<compile_context>
chip_gen: v5e
topology: v5e:2x2
jax: 0.10.0
libtpu: 0.0.40
codegen_flags: <defaults>
</compile_context>

<pallas_src>
import math
import functools

import jax
import jax.numpy as jnp
from jax.experimental import pallas as pl
from jax.experimental.pallas import tpu as pltpu  # noqa: F401  (kept for TPU-specific tuning hooks)


# ----------------------------- in-kernel helpers -----------------------------

def _layernorm(x, g, b, eps=1e-5):
    mu = jnp.mean(x, axis=-1, keepdims=True)
    xc = x - mu
    var = jnp.mean(xc * xc, axis=-1, keepdims=True)
    return xc * jax.lax.rsqrt(var + eps) * g + b


def _causal_bias(lq, lk):
    row = jax.lax.broadcasted_iota(jnp.int32, (lq, lk), 0)
    col = jax.lax.broadcasted_iota(jnp.int32, (lq, lk), 1)
    return jnp.where(col > row, -1e30, 0.0).astype(jnp.float32)


def _softmax(s):
    m = jnp.max(s, axis=-1, keepdims=True)
    p = jnp.exp(s - m)
    return p / jnp.sum(p, axis=-1, keepdims=True)


def _mha(q_all, k_all, v_all, w_o_f32, b_o, *, B, H, causal):
    """Multi-head attention on already-projected activations (everything stays in
    vregs/VMEM).  q_all: (B*Lq, E) f32; k_all/v_all: (B*Lk, E) f32; w_o_f32: (E, E).
    Heads are an unrolled in-kernel loop; the per-head output projection is
    accumulated so the (M, E) result is produced without materializing per-head
    tensors to HBM."""
    Mq, E = q_all.shape
    Mk = k_all.shape[0]
    Lq, Lk = Mq // B, Mk // B
    Dh = E // H
    scale = 1.0 / math.sqrt(Dh)
    bias = _causal_bias(Lq, Lk)[None] if causal else None

    acc = jnp.zeros((Mq, E), jnp.float32)
    for h in range(H):
        q3 = q_all[:, h * Dh:(h + 1) * Dh].reshape(B, Lq, Dh)
        k3 = k_all[:, h * Dh:(h + 1) * Dh].reshape(B, Lk, Dh)
        v3 = v_all[:, h * Dh:(h + 1) * Dh].reshape(B, Lk, Dh)
        s = jnp.einsum("bqd,bkd->bqk",
                       q3.astype(jnp.bfloat16), k3.astype(jnp.bfloat16),
                       preferred_element_type=jnp.float32) * scale
        if causal:
            s = s + bias
        p = _softmax(s)
        o3 = jnp.einsum("bqk,bkd->bqd",
                        p.astype(jnp.bfloat16), v3.astype(jnp.bfloat16),
                        preferred_element_type=jnp.float32)
        oh = o3.reshape(Mq, Dh)
        wo_h = w_o_f32[h * Dh:(h + 1) * Dh, :].astype(jnp.bfloat16)
        acc = acc + jnp.dot(oh.astype(jnp.bfloat16), wo_h,
                            preferred_element_type=jnp.float32)
    return acc + b_o


# ----------------------------- fused layer kernels -----------------------------

def _encoder_layer_kernel(x_ref, wqkv_ref, bqkv_ref, wo_ref, bo_ref,
                          ln1g_ref, ln1b_ref,
                          w1_ref, b1_ref, w2_ref, b2_ref,
                          ln2g_ref, ln2b_ref,
                          o_ref, *, B, H):
    x = x_ref[...]                                     # (B*L, E) f32
    E = x.shape[1]
    # fused QKV projection (one MXU push, N = 3E)
    qkv = jnp.dot(x.astype(jnp.bfloat16), wqkv_ref[...],
                  preferred_element_type=jnp.float32) + bqkv_ref[...]
    # causal self-attention (the PyTorch module passes a causal src_mask)
    a = _mha(qkv[:, :E], qkv[:, E:2 * E], qkv[:, 2 * E:],
             wo_ref[...], bo_ref[...], B=B, H=H, causal=True)
    x1 = _layernorm(x + a, ln1g_ref[...], ln1b_ref[...])
    # FFN (ReLU) fused with residual + LayerNorm
    hid = jnp.maximum(
        jnp.dot(x1.astype(jnp.bfloat16), w1_ref[...],
                preferred_element_type=jnp.float32) + b1_ref[...], 0.0)
    f = jnp.dot(hid.astype(jnp.bfloat16), w2_ref[...],
                preferred_element_type=jnp.float32) + b2_ref[...]
    o_ref[...] = _layernorm(x1 + f, ln2g_ref[...], ln2b_ref[...])


def _decoder_layer_kernel(x_ref, mem_ref,
                          wqkv_ref, bqkv_ref, wo_ref, bo_ref, ln1g_ref, ln1b_ref,
                          cwq_ref, cbq_ref, cwkv_ref, cbkv_ref, cwo_ref, cbo_ref,
                          ln2g_ref, ln2b_ref,
                          w1_ref, b1_ref, w2_ref, b2_ref, ln3g_ref, ln3b_ref,
                          o_ref, *, B, H):
    x = x_ref[...]                                     # (B*Lt, E) f32
    mem = mem_ref[...]                                 # (B*Ls, E) f32
    E = x.shape[1]

    # causal self-attention, fused QKV projection
    qkv = jnp.dot(x.astype(jnp.bfloat16), wqkv_ref[...],
                  preferred_element_type=jnp.float32) + bqkv_ref[...]
    a = _mha(qkv[:, :E], qkv[:, E:2 * E], qkv[:, 2 * E:],
             wo_ref[...], bo_ref[...], B=B, H=H, causal=True)
    x1 = _layernorm(x + a, ln1g_ref[...], ln1b_ref[...])

    # cross-attention over encoder memory (memory_mask=None -> unmasked), fused KV
    q_all = jnp.dot(x1.astype(jnp.bfloat16), cwq_ref[...],
                    preferred_element_type=jnp.float32) + cbq_ref[...]
    kv = jnp.dot(mem.astype(jnp.bfloat16), cwkv_ref[...],
                 preferred_element_type=jnp.float32) + cbkv_ref[...]
    c = _mha(q_all, kv[:, :E], kv[:, E:],
             cwo_ref[...], cbo_ref[...], B=B, H=H, causal=False)
    x2 = _layernorm(x1 + c, ln2g_ref[...], ln2b_ref[...])

    # FFN (ReLU) fused with residual + LayerNorm
    hid = jnp.maximum(
        jnp.dot(x2.astype(jnp.bfloat16), w1_ref[...],
                preferred_element_type=jnp.float32) + b1_ref[...], 0.0)
    f = jnp.dot(hid.astype(jnp.bfloat16), w2_ref[...],
                preferred_element_type=jnp.float32) + b2_ref[...]
    o_ref[...] = _layernorm(x2 + f, ln3g_ref[...], ln3b_ref[...])


def _layernorm_kernel(x_ref, g_ref, b_ref, o_ref):
    o_ref[...] = _layernorm(x_ref[...], g_ref[...], b_ref[...])


def _final_norm_logits_kernel(x_ref, g_ref, b_ref, w_ref, bias_ref, o_ref):
    xn = _layernorm(x_ref[...], g_ref[...], b_ref[...])
    o_ref[...] = jnp.dot(xn.astype(jnp.bfloat16), w_ref[...],
                         preferred_element_type=jnp.float32) + bias_ref[...]


# ----------------------------- pallas_call wrappers -----------------------------
# Whole arrays fit comfortably in VMEM at these shapes, so every call uses grid=()
# with full-array blocks (no per-call tiling/pipeline overhead).

def encoder_layer(x2d, p, *, B, H):
    M, E = x2d.shape
    return pl.pallas_call(
        functools.partial(_encoder_layer_kernel, B=B, H=H),
        out_shape=jax.ShapeDtypeStruct((M, E), jnp.float32),
    )(x2d, p["wqkv"], p["bqkv"], p["wo"], p["bo"],
      p["ln1_g"], p["ln1_b"],
      p["ff_w1"], p["ff_b1"], p["ff_w2"], p["ff_b2"],
      p["ln2_g"], p["ln2_b"])


def decoder_layer(x2d, mem2d, p, *, B, H):
    M, E = x2d.shape
    return pl.pallas_call(
        functools.partial(_decoder_layer_kernel, B=B, H=H),
        out_shape=jax.ShapeDtypeStruct((M, E), jnp.float32),
    )(x2d, mem2d,
      p["wqkv"], p["bqkv"], p["wo"], p["bo"], p["ln1_g"], p["ln1_b"],
      p["cwq"], p["cbq"], p["cwkv"], p["cbkv"], p["cwo"], p["cbo"],
      p["ln2_g"], p["ln2_b"],
      p["ff_w1"], p["ff_b1"], p["ff_w2"], p["ff_b2"], p["ln3_g"], p["ln3_b"])


def final_layernorm(x2d, g, b):
    M, E = x2d.shape
    return pl.pallas_call(
        _layernorm_kernel,
        out_shape=jax.ShapeDtypeStruct((M, E), jnp.float32),
    )(x2d, g, b)


def final_norm_logits(x2d, g, b, w_bf16, bias):
    M, _ = x2d.shape
    V = w_bf16.shape[1]
    return pl.pallas_call(
        _final_norm_logits_kernel,
        out_shape=jax.ShapeDtypeStruct((M, V), jnp.float32),
    )(x2d, g, b, w_bf16, bias)


# ----------------------------------- forward -----------------------------------

def forward(params, src_ids, tgt_ids, num_heads):
    B, Ls = src_ids.shape
    _, Lt = tgt_ids.shape
    E = params["embed"].shape[1]

    # TODO(synk): nn.Dropout is stochastic; eval-mode identity is used here.
    src = (params["embed"][src_ids] + params["pos"][:, :Ls, :]).reshape(B * Ls, E)
    tgt = (params["embed"][tgt_ids] + params["pos"][:, :Lt, :]).reshape(B * Lt, E)

    mem = src
    for lp in params["enc_layers"]:
        mem = encoder_layer(mem, lp, B=B, H=num_heads)
    mem = final_layernorm(mem, params["enc_norm_g"], params["enc_norm_b"])

    out = tgt
    for lp in params["dec_layers"]:
        out = decoder_layer(out, mem, lp, B=B, H=num_heads)

    logits = final_norm_logits(out, params["dec_norm_g"], params["dec_norm_b"],
                               params["fc_w"], params["fc_b"])
    return logits.reshape(B, Lt, -1), None


# ----------------------------- parameter init -----------------------------

def init_params(key, vocab_size, embed_size, num_heads, num_layers, ff_dim, max_len=32):
    keys = iter(jax.random.split(key, 512))
    E, F = embed_size, ff_dim

    def dense(shape, scale=0.02):
        return jax.random.normal(next(keys), shape, jnp.float32) * scale

    def bf(w):              # matrix weights fed whole to the MXU -> bf16 (halves DMA)
        return w.astype(jnp.bfloat16)

    def zeros_row(n):
        return jnp.zeros((1, n), jnp.float32)

    def ones_row(n):
        return jnp.ones((1, n), jnp.float32)

    def enc_layer_params():
        return dict(
            wqkv=bf(dense((E, 3 * E))), bqkv=zeros_row(3 * E),
            wo=dense((E, E)), bo=zeros_row(E),            # wo kept f32 (sliced per head)
            ln1_g=ones_row(E), ln1_b=zeros_row(E),
            ff_w1=bf(dense((E, F))), ff_b1=zeros_row(F),
            ff_w2=bf(dense((F, E))), ff_b2=zeros_row(E),
            ln2_g=ones_row(E), ln2_b=zeros_row(E),
        )

    def dec_layer_params():
        return dict(
            wqkv=bf(dense((E, 3 * E))), bqkv=zeros_row(3 * E),
            wo=dense((E, E)), bo=zeros_row(E),
            ln1_g=ones_row(E), ln1_b=zeros_row(E),
            cwq=bf(dense((E, E))), cbq=zeros_row(E),
            cwkv=bf(dense((E, 2 * E))), cbkv=zeros_row(2 * E),
            cwo=dense((E, E)), cbo=zeros_row(E),
            ln2_g=ones_row(E), ln2_b=zeros_row(E),
            ff_w1=bf(dense((E, F))), ff_b1=zeros_row(F),
            ff_w2=bf(dense((F, E))), ff_b2=zeros_row(E),
            ln3_g=ones_row(E), ln3_b=zeros_row(E),
        )

    embed = dense((vocab_size, E), scale=0.1)
    embed = embed.at[0].set(0.0)                           # padding_idx=0

    return dict(
        embed=embed,
        pos=jax.random.uniform(next(keys), (1, max_len, E), jnp.float32),  # torch.rand
        enc_layers=[enc_layer_params() for _ in range(num_layers)],
        dec_layers=[dec_layer_params() for _ in range(num_layers)],
        enc_norm_g=ones_row(E), enc_norm_b=zeros_row(E),
        dec_norm_g=ones_row(E), dec_norm_b=zeros_row(E),
        fc_w=bf(dense((E, vocab_size))), fc_b=zeros_row(vocab_size),
    )


# ----------------------------------- main -----------------------------------

if __name__ == "__main__":
    VOCAB, EMBED, HEADS, LAYERS, FF = 64, 32, 4, 2, 64
    B, L_SRC, L_TGT = 2, 8, 8

    key = jax.random.PRNGKey(0)
    pkey, skey, tkey = jax.random.split(key, 3)

    params = init_params(pkey, VOCAB, EMBED, HEADS, LAYERS, FF, max_len=32)
    src = jax.random.randint(skey, (B, L_SRC), 1, VOCAB, dtype=jnp.int32)
    tgt = jax.random.randint(tkey, (B, L_TGT), 1, VOCAB, dtype=jnp.int32)

    fwd = jax.jit(functools.partial(forward, num_heads=HEADS))
    logits, aux = fwd(params, src, tgt)
    jax.block_until_ready(logits)

    assert logits.shape == (B, L_TGT, VOCAB), logits.shape
    assert aux is None
    assert bool(jnp.all(jnp.isfinite(logits)))
    print("KERNEL_OK")
</pallas_src>

<mosaic_0001>
module attributes {stable_mosaic.version = 11 : i64} {
  func.func @_layernorm_kernel(%arg0: memref<16x32xf32, #tpu.memory_space<vmem>>, %arg1: memref<1x32xf32, #tpu.memory_space<vmem>>, %arg2: memref<1x32xf32, #tpu.memory_space<vmem>>, %arg3: memref<16x32xf32, #tpu.memory_space<vmem>>) attributes {dimension_semantics = [], scalar_prefetch = 0 : i64, scratch_operands = 0 : i64, tpu.core_type = #tpu.core_type<tc>} {
    %c0 = arith.constant 0 : index
    %c0_0 = arith.constant 0 : index
    %0 = vector.load %arg0[%c0, %c0_0] : memref<16x32xf32, #tpu.memory_space<vmem>>, vector<16x32xf32>
    %c0_1 = arith.constant 0 : index
    %c0_2 = arith.constant 0 : index
    %1 = vector.load %arg1[%c0_1, %c0_2] : memref<1x32xf32, #tpu.memory_space<vmem>>, vector<1x32xf32>
    %c0_3 = arith.constant 0 : index
    %c0_4 = arith.constant 0 : index
    %2 = vector.load %arg2[%c0_3, %c0_4] : memref<1x32xf32, #tpu.memory_space<vmem>>, vector<1x32xf32>
    %cst = arith.constant dense<0.000000e+00> : vector<16xf32>
    %3 = vector.multi_reduction <add>, %0, %cst [1] : vector<16x32xf32> to vector<16xf32>
    %4 = vector.shape_cast %3 : vector<16xf32> to vector<16x1xf32>
    %cst_5 = arith.constant 3.200000e+01 : f32
    %5 = vector.broadcast %cst_5 : f32 to vector<16x1xf32>
    %6 = arith.divf %4, %5 : vector<16x1xf32>
    %7 = vector.broadcast %6 : vector<16x1xf32> to vector<16x32xf32>
    %8 = arith.subf %0, %7 : vector<16x32xf32>
    %9 = arith.mulf %8, %8 : vector<16x32xf32>
    %cst_6 = arith.constant dense<0.000000e+00> : vector<16xf32>
    %10 = vector.multi_reduction <add>, %9, %cst_6 [1] : vector<16x32xf32> to vector<16xf32>
    %11 = vector.shape_cast %10 : vector<16xf32> to vector<16x1xf32>
    %cst_7 = arith.constant 3.200000e+01 : f32
    %12 = vector.broadcast %cst_7 : f32 to vector<16x1xf32>
    %13 = arith.divf %11, %12 : vector<16x1xf32>
    %cst_8 = arith.constant 9.99999974E-6 : f32
    %14 = vector.broadcast %cst_8 : f32 to vector<16x1xf32>
    %15 = arith.addf %13, %14 : vector<16x1xf32>
    %16 = math.rsqrt %15 : vector<16x1xf32>
    %17 = vector.broadcast %16 : vector<16x1xf32> to vector<16x32xf32>
    %18 = arith.mulf %8, %17 : vector<16x32xf32>
    %19 = vector.broadcast %1 : vector<1x32xf32> to vector<16x32xf32>
    %20 = arith.mulf %18, %19 : vector<16x32xf32>
    %21 = vector.broadcast %2 : vector<1x32xf32> to vector<16x32xf32>
    %22 = arith.addf %20, %21 : vector<16x32xf32>
    %c0_9 = arith.constant 0 : index
    %c0_10 = arith.constant 0 : index
    %23 = vector.load %arg3[%c0_9, %c0_10] : memref<16x32xf32, #tpu.memory_space<vmem>>, vector<16x32xf32>
    tpu.vector_store %arg3[%c0_9, %c0_10], %22 {strides = array<i32>} : memref<16x32xf32, #tpu.memory_space<vmem>>, vector<16x32xf32>,
    return
  }
}

module attributes {stable_mosaic.version = 11 : i64} {
  func.func @_decoder_layer_kernel(%arg0: memref<16x32xf32, #tpu.memory_space<vmem>>, %arg1: memref<16x32xf32, #tpu.memory_space<vmem>>, %arg2: memref<32x96xbf16, #tpu.memory_space<vmem>>, %arg3: memref<1x96xf32, #tpu.memory_space<vmem>>, %arg4: memref<32x32xf32, #tpu.memory_space<vmem>>, %arg5: memref<1x32xf32, #tpu.memory_space<vmem>>, %arg6: memref<1x32xf32, #tpu.memory_space<vmem>>, %arg7: memref<1x32xf32, #tpu.memory_space<vmem>>, %arg8: memref<32x32xbf16, #tpu.memory_space<vmem>>, %arg9: memref<1x32xf32, #tpu.memory_space<vmem>>, %arg10: memref<32x64xbf16, #tpu.memory_space<vmem>>, %arg11: memref<1x64xf32, #tpu.memory_space<vmem>>, %arg12: memref<32x32xf32, #tpu.memory_space<vmem>>, %arg13: memref<1x32xf32, #tpu.memory_space<vmem>>, %arg14: memref<1x32xf32, #tpu.memory_space<vmem>>, %arg15: memref<1x32xf32, #tpu.memory_space<vmem>>, %arg16: memref<32x64xbf16, #tpu.memory_space<vmem>>, %arg17: memref<1x64xf32, #tpu.memory_space<vmem>>, %arg18: memref<64x32xbf16, #tpu.memory_space<vmem>>, %arg19: memref<1x32xf32, #tpu.memory_space<vmem>>, %arg20: memref<1x32xf32, #tpu.memory_space<vmem>>, %arg21: memref<1x32xf32, #tpu.memory_space<vmem>>, %arg22: memref<16x32xf32, #tpu.memory_space<vmem>>) attributes {dimension_semantics = [], scalar_prefetch = 0 : i64, scratch_operands = 0 : i64, tpu.core_type = #tpu.core_type<tc>} {
    %c0 = arith.constant 0 : index
    %c0_0 = arith.constant 0 : index
    %0 = vector.load %arg0[%c0, %c0_0] : memref<16x32xf32, #tpu.memory_space<vmem>>, vector<16x32xf32>
    %c0_1 = arith.constant 0 : index
    %c0_2 = arith.constant 0 : index
    %1 = vector.load %arg1[%c0_1, %c0_2] : memref<16x32xf32, #tpu.memory_space<vmem>>, vector<16x32xf32>
    %2 = arith.truncf %0 : vector<16x32xf32> to vector<16x32xbf16>
    %c0_3 = arith.constant 0 : index
    %c0_4 = arith.constant 0 : index
    %3 = vector.load %arg2[%c0_3, %c0_4] : memref<32x96xbf16, #tpu.memory_space<vmem>>, vector<32x96xbf16>
    %cst = arith.constant dense<0.000000e+00> : vector<16x96xf32>
    %4 = tpu.matmul %2, %3, %cst {dimension_numbers = #tpu.dot_dimension_numbers<[1], [0], [0], [1], [0, 0, 1, 1], [], []>} : vector<16x32xbf16>, vector<32x96xbf16>, vector<16x96xf32> -> vector<16x96xf32>
    %c0_5 = arith.constant 0 : index
    %c0_6 = arith.constant 0 : index
    %5 = vector.load %arg3[%c0_5, %c0_6] : memref<1x96xf32, #tpu.memory_space<vmem>>, vector<1x96xf32>
    %6 = vector.broadcast %5 : vector<1x96xf32> to vector<16x96xf32>
    %7 = arith.addf %4, %6 : vector<16x96xf32>
    %8 = vector.extract_strided_slice %7 {offsets = [0, 0], sizes = [16, 32], strides = [1, 1]} : vector<16x96xf32> to vector<16x32xf32>
    %9 = vector.extract_strided_slice %7 {offsets = [0, 32], sizes = [16, 32], strides = [1, 1]} : vector<16x96xf32> to vector<16x32xf32>
    %10 = vector.extract_strided_slice %7 {offsets = [0, 64], sizes = [16, 32], strides = [1, 1]} : vector<16x96xf32> to vector<16x32xf32>
    %c0_7 = arith.constant 0 : index
    %c0_8 = arith.constant 0 : index
    %11 = vector.load %arg4[%c0_7, %c0_8] : memref<32x32xf32, #tpu.memory_space<vmem>>, vector<32x32xf32>
    %c0_9 = arith.constant 0 : index
    %c0_10 = arith.constant 0 : index
    %12 = vector.load %arg5[%c0_9, %c0_10] : memref<1x32xf32, #tpu.memory_space<vmem>>, vector<1x32xf32>
    %13 = tpu.iota {dimensions = array<i32: 0>} : vector<8x8xi32>
    %14 = tpu.iota {dimensions = array<i32: 1>} : vector<8x8xi32>
    %15 = arith.cmpi sgt, %14, %13 : vector<8x8xi32>
    %cst_11 = arith.constant -1.000000e+30 : f32
    %cst_12 = arith.constant 0.000000e+00 : f32
    %16 = vector.broadcast %cst_11 : f32 to vector<8x8xf32>
    %17 = vector.broadcast %cst_12 : f32 to vector<8x8xf32>
    %18 = arith.select %15, %16, %17 : vector<8x8xi1>, vector<8x8xf32>
    %19 = vector.shape_cast %18 : vector<8x8xf32> to vector<1x8x8xf32>
    %cst_13 = arith.constant 0.000000e+00 : f32
    %20 = vector.broadcast %cst_13 : f32 to vector<16x32xf32>
    %21 = vector.extract_strided_slice %8 {offsets = [0, 0], sizes = [16, 8], strides = [1, 1]} : vector<16x32xf32> to vector<16x8xf32>
    %22 = vector.shape_cast %21 : vector<16x8xf32> to vector<2x8x8xf32>
    %23 = vector.extract_strided_slice %9 {offsets = [0, 0], sizes = [16, 8], strides = [1, 1]} : vector<16x32xf32> to vector<16x8xf32>
    %24 = vector.shape_cast %23 : vector<16x8xf32> to vector<2x8x8xf32>
    %25 = vector.extract_strided_slice %10 {offsets = [0, 0], sizes = [16, 8], strides = [1, 1]} : vector<16x32xf32> to vector<16x8xf32>
    %26 = vector.shape_cast %25 : vector<16x8xf32> to vector<2x8x8xf32>
    %27 = arith.truncf %22 : vector<2x8x8xf32> to vector<2x8x8xbf16>
    %28 = arith.truncf %24 : vector<2x8x8xf32> to vector<2x8x8xbf16>
    "tpu.trace_start"() <{level = 10 : i32, message = "bqd,bkd->bqk"}> : () -> ()
    %cst_14 = arith.constant dense<0.000000e+00> : vector<2x8x8xf32>
    %29 = tpu.matmul %27, %28, %cst_14 {dimension_numbers = #tpu.dot_dimension_numbers<[2], [2], [1], [1], [0, 0, 0, 1, 1, 1], [0], [0]>} : vector<2x8x8xbf16>, vector<2x8x8xbf16>, vector<2x8x8xf32> -> vector<2x8x8xf32>
    "tpu.trace_stop"() : () -> ()
    %cst_15 = arith.constant 0.353553385 : f32
    %30 = vector.broadcast %cst_15 : f32 to vector<2x8x8xf32>
    %31 = arith.mulf %29, %30 : vector<2x8x8xf32>
    %32 = vector.broadcast %19 : vector<1x8x8xf32> to vector<2x8x8xf32>
    %33 = arith.addf %31, %32 : vector<2x8x8xf32>
    %cst_16 = arith.constant dense<0xFF800000> : vector<2x8xf32>
    %34 = vector.multi_reduction <maximumf>, %33, %cst_16 [2] : vector<2x8x8xf32> to vector<2x8xf32>
    %35 = vector.shape_cast %34 : vector<2x8xf32> to vector<2x8x1xf32>
    %36 = vector.broadcast %35 : vector<2x8x1xf32> to vector<2x8x8xf32>
    %37 = arith.subf %33, %36 : vector<2x8x8xf32>
    %38 = math.exp %37 : vector<2x8x8xf32>
    %cst_17 = arith.constant dense<0.000000e+00> : vector<2x8xf32>
    %39 = vector.multi_reduction <add>, %38, %cst_17 [2] : vector<2x8x8xf32> to vector<2x8xf32>
    %40 = vector.shape_cast %39 : vector<2x8xf32> to vector<2x8x1xf32>
    %41 = vector.broadcast %40 : vector<2x8x1xf32> to vector<2x8x8xf32>
    %42 = arith.divf %38, %41 : vector<2x8x8xf32>
    %43 = arith.truncf %42 : vector<2x8x8xf32> to vector<2x8x8xbf16>
    %44 = arith.truncf %26 : vector<2x8x8xf32> to vector<2x8x8xbf16>
    "tpu.trace_start"() <{level = 10 : i32, message = "bqk,bkd->bqd"}> : () -> ()
    %cst_18 = arith.constant dense<0.000000e+00> : vector<2x8x8xf32>
    %45 = tpu.matmul %43, %44, %cst_18 {dimension_numbers = #tpu.dot_dimension_numbers<[2], [1], [1], [2], [0, 0, 0, 1, 1, 2], [0], [0]>} : vector<2x8x8xbf16>, vector<2x8x8xbf16>, vector<2x8x8xf32> -> vector<2x8x8xf32>
    "tpu.trace_stop"() : () -> ()
    %46 = vector.shape_cast %45 : vector<2x8x8xf32> to vector<16x8xf32>
    %47 = vector.extract_strided_slice %11 {offsets = [0, 0], sizes = [8, 32], strides = [1, 1]} : vector<32x32xf32> to vector<8x32xf32>
    %48 = arith.truncf %47 : vector<8x32xf32> to vector<8x32xbf16>
    %49 = arith.truncf %46 : vector<16x8xf32> to vector<16x8xbf16>
    %cst_19 = arith.constant dense<0.000000e+00> : vector<16x32xf32>
    %50 = tpu.matmul %49, %48, %cst_19 {dimension_numbers = #tpu.dot_dimension_numbers<[1], [0], [0], [1], [0, 0, 1, 1], [], []>} : vector<16x8xbf16>, vector<8x32xbf16>, vector<16x32xf32> -> vector<16x32xf32>
    %51 = arith.addf %20, %50 : vector<16x32xf32>
    %52 = vector.extract_strided_slice %8 {offsets = [0, 8], sizes = [16, 8], strides = [1, 1]} : vector<16x32xf32> to vector<16x8xf32>
    %53 = vector.shape_cast %52 : vector<16x8xf32> to vector<2x8x8xf32>
    %54 = vector.extract_strided_slice %9 {offsets = [0, 8], sizes = [16, 8], strides = [1, 1]} : vector<16x32xf32> to vector<16x8xf32>
    %55 = vector.shape_cast %54 : vector<16x8xf32> to vector<2x8x8xf32>
    %56 = vector.extract_strided_slice %10 {offsets = [0, 8], sizes = [16, 8], strides = [1, 1]} : vector<16x32xf32> to vector<16x8xf32>
    %57 = vector.shape_cast %56 : vector<16x8xf32> to vector<2x8x8xf32>
    %58 = arith.truncf %53 : vector<2x8x8xf32> to vector<2x8x8xbf16>
    %59 = arith.truncf %55 : vector<2x8x8xf32> to vector<2x8x8xbf16>
    "tpu.trace_start"() <{level = 10 : i32, message = "bqd,bkd->bqk"}> : () -> ()
    %cst_20 = arith.constant dense<0.000000e+00> : vector<2x8x8xf32>
    %60 = tpu.matmul %58, %59, %cst_20 {dimension_numbers = #tpu.dot_dimension_numbers<[2], [2], [1], [1], [0, 0, 0, 1, 1, 1], [0], [0]>} : vector<2x8x8xbf16>, vector<2x8x8xbf16>, vector<2x8x8xf32> -> vector<2x8x8xf32>
    "tpu.trace_stop"() : () -> ()
    %cst_21 = arith.constant 0.353553385 : f32
    %61 = vector.broadcast %cst_21 : f32 to vector<2x8x8xf32>
    %62 = arith.mulf %60, %61 : vector<2x8x8xf32>
    %63 = vector.broadcast %19 : vector<1x8x8xf32> to vector<2x8x8xf32>
    %64 = arith.addf %62, %63 : vector<2x8x8xf32>
    %cst_22 = arith.constant dense<0xFF800000> : vector<2x8xf32>
    %65 = vector.multi_reduction <maximumf>, %64, %cst_22 [2] : vector<2x8x8xf32> to vector<2x8xf32>
    %66 = vector.shape_cast %65 : vector<2x8xf32> to vector<2x8x1xf32>
    %67 = vector.broadcast %66 : vector<2x8x1xf32> to vector<2x8x8xf32>
    %68 = arith.subf %64, %67 : vector<2x8x8xf32>
    %69 = math.exp %68 : vector<2x8x8xf32>
    %cst_23 = arith.constant dense<0.000000e+00> : vector<2x8xf32>
    %70 = vector.multi_reduction <add>, %69, %cst_23 [2] : vector<2x8x8xf32> to vector<2x8xf32>
    %71 = vector.shape_cast %70 : vector<2x8xf32> to vector<2x8x1xf32>
    %72 = vector.broadcast %71 : vector<2x8x1xf32> to vector<2x8x8xf32>
    %73 = arith.divf %69, %72 : vector<2x8x8xf32>
    %74 = arith.truncf %73 : vector<2x8x8xf32> to vector<2x8x8xbf16>
    %75 = arith.truncf %57 : vector<2x8x8xf32> to vector<2x8x8xbf16>
    "tpu.trace_start"() <{level = 10 : i32, message = "bqk,bkd->bqd"}> : () -> ()
    %cst_24 = arith.constant dense<0.000000e+00> : vector<2x8x8xf32>
    %76 = tpu.matmul %74, %75, %cst_24 {dimension_numbers = #tpu.dot_dimension_numbers<[2], [1], [1], [2], [0, 0, 0, 1, 1, 2], [0], [0]>} : vector<2x8x8xbf16>, vector<2x8x8xbf16>, vector<2x8x8xf32> -> vector<2x8x8xf32>
    "tpu.trace_stop"() : () -> ()
    %77 = vector.shape_cast %76 : vector<2x8x8xf32> to vector<16x8xf32>
    %78 = vector.extract_strided_slice %11 {offsets = [8, 0], sizes = [8, 32], strides = [1, 1]} : vector<32x32xf32> to vector<8x32xf32>
    %79 = arith.truncf %78 : vector<8x32xf32> to vector<8x32xbf16>
    %80 = arith.truncf %77 : vector<16x8xf32> to vector<16x8xbf16>
    %cst_25 = arith.constant dense<0.000000e+00> : vector<16x32xf32>
    %81 = tpu.matmul %80, %79, %cst_25 {dimension_numbers = #tpu.dot_dimension_numbers<[1], [0], [0], [1], [0, 0, 1, 1], [], []>} : vector<16x8xbf16>, vector<8x32xbf16>, vector<16x32xf32> -> vector<16x32xf32>
    %82 = arith.addf %51, %81 : vector<16x32xf32>
    %83 = vector.extract_strided_slice %8 {offsets = [0, 16], sizes = [16, 8], strides = [1, 1]} : vector<16x32xf32> to vector<16x8xf32>
    %84 = vector.shape_cast %83 : vector<16x8xf32> to vector<2x8x8xf32>
    %85 = vector.extract_strided_slice %9 {offsets = [0, 16], sizes = [16, 8], strides = [1, 1]} : vector<16x32xf32> to vector<16x8xf32>
    %86 = vector.shape_cast %85 : vector<16x8xf32> to vector<2x8x8xf32>
    %87 = vector.extract_strided_slice %10 {offsets = [0, 16], sizes = [16, 8], strides = [1, 1]} : vector<16x32xf32> to vector<16x8xf32>
    %88 = vector.shape_cast %87 : vector<16x8xf32> to vector<2x8x8xf32>
    %89 = arith.truncf %84 : vector<2x8x8xf32> to vector<2x8x8xbf16>
    %90 = arith.truncf %86 : vector<2x8x8xf32> to vector<2x8x8xbf16>
    "tpu.trace_start"() <{level = 10 : i32, message = "bqd,bkd->bqk"}> : () -> ()
    %cst_26 = arith.constant dense<0.000000e+00> : vector<2x8x8xf32>
    %91 = tpu.matmul %89, %90, %cst_26 {dimension_numbers = #tpu.dot_dimension_numbers<[2], [2], [1], [1], [0, 0, 0, 1, 1, 1], [0], [0]>} : vector<2x8x8xbf16>, vector<2x8x8xbf16>, vector<2x8x8xf32> -> vector<2x8x8xf32>
    "tpu.trace_stop"() : () -> ()
    %cst_27 = arith.constant 0.353553385 : f32
    %92 = vector.broadcast %cst_27 : f32 to vector<2x8x8xf32>
    %93 = arith.mulf %91, %92 : vector<2x8x8xf32>
    %94 = vector.broadcast %19 : vector<1x8x8xf32> to vector<2x8x8xf32>
    %95 = arith.addf %93, %94 : vector<2x8x8xf32>
    %cst_28 = arith.constant dense<0xFF800000> : vector<2x8xf32>
    %96 = vector.multi_reduction <maximumf>, %95, %cst_28 [2] : vector<2x8x8xf32> to vector<2x8xf32>
    %97 = vector.shape_cast %96 : vector<2x8xf32> to vector<2x8x1xf32>
    %98 = vector.broadcast %97 : vector<2x8x1xf32> to vector<2x8x8xf32>
    %99 = arith.subf %95, %98 : vector<2x8x8xf32>
    %100 = math.exp %99 : vector<2x8x8xf32>
    %cst_29 = arith.constant dense<0.000000e+00> : vector<2x8xf32>
    %101 = vector.multi_reduction <add>, %100, %cst_29 [2] : vector<2x8x8xf32> to vector<2x8xf32>
    %102 = vector.shape_cast %101 : vector<2x8xf32> to vector<2x8x1xf32>
    %103 = vector.broadcast %102 : vector<2x8x1xf32> to vector<2x8x8xf32>
    %104 = arith.divf %100, %103 : vector<2x8x8xf32>
    %105 = arith.truncf %104 : vector<2x8x8xf32> to vector<2x8x8xbf16>
    %106 = arith.truncf %88 : vector<2x8x8xf32> to vector<2x8x8xbf16>
    "tpu.trace_start"() <{level = 10 : i32, message = "bqk,bkd->bqd"}> : () -> ()
    %cst_30 = arith.constant dense<0.000000e+00> : vector<2x8x8xf32>
    %107 = tpu.matmul %105, %106, %cst_30 {dimension_numbers = #tpu.dot_dimension_numbers<[2], [1], [1], [2], [0, 0, 0, 1, 1, 2], [0], [0]>} : vector<2x8x8xbf16>, vector<2x8x8xbf16>, vector<2x8x8xf32> -> vector<2x8x8xf32>
    "tpu.trace_stop"() : () -> ()
    %108 = vector.shape_cast %107 : vector<2x8x8xf32> to vector<16x8xf32>
    %109 = vector.extract_strided_slice %11 {offsets = [16, 0], sizes = [8, 32], strides = [1, 1]} : vector<32x32xf32> to vector<8x32xf32>
    %110 = arith.truncf %109 : vector<8x32xf32> to vector<8x32xbf16>
    %111 = arith.truncf %108 : vector<16x8xf32> to vector<16x8xbf16>
    %cst_31 = arith.constant dense<0.000000e+00> : vector<16x32xf32>
    %112 = tpu.matmul %111, %110, %cst_31 {dimension_numbers = #tpu.dot_dimension_numbers<[1], [0], [0], [1], [0, 0, 1, 1], [], []>} : vector<16x8xbf16>, vector<8x32xbf16>, vector<16x32xf32> -> vector<16x32xf32>
    %113 = arith.addf %82, %112 : vector<16x32xf32>
    %114 = vector.extract_strided_slice %8 {offsets = [0, 24], sizes = [16, 8], strides = [1, 1]} : vector<16x32xf32> to vector<16x8xf32>
    %115 = vector.shape_cast %114 : vector<16x8xf32> to vector<2x8x8xf32>
    %116 = vector.extract_strided_slice %9 {offsets = [0, 24], sizes = [16, 8], strides = [1, 1]} : vector<16x32xf32> to vector<16x8xf32>
    %117 = vector.shape_cast %116 : vector<16x8xf32> to vector<2x8x8xf32>
    %118 = vector.extract_strided_slice %10 {offsets = [0, 24], sizes = [16, 8], strides = [1, 1]} : vector<16x32xf32> to vector<16x8xf32>
    %119 = vector.shape_cast %118 : vector<16x8xf32> to vector<2x8x8xf32>
    %120 = arith.truncf %115 : vector<2x8x8xf32> to vector<2x8x8xbf16>
    %121 = arith.truncf %117 : vector<2x8x8xf32> to vector<2x8x8xbf16>
    "tpu.trace_start"() <{level = 10 : i32, message = "bqd,bkd->bqk"}> : () -> ()
    %cst_32 = arith.constant dense<0.000000e+00> : vector<2x8x8xf32>
    %122 = tpu.matmul %120, %121, %cst_32 {dimension_numbers = #tpu.dot_dimension_numbers<[2], [2], [1], [1], [0, 0, 0, 1, 1, 1], [0], [0]>} : vector<2x8x8xbf16>, vector<2x8x8xbf16>, vector<2x8x8xf32> -> vector<2x8x8xf32>
    "tpu.trace_stop"() : () -> ()
    %cst_33 = arith.constant 0.353553385 : f32
    %123 = vector.broadcast %cst_33 : f32 to vector<2x8x8xf32>
    %124 = arith.mulf %122, %123 : vector<2x8x8xf32>
    %125 = vector.broadcast %19 : vector<1x8x8xf32> to vector<2x8x8xf32>
    %126 = arith.addf %124, %125 : vector<2x8x8xf32>
    %cst_34 = arith.constant dense<0xFF800000> : vector<2x8xf32>
    %127 = vector.multi_reduction <maximumf>, %126, %cst_34 [2] : vector<2x8x8xf32> to vector<2x8xf32>
    %128 = vector.shape_cast %127 : vector<2x8xf32> to vector<2x8x1xf32>
    %129 = vector.broadcast %128 : vector<2x8x1xf32> to vector<2x8x8xf32>
    %130 = arith.subf %126, %129 : vector<2x8x8xf32>
    %131 = math.exp %130 : vector<2x8x8xf32>
    %cst_35 = arith.constant dense<0.000000e+00> : vector<2x8xf32>
    %132 = vector.multi_reduction <add>, %131, %cst_35 [2] : vector<2x8x8xf32> to vector<2x8xf32>
    %133 = vector.shape_cast %132 : vector<2x8xf32> to vector<2x8x1xf32>
    %134 = vector.broadcast %133 : vector<2x8x1xf32> to vector<2x8x8xf32>
    %135 = arith.divf %131, %134 : vector<2x8x8xf32>
    %136 = arith.truncf %135 : vector<2x8x8xf32> to vector<2x8x8xbf16>
    %137 = arith.truncf %119 : vector<2x8x8xf32> to vector<2x8x8xbf16>
    "tpu.trace_start"() <{level = 10 : i32, message = "bqk,bkd->bqd"}> : () -> ()
    %cst_36 = arith.constant dense<0.000000e+00> : vector<2x8x8xf32>
    %138 = tpu.matmul %136, %137, %cst_36 {dimension_numbers = #tpu.dot_dimension_numbers<[2], [1], [1], [2], [0, 0, 0, 1, 1, 2], [0], [0]>} : vector<2x8x8xbf16>, vector<2x8x8xbf16>, vector<2x8x8xf32> -> vector<2x8x8xf32>
    "tpu.trace_stop"() : () -> ()
    %139 = vector.shape_cast %138 : vector<2x8x8xf32> to vector<16x8xf32>
    %140 = vector.extract_strided_slice %11 {offsets = [24, 0], sizes = [8, 32], strides = [1, 1]} : vector<32x32xf32> to vector<8x32xf32>
    %141 = arith.truncf %140 : vector<8x32xf32> to vector<8x32xbf16>
    %142 = arith.truncf %139 : vector<16x8xf32> to vector<16x8xbf16>
    %cst_37 = arith.constant dense<0.000000e+00> : vector<16x32xf32>
    %143 = tpu.matmul %142, %141, %cst_37 {dimension_numbers = #tpu.dot_dimension_numbers<[1], [0], [0], [1], [0, 0, 1, 1], [], []>} : vector<16x8xbf16>, vector<8x32xbf16>, vector<16x32xf32> -> vector<16x32xf32>
    %144 = arith.addf %113, %143 : vector<16x32xf32>
    %145 = vector.broadcast %12 : vector<1x32xf32> to vector<16x32xf32>
    %146 = arith.addf %144, %145 : vector<16x32xf32>
    %147 = arith.addf %0, %146 : vector<16x32xf32>
    %c0_38 = arith.constant 0 : index
    %c0_39 = arith.constant 0 : index
    %148 = vector.load %arg6[%c0_38, %c0_39] : memref<1x32xf32, #tpu.memory_space<vmem>>, vector<1x32xf32>
    %c0_40 = arith.constant 0 : index
    %c0_41 = arith.constant 0 : index
    %149 = vector.load %arg7[%c0_40, %c0_41] : memref<1x32xf32, #tpu.memory_space<vmem>>, vector<1x32xf32>
    %cst_42 = arith.constant dense<0.000000e+00> : vector<16xf32>
    %150 = vector.multi_reduction <add>, %147, %cst_42 [1] : vector<16x32xf32> to vector<16xf32>
    %151 = vector.shape_cast %150 : vector<16xf32> to vector<16x1xf32>
    %cst_43 = arith.constant 3.200000e+01 : f32
    %152 = vector.broadcast %cst_43 : f32 to vector<16x1xf32>
    %153 = arith.divf %151, %152 : vector<16x1xf32>
    %154 = vector.broadcast %153 : vector<16x1xf32> to vector<16x32xf32>
    %155 = arith.subf %147, %154 : vector<16x32xf32>
    %156 = arith.mulf %155, %155 : vector<16x32xf32>
    %cst_44 = arith.constant dense<0.000000e+00> : vector<16xf32>
    %157 = vector.multi_reduction <add>, %156, %cst_44 [1] : vector<16x32xf32> to vector<16xf32>
    %158 = vector.shape_cast %157 : vector<16xf32> to vector<16x1xf32>
    %cst_45 = arith.constant 3.200000e+01 : f32
    %159 = vector.broadcast %cst_45 : f32 to vector<16x1xf32>
    %160 = arith.divf %158, %159 : vector<16x1xf32>
    %cst_46 = arith.constant 9.99999974E-6 : f32
    %161 = vector.broadcast %cst_46 : f32 to vector<16x1xf32>
    %162 = arith.addf %160, %161 : vector<16x1xf32>
    %163 = math.rsqrt %162 : vector<16x1xf32>
    %164 = vector.broadcast %163 : vector<16x1xf32> to vector<16x32xf32>
    %165 = arith.mulf %155, %164 : vector<16x32xf32>
    %166 = vector.broadcast %148 : vector<1x32xf32> to vector<16x32xf32>
    %167 = arith.mulf %165, %166 : vector<16x32xf32>
    %168 = vector.broadcast %149 : vector<1x32xf32> to vector<16x32xf32>
    %169 = arith.addf %167, %168 : vector<16x32xf32>
    %170 = arith.truncf %169 : vector<16x32xf32> to vector<16x32xbf16>
    %c0_47 = arith.constant 0 : index
    %c0_48 = arith.constant 0 : index
    %171 = vector.load %arg8[%c0_47, %c0_48] : memref<32x32xbf16, #tpu.memory_space<vmem>>, vector<32x32xbf16>
    %cst_49 = arith.constant dense<0.000000e+00> : vector<16x32xf32>
    %172 = tpu.matmul %170, %171, %cst_49 {dimension_numbers = #tpu.dot_dimension_numbers<[1], [0], [0], [1], [0, 0, 1, 1], [], []>} : vector<16x32xbf16>, vector<32x32xbf16>, vector<16x32xf32> -> vector<16x32xf32>
    %c0_50 = arith.constant 0 : index
    %c0_51 = arith.constant 0 : index
    %173 = vector.load %arg9[%c0_50, %c0_51] : memref<1x32xf32, #tpu.memory_space<vmem>>, vector<1x32xf32>
    %174 = vector.broadcast %173 : vector<1x32xf32> to vector<16x32xf32>
    %175 = arith.addf %172, %174 : vector<16x32xf32>
    %176 = arith.truncf %1 : vector<16x32xf32> to vector<16x32xbf16>
    %c0_52 = arith.constant 0 : index
    %c0_53 = arith.constant 0 : index
    %177 = vector.load %arg10[%c0_52, %c0_53] : memref<32x64xbf16, #tpu.memory_space<vmem>>, vector<32x64xbf16>
    %cst_54 = arith.constant dense<0.000000e+00> : vector<16x64xf32>
    %178 = tpu.matmul %176, %177, %cst_54 {dimension_numbers = #tpu.dot_dimension_numbers<[1], [0], [0], [1], [0, 0, 1, 1], [], []>} : vector<16x32xbf16>, vector<32x64xbf16>, vector<16x64xf32> -> vector<16x64xf32>
    %c0_55 = arith.constant 0 : index
    %c0_56 = arith.constant 0 : index
    %179 = vector.load %arg11[%c0_55, %c0_56] : memref<1x64xf32, #tpu.memory_space<vmem>>, vector<1x64xf32>
    %180 = vector.broadcast %179 : vector<1x64xf32> to vector<16x64xf32>
    %181 = arith.addf %178, %180 : vector<16x64xf32>
    %182 = vector.extract_strided_slice %181 {offsets = [0, 0], sizes = [16, 32], strides = [1, 1]} : vector<16x64xf32> to vector<16x32xf32>
    %183 = vector.extract_strided_slice %181 {offsets = [0, 32], sizes = [16, 32], strides = [1, 1]} : vector<16x64xf32> to vector<16x32xf32>
    %c0_57 = arith.constant 0 : index
    %c0_58 = arith.constant 0 : index
    %184 = vector.load %arg12[%c0_57, %c0_58] : memref<32x32xf32, #tpu.memory_space<vmem>>, vector<32x32xf32>
    %c0_59 = arith.constant 0 : index
    %c0_60 = arith.constant 0 : index
    %185 = vector.load %arg13[%c0_59, %c0_60] : memref<1x32xf32, #tpu.memory_space<vmem>>, vector<1x32xf32>
    %cst_61 = arith.constant 0.000000e+00 : f32
    %186 = vector.broadcast %cst_61 : f32 to vector<16x32xf32>
    %187 = vector.extract_strided_slice %175 {offsets = [0, 0], sizes = [16, 8], strides = [1, 1]} : vector<16x32xf32> to vector<16x8xf32>
    %188 = vector.shape_cast %187 : vector<16x8xf32> to vector<2x8x8xf32>
    %189 = vector.extract_strided_slice %182 {offsets = [0, 0], sizes = [16, 8], strides = [1, 1]} : vector<16x32xf32> to vector<16x8xf32>
    %190 = vector.shape_cast %189 : vector<16x8xf32> to vector<2x8x8xf32>
    %191 = vector.extract_strided_slice %183 {offsets = [0, 0], sizes = [16, 8], strides = [1, 1]} : vector<16x32xf32> to vector<16x8xf32>
    %192 = vector.shape_cast %191 : vector<16x8xf32> to vector<2x8x8xf32>
    %193 = arith.truncf %188 : vector<2x8x8xf32> to vector<2x8x8xbf16>
    %194 = arith.truncf %190 : vector<2x8x8xf32> to vector<2x8x8xbf16>
    "tpu.trace_start"() <{level = 10 : i32, message = "bqd,bkd->bqk"}> : () -> ()
    %cst_62 = arith.constant dense<0.000000e+00> : vector<2x8x8xf32>
    %195 = tpu.matmul %193, %194, %cst_62 {dimension_numbers = #tpu.dot_dimension_numbers<[2], [2], [1], [1], [0, 0, 0, 1, 1, 1], [0], [0]>} : vector<2x8x8xbf16>, vector<2x8x8xbf16>, vector<2x8x8xf32> -> vector<2x8x8xf32>
    "tpu.trace_stop"() : () -> ()
    %cst_63 = arith.constant 0.353553385 : f32
    %196 = vector.broadcast %cst_63 : f32 to vector<2x8x8xf32>
    %197 = arith.mulf %195, %196 : vector<2x8x8xf32>
    %cst_64 = arith.constant dense<0xFF800000> : vector<2x8xf32>
    %198 = vector.multi_reduction <maximumf>, %197, %cst_64 [2] : vector<2x8x8xf32> to vector<2x8xf32>
    %199 = vector.shape_cast %198 : vector<2x8xf32> to vector<2x8x1xf32>
    %200 = vector.broadcast %199 : vector<2x8x1xf32> to vector<2x8x8xf32>
    %201 = arith.subf %197, %200 : vector<2x8x8xf32>
    %202 = math.exp %201 : vector<2x8x8xf32>
    %cst_65 = arith.constant dense<0.000000e+00> : vector<2x8xf32>
    %203 = vector.multi_reduction <add>, %202, %cst_65 [2] : vector<2x8x8xf32> to vector<2x8xf32>
    %204 = vector.shape_cast %203 : vector<2x8xf32> to vector<2x8x1xf32>
    %205 = vector.broadcast %204 : vector<2x8x1xf32> to vector<2x8x8xf32>
    %206 = arith.divf %202, %205 : vector<2x8x8xf32>
    %207 = arith.truncf %206 : vector<2x8x8xf32> to vector<2x8x8xbf16>
    %208 = arith.truncf %192 : vector<2x8x8xf32> to vector<2x8x8xbf16>
    "tpu.trace_start"() <{level = 10 : i32, message = "bqk,bkd->bqd"}> : () -> ()
    %cst_66 = arith.constant dense<0.000000e+00> : vector<2x8x8xf32>
    %209 = tpu.matmul %207, %208, %cst_66 {dimension_numbers = #tpu.dot_dimension_numbers<[2], [1], [1], [2], [0, 0, 0, 1, 1, 2], [0], [0]>} : vector<2x8x8xbf16>, vector<2x8x8xbf16>, vector<2x8x8xf32> -> vector<2x8x8xf32>
    "tpu.trace_stop"() : () -> ()
    %210 = vector.shape_cast %209 : vector<2x8x8xf32> to vector<16x8xf32>
    %211 = vector.extract_strided_slice %184 {offsets = [0, 0], sizes = [8, 32], strides = [1, 1]} : vector<32x32xf32> to vector<8x32xf32>
    %212 = arith.truncf %211 : vector<8x32xf32> to vector<8x32xbf16>
    %213 = arith.truncf %210 : vector<16x8xf32> to vector<16x8xbf16>
    %cst_67 = arith.constant dense<0.000000e+00> : vector<16x32xf32>
    %214 = tpu.matmul %213, %212, %cst_67 {dimension_numbers = #tpu.dot_dimension_numbers<[1], [0], [0], [1], [0, 0, 1, 1], [], []>} : vector<16x8xbf16>, vector<8x32xbf16>, vector<16x32xf32> -> vector<16x32xf32>
    %215 = arith.addf %186, %214 : vector<16x32xf32>
    %216 = vector.extract_strided_slice %175 {offsets = [0, 8], sizes = [16, 8], strides = [1, 1]} : vector<16x32xf32> to vector<16x8xf32>
    %217 = vector.shape_cast %216 : vector<16x8xf32> to vector<2x8x8xf32>
    %218 = vector.extract_strided_slice %182 {offsets = [0, 8], sizes = [16, 8], strides = [1, 1]} : vector<16x32xf32> to vector<16x8xf32>
    %219 = vector.shape_cast %218 : vector<16x8xf32> to vector<2x8x8xf32>
    %220 = vector.extract_strided_slice %183 {offsets = [0, 8], sizes = [16, 8], strides = [1, 1]} : vector<16x32xf32> to vector<16x8xf32>
    %221 = vector.shape_cast %220 : vector<16x8xf32> to vector<2x8x8xf32>
    %222 = arith.truncf %217 : vector<2x8x8xf32> to vector<2x8x8xbf16>
    %223 = arith.truncf %219 : vector<2x8x8xf32> to vector<2x8x8xbf16>
    "tpu.trace_start"() <{level = 10 : i32, message = "bqd,bkd->bqk"}> : () -> ()
    %cst_68 = arith.constant dense<0.000000e+00> : vector<2x8x8xf32>
    %224 = tpu.matmul %222, %223, %cst_68 {dimension_numbers = #tpu.dot_dimension_numbers<[2], [2], [1], [1], [0, 0, 0, 1, 1, 1], [0], [0]>} : vector<2x8x8xbf16>, vector<2x8x8xbf16>, vector<2x8x8xf32> -> vector<2x8x8xf32>
    "tpu.trace_stop"() : () -> ()
    %cst_69 = arith.constant 0.353553385 : f32
    %225 = vector.broadcast %cst_69 : f32 to vector<2x8x8xf32>
    %226 = arith.mulf %224, %225 : vector<2x8x8xf32>
    %cst_70 = arith.constant dense<0xFF800000> : vector<2x8xf32>
    %227 = vector.multi_reduction <maximumf>, %226, %cst_70 [2] : vector<2x8x8xf32> to vector<2x8xf32>
    %228 = vector.shape_cast %227 : vector<2x8xf32> to vector<2x8x1xf32>
    %229 = vector.broadcast %228 : vector<2x8x1xf32> to vector<2x8x8xf32>
    %230 = arith.subf %226, %229 : vector<2x8x8xf32>
    %231 = math.exp %230 : vector<2x8x8xf32>
    %cst_71 = arith.constant dense<0.000000e+00> : vector<2x8xf32>
    %232 = vector.multi_reduction <add>, %231, %cst_71 [2] : vector<2x8x8xf32> to vector<2x8xf32>
    %233 = vector.shape_cast %232 : vector<2x8xf32> to vector<2x8x1xf32>
    %234 = vector.broadcast %233 : vector<2x8x1xf32> to vector<2x8x8xf32>
    %235 = arith.divf %231, %234 : vector<2x8x8xf32>
    %236 = arith.truncf %235 : vector<2x8x8xf32> to vector<2x8x8xbf16>
    %237 = arith.truncf %221 : vector<2x8x8xf32> to vector<2x8x8xbf16>
    "tpu.trace_start"() <{level = 10 : i32, message = "bqk,bkd->bqd"}> : () -> ()
    %cst_72 = arith.constant dense<0.000000e+00> : vector<2x8x8xf32>
    %238 = tpu.matmul %236, %237, %cst_72 {dimension_numbers = #tpu.dot_dimension_numbers<[2], [1], [1], [2], [0, 0, 0, 1, 1, 2], [0], [0]>} : vector<2x8x8xbf16>, vector<2x8x8xbf16>, vector<2x8x8xf32> -> vector<2x8x8xf32>
    "tpu.trace_stop"() : () -> ()
    %239 = vector.shape_cast %238 : vector<2x8x8xf32> to vector<16x8xf32>
    %240 = vector.extract_strided_slice %184 {offsets = [8, 0], sizes = [8, 32], strides = [1, 1]} : vector<32x32xf32> to vector<8x32xf32>
    %241 = arith.truncf %240 : vector<8x32xf32> to vector<8x32xbf16>
    %242 = arith.truncf %239 : vector<16x8xf32> to vector<16x8xbf16>
    %cst_73 = arith.constant dense<0.000000e+00> : vector<16x32xf32>
    %243 = tpu.matmul %242, %241, %cst_73 {dimension_numbers = #tpu.dot_dimension_numbers<[1], [0], [0], [1], [0, 0, 1, 1], [], []>} : vector<16x8xbf16>, vector<8x32xbf16>, vector<16x32xf32> -> vector<16x32xf32>
    %244 = arith.addf %215, %243 : vector<16x32xf32>
    %245 = vector.extract_strided_slice %175 {offsets = [0, 16], sizes = [16, 8], strides = [1, 1]} : vector<16x32xf32> to vector<16x8xf32>
    %246 = vector.shape_cast %245 : vector<16x8xf32> to vector<2x8x8xf32>
    %247 = vector.extract_strided_slice %182 {offsets = [0, 16], sizes = [16, 8], strides = [1, 1]} : vector<16x32xf32> to vector<16x8xf32>
    %248 = vector.shape_cast %247 : vector<16x8xf32> to vector<2x8x8xf32>
    %249 = vector.extract_strided_slice %183 {offsets = [0, 16], sizes = [16, 8], strides = [1, 1]} : vector<16x32xf32> to vector<16x8xf32>
    %250 = vector.shape_cast %249 : vector<16x8xf32> to vector<2x8x8xf32>
    %251 = arith.truncf %246 : vector<2x8x8xf32> to vector<2x8x8xbf16>
    %252 = arith.truncf %248 : vector<2x8x8xf32> to vector<2x8x8xbf16>
    "tpu.trace_start"() <{level = 10 : i32, message = "bqd,bkd->bqk"}> : () -> ()
    %cst_74 = arith.constant dense<0.000000e+00> : vector<2x8x8xf32>
    %253 = tpu.matmul %251, %252, %cst_74 {dimension_numbers = #tpu.dot_dimension_numbers<[2], [2], [1], [1], [0, 0, 0, 1, 1, 1], [0], [0]>} : vector<2x8x8xbf16>, vector<2x8x8xbf16>, vector<2x8x8xf32> -> vector<2x8x8xf32>
    "tpu.trace_stop"() : () -> ()
    %cst_75 = arith.constant 0.353553385 : f32
    %254 = vector.broadcast %cst_75 : f32 to vector<2x8x8xf32>
    %255 = arith.mulf %253, %254 : vector<2x8x8xf32>
    %cst_76 = arith.constant dense<0xFF800000> : vector<2x8xf32>
    %256 = vector.multi_reduction <maximumf>, %255, %cst_76 [2] : vector<2x8x8xf32> to vector<2x8xf32>
    %257 = vector.shape_cast %256 : vector<2x8xf32> to vector<2x8x1xf32>
    %258 = vector.broadcast %257 : vector<2x8x1xf32> to vector<2x8x8xf32>
    %259 = arith.subf %255, %258 : vector<2x8x8xf32>
    %260 = math.exp %259 : vector<2x8x8xf32>
    %cst_77 = arith.constant dense<0.000000e+00> : vector<2x8xf32>
    %261 = vector.multi_reduction <add>, %260, %cst_77 [2] : vector<2x8x8xf32> to vector<2x8xf32>
    %262 = vector.shape_cast %261 : vector<2x8xf32> to vector<2x8x1xf32>
    %263 = vector.broadcast %262 : vector<2x8x1xf32> to vector<2x8x8xf32>
    %264 = arith.divf %260, %263 : vector<2x8x8xf32>
    %265 = arith.truncf %264 : vector<2x8x8xf32> to vector<2x8x8xbf16>
    %266 = arith.truncf %250 : vector<2x8x8xf32> to vector<2x8x8xbf16>
    "tpu.trace_start"() <{level = 10 : i32, message = "bqk,bkd->bqd"}> : () -> ()
    %cst_78 = arith.constant dense<0.000000e+00> : vector<2x8x8xf32>
    %267 = tpu.matmul %265, %266, %cst_78 {dimension_numbers = #tpu.dot_dimension_numbers<[2], [1], [1], [2], [0, 0, 0, 1, 1, 2], [0], [0]>} : vector<2x8x8xbf16>, vector<2x8x8xbf16>, vector<2x8x8xf32> -> vector<2x8x8xf32>
    "tpu.trace_stop"() : () -> ()
    %268 = vector.shape_cast %267 : vector<2x8x8xf32> to vector<16x8xf32>
    %269 = vector.extract_strided_slice %184 {offsets = [16, 0], sizes = [8, 32], strides = [1, 1]} : vector<32x32xf32> to vector<8x32xf32>
    %270 = arith.truncf %269 : vector<8x32xf32> to vector<8x32xbf16>
    %271 = arith.truncf %268 : vector<16x8xf32> to vector<16x8xbf16>
    %cst_79 = arith.constant dense<0.000000e+00> : vector<16x32xf32>
    %272 = tpu.matmul %271, %270, %cst_79 {dimension_numbers = #tpu.dot_dimension_numbers<[1], [0], [0], [1], [0, 0, 1, 1], [], []>} : vector<16x8xbf16>, vector<8x32xbf16>, vector<16x32xf32> -> vector<16x32xf32>
    %273 = arith.addf %244, %272 : vector<16x32xf32>
    %274 = vector.extract_strided_slice %175 {offsets = [0, 24], sizes = [16, 8], strides = [1, 1]} : vector<16x32xf32> to vector<16x8xf32>
    %275 = vector.shape_cast %274 : vector<16x8xf32> to vector<2x8x8xf32>
    %276 = vector.extract_strided_slice %182 {offsets = [0, 24], sizes = [16, 8], strides = [1, 1]} : vector<16x32xf32> to vector<16x8xf32>
    %277 = vector.shape_cast %276 : vector<16x8xf32> to vector<2x8x8xf32>
    %278 = vector.extract_strided_slice %183 {offsets = [0, 24], sizes = [16, 8], strides = [1, 1]} : vector<16x32xf32> to vector<16x8xf32>
    %279 = vector.shape_cast %278 : vector<16x8xf32> to vector<2x8x8xf32>
    %280 = arith.truncf %275 : vector<2x8x8xf32> to vector<2x8x8xbf16>
    %281 = arith.truncf %277 : vector<2x8x8xf32> to vector<2x8x8xbf16>
    "tpu.trace_start"() <{level = 10 : i32, message = "bqd,bkd->bqk"}> : () -> ()
    %cst_80 = arith.constant dense<0.000000e+00> : vector<2x8x8xf32>
    %282 = tpu.matmul %280, %281, %cst_80 {dimension_numbers = #tpu.dot_dimension_numbers<[2], [2], [1], [1], [0, 0, 0, 1, 1, 1], [0], [0]>} : vector<2x8x8xbf16>, vector<2x8x8xbf16>, vector<2x8x8xf32> -> vector<2x8x8xf32>
    "tpu.trace_stop"() : () -> ()
    %cst_81 = arith.constant 0.353553385 : f32
    %283 = vector.broadcast %cst_81 : f32 to vector<2x8x8xf32>
    %284 = arith.mulf %282, %283 : vector<2x8x8xf32>
    %cst_82 = arith.constant dense<0xFF800000> : vector<2x8xf32>
    %285 = vector.multi_reduction <maximumf>, %284, %cst_82 [2] : vector<2x8x8xf32> to vector<2x8xf32>
    %286 = vector.shape_cast %285 : vector<2x8xf32> to vector<2x8x1xf32>
    %287 = vector.broadcast %286 : vector<2x8x1xf32> to vector<2x8x8xf32>
    %288 = arith.subf %284, %287 : vector<2x8x8xf32>
    %289 = math.exp %288 : vector<2x8x8xf32>
    %cst_83 = arith.constant dense<0.000000e+00> : vector<2x8xf32>
    %290 = vector.multi_reduction <add>, %289, %cst_83 [2] : vector<2x8x8xf32> to vector<2x8xf32>
    %291 = vector.shape_cast %290 : vector<2x8xf32> to vector<2x8x1xf32>
    %292 = vector.broadcast %291 : vector<2x8x1xf32> to vector<2x8x8xf32>
    %293 = arith.divf %289, %292 : vector<2x8x8xf32>
    %294 = arith.truncf %293 : vector<2x8x8xf32> to vector<2x8x8xbf16>
    %295 = arith.truncf %279 : vector<2x8x8xf32> to vector<2x8x8xbf16>
    "tpu.trace_start"() <{level = 10 : i32, message = "bqk,bkd->bqd"}> : () -> ()
    %cst_84 = arith.constant dense<0.000000e+00> : vector<2x8x8xf32>
    %296 = tpu.matmul %294, %295, %cst_84 {dimension_numbers = #tpu.dot_dimension_numbers<[2], [1], [1], [2], [0, 0, 0, 1, 1, 2], [0], [0]>} : vector<2x8x8xbf16>, vector<2x8x8xbf16>, vector<2x8x8xf32> -> vector<2x8x8xf32>
    "tpu.trace_stop"() : () -> ()
    %297 = vector.shape_cast %296 : vector<2x8x8xf32> to vector<16x8xf32>
    %298 = vector.extract_strided_slice %184 {offsets = [24, 0], sizes = [8, 32], strides = [1, 1]} : vector<32x32xf32> to vector<8x32xf32>
    %299 = arith.truncf %298 : vector<8x32xf32> to vector<8x32xbf16>
    %300 = arith.truncf %297 : vector<16x8xf32> to vector<16x8xbf16>
    %cst_85 = arith.constant dense<0.000000e+00> : vector<16x32xf32>
    %301 = tpu.matmul %300, %299, %cst_85 {dimension_numbers = #tpu.dot_dimension_numbers<[1], [0], [0], [1], [0, 0, 1, 1], [], []>} : vector<16x8xbf16>, vector<8x32xbf16>, vector<16x32xf32> -> vector<16x32xf32>
    %302 = arith.addf %273, %301 : vector<16x32xf32>
    %303 = vector.broadcast %185 : vector<1x32xf32> to vector<16x32xf32>
    %304 = arith.addf %302, %303 : vector<16x32xf32>
    %305 = arith.addf %169, %304 : vector<16x32xf32>
    %c0_86 = arith.constant 0 : index
    %c0_87 = arith.constant 0 : index
    %306 = vector.load %arg14[%c0_86, %c0_87] : memref<1x32xf32, #tpu.memory_space<vmem>>, vector<1x32xf32>
    %c0_88 = arith.constant 0 : index
    %c0_89 = arith.constant 0 : index
    %307 = vector.load %arg15[%c0_88, %c0_89] : memref<1x32xf32, #tpu.memory_space<vmem>>, vector<1x32xf32>
    %cst_90 = arith.constant dense<0.000000e+00> : vector<16xf32>
    %308 = vector.multi_reduction <add>, %305, %cst_90 [1] : vector<16x32xf32> to vector<16xf32>
    %309 = vector.shape_cast %308 : vector<16xf32> to vector<16x1xf32>
    %cst_91 = arith.constant 3.200000e+01 : f32
    %310 = vector.broadcast %cst_91 : f32 to vector<16x1xf32>
    %311 = arith.divf %309, %310 : vector<16x1xf32>
    %312 = vector.broadcast %311 : vector<16x1xf32> to vector<16x32xf32>
    %313 = arith.subf %305, %312 : vector<16x32xf32>
    %314 = arith.mulf %313, %313 : vector<16x32xf32>
    %cst_92 = arith.constant dense<0.000000e+00> : vector<16xf32>
    %315 = vector.multi_reduction <add>, %314, %cst_92 [1] : vector<16x32xf32> to vector<16xf32>
    %316 = vector.shape_cast %315 : vector<16xf32> to vector<16x1xf32>
    %cst_93 = arith.constant 3.200000e+01 : f32
    %317 = vector.broadcast %cst_93 : f32 to vector<16x1xf32>
    %318 = arith.divf %316, %317 : vector<16x1xf32>
    %cst_94 = arith.constant 9.99999974E-6 : f32
    %319 = vector.broadcast %cst_94 : f32 to vector<16x1xf32>
    %320 = arith.addf %318, %319 : vector<16x1xf32>
    %321 = math.rsqrt %320 : vector<16x1xf32>
    %322 = vector.broadcast %321 : vector<16x1xf32> to vector<16x32xf32>
    %323 = arith.mulf %313, %322 : vector<16x32xf32>
    %324 = vector.broadcast %306 : vector<1x32xf32> to vector<16x32xf32>
    %325 = arith.mulf %323, %324 : vector<16x32xf32>
    %326 = vector.broadcast %307 : vector<1x32xf32> to vector<16x32xf32>
    %327 = arith.addf %325, %326 : vector<16x32xf32>
    %328 = arith.truncf %327 : vector<16x32xf32> to vector<16x32xbf16>
    %c0_95 = arith.constant 0 : index
    %c0_96 = arith.constant 0 : index
    %329 = vector.load %arg16[%c0_95, %c0_96] : memref<32x64xbf16, #tpu.memory_space<vmem>>, vector<32x64xbf16>
    %cst_97 = arith.constant dense<0.000000e+00> : vector<16x64xf32>
    %330 = tpu.matmul %328, %329, %cst_97 {dimension_numbers = #tpu.dot_dimension_numbers<[1], [0], [0], [1], [0, 0, 1, 1], [], []>} : vector<16x32xbf16>, vector<32x64xbf16>, vector<16x64xf32> -> vector<16x64xf32>
    %c0_98 = arith.constant 0 : index
    %c0_99 = arith.constant 0 : index
    %331 = vector.load %arg17[%c0_98, %c0_99] : memref<1x64xf32, #tpu.memory_space<vmem>>, vector<1x64xf32>
    %332 = vector.broadcast %331 : vector<1x64xf32> to vector<16x64xf32>
    %333 = arith.addf %330, %332 : vector<16x64xf32>
    %cst_100 = arith.constant 0.000000e+00 : f32
    %334 = vector.broadcast %cst_100 : f32 to vector<16x64xf32>
    %335 = arith.maximumf %333, %334 : vector<16x64xf32>
    %336 = arith.truncf %335 : vector<16x64xf32> to vector<16x64xbf16>
    %c0_101 = arith.constant 0 : index
    %c0_102 = arith.constant 0 : index
    %337 = vector.load %arg18[%c0_101, %c0_102] : memref<64x32xbf16, #tpu.memory_space<vmem>>, vector<64x32xbf16>
    %cst_103 = arith.constant dense<0.000000e+00> : vector<16x32xf32>
    %338 = tpu.matmul %336, %337, %cst_103 {dimension_numbers = #tpu.dot_dimension_numbers<[1], [0], [0], [1], [0, 0, 1, 1], [], []>} : vector<16x64xbf16>, vector<64x32xbf16>, vector<16x32xf32> -> vector<16x32xf32>
    %c0_104 = arith.constant 0 : index
    %c0_105 = arith.constant 0 : index
    %339 = vector.load %arg19[%c0_104, %c0_105] : memref<1x32xf32, #tpu.memory_space<vmem>>, vector<1x32xf32>
    %340 = vector.broadcast %339 : vector<1x32xf32> to vector<16x32xf32>
    %341 = arith.addf %338, %340 : vector<16x32xf32>
    %342 = arith.addf %327, %341 : vector<16x32xf32>
    %c0_106 = arith.constant 0 : index
    %c0_107 = arith.constant 0 : index
    %343 = vector.load %arg20[%c0_106, %c0_107] : memref<1x32xf32, #tpu.memory_space<vmem>>, vector<1x32xf32>
    %c0_108 = arith.constant 0 : index
    %c0_109 = arith.constant 0 : index
    %344 = vector.load %arg21[%c0_108, %c0_109] : memref<1x32xf32, #tpu.memory_space<vmem>>, vector<1x32xf32>
    %cst_110 = arith.constant dense<0.000000e+00> : vector<16xf32>
    %345 = vector.multi_reduction <add>, %342, %cst_110 [1] : vector<16x32xf32> to vector<16xf32>
    %346 = vector.shape_cast %345 : vector<16xf32> to vector<16x1xf32>
    %cst_111 = arith.constant 3.200000e+01 : f32
    %347 = vector.broadcast %cst_111 : f32 to vector<16x1xf32>
    %348 = arith.divf %346, %347 : vector<16x1xf32>
    %349 = vector.broadcast %348 : vector<16x1xf32> to vector<16x32xf32>
    %350 = arith.subf %342, %349 : vector<16x32xf32>
    %351 = arith.mulf %350, %350 : vector<16x32xf32>
    %cst_112 = arith.constant dense<0.000000e+00> : vector<16xf32>
    %352 = vector.multi_reduction <add>, %351, %cst_112 [1] : vector<16x32xf32> to vector<16xf32>
    %353 = vector.shape_cast %352 : vector<16xf32> to vector<16x1xf32>
    %cst_113 = arith.constant 3.200000e+01 : f32
    %354 = vector.broadcast %cst_113 : f32 to vector<16x1xf32>
    %355 = arith.divf %353, %354 : vector<16x1xf32>
    %cst_114 = arith.constant 9.99999974E-6 : f32
    %356 = vector.broadcast %cst_114 : f32 to vector<16x1xf32>
    %357 = arith.addf %355, %356 : vector<16x1xf32>
    %358 = math.rsqrt %357 : vector<16x1xf32>
    %359 = vector.broadcast %358 : vector<16x1xf32> to vector<16x32xf32>
    %360 = arith.mulf %350, %359 : vector<16x32xf32>
    %361 = vector.broadcast %343 : vector<1x32xf32> to vector<16x32xf32>
    %362 = arith.mulf %360, %361 : vector<16x32xf32>
    %363 = vector.broadcast %344 : vector<1x32xf32> to vector<16x32xf32>
    %364 = arith.addf %362, %363 : vector<16x32xf32>
    %c0_115 = arith.constant 0 : index
    %c0_116 = arith.constant 0 : index
    %365 = vector.load %arg22[%c0_115, %c0_116] : memref<16x32xf32, #tpu.memory_space<vmem>>, vector<16x32xf32>
    tpu.vector_store %arg22[%c0_115, %c0_116], %364 {strides = array<i32>} : memref<16x32xf32, #tpu.memory_space<vmem>>, vector<16x32xf32>,
    return
  }
}

module attributes {stable_mosaic.version = 11 : i64} {
  func.func @_encoder_layer_kernel(%arg0: memref<16x32xf32, #tpu.memory_space<vmem>>, %arg1: memref<32x96xbf16, #tpu.memory_space<vmem>>, %arg2: memref<1x96xf32, #tpu.memory_space<vmem>>, %arg3: memref<32x32xf32, #tpu.memory_space<vmem>>, %arg4: memref<1x32xf32, #tpu.memory_space<vmem>>, %arg5: memref<1x32xf32, #tpu.memory_space<vmem>>, %arg6: memref<1x32xf32, #tpu.memory_space<vmem>>, %arg7: memref<32x64xbf16, #tpu.memory_space<vmem>>, %arg8: memref<1x64xf32, #tpu.memory_space<vmem>>, %arg9: memref<64x32xbf16, #tpu.memory_space<vmem>>, %arg10: memref<1x32xf32, #tpu.memory_space<vmem>>, %arg11: memref<1x32xf32, #tpu.memory_space<vmem>>, %arg12: memref<1x32xf32, #tpu.memory_space<vmem>>, %arg13: memref<16x32xf32, #tpu.memory_space<vmem>>) attributes {dimension_semantics = [], scalar_prefetch = 0 : i64, scratch_operands = 0 : i64, tpu.core_type = #tpu.core_type<tc>} {
    %c0 = arith.constant 0 : index
    %c0_0 = arith.constant 0 : index
    %0 = vector.load %arg0[%c0, %c0_0] : memref<16x32xf32, #tpu.memory_space<vmem>>, vector<16x32xf32>
    %1 = arith.truncf %0 : vector<16x32xf32> to vector<16x32xbf16>
    %c0_1 = arith.constant 0 : index
    %c0_2 = arith.constant 0 : index
    %2 = vector.load %arg1[%c0_1, %c0_2] : memref<32x96xbf16, #tpu.memory_space<vmem>>, vector<32x96xbf16>
    %cst = arith.constant dense<0.000000e+00> : vector<16x96xf32>
    %3 = tpu.matmul %1, %2, %cst {dimension_numbers = #tpu.dot_dimension_numbers<[1], [0], [0], [1], [0, 0, 1, 1], [], []>} : vector<16x32xbf16>, vector<32x96xbf16>, vector<16x96xf32> -> vector<16x96xf32>
    %c0_3 = arith.constant 0 : index
    %c0_4 = arith.constant 0 : index
    %4 = vector.load %arg2[%c0_3, %c0_4] : memref<1x96xf32, #tpu.memory_space<vmem>>, vector<1x96xf32>
    %5 = vector.broadcast %4 : vector<1x96xf32> to vector<16x96xf32>
    %6 = arith.addf %3, %5 : vector<16x96xf32>
    %7 = vector.extract_strided_slice %6 {offsets = [0, 0], sizes = [16, 32], strides = [1, 1]} : vector<16x96xf32> to vector<16x32xf32>
    %8 = vector.extract_strided_slice %6 {offsets = [0, 32], sizes = [16, 32], strides = [1, 1]} : vector<16x96xf32> to vector<16x32xf32>
    %9 = vector.extract_strided_slice %6 {offsets = [0, 64], sizes = [16, 32], strides = [1, 1]} : vector<16x96xf32> to vector<16x32xf32>
    %c0_5 = arith.constant 0 : index
    %c0_6 = arith.constant 0 : index
    %10 = vector.load %arg3[%c0_5, %c0_6] : memref<32x32xf32, #tpu.memory_space<vmem>>, vector<32x32xf32>
    %c0_7 = arith.constant 0 : index
    %c0_8 = arith.constant 0 : index
    %11 = vector.load %arg4[%c0_7, %c0_8] : memref<1x32xf32, #tpu.memory_space<vmem>>, vector<1x32xf32>
    %12 = tpu.iota {dimensions = array<i32: 0>} : vector<8x8xi32>
    %13 = tpu.iota {dimensions = array<i32: 1>} : vector<8x8xi32>
    %14 = arith.cmpi sgt, %13, %12 : vector<8x8xi32>
    %cst_9 = arith.constant -1.000000e+30 : f32
    %cst_10 = arith.constant 0.000000e+00 : f32
    %15 = vector.broadcast %cst_9 : f32 to vector<8x8xf32>
    %16 = vector.broadcast %cst_10 : f32 to vector<8x8xf32>
    %17 = arith.select %14, %15, %16 : vector<8x8xi1>, vector<8x8xf32>
    %18 = vector.shape_cast %17 : vector<8x8xf32> to vector<1x8x8xf32>
    %cst_11 = arith.constant 0.000000e+00 : f32
    %19 = vector.broadcast %cst_11 : f32 to vector<16x32xf32>
    %20 = vector.extract_strided_slice %7 {offsets = [0, 0], sizes = [16, 8], strides = [1, 1]} : vector<16x32xf32> to vector<16x8xf32>
    %21 = vector.shape_cast %20 : vector<16x8xf32> to vector<2x8x8xf32>
    %22 = vector.extract_strided_slice %8 {offsets = [0, 0], sizes = [16, 8], strides = [1, 1]} : vector<16x32xf32> to vector<16x8xf32>
    %23 = vector.shape_cast %22 : vector<16x8xf32> to vector<2x8x8xf32>
    %24 = vector.extract_strided_slice %9 {offsets = [0, 0], sizes = [16, 8], strides = [1, 1]} : vector<16x32xf32> to vector<16x8xf32>
    %25 = vector.shape_cast %24 : vector<16x8xf32> to vector<2x8x8xf32>
    %26 = arith.truncf %21 : vector<2x8x8xf32> to vector<2x8x8xbf16>
    %27 = arith.truncf %23 : vector<2x8x8xf32> to vector<2x8x8xbf16>
    "tpu.trace_start"() <{level = 10 : i32, message = "bqd,bkd->bqk"}> : () -> ()
    %cst_12 = arith.constant dense<0.000000e+00> : vector<2x8x8xf32>
    %28 = tpu.matmul %26, %27, %cst_12 {dimension_numbers = #tpu.dot_dimension_numbers<[2], [2], [1], [1], [0, 0, 0, 1, 1, 1], [0], [0]>} : vector<2x8x8xbf16>, vector<2x8x8xbf16>, vector<2x8x8xf32> -> vector<2x8x8xf32>
    "tpu.trace_stop"() : () -> ()
    %cst_13 = arith.constant 0.353553385 : f32
    %29 = vector.broadcast %cst_13 : f32 to vector<2x8x8xf32>
    %30 = arith.mulf %28, %29 : vector<2x8x8xf32>
    %31 = vector.broadcast %18 : vector<1x8x8xf32> to vector<2x8x8xf32>
    %32 = arith.addf %30, %31 : vector<2x8x8xf32>
    %cst_14 = arith.constant dense<0xFF800000> : vector<2x8xf32>
    %33 = vector.multi_reduction <maximumf>, %32, %cst_14 [2] : vector<2x8x8xf32> to vector<2x8xf32>
    %34 = vector.shape_cast %33 : vector<2x8xf32> to vector<2x8x1xf32>
    %35 = vector.broadcast %34 : vector<2x8x1xf32> to vector<2x8x8xf32>
    %36 = arith.subf %32, %35 : vector<2x8x8xf32>
    %37 = math.exp %36 : vector<2x8x8xf32>
    %cst_15 = arith.constant dense<0.000000e+00> : vector<2x8xf32>
    %38 = vector.multi_reduction <add>, %37, %cst_15 [2] : vector<2x8x8xf32> to vector<2x8xf32>
    %39 = vector.shape_cast %38 : vector<2x8xf32> to vector<2x8x1xf32>
    %40 = vector.broadcast %39 : vector<2x8x1xf32> to vector<2x8x8xf32>
    %41 = arith.divf %37, %40 : vector<2x8x8xf32>
    %42 = arith.truncf %41 : vector<2x8x8xf32> to vector<2x8x8xbf16>
    %43 = arith.truncf %25 : vector<2x8x8xf32> to vector<2x8x8xbf16>
    "tpu.trace_start"() <{level = 10 : i32, message = "bqk,bkd->bqd"}> : () -> ()
    %cst_16 = arith.constant dense<0.000000e+00> : vector<2x8x8xf32>
    %44 = tpu.matmul %42, %43, %cst_16 {dimension_numbers = #tpu.dot_dimension_numbers<[2], [1], [1], [2], [0, 0, 0, 1, 1, 2], [0], [0]>} : vector<2x8x8xbf16>, vector<2x8x8xbf16>, vector<2x8x8xf32> -> vector<2x8x8xf32>
    "tpu.trace_stop"() : () -> ()
    %45 = vector.shape_cast %44 : vector<2x8x8xf32> to vector<16x8xf32>
    %46 = vector.extract_strided_slice %10 {offsets = [0, 0], sizes = [8, 32], strides = [1, 1]} : vector<32x32xf32> to vector<8x32xf32>
    %47 = arith.truncf %46 : vector<8x32xf32> to vector<8x32xbf16>
    %48 = arith.truncf %45 : vector<16x8xf32> to vector<16x8xbf16>
    %cst_17 = arith.constant dense<0.000000e+00> : vector<16x32xf32>
    %49 = tpu.matmul %48, %47, %cst_17 {dimension_numbers = #tpu.dot_dimension_numbers<[1], [0], [0], [1], [0, 0, 1, 1], [], []>} : vector<16x8xbf16>, vector<8x32xbf16>, vector<16x32xf32> -> vector<16x32xf32>
    %50 = arith.addf %19, %49 : vector<16x32xf32>
    %51 = vector.extract_strided_slice %7 {offsets = [0, 8], sizes = [16, 8], strides = [1, 1]} : vector<16x32xf32> to vector<16x8xf32>
    %52 = vector.shape_cast %51 : vector<16x8xf32> to vector<2x8x8xf32>
    %53 = vector.extract_strided_slice %8 {offsets = [0, 8], sizes = [16, 8], strides = [1, 1]} : vector<16x32xf32> to vector<16x8xf32>
    %54 = vector.shape_cast %53 : vector<16x8xf32> to vector<2x8x8xf32>
    %55 = vector.extract_strided_slice %9 {offsets = [0, 8], sizes = [16, 8], strides = [1, 1]} : vector<16x32xf32> to vector<16x8xf32>
    %56 = vector.shape_cast %55 : vector<16x8xf32> to vector<2x8x8xf32>
    %57 = arith.truncf %52 : vector<2x8x8xf32> to vector<2x8x8xbf16>
    %58 = arith.truncf %54 : vector<2x8x8xf32> to vector<2x8x8xbf16>
    "tpu.trace_start"() <{level = 10 : i32, message = "bqd,bkd->bqk"}> : () -> ()
    %cst_18 = arith.constant dense<0.000000e+00> : vector<2x8x8xf32>
    %59 = tpu.matmul %57, %58, %cst_18 {dimension_numbers = #tpu.dot_dimension_numbers<[2], [2], [1], [1], [0, 0, 0, 1, 1, 1], [0], [0]>} : vector<2x8x8xbf16>, vector<2x8x8xbf16>, vector<2x8x8xf32> -> vector<2x8x8xf32>
    "tpu.trace_stop"() : () -> ()
    %cst_19 = arith.constant 0.353553385 : f32
    %60 = vector.broadcast %cst_19 : f32 to vector<2x8x8xf32>
    %61 = arith.mulf %59, %60 : vector<2x8x8xf32>
    %62 = vector.broadcast %18 : vector<1x8x8xf32> to vector<2x8x8xf32>
    %63 = arith.addf %61, %62 : vector<2x8x8xf32>
    %cst_20 = arith.constant dense<0xFF800000> : vector<2x8xf32>
    %64 = vector.multi_reduction <maximumf>, %63, %cst_20 [2] : vector<2x8x8xf32> to vector<2x8xf32>
    %65 = vector.shape_cast %64 : vector<2x8xf32> to vector<2x8x1xf32>
    %66 = vector.broadcast %65 : vector<2x8x1xf32> to vector<2x8x8xf32>
    %67 = arith.subf %63, %66 : vector<2x8x8xf32>
    %68 = math.exp %67 : vector<2x8x8xf32>
    %cst_21 = arith.constant dense<0.000000e+00> : vector<2x8xf32>
    %69 = vector.multi_reduction <add>, %68, %cst_21 [2] : vector<2x8x8xf32> to vector<2x8xf32>
    %70 = vector.shape_cast %69 : vector<2x8xf32> to vector<2x8x1xf32>
    %71 = vector.broadcast %70 : vector<2x8x1xf32> to vector<2x8x8xf32>
    %72 = arith.divf %68, %71 : vector<2x8x8xf32>
    %73 = arith.truncf %72 : vector<2x8x8xf32> to vector<2x8x8xbf16>
    %74 = arith.truncf %56 : vector<2x8x8xf32> to vector<2x8x8xbf16>
    "tpu.trace_start"() <{level = 10 : i32, message = "bqk,bkd->bqd"}> : () -> ()
    %cst_22 = arith.constant dense<0.000000e+00> : vector<2x8x8xf32>
    %75 = tpu.matmul %73, %74, %cst_22 {dimension_numbers = #tpu.dot_dimension_numbers<[2], [1], [1], [2], [0, 0, 0, 1, 1, 2], [0], [0]>} : vector<2x8x8xbf16>, vector<2x8x8xbf16>, vector<2x8x8xf32> -> vector<2x8x8xf32>
    "tpu.trace_stop"() : () -> ()
    %76 = vector.shape_cast %75 : vector<2x8x8xf32> to vector<16x8xf32>
    %77 = vector.extract_strided_slice %10 {offsets = [8, 0], sizes = [8, 32], strides = [1, 1]} : vector<32x32xf32> to vector<8x32xf32>
    %78 = arith.truncf %77 : vector<8x32xf32> to vector<8x32xbf16>
    %79 = arith.truncf %76 : vector<16x8xf32> to vector<16x8xbf16>
    %cst_23 = arith.constant dense<0.000000e+00> : vector<16x32xf32>
    %80 = tpu.matmul %79, %78, %cst_23 {dimension_numbers = #tpu.dot_dimension_numbers<[1], [0], [0], [1], [0, 0, 1, 1], [], []>} : vector<16x8xbf16>, vector<8x32xbf16>, vector<16x32xf32> -> vector<16x32xf32>
    %81 = arith.addf %50, %80 : vector<16x32xf32>
    %82 = vector.extract_strided_slice %7 {offsets = [0, 16], sizes = [16, 8], strides = [1, 1]} : vector<16x32xf32> to vector<16x8xf32>
    %83 = vector.shape_cast %82 : vector<16x8xf32> to vector<2x8x8xf32>
    %84 = vector.extract_strided_slice %8 {offsets = [0, 16], sizes = [16, 8], strides = [1, 1]} : vector<16x32xf32> to vector<16x8xf32>
    %85 = vector.shape_cast %84 : vector<16x8xf32> to vector<2x8x8xf32>
    %86 = vector.extract_strided_slice %9 {offsets = [0, 16], sizes = [16, 8], strides = [1, 1]} : vector<16x32xf32> to vector<16x8xf32>
    %87 = vector.shape_cast %86 : vector<16x8xf32> to vector<2x8x8xf32>
    %88 = arith.truncf %83 : vector<2x8x8xf32> to vector<2x8x8xbf16>
    %89 = arith.truncf %85 : vector<2x8x8xf32> to vector<2x8x8xbf16>
    "tpu.trace_start"() <{level = 10 : i32, message = "bqd,bkd->bqk"}> : () -> ()
    %cst_24 = arith.constant dense<0.000000e+00> : vector<2x8x8xf32>
    %90 = tpu.matmul %88, %89, %cst_24 {dimension_numbers = #tpu.dot_dimension_numbers<[2], [2], [1], [1], [0, 0, 0, 1, 1, 1], [0], [0]>} : vector<2x8x8xbf16>, vector<2x8x8xbf16>, vector<2x8x8xf32> -> vector<2x8x8xf32>
    "tpu.trace_stop"() : () -> ()
    %cst_25 = arith.constant 0.353553385 : f32
    %91 = vector.broadcast %cst_25 : f32 to vector<2x8x8xf32>
    %92 = arith.mulf %90, %91 : vector<2x8x8xf32>
    %93 = vector.broadcast %18 : vector<1x8x8xf32> to vector<2x8x8xf32>
    %94 = arith.addf %92, %93 : vector<2x8x8xf32>
    %cst_26 = arith.constant dense<0xFF800000> : vector<2x8xf32>
    %95 = vector.multi_reduction <maximumf>, %94, %cst_26 [2] : vector<2x8x8xf32> to vector<2x8xf32>
    %96 = vector.shape_cast %95 : vector<2x8xf32> to vector<2x8x1xf32>
    %97 = vector.broadcast %96 : vector<2x8x1xf32> to vector<2x8x8xf32>
    %98 = arith.subf %94, %97 : vector<2x8x8xf32>
    %99 = math.exp %98 : vector<2x8x8xf32>
    %cst_27 = arith.constant dense<0.000000e+00> : vector<2x8xf32>
    %100 = vector.multi_reduction <add>, %99, %cst_27 [2] : vector<2x8x8xf32> to vector<2x8xf32>
    %101 = vector.shape_cast %100 : vector<2x8xf32> to vector<2x8x1xf32>
    %102 = vector.broadcast %101 : vector<2x8x1xf32> to vector<2x8x8xf32>
    %103 = arith.divf %99, %102 : vector<2x8x8xf32>
    %104 = arith.truncf %103 : vector<2x8x8xf32> to vector<2x8x8xbf16>
    %105 = arith.truncf %87 : vector<2x8x8xf32> to vector<2x8x8xbf16>
    "tpu.trace_start"() <{level = 10 : i32, message = "bqk,bkd->bqd"}> : () -> ()
    %cst_28 = arith.constant dense<0.000000e+00> : vector<2x8x8xf32>
    %106 = tpu.matmul %104, %105, %cst_28 {dimension_numbers = #tpu.dot_dimension_numbers<[2], [1], [1], [2], [0, 0, 0, 1, 1, 2], [0], [0]>} : vector<2x8x8xbf16>, vector<2x8x8xbf16>, vector<2x8x8xf32> -> vector<2x8x8xf32>
    "tpu.trace_stop"() : () -> ()
    %107 = vector.shape_cast %106 : vector<2x8x8xf32> to vector<16x8xf32>
    %108 = vector.extract_strided_slice %10 {offsets = [16, 0], sizes = [8, 32], strides = [1, 1]} : vector<32x32xf32> to vector<8x32xf32>
    %109 = arith.truncf %108 : vector<8x32xf32> to vector<8x32xbf16>
    %110 = arith.truncf %107 : vector<16x8xf32> to vector<16x8xbf16>
    %cst_29 = arith.constant dense<0.000000e+00> : vector<16x32xf32>
    %111 = tpu.matmul %110, %109, %cst_29 {dimension_numbers = #tpu.dot_dimension_numbers<[1], [0], [0], [1], [0, 0, 1, 1], [], []>} : vector<16x8xbf16>, vector<8x32xbf16>, vector<16x32xf32> -> vector<16x32xf32>
    %112 = arith.addf %81, %111 : vector<16x32xf32>
    %113 = vector.extract_strided_slice %7 {offsets = [0, 24], sizes = [16, 8], strides = [1, 1]} : vector<16x32xf32> to vector<16x8xf32>
    %114 = vector.shape_cast %113 : vector<16x8xf32> to vector<2x8x8xf32>
    %115 = vector.extract_strided_slice %8 {offsets = [0, 24], sizes = [16, 8], strides = [1, 1]} : vector<16x32xf32> to vector<16x8xf32>
    %116 = vector.shape_cast %115 : vector<16x8xf32> to vector<2x8x8xf32>
    %117 = vector.extract_strided_slice %9 {offsets = [0, 24], sizes = [16, 8], strides = [1, 1]} : vector<16x32xf32> to vector<16x8xf32>
    %118 = vector.shape_cast %117 : vector<16x8xf32> to vector<2x8x8xf32>
    %119 = arith.truncf %114 : vector<2x8x8xf32> to vector<2x8x8xbf16>
    %120 = arith.truncf %116 : vector<2x8x8xf32> to vector<2x8x8xbf16>
    "tpu.trace_start"() <{level = 10 : i32, message = "bqd,bkd->bqk"}> : () -> ()
    %cst_30 = arith.constant dense<0.000000e+00> : vector<2x8x8xf32>
    %121 = tpu.matmul %119, %120, %cst_30 {dimension_numbers = #tpu.dot_dimension_numbers<[2], [2], [1], [1], [0, 0, 0, 1, 1, 1], [0], [0]>} : vector<2x8x8xbf16>, vector<2x8x8xbf16>, vector<2x8x8xf32> -> vector<2x8x8xf32>
    "tpu.trace_stop"() : () -> ()
    %cst_31 = arith.constant 0.353553385 : f32
    %122 = vector.broadcast %cst_31 : f32 to vector<2x8x8xf32>
    %123 = arith.mulf %121, %122 : vector<2x8x8xf32>
    %124 = vector.broadcast %18 : vector<1x8x8xf32> to vector<2x8x8xf32>
    %125 = arith.addf %123, %124 : vector<2x8x8xf32>
    %cst_32 = arith.constant dense<0xFF800000> : vector<2x8xf32>
    %126 = vector.multi_reduction <maximumf>, %125, %cst_32 [2] : vector<2x8x8xf32> to vector<2x8xf32>
    %127 = vector.shape_cast %126 : vector<2x8xf32> to vector<2x8x1xf32>
    %128 = vector.broadcast %127 : vector<2x8x1xf32> to vector<2x8x8xf32>
    %129 = arith.subf %125, %128 : vector<2x8x8xf32>
    %130 = math.exp %129 : vector<2x8x8xf32>
    %cst_33 = arith.constant dense<0.000000e+00> : vector<2x8xf32>
    %131 = vector.multi_reduction <add>, %130, %cst_33 [2] : vector<2x8x8xf32> to vector<2x8xf32>
    %132 = vector.shape_cast %131 : vector<2x8xf32> to vector<2x8x1xf32>
    %133 = vector.broadcast %132 : vector<2x8x1xf32> to vector<2x8x8xf32>
    %134 = arith.divf %130, %133 : vector<2x8x8xf32>
    %135 = arith.truncf %134 : vector<2x8x8xf32> to vector<2x8x8xbf16>
    %136 = arith.truncf %118 : vector<2x8x8xf32> to vector<2x8x8xbf16>
    "tpu.trace_start"() <{level = 10 : i32, message = "bqk,bkd->bqd"}> : () -> ()
    %cst_34 = arith.constant dense<0.000000e+00> : vector<2x8x8xf32>
    %137 = tpu.matmul %135, %136, %cst_34 {dimension_numbers = #tpu.dot_dimension_numbers<[2], [1], [1], [2], [0, 0, 0, 1, 1, 2], [0], [0]>} : vector<2x8x8xbf16>, vector<2x8x8xbf16>, vector<2x8x8xf32> -> vector<2x8x8xf32>
    "tpu.trace_stop"() : () -> ()
    %138 = vector.shape_cast %137 : vector<2x8x8xf32> to vector<16x8xf32>
    %139 = vector.extract_strided_slice %10 {offsets = [24, 0], sizes = [8, 32], strides = [1, 1]} : vector<32x32xf32> to vector<8x32xf32>
    %140 = arith.truncf %139 : vector<8x32xf32> to vector<8x32xbf16>
    %141 = arith.truncf %138 : vector<16x8xf32> to vector<16x8xbf16>
    %cst_35 = arith.constant dense<0.000000e+00> : vector<16x32xf32>
    %142 = tpu.matmul %141, %140, %cst_35 {dimension_numbers = #tpu.dot_dimension_numbers<[1], [0], [0], [1], [0, 0, 1, 1], [], []>} : vector<16x8xbf16>, vector<8x32xbf16>, vector<16x32xf32> -> vector<16x32xf32>
    %143 = arith.addf %112, %142 : vector<16x32xf32>
    %144 = vector.broadcast %11 : vector<1x32xf32> to vector<16x32xf32>
    %145 = arith.addf %143, %144 : vector<16x32xf32>
    %146 = arith.addf %0, %145 : vector<16x32xf32>
    %c0_36 = arith.constant 0 : index
    %c0_37 = arith.constant 0 : index
    %147 = vector.load %arg5[%c0_36, %c0_37] : memref<1x32xf32, #tpu.memory_space<vmem>>, vector<1x32xf32>
    %c0_38 = arith.constant 0 : index
    %c0_39 = arith.constant 0 : index
    %148 = vector.load %arg6[%c0_38, %c0_39] : memref<1x32xf32, #tpu.memory_space<vmem>>, vector<1x32xf32>
    %cst_40 = arith.constant dense<0.000000e+00> : vector<16xf32>
    %149 = vector.multi_reduction <add>, %146, %cst_40 [1] : vector<16x32xf32> to vector<16xf32>
    %150 = vector.shape_cast %149 : vector<16xf32> to vector<16x1xf32>
    %cst_41 = arith.constant 3.200000e+01 : f32
    %151 = vector.broadcast %cst_41 : f32 to vector<16x1xf32>
    %152 = arith.divf %150, %151 : vector<16x1xf32>
    %153 = vector.broadcast %152 : vector<16x1xf32> to vector<16x32xf32>
    %154 = arith.subf %146, %153 : vector<16x32xf32>
    %155 = arith.mulf %154, %154 : vector<16x32xf32>
    %cst_42 = arith.constant dense<0.000000e+00> : vector<16xf32>
    %156 = vector.multi_reduction <add>, %155, %cst_42 [1] : vector<16x32xf32> to vector<16xf32>
    %157 = vector.shape_cast %156 : vector<16xf32> to vector<16x1xf32>
    %cst_43 = arith.constant 3.200000e+01 : f32
    %158 = vector.broadcast %cst_43 : f32 to vector<16x1xf32>
    %159 = arith.divf %157, %158 : vector<16x1xf32>
    %cst_44 = arith.constant 9.99999974E-6 : f32
    %160 = vector.broadcast %cst_44 : f32 to vector<16x1xf32>
    %161 = arith.addf %159, %160 : vector<16x1xf32>
    %162 = math.rsqrt %161 : vector<16x1xf32>
    %163 = vector.broadcast %162 : vector<16x1xf32> to vector<16x32xf32>
    %164 = arith.mulf %154, %163 : vector<16x32xf32>
    %165 = vector.broadcast %147 : vector<1x32xf32> to vector<16x32xf32>
    %166 = arith.mulf %164, %165 : vector<16x32xf32>
    %167 = vector.broadcast %148 : vector<1x32xf32> to vector<16x32xf32>
    %168 = arith.addf %166, %167 : vector<16x32xf32>
    %169 = arith.truncf %168 : vector<16x32xf32> to vector<16x32xbf16>
    %c0_45 = arith.constant 0 : index
    %c0_46 = arith.constant 0 : index
    %170 = vector.load %arg7[%c0_45, %c0_46] : memref<32x64xbf16, #tpu.memory_space<vmem>>, vector<32x64xbf16>
    %cst_47 = arith.constant dense<0.000000e+00> : vector<16x64xf32>
    %171 = tpu.matmul %169, %170, %cst_47 {dimension_numbers = #tpu.dot_dimension_numbers<[1], [0], [0], [1], [0, 0, 1, 1], [], []>} : vector<16x32xbf16>, vector<32x64xbf16>, vector<16x64xf32> -> vector<16x64xf32>
    %c0_48 = arith.constant 0 : index
    %c0_49 = arith.constant 0 : index
    %172 = vector.load %arg8[%c0_48, %c0_49] : memref<1x64xf32, #tpu.memory_space<vmem>>, vector<1x64xf32>
    %173 = vector.broadcast %172 : vector<1x64xf32> to vector<16x64xf32>
    %174 = arith.addf %171, %173 : vector<16x64xf32>
    %cst_50 = arith.constant 0.000000e+00 : f32
    %175 = vector.broadcast %cst_50 : f32 to vector<16x64xf32>
    %176 = arith.maximumf %174, %175 : vector<16x64xf32>
    %177 = arith.truncf %176 : vector<16x64xf32> to vector<16x64xbf16>
    %c0_51 = arith.constant 0 : index
    %c0_52 = arith.constant 0 : index
    %178 = vector.load %arg9[%c0_51, %c0_52] : memref<64x32xbf16, #tpu.memory_space<vmem>>, vector<64x32xbf16>
    %cst_53 = arith.constant dense<0.000000e+00> : vector<16x32xf32>
    %179 = tpu.matmul %177, %178, %cst_53 {dimension_numbers = #tpu.dot_dimension_numbers<[1], [0], [0], [1], [0, 0, 1, 1], [], []>} : vector<16x64xbf16>, vector<64x32xbf16>, vector<16x32xf32> -> vector<16x32xf32>
    %c0_54 = arith.constant 0 : index
    %c0_55 = arith.constant 0 : index
    %180 = vector.load %arg10[%c0_54, %c0_55] : memref<1x32xf32, #tpu.memory_space<vmem>>, vector<1x32xf32>
    %181 = vector.broadcast %180 : vector<1x32xf32> to vector<16x32xf32>
    %182 = arith.addf %179, %181 : vector<16x32xf32>
    %183 = arith.addf %168, %182 : vector<16x32xf32>
    %c0_56 = arith.constant 0 : index
    %c0_57 = arith.constant 0 : index
    %184 = vector.load %arg11[%c0_56, %c0_57] : memref<1x32xf32, #tpu.memory_space<vmem>>, vector<1x32xf32>
    %c0_58 = arith.constant 0 : index
    %c0_59 = arith.constant 0 : index
    %185 = vector.load %arg12[%c0_58, %c0_59] : memref<1x32xf32, #tpu.memory_space<vmem>>, vector<1x32xf32>
    %cst_60 = arith.constant dense<0.000000e+00> : vector<16xf32>
    %186 = vector.multi_reduction <add>, %183, %cst_60 [1] : vector<16x32xf32> to vector<16xf32>
    %187 = vector.shape_cast %186 : vector<16xf32> to vector<16x1xf32>
    %cst_61 = arith.constant 3.200000e+01 : f32
    %188 = vector.broadcast %cst_61 : f32 to vector<16x1xf32>
    %189 = arith.divf %187, %188 : vector<16x1xf32>
    %190 = vector.broadcast %189 : vector<16x1xf32> to vector<16x32xf32>
    %191 = arith.subf %183, %190 : vector<16x32xf32>
    %192 = arith.mulf %191, %191 : vector<16x32xf32>
    %cst_62 = arith.constant dense<0.000000e+00> : vector<16xf32>
    %193 = vector.multi_reduction <add>, %192, %cst_62 [1] : vector<16x32xf32> to vector<16xf32>
    %194 = vector.shape_cast %193 : vector<16xf32> to vector<16x1xf32>
    %cst_63 = arith.constant 3.200000e+01 : f32
    %195 = vector.broadcast %cst_63 : f32 to vector<16x1xf32>
    %196 = arith.divf %194, %195 : vector<16x1xf32>
    %cst_64 = arith.constant 9.99999974E-6 : f32
    %197 = vector.broadcast %cst_64 : f32 to vector<16x1xf32>
    %198 = arith.addf %196, %197 : vector<16x1xf32>
    %199 = math.rsqrt %198 : vector<16x1xf32>
    %200 = vector.broadcast %199 : vector<16x1xf32> to vector<16x32xf32>
    %201 = arith.mulf %191, %200 : vector<16x32xf32>
    %202 = vector.broadcast %184 : vector<1x32xf32> to vector<16x32xf32>
    %203 = arith.mulf %201, %202 : vector<16x32xf32>
    %204 = vector.broadcast %185 : vector<1x32xf32> to vector<16x32xf32>
    %205 = arith.addf %203, %204 : vector<16x32xf32>
    %c0_65 = arith.constant 0 : index
    %c0_66 = arith.constant 0 : index
    %206 = vector.load %arg13[%c0_65, %c0_66] : memref<16x32xf32, #tpu.memory_space<vmem>>, vector<16x32xf32>
    tpu.vector_store %arg13[%c0_65, %c0_66], %205 {strides = array<i32>} : memref<16x32xf32, #tpu.memory_space<vmem>>, vector<16x32xf32>,
    return
  }
}

module attributes {stable_mosaic.version = 11 : i64} {
  func.func @_decoder_layer_kernel(%arg0: memref<16x32xf32, #tpu.memory_space<vmem>>, %arg1: memref<16x32xf32, #tpu.memory_space<vmem>>, %arg2: memref<32x96xbf16, #tpu.memory_space<vmem>>, %arg3: memref<1x96xf32, #tpu.memory_space<vmem>>, %arg4: memref<32x32xf32, #tpu.memory_space<vmem>>, %arg5: memref<1x32xf32, #tpu.memory_space<vmem>>, %arg6: memref<1x32xf32, #tpu.memory_space<vmem>>, %arg7: memref<1x32xf32, #tpu.memory_space<vmem>>, %arg8: memref<32x32xbf16, #tpu.memory_space<vmem>>, %arg9: memref<1x32xf32, #tpu.memory_space<vmem>>, %arg10: memref<32x64xbf16, #tpu.memory_space<vmem>>, %arg11: memref<1x64xf32, #tpu.memory_space<vmem>>, %arg12: memref<32x32xf32, #tpu.memory_space<vmem>>, %arg13: memref<1x32xf32, #tpu.memory_space<vmem>>, %arg14: memref<1x32xf32, #tpu.memory_space<vmem>>, %arg15: memref<1x32xf32, #tpu.memory_space<vmem>>, %arg16: memref<32x64xbf16, #tpu.memory_space<vmem>>, %arg17: memref<1x64xf32, #tpu.memory_space<vmem>>, %arg18: memref<64x32xbf16, #tpu.memory_space<vmem>>, %arg19: memref<1x32xf32, #tpu.memory_space<vmem>>, %arg20: memref<1x32xf32, #tpu.memory_space<vmem>>, %arg21: memref<1x32xf32, #tpu.memory_space<vmem>>, %arg22: memref<16x32xf32, #tpu.memory_space<vmem>>) attributes {dimension_semantics = [], scalar_prefetch = 0 : i64, scratch_operands = 0 : i64, tpu.core_type = #tpu.core_type<tc>} {
    %c0 = arith.constant 0 : index
    %c0_0 = arith.constant 0 : index
    %0 = vector.load %arg0[%c0, %c0_0] : memref<16x32xf32, #tpu.memory_space<vmem>>, vector<16x32xf32>
    %c0_1 = arith.constant 0 : index
    %c0_2 = arith.constant 0 : index
    %1 = vector.load %arg1[%c0_1, %c0_2] : memref<16x32xf32, #tpu.memory_space<vmem>>, vector<16x32xf32>
    %2 = arith.truncf %0 : vector<16x32xf32> to vector<16x32xbf16>
    %c0_3 = arith.constant 0 : index
    %c0_4 = arith.constant 0 : index
    %3 = vector.load %arg2[%c0_3, %c0_4] : memref<32x96xbf16, #tpu.memory_space<vmem>>, vector<32x96xbf16>
    %cst = arith.constant dense<0.000000e+00> : vector<16x96xf32>
    %4 = tpu.matmul %2, %3, %cst {dimension_numbers = #tpu.dot_dimension_numbers<[1], [0], [0], [1], [0, 0, 1, 1], [], []>} : vector<16x32xbf16>, vector<32x96xbf16>, vector<16x96xf32> -> vector<16x96xf32>
    %c0_5 = arith.constant 0 : index
    %c0_6 = arith.constant 0 : index
    %5 = vector.load %arg3[%c0_5, %c0_6] : memref<1x96xf32, #tpu.memory_space<vmem>>, vector<1x96xf32>
    %6 = vector.broadcast %5 : vector<1x96xf32> to vector<16x96xf32>
    %7 = arith.addf %4, %6 : vector<16x96xf32>
    %8 = vector.extract_strided_slice %7 {offsets = [0, 0], sizes = [16, 32], strides = [1, 1]} : vector<16x96xf32> to vector<16x32xf32>
    %9 = vector.extract_strided_slice %7 {offsets = [0, 32], sizes = [16, 32], strides = [1, 1]} : vector<16x96xf32> to vector<16x32xf32>
    %10 = vector.extract_strided_slice %7 {offsets = [0, 64], sizes = [16, 32], strides = [1, 1]} : vector<16x96xf32> to vector<16x32xf32>
    %c0_7 = arith.constant 0 : index
    %c0_8 = arith.constant 0 : index
    %11 = vector.load %arg4[%c0_7, %c0_8] : memref<32x32xf32, #tpu.memory_space<vmem>>, vector<32x32xf32>
    %c0_9 = arith.constant 0 : index
    %c0_10 = arith.constant 0 : index
    %12 = vector.load %arg5[%c0_9, %c0_10] : memref<1x32xf32, #tpu.memory_space<vmem>>, vector<1x32xf32>
    %13 = tpu.iota {dimensions = array<i32: 0>} : vector<8x8xi32>
    %14 = tpu.iota {dimensions = array<i32: 1>} : vector<8x8xi32>
    %15 = arith.cmpi sgt, %14, %13 : vector<8x8xi32>
    %cst_11 = arith.constant -1.000000e+30 : f32
    %cst_12 = arith.constant 0.000000e+00 : f32
    %16 = vector.broadcast %cst_11 : f32 to vector<8x8xf32>
    %17 = vector.broadcast %cst_12 : f32 to vector<8x8xf32>
    %18 = arith.select %15, %16, %17 : vector<8x8xi1>, vector<8x8xf32>
    %19 = vector.shape_cast %18 : vector<8x8xf32> to vector<1x8x8xf32>
    %cst_13 = arith.constant 0.000000e+00 : f32
    %20 = vector.broadcast %cst_13 : f32 to vector<16x32xf32>
    %21 = vector.extract_strided_slice %8 {offsets = [0, 0], sizes = [16, 8], strides = [1, 1]} : vector<16x32xf32> to vector<16x8xf32>
    %22 = vector.shape_cast %21 : vector<16x8xf32> to vector<2x8x8xf32>
    %23 = vector.extract_strided_slice %9 {offsets = [0, 0], sizes = [16, 8], strides = [1, 1]} : vector<16x32xf32> to vector<16x8xf32>
    %24 = vector.shape_cast %23 : vector<16x8xf32> to vector<2x8x8xf32>
    %25 = vector.extract_strided_slice %10 {offsets = [0, 0], sizes = [16, 8], strides = [1, 1]} : vector<16x32xf32> to vector<16x8xf32>
    %26 = vector.shape_cast %25 : vector<16x8xf32> to vector<2x8x8xf32>
    %27 = arith.truncf %22 : vector<2x8x8xf32> to vector<2x8x8xbf16>
    %28 = arith.truncf %24 : vector<2x8x8xf32> to vector<2x8x8xbf16>
    "tpu.trace_start"() <{level = 10 : i32, message = "bqd,bkd->bqk"}> : () -> ()
    %cst_14 = arith.constant dense<0.000000e+00> : vector<2x8x8xf32>
    %29 = tpu.matmul %27, %28, %cst_14 {dimension_numbers = #tpu.dot_dimension_numbers<[2], [2], [1], [1], [0, 0, 0, 1, 1, 1], [0], [0]>} : vector<2x8x8xbf16>, vector<2x8x8xbf16>, vector<2x8x8xf32> -> vector<2x8x8xf32>
    "tpu.trace_stop"() : () -> ()
    %cst_15 = arith.constant 0.353553385 : f32
    %30 = vector.broadcast %cst_15 : f32 to vector<2x8x8xf32>
    %31 = arith.mulf %29, %30 : vector<2x8x8xf32>
    %32 = vector.broadcast %19 : vector<1x8x8xf32> to vector<2x8x8xf32>
    %33 = arith.addf %31, %32 : vector<2x8x8xf32>
    %cst_16 = arith.constant dense<0xFF800000> : vector<2x8xf32>
    %34 = vector.multi_reduction <maximumf>, %33, %cst_16 [2] : vector<2x8x8xf32> to vector<2x8xf32>
    %35 = vector.shape_cast %34 : vector<2x8xf32> to vector<2x8x1xf32>
    %36 = vector.broadcast %35 : vector<2x8x1xf32> to vector<2x8x8xf32>
    %37 = arith.subf %33, %36 : vector<2x8x8xf32>
    %38 = math.exp %37 : vector<2x8x8xf32>
    %cst_17 = arith.constant dense<0.000000e+00> : vector<2x8xf32>
    %39 = vector.multi_reduction <add>, %38, %cst_17 [2] : vector<2x8x8xf32> to vector<2x8xf32>
    %40 = vector.shape_cast %39 : vector<2x8xf32> to vector<2x8x1xf32>
    %41 = vector.broadcast %40 : vector<2x8x1xf32> to vector<2x8x8xf32>
    %42 = arith.divf %38, %41 : vector<2x8x8xf32>
    %43 = arith.truncf %42 : vector<2x8x8xf32> to vector<2x8x8xbf16>
    %44 = arith.truncf %26 : vector<2x8x8xf32> to vector<2x8x8xbf16>
    "tpu.trace_start"() <{level = 10 : i32, message = "bqk,bkd->bqd"}> : () -> ()
    %cst_18 = arith.constant dense<0.000000e+00> : vector<2x8x8xf32>
    %45 = tpu.matmul %43, %44, %cst_18 {dimension_numbers = #tpu.dot_dimension_numbers<[2], [1], [1], [2], [0, 0, 0, 1, 1, 2], [0], [0]>} : vector<2x8x8xbf16>, vector<2x8x8xbf16>, vector<2x8x8xf32> -> vector<2x8x8xf32>
    "tpu.trace_stop"() : () -> ()
    %46 = vector.shape_cast %45 : vector<2x8x8xf32> to vector<16x8xf32>
    %47 = vector.extract_strided_slice %11 {offsets = [0, 0], sizes = [8, 32], strides = [1, 1]} : vector<32x32xf32> to vector<8x32xf32>
    %48 = arith.truncf %47 : vector<8x32xf32> to vector<8x32xbf16>
    %49 = arith.truncf %46 : vector<16x8xf32> to vector<16x8xbf16>
    %cst_19 = arith.constant dense<0.000000e+00> : vector<16x32xf32>
    %50 = tpu.matmul %49, %48, %cst_19 {dimension_numbers = #tpu.dot_dimension_numbers<[1], [0], [0], [1], [0, 0, 1, 1], [], []>} : vector<16x8xbf16>, vector<8x32xbf16>, vector<16x32xf32> -> vector<16x32xf32>
    %51 = arith.addf %20, %50 : vector<16x32xf32>
    %52 = vector.extract_strided_slice %8 {offsets = [0, 8], sizes = [16, 8], strides = [1, 1]} : vector<16x32xf32> to vector<16x8xf32>
    %53 = vector.shape_cast %52 : vector<16x8xf32> to vector<2x8x8xf32>
    %54 = vector.extract_strided_slice %9 {offsets = [0, 8], sizes = [16, 8], strides = [1, 1]} : vector<16x32xf32> to vector<16x8xf32>
    %55 = vector.shape_cast %54 : vector<16x8xf32> to vector<2x8x8xf32>
    %56 = vector.extract_strided_slice %10 {offsets = [0, 8], sizes = [16, 8], strides = [1, 1]} : vector<16x32xf32> to vector<16x8xf32>
    %57 = vector.shape_cast %56 : vector<16x8xf32> to vector<2x8x8xf32>
    %58 = arith.truncf %53 : vector<2x8x8xf32> to vector<2x8x8xbf16>
    %59 = arith.truncf %55 : vector<2x8x8xf32> to vector<2x8x8xbf16>
    "tpu.trace_start"() <{level = 10 : i32, message = "bqd,bkd->bqk"}> : () -> ()
    %cst_20 = arith.constant dense<0.000000e+00> : vector<2x8x8xf32>
    %60 = tpu.matmul %58, %59, %cst_20 {dimension_numbers = #tpu.dot_dimension_numbers<[2], [2], [1], [1], [0, 0, 0, 1, 1, 1], [0], [0]>} : vector<2x8x8xbf16>, vector<2x8x8xbf16>, vector<2x8x8xf32> -> vector<2x8x8xf32>
    "tpu.trace_stop"() : () -> ()
    %cst_21 = arith.constant 0.353553385 : f32
    %61 = vector.broadcast %cst_21 : f32 to vector<2x8x8xf32>
    %62 = arith.mulf %60, %61 : vector<2x8x8xf32>
    %63 = vector.broadcast %19 : vector<1x8x8xf32> to vector<2x8x8xf32>
    %64 = arith.addf %62, %63 : vector<2x8x8xf32>
    %cst_22 = arith.constant dense<0xFF800000> : vector<2x8xf32>
    %65 = vector.multi_reduction <maximumf>, %64, %cst_22 [2] : vector<2x8x8xf32> to vector<2x8xf32>
    %66 = vector.shape_cast %65 : vector<2x8xf32> to vector<2x8x1xf32>
    %67 = vector.broadcast %66 : vector<2x8x1xf32> to vector<2x8x8xf32>
    %68 = arith.subf %64, %67 : vector<2x8x8xf32>
    %69 = math.exp %68 : vector<2x8x8xf32>
    %cst_23 = arith.constant dense<0.000000e+00> : vector<2x8xf32>
    %70 = vector.multi_reduction <add>, %69, %cst_23 [2] : vector<2x8x8xf32> to vector<2x8xf32>
    %71 = vector.shape_cast %70 : vector<2x8xf32> to vector<2x8x1xf32>
    %72 = vector.broadcast %71 : vector<2x8x1xf32> to vector<2x8x8xf32>
    %73 = arith.divf %69, %72 : vector<2x8x8xf32>
    %74 = arith.truncf %73 : vector<2x8x8xf32> to vector<2x8x8xbf16>
    %75 = arith.truncf %57 : vector<2x8x8xf32> to vector<2x8x8xbf16>
    "tpu.trace_start"() <{level = 10 : i32, message = "bqk,bkd->bqd"}> : () -> ()
    %cst_24 = arith.constant dense<0.000000e+00> : vector<2x8x8xf32>
    %76 = tpu.matmul %74, %75, %cst_24 {dimension_numbers = #tpu.dot_dimension_numbers<[2], [1], [1], [2], [0, 0, 0, 1, 1, 2], [0], [0]>} : vector<2x8x8xbf16>, vector<2x8x8xbf16>, vector<2x8x8xf32> -> vector<2x8x8xf32>
    "tpu.trace_stop"() : () -> ()
    %77 = vector.shape_cast %76 : vector<2x8x8xf32> to vector<16x8xf32>
    %78 = vector.extract_strided_slice %11 {offsets = [8, 0], sizes = [8, 32], strides = [1, 1]} : vector<32x32xf32> to vector<8x32xf32>
    %79 = arith.truncf %78 : vector<8x32xf32> to vector<8x32xbf16>
    %80 = arith.truncf %77 : vector<16x8xf32> to vector<16x8xbf16>
    %cst_25 = arith.constant dense<0.000000e+00> : vector<16x32xf32>
    %81 = tpu.matmul %80, %79, %cst_25 {dimension_numbers = #tpu.dot_dimension_numbers<[1], [0], [0], [1], [0, 0, 1, 1], [], []>} : vector<16x8xbf16>, vector<8x32xbf16>, vector<16x32xf32> -> vector<16x32xf32>
    %82 = arith.addf %51, %81 : vector<16x32xf32>
    %83 = vector.extract_strided_slice %8 {offsets = [0, 16], sizes = [16, 8], strides = [1, 1]} : vector<16x32xf32> to vector<16x8xf32>
    %84 = vector.shape_cast %83 : vector<16x8xf32> to vector<2x8x8xf32>
    %85 = vector.extract_strided_slice %9 {offsets = [0, 16], sizes = [16, 8], strides = [1, 1]} : vector<16x32xf32> to vector<16x8xf32>
    %86 = vector.shape_cast %85 : vector<16x8xf32> to vector<2x8x8xf32>
    %87 = vector.extract_strided_slice %10 {offsets = [0, 16], sizes = [16, 8], strides = [1, 1]} : vector<16x32xf32> to vector<16x8xf32>
    %88 = vector.shape_cast %87 : vector<16x8xf32> to vector<2x8x8xf32>
    %89 = arith.truncf %84 : vector<2x8x8xf32> to vector<2x8x8xbf16>
    %90 = arith.truncf %86 : vector<2x8x8xf32> to vector<2x8x8xbf16>
    "tpu.trace_start"() <{level = 10 : i32, message = "bqd,bkd->bqk"}> : () -> ()
    %cst_26 = arith.constant dense<0.000000e+00> : vector<2x8x8xf32>
    %91 = tpu.matmul %89, %90, %cst_26 {dimension_numbers = #tpu.dot_dimension_numbers<[2], [2], [1], [1], [0, 0, 0, 1, 1, 1], [0], [0]>} : vector<2x8x8xbf16>, vector<2x8x8xbf16>, vector<2x8x8xf32> -> vector<2x8x8xf32>
    "tpu.trace_stop"() : () -> ()
    %cst_27 = arith.constant 0.353553385 : f32
    %92 = vector.broadcast %cst_27 : f32 to vector<2x8x8xf32>
    %93 = arith.mulf %91, %92 : vector<2x8x8xf32>
    %94 = vector.broadcast %19 : vector<1x8x8xf32> to vector<2x8x8xf32>
    %95 = arith.addf %93, %94 : vector<2x8x8xf32>
    %cst_28 = arith.constant dense<0xFF800000> : vector<2x8xf32>
    %96 = vector.multi_reduction <maximumf>, %95, %cst_28 [2] : vector<2x8x8xf32> to vector<2x8xf32>
    %97 = vector.shape_cast %96 : vector<2x8xf32> to vector<2x8x1xf32>
    %98 = vector.broadcast %97 : vector<2x8x1xf32> to vector<2x8x8xf32>
    %99 = arith.subf %95, %98 : vector<2x8x8xf32>
    %100 = math.exp %99 : vector<2x8x8xf32>
    %cst_29 = arith.constant dense<0.000000e+00> : vector<2x8xf32>
    %101 = vector.multi_reduction <add>, %100, %cst_29 [2] : vector<2x8x8xf32> to vector<2x8xf32>
    %102 = vector.shape_cast %101 : vector<2x8xf32> to vector<2x8x1xf32>
    %103 = vector.broadcast %102 : vector<2x8x1xf32> to vector<2x8x8xf32>
    %104 = arith.divf %100, %103 : vector<2x8x8xf32>
    %105 = arith.truncf %104 : vector<2x8x8xf32> to vector<2x8x8xbf16>
    %106 = arith.truncf %88 : vector<2x8x8xf32> to vector<2x8x8xbf16>
    "tpu.trace_start"() <{level = 10 : i32, message = "bqk,bkd->bqd"}> : () -> ()
    %cst_30 = arith.constant dense<0.000000e+00> : vector<2x8x8xf32>
    %107 = tpu.matmul %105, %106, %cst_30 {dimension_numbers = #tpu.dot_dimension_numbers<[2], [1], [1], [2], [0, 0, 0, 1, 1, 2], [0], [0]>} : vector<2x8x8xbf16>, vector<2x8x8xbf16>, vector<2x8x8xf32> -> vector<2x8x8xf32>
    "tpu.trace_stop"() : () -> ()
    %108 = vector.shape_cast %107 : vector<2x8x8xf32> to vector<16x8xf32>
    %109 = vector.extract_strided_slice %11 {offsets = [16, 0], sizes = [8, 32], strides = [1, 1]} : vector<32x32xf32> to vector<8x32xf32>
    %110 = arith.truncf %109 : vector<8x32xf32> to vector<8x32xbf16>
    %111 = arith.truncf %108 : vector<16x8xf32> to vector<16x8xbf16>
    %cst_31 = arith.constant dense<0.000000e+00> : vector<16x32xf32>
    %112 = tpu.matmul %111, %110, %cst_31 {dimension_numbers = #tpu.dot_dimension_numbers<[1], [0], [0], [1], [0, 0, 1, 1], [], []>} : vector<16x8xbf16>, vector<8x32xbf16>, vector<16x32xf32> -> vector<16x32xf32>
    %113 = arith.addf %82, %112 : vector<16x32xf32>
    %114 = vector.extract_strided_slice %8 {offsets = [0, 24], sizes = [16, 8], strides = [1, 1]} : vector<16x32xf32> to vector<16x8xf32>
    %115 = vector.shape_cast %114 : vector<16x8xf32> to vector<2x8x8xf32>
    %116 = vector.extract_strided_slice %9 {offsets = [0, 24], sizes = [16, 8], strides = [1, 1]} : vector<16x32xf32> to vector<16x8xf32>
    %117 = vector.shape_cast %116 : vector<16x8xf32> to vector<2x8x8xf32>
    %118 = vector.extract_strided_slice %10 {offsets = [0, 24], sizes = [16, 8], strides = [1, 1]} : vector<16x32xf32> to vector<16x8xf32>
    %119 = vector.shape_cast %118 : vector<16x8xf32> to vector<2x8x8xf32>
    %120 = arith.truncf %115 : vector<2x8x8xf32> to vector<2x8x8xbf16>
    %121 = arith.truncf %117 : vector<2x8x8xf32> to vector<2x8x8xbf16>
    "tpu.trace_start"() <{level = 10 : i32, message = "bqd,bkd->bqk"}> : () -> ()
    %cst_32 = arith.constant dense<0.000000e+00> : vector<2x8x8xf32>
    %122 = tpu.matmul %120, %121, %cst_32 {dimension_numbers = #tpu.dot_dimension_numbers<[2], [2], [1], [1], [0, 0, 0, 1, 1, 1], [0], [0]>} : vector<2x8x8xbf16>, vector<2x8x8xbf16>, vector<2x8x8xf32> -> vector<2x8x8xf32>
    "tpu.trace_stop"() : () -> ()
    %cst_33 = arith.constant 0.353553385 : f32
    %123 = vector.broadcast %cst_33 : f32 to vector<2x8x8xf32>
    %124 = arith.mulf %122, %123 : vector<2x8x8xf32>
    %125 = vector.broadcast %19 : vector<1x8x8xf32> to vector<2x8x8xf32>
    %126 = arith.addf %124, %125 : vector<2x8x8xf32>
    %cst_34 = arith.constant dense<0xFF800000> : vector<2x8xf32>
    %127 = vector.multi_reduction <maximumf>, %126, %cst_34 [2] : vector<2x8x8xf32> to vector<2x8xf32>
    %128 = vector.shape_cast %127 : vector<2x8xf32> to vector<2x8x1xf32>
    %129 = vector.broadcast %128 : vector<2x8x1xf32> to vector<2x8x8xf32>
    %130 = arith.subf %126, %129 : vector<2x8x8xf32>
    %131 = math.exp %130 : vector<2x8x8xf32>
    %cst_35 = arith.constant dense<0.000000e+00> : vector<2x8xf32>
    %132 = vector.multi_reduction <add>, %131, %cst_35 [2] : vector<2x8x8xf32> to vector<2x8xf32>
    %133 = vector.shape_cast %132 : vector<2x8xf32> to vector<2x8x1xf32>
    %134 = vector.broadcast %133 : vector<2x8x1xf32> to vector<2x8x8xf32>
    %135 = arith.divf %131, %134 : vector<2x8x8xf32>
    %136 = arith.truncf %135 : vector<2x8x8xf32> to vector<2x8x8xbf16>
    %137 = arith.truncf %119 : vector<2x8x8xf32> to vector<2x8x8xbf16>
    "tpu.trace_start"() <{level = 10 : i32, message = "bqk,bkd->bqd"}> : () -> ()
    %cst_36 = arith.constant dense<0.000000e+00> : vector<2x8x8xf32>
    %138 = tpu.matmul %136, %137, %cst_36 {dimension_numbers = #tpu.dot_dimension_numbers<[2], [1], [1], [2], [0, 0, 0, 1, 1, 2], [0], [0]>} : vector<2x8x8xbf16>, vector<2x8x8xbf16>, vector<2x8x8xf32> -> vector<2x8x8xf32>
    "tpu.trace_stop"() : () -> ()
    %139 = vector.shape_cast %138 : vector<2x8x8xf32> to vector<16x8xf32>
    %140 = vector.extract_strided_slice %11 {offsets = [24, 0], sizes = [8, 32], strides = [1, 1]} : vector<32x32xf32> to vector<8x32xf32>
    %141 = arith.truncf %140 : vector<8x32xf32> to vector<8x32xbf16>
    %142 = arith.truncf %139 : vector<16x8xf32> to vector<16x8xbf16>
    %cst_37 = arith.constant dense<0.000000e+00> : vector<16x32xf32>
    %143 = tpu.matmul %142, %141, %cst_37 {dimension_numbers = #tpu.dot_dimension_numbers<[1], [0], [0], [1], [0, 0, 1, 1], [], []>} : vector<16x8xbf16>, vector<8x32xbf16>, vector<16x32xf32> -> vector<16x32xf32>
    %144 = arith.addf %113, %143 : vector<16x32xf32>
    %145 = vector.broadcast %12 : vector<1x32xf32> to vector<16x32xf32>
    %146 = arith.addf %144, %145 : vector<16x32xf32>
    %147 = arith.addf %0, %146 : vector<16x32xf32>
    %c0_38 = arith.constant 0 : index
    %c0_39 = arith.constant 0 : index
    %148 = vector.load %arg6[%c0_38, %c0_39] : memref<1x32xf32, #tpu.memory_space<vmem>>, vector<1x32xf32>
    %c0_40 = arith.constant 0 : index
    %c0_41 = arith.constant 0 : index
    %149 = vector.load %arg7[%c0_40, %c0_41] : memref<1x32xf32, #tpu.memory_space<vmem>>, vector<1x32xf32>
    %cst_42 = arith.constant dense<0.000000e+00> : vector<16xf32>
    %150 = vector.multi_reduction <add>, %147, %cst_42 [1] : vector<16x32xf32> to vector<16xf32>
    %151 = vector.shape_cast %150 : vector<16xf32> to vector<16x1xf32>
    %cst_43 = arith.constant 3.200000e+01 : f32
    %152 = vector.broadcast %cst_43 : f32 to vector<16x1xf32>
    %153 = arith.divf %151, %152 : vector<16x1xf32>
    %154 = vector.broadcast %153 : vector<16x1xf32> to vector<16x32xf32>
    %155 = arith.subf %147, %154 : vector<16x32xf32>
    %156 = arith.mulf %155, %155 : vector<16x32xf32>
    %cst_44 = arith.constant dense<0.000000e+00> : vector<16xf32>
    %157 = vector.multi_reduction <add>, %156, %cst_44 [1] : vector<16x32xf32> to vector<16xf32>
    %158 = vector.shape_cast %157 : vector<16xf32> to vector<16x1xf32>
    %cst_45 = arith.constant 3.200000e+01 : f32
    %159 = vector.broadcast %cst_45 : f32 to vector<16x1xf32>
    %160 = arith.divf %158, %159 : vector<16x1xf32>
    %cst_46 = arith.constant 9.99999974E-6 : f32
    %161 = vector.broadcast %cst_46 : f32 to vector<16x1xf32>
    %162 = arith.addf %160, %161 : vector<16x1xf32>
    %163 = math.rsqrt %162 : vector<16x1xf32>
    %164 = vector.broadcast %163 : vector<16x1xf32> to vector<16x32xf32>
    %165 = arith.mulf %155, %164 : vector<16x32xf32>
    %166 = vector.broadcast %148 : vector<1x32xf32> to vector<16x32xf32>
    %167 = arith.mulf %165, %166 : vector<16x32xf32>
    %168 = vector.broadcast %149 : vector<1x32xf32> to vector<16x32xf32>
    %169 = arith.addf %167, %168 : vector<16x32xf32>
    %170 = arith.truncf %169 : vector<16x32xf32> to vector<16x32xbf16>
    %c0_47 = arith.constant 0 : index
    %c0_48 = arith.constant 0 : index
    %171 = vector.load %arg8[%c0_47, %c0_48] : memref<32x32xbf16, #tpu.memory_space<vmem>>, vector<32x32xbf16>
    %cst_49 = arith.constant dense<0.000000e+00> : vector<16x32xf32>
    %172 = tpu.matmul %170, %171, %cst_49 {dimension_numbers = #tpu.dot_dimension_numbers<[1], [0], [0], [1], [0, 0, 1, 1], [], []>} : vector<16x32xbf16>, vector<32x32xbf16>, vector<16x32xf32> -> vector<16x32xf32>
    %c0_50 = arith.constant 0 : index
    %c0_51 = arith.constant 0 : index
    %173 = vector.load %arg9[%c0_50, %c0_51] : memref<1x32xf32, #tpu.memory_space<vmem>>, vector<1x32xf32>
    %174 = vector.broadcast %173 : vector<1x32xf32> to vector<16x32xf32>
    %175 = arith.addf %172, %174 : vector<16x32xf32>
    %176 = arith.truncf %1 : vector<16x32xf32> to vector<16x32xbf16>
    %c0_52 = arith.constant 0 : index
    %c0_53 = arith.constant 0 : index
    %177 = vector.load %arg10[%c0_52, %c0_53] : memref<32x64xbf16, #tpu.memory_space<vmem>>, vector<32x64xbf16>
    %cst_54 = arith.constant dense<0.000000e+00> : vector<16x64xf32>
    %178 = tpu.matmul %176, %177, %cst_54 {dimension_numbers = #tpu.dot_dimension_numbers<[1], [0], [0], [1], [0, 0, 1, 1], [], []>} : vector<16x32xbf16>, vector<32x64xbf16>, vector<16x64xf32> -> vector<16x64xf32>
    %c0_55 = arith.constant 0 : index
    %c0_56 = arith.constant 0 : index
    %179 = vector.load %arg11[%c0_55, %c0_56] : memref<1x64xf32, #tpu.memory_space<vmem>>, vector<1x64xf32>
    %180 = vector.broadcast %179 : vector<1x64xf32> to vector<16x64xf32>
    %181 = arith.addf %178, %180 : vector<16x64xf32>
    %182 = vector.extract_strided_slice %181 {offsets = [0, 0], sizes = [16, 32], strides = [1, 1]} : vector<16x64xf32> to vector<16x32xf32>
    %183 = vector.extract_strided_slice %181 {offsets = [0, 32], sizes = [16, 32], strides = [1, 1]} : vector<16x64xf32> to vector<16x32xf32>
    %c0_57 = arith.constant 0 : index
    %c0_58 = arith.constant 0 : index
    %184 = vector.load %arg12[%c0_57, %c0_58] : memref<32x32xf32, #tpu.memory_space<vmem>>, vector<32x32xf32>
    %c0_59 = arith.constant 0 : index
    %c0_60 = arith.constant 0 : index
    %185 = vector.load %arg13[%c0_59, %c0_60] : memref<1x32xf32, #tpu.memory_space<vmem>>, vector<1x32xf32>
    %cst_61 = arith.constant 0.000000e+00 : f32
    %186 = vector.broadcast %cst_61 : f32 to vector<16x32xf32>
    %187 = vector.extract_strided_slice %175 {offsets = [0, 0], sizes = [16, 8], strides = [1, 1]} : vector<16x32xf32> to vector<16x8xf32>
    %188 = vector.shape_cast %187 : vector<16x8xf32> to vector<2x8x8xf32>
    %189 = vector.extract_strided_slice %182 {offsets = [0, 0], sizes = [16, 8], strides = [1, 1]} : vector<16x32xf32> to vector<16x8xf32>
    %190 = vector.shape_cast %189 : vector<16x8xf32> to vector<2x8x8xf32>
    %191 = vector.extract_strided_slice %183 {offsets = [0, 0], sizes = [16, 8], strides = [1, 1]} : vector<16x32xf32> to vector<16x8xf32>
    %192 = vector.shape_cast %191 : vector<16x8xf32> to vector<2x8x8xf32>
    %193 = arith.truncf %188 : vector<2x8x8xf32> to vector<2x8x8xbf16>
    %194 = arith.truncf %190 : vector<2x8x8xf32> to vector<2x8x8xbf16>
    "tpu.trace_start"() <{level = 10 : i32, message = "bqd,bkd->bqk"}> : () -> ()
    %cst_62 = arith.constant dense<0.000000e+00> : vector<2x8x8xf32>
    %195 = tpu.matmul %193, %194, %cst_62 {dimension_numbers = #tpu.dot_dimension_numbers<[2], [2], [1], [1], [0, 0, 0, 1, 1, 1], [0], [0]>} : vector<2x8x8xbf16>, vector<2x8x8xbf16>, vector<2x8x8xf32> -> vector<2x8x8xf32>
    "tpu.trace_stop"() : () -> ()
    %cst_63 = arith.constant 0.353553385 : f32
    %196 = vector.broadcast %cst_63 : f32 to vector<2x8x8xf32>
    %197 = arith.mulf %195, %196 : vector<2x8x8xf32>
    %cst_64 = arith.constant dense<0xFF800000> : vector<2x8xf32>
    %198 = vector.multi_reduction <maximumf>, %197, %cst_64 [2] : vector<2x8x8xf32> to vector<2x8xf32>
    %199 = vector.shape_cast %198 : vector<2x8xf32> to vector<2x8x1xf32>
    %200 = vector.broadcast %199 : vector<2x8x1xf32> to vector<2x8x8xf32>
    %201 = arith.subf %197, %200 : vector<2x8x8xf32>
    %202 = math.exp %201 : vector<2x8x8xf32>
    %cst_65 = arith.constant dense<0.000000e+00> : vector<2x8xf32>
    %203 = vector.multi_reduction <add>, %202, %cst_65 [2] : vector<2x8x8xf32> to vector<2x8xf32>
    %204 = vector.shape_cast %203 : vector<2x8xf32> to vector<2x8x1xf32>
    %205 = vector.broadcast %204 : vector<2x8x1xf32> to vector<2x8x8xf32>
    %206 = arith.divf %202, %205 : vector<2x8x8xf32>
    %207 = arith.truncf %206 : vector<2x8x8xf32> to vector<2x8x8xbf16>
    %208 = arith.truncf %192 : vector<2x8x8xf32> to vector<2x8x8xbf16>
    "tpu.trace_start"() <{level = 10 : i32, message = "bqk,bkd->bqd"}> : () -> ()
    %cst_66 = arith.constant dense<0.000000e+00> : vector<2x8x8xf32>
    %209 = tpu.matmul %207, %208, %cst_66 {dimension_numbers = #tpu.dot_dimension_numbers<[2], [1], [1], [2], [0, 0, 0, 1, 1, 2], [0], [0]>} : vector<2x8x8xbf16>, vector<2x8x8xbf16>, vector<2x8x8xf32> -> vector<2x8x8xf32>
    "tpu.trace_stop"() : () -> ()
    %210 = vector.shape_cast %209 : vector<2x8x8xf32> to vector<16x8xf32>
    %211 = vector.extract_strided_slice %184 {offsets = [0, 0], sizes = [8, 32], strides = [1, 1]} : vector<32x32xf32> to vector<8x32xf32>
    %212 = arith.truncf %211 : vector<8x32xf32> to vector<8x32xbf16>
    %213 = arith.truncf %210 : vector<16x8xf32> to vector<16x8xbf16>
    %cst_67 = arith.constant dense<0.000000e+00> : vector<16x32xf32>
    %214 = tpu.matmul %213, %212, %cst_67 {dimension_numbers = #tpu.dot_dimension_numbers<[1], [0], [0], [1], [0, 0, 1, 1], [], []>} : vector<16x8xbf16>, vector<8x32xbf16>, vector<16x32xf32> -> vector<16x32xf32>
    %215 = arith.addf %186, %214 : vector<16x32xf32>
    %216 = vector.extract_strided_slice %175 {offsets = [0, 8], sizes = [16, 8], strides = [1, 1]} : vector<16x32xf32> to vector<16x8xf32>
    %217 = vector.shape_cast %216 : vector<16x8xf32> to vector<2x8x8xf32>
    %218 = vector.extract_strided_slice %182 {offsets = [0, 8], sizes = [16, 8], strides = [1, 1]} : vector<16x32xf32> to vector<16x8xf32>
    %219 = vector.shape_cast %218 : vector<16x8xf32> to vector<2x8x8xf32>
    %220 = vector.extract_strided_slice %183 {offsets = [0, 8], sizes = [16, 8], strides = [1, 1]} : vector<16x32xf32> to vector<16x8xf32>
    %221 = vector.shape_cast %220 : vector<16x8xf32> to vector<2x8x8xf32>
    %222 = arith.truncf %217 : vector<2x8x8xf32> to vector<2x8x8xbf16>
    %223 = arith.truncf %219 : vector<2x8x8xf32> to vector<2x8x8xbf16>
    "tpu.trace_start"() <{level = 10 : i32, message = "bqd,bkd->bqk"}> : () -> ()
    %cst_68 = arith.constant dense<0.000000e+00> : vector<2x8x8xf32>
    %224 = tpu.matmul %222, %223, %cst_68 {dimension_numbers = #tpu.dot_dimension_numbers<[2], [2], [1], [1], [0, 0, 0, 1, 1, 1], [0], [0]>} : vector<2x8x8xbf16>, vector<2x8x8xbf16>, vector<2x8x8xf32> -> vector<2x8x8xf32>
    "tpu.trace_stop"() : () -> ()
    %cst_69 = arith.constant 0.353553385 : f32
    %225 = vector.broadcast %cst_69 : f32 to vector<2x8x8xf32>
    %226 = arith.mulf %224, %225 : vector<2x8x8xf32>
    %cst_70 = arith.constant dense<0xFF800000> : vector<2x8xf32>
    %227 = vector.multi_reduction <maximumf>, %226, %cst_70 [2] : vector<2x8x8xf32> to vector<2x8xf32>
    %228 = vector.shape_cast %227 : vector<2x8xf32> to vector<2x8x1xf32>
    %229 = vector.broadcast %228 : vector<2x8x1xf32> to vector<2x8x8xf32>
    %230 = arith.subf %226, %229 : vector<2x8x8xf32>
    %231 = math.exp %230 : vector<2x8x8xf32>
    %cst_71 = arith.constant dense<0.000000e+00> : vector<2x8xf32>
    %232 = vector.multi_reduction <add>, %231, %cst_71 [2] : vector<2x8x8xf32> to vector<2x8xf32>
    %233 = vector.shape_cast %232 : vector<2x8xf32> to vector<2x8x1xf32>
    %234 = vector.broadcast %233 : vector<2x8x1xf32> to vector<2x8x8xf32>
    %235 = arith.divf %231, %234 : vector<2x8x8xf32>
    %236 = arith.truncf %235 : vector<2x8x8xf32> to vector<2x8x8xbf16>
    %237 = arith.truncf %221 : vector<2x8x8xf32> to vector<2x8x8xbf16>
    "tpu.trace_start"() <{level = 10 : i32, message = "bqk,bkd->bqd"}> : () -> ()
    %cst_72 = arith.constant dense<0.000000e+00> : vector<2x8x8xf32>
    %238 = tpu.matmul %236, %237, %cst_72 {dimension_numbers = #tpu.dot_dimension_numbers<[2], [1], [1], [2], [0, 0, 0, 1, 1, 2], [0], [0]>} : vector<2x8x8xbf16>, vector<2x8x8xbf16>, vector<2x8x8xf32> -> vector<2x8x8xf32>
    "tpu.trace_stop"() : () -> ()
    %239 = vector.shape_cast %238 : vector<2x8x8xf32> to vector<16x8xf32>
    %240 = vector.extract_strided_slice %184 {offsets = [8, 0], sizes = [8, 32], strides = [1, 1]} : vector<32x32xf32> to vector<8x32xf32>
    %241 = arith.truncf %240 : vector<8x32xf32> to vector<8x32xbf16>
    %242 = arith.truncf %239 : vector<16x8xf32> to vector<16x8xbf16>
    %cst_73 = arith.constant dense<0.000000e+00> : vector<16x32xf32>
    %243 = tpu.matmul %242, %241, %cst_73 {dimension_numbers = #tpu.dot_dimension_numbers<[1], [0], [0], [1], [0, 0, 1, 1], [], []>} : vector<16x8xbf16>, vector<8x32xbf16>, vector<16x32xf32> -> vector<16x32xf32>
    %244 = arith.addf %215, %243 : vector<16x32xf32>
    %245 = vector.extract_strided_slice %175 {offsets = [0, 16], sizes = [16, 8], strides = [1, 1]} : vector<16x32xf32> to vector<16x8xf32>
    %246 = vector.shape_cast %245 : vector<16x8xf32> to vector<2x8x8xf32>
    %247 = vector.extract_strided_slice %182 {offsets = [0, 16], sizes = [16, 8], strides = [1, 1]} : vector<16x32xf32> to vector<16x8xf32>
    %248 = vector.shape_cast %247 : vector<16x8xf32> to vector<2x8x8xf32>
    %249 = vector.extract_strided_slice %183 {offsets = [0, 16], sizes = [16, 8], strides = [1, 1]} : vector<16x32xf32> to vector<16x8xf32>
    %250 = vector.shape_cast %249 : vector<16x8xf32> to vector<2x8x8xf32>
    %251 = arith.truncf %246 : vector<2x8x8xf32> to vector<2x8x8xbf16>
    %252 = arith.truncf %248 : vector<2x8x8xf32> to vector<2x8x8xbf16>
    "tpu.trace_start"() <{level = 10 : i32, message = "bqd,bkd->bqk"}> : () -> ()
    %cst_74 = arith.constant dense<0.000000e+00> : vector<2x8x8xf32>
    %253 = tpu.matmul %251, %252, %cst_74 {dimension_numbers = #tpu.dot_dimension_numbers<[2], [2], [1], [1], [0, 0, 0, 1, 1, 1], [0], [0]>} : vector<2x8x8xbf16>, vector<2x8x8xbf16>, vector<2x8x8xf32> -> vector<2x8x8xf32>
    "tpu.trace_stop"() : () -> ()
    %cst_75 = arith.constant 0.353553385 : f32
    %254 = vector.broadcast %cst_75 : f32 to vector<2x8x8xf32>
    %255 = arith.mulf %253, %254 : vector<2x8x8xf32>
    %cst_76 = arith.constant dense<0xFF800000> : vector<2x8xf32>
    %256 = vector.multi_reduction <maximumf>, %255, %cst_76 [2] : vector<2x8x8xf32> to vector<2x8xf32>
    %257 = vector.shape_cast %256 : vector<2x8xf32> to vector<2x8x1xf32>
    %258 = vector.broadcast %257 : vector<2x8x1xf32> to vector<2x8x8xf32>
    %259 = arith.subf %255, %258 : vector<2x8x8xf32>
    %260 = math.exp %259 : vector<2x8x8xf32>
    %cst_77 = arith.constant dense<0.000000e+00> : vector<2x8xf32>
    %261 = vector.multi_reduction <add>, %260, %cst_77 [2] : vector<2x8x8xf32> to vector<2x8xf32>
    %262 = vector.shape_cast %261 : vector<2x8xf32> to vector<2x8x1xf32>
    %263 = vector.broadcast %262 : vector<2x8x1xf32> to vector<2x8x8xf32>
    %264 = arith.divf %260, %263 : vector<2x8x8xf32>
    %265 = arith.truncf %264 : vector<2x8x8xf32> to vector<2x8x8xbf16>
    %266 = arith.truncf %250 : vector<2x8x8xf32> to vector<2x8x8xbf16>
    "tpu.trace_start"() <{level = 10 : i32, message = "bqk,bkd->bqd"}> : () -> ()
    %cst_78 = arith.constant dense<0.000000e+00> : vector<2x8x8xf32>
    %267 = tpu.matmul %265, %266, %cst_78 {dimension_numbers = #tpu.dot_dimension_numbers<[2], [1], [1], [2], [0, 0, 0, 1, 1, 2], [0], [0]>} : vector<2x8x8xbf16>, vector<2x8x8xbf16>, vector<2x8x8xf32> -> vector<2x8x8xf32>
    "tpu.trace_stop"() : () -> ()
    %268 = vector.shape_cast %267 : vector<2x8x8xf32> to vector<16x8xf32>
    %269 = vector.extract_strided_slice %184 {offsets = [16, 0], sizes = [8, 32], strides = [1, 1]} : vector<32x32xf32> to vector<8x32xf32>
    %270 = arith.truncf %269 : vector<8x32xf32> to vector<8x32xbf16>
    %271 = arith.truncf %268 : vector<16x8xf32> to vector<16x8xbf16>
    %cst_79 = arith.constant dense<0.000000e+00> : vector<16x32xf32>
    %272 = tpu.matmul %271, %270, %cst_79 {dimension_numbers = #tpu.dot_dimension_numbers<[1], [0], [0], [1], [0, 0, 1, 1], [], []>} : vector<16x8xbf16>, vector<8x32xbf16>, vector<16x32xf32> -> vector<16x32xf32>
    %273 = arith.addf %244, %272 : vector<16x32xf32>
    %274 = vector.extract_strided_slice %175 {offsets = [0, 24], sizes = [16, 8], strides = [1, 1]} : vector<16x32xf32> to vector<16x8xf32>
    %275 = vector.shape_cast %274 : vector<16x8xf32> to vector<2x8x8xf32>
    %276 = vector.extract_strided_slice %182 {offsets = [0, 24], sizes = [16, 8], strides = [1, 1]} : vector<16x32xf32> to vector<16x8xf32>
    %277 = vector.shape_cast %276 : vector<16x8xf32> to vector<2x8x8xf32>
    %278 = vector.extract_strided_slice %183 {offsets = [0, 24], sizes = [16, 8], strides = [1, 1]} : vector<16x32xf32> to vector<16x8xf32>
    %279 = vector.shape_cast %278 : vector<16x8xf32> to vector<2x8x8xf32>
    %280 = arith.truncf %275 : vector<2x8x8xf32> to vector<2x8x8xbf16>
    %281 = arith.truncf %277 : vector<2x8x8xf32> to vector<2x8x8xbf16>
    "tpu.trace_start"() <{level = 10 : i32, message = "bqd,bkd->bqk"}> : () -> ()
    %cst_80 = arith.constant dense<0.000000e+00> : vector<2x8x8xf32>
    %282 = tpu.matmul %280, %281, %cst_80 {dimension_numbers = #tpu.dot_dimension_numbers<[2], [2], [1], [1], [0, 0, 0, 1, 1, 1], [0], [0]>} : vector<2x8x8xbf16>, vector<2x8x8xbf16>, vector<2x8x8xf32> -> vector<2x8x8xf32>
    "tpu.trace_stop"() : () -> ()
    %cst_81 = arith.constant 0.353553385 : f32
    %283 = vector.broadcast %cst_81 : f32 to vector<2x8x8xf32>
    %284 = arith.mulf %282, %283 : vector<2x8x8xf32>
    %cst_82 = arith.constant dense<0xFF800000> : vector<2x8xf32>
    %285 = vector.multi_reduction <maximumf>, %284, %cst_82 [2] : vector<2x8x8xf32> to vector<2x8xf32>
    %286 = vector.shape_cast %285 : vector<2x8xf32> to vector<2x8x1xf32>
    %287 = vector.broadcast %286 : vector<2x8x1xf32> to vector<2x8x8xf32>
    %288 = arith.subf %284, %287 : vector<2x8x8xf32>
    %289 = math.exp %288 : vector<2x8x8xf32>
    %cst_83 = arith.constant dense<0.000000e+00> : vector<2x8xf32>
    %290 = vector.multi_reduction <add>, %289, %cst_83 [2] : vector<2x8x8xf32> to vector<2x8xf32>
    %291 = vector.shape_cast %290 : vector<2x8xf32> to vector<2x8x1xf32>
    %292 = vector.broadcast %291 : vector<2x8x1xf32> to vector<2x8x8xf32>
    %293 = arith.divf %289, %292 : vector<2x8x8xf32>
    %294 = arith.truncf %293 : vector<2x8x8xf32> to vector<2x8x8xbf16>
    %295 = arith.truncf %279 : vector<2x8x8xf32> to vector<2x8x8xbf16>
    "tpu.trace_start"() <{level = 10 : i32, message = "bqk,bkd->bqd"}> : () -> ()
    %cst_84 = arith.constant dense<0.000000e+00> : vector<2x8x8xf32>
    %296 = tpu.matmul %294, %295, %cst_84 {dimension_numbers = #tpu.dot_dimension_numbers<[2], [1], [1], [2], [0, 0, 0, 1, 1, 2], [0], [0]>} : vector<2x8x8xbf16>, vector<2x8x8xbf16>, vector<2x8x8xf32> -> vector<2x8x8xf32>
    "tpu.trace_stop"() : () -> ()
    %297 = vector.shape_cast %296 : vector<2x8x8xf32> to vector<16x8xf32>
    %298 = vector.extract_strided_slice %184 {offsets = [24, 0], sizes = [8, 32], strides = [1, 1]} : vector<32x32xf32> to vector<8x32xf32>
    %299 = arith.truncf %298 : vector<8x32xf32> to vector<8x32xbf16>
    %300 = arith.truncf %297 : vector<16x8xf32> to vector<16x8xbf16>
    %cst_85 = arith.constant dense<0.000000e+00> : vector<16x32xf32>
    %301 = tpu.matmul %300, %299, %cst_85 {dimension_numbers = #tpu.dot_dimension_numbers<[1], [0], [0], [1], [0, 0, 1, 1], [], []>} : vector<16x8xbf16>, vector<8x32xbf16>, vector<16x32xf32> -> vector<16x32xf32>
    %302 = arith.addf %273, %301 : vector<16x32xf32>
    %303 = vector.broadcast %185 : vector<1x32xf32> to vector<16x32xf32>
    %304 = arith.addf %302, %303 : vector<16x32xf32>
    %305 = arith.addf %169, %304 : vector<16x32xf32>
    %c0_86 = arith.constant 0 : index
    %c0_87 = arith.constant 0 : index
    %306 = vector.load %arg14[%c0_86, %c0_87] : memref<1x32xf32, #tpu.memory_space<vmem>>, vector<1x32xf32>
    %c0_88 = arith.constant 0 : index
    %c0_89 = arith.constant 0 : index
    %307 = vector.load %arg15[%c0_88, %c0_89] : memref<1x32xf32, #tpu.memory_space<vmem>>, vector<1x32xf32>
    %cst_90 = arith.constant dense<0.000000e+00> : vector<16xf32>
    %308 = vector.multi_reduction <add>, %305, %cst_90 [1] : vector<16x32xf32> to vector<16xf32>
    %309 = vector.shape_cast %308 : vector<16xf32> to vector<16x1xf32>
    %cst_91 = arith.constant 3.200000e+01 : f32
    %310 = vector.broadcast %cst_91 : f32 to vector<16x1xf32>
    %311 = arith.divf %309, %310 : vector<16x1xf32>
    %312 = vector.broadcast %311 : vector<16x1xf32> to vector<16x32xf32>
    %313 = arith.subf %305, %312 : vector<16x32xf32>
    %314 = arith.mulf %313, %313 : vector<16x32xf32>
    %cst_92 = arith.constant dense<0.000000e+00> : vector<16xf32>
    %315 = vector.multi_reduction <add>, %314, %cst_92 [1] : vector<16x32xf32> to vector<16xf32>
    %316 = vector.shape_cast %315 : vector<16xf32> to vector<16x1xf32>
    %cst_93 = arith.constant 3.200000e+01 : f32
    %317 = vector.broadcast %cst_93 : f32 to vector<16x1xf32>
    %318 = arith.divf %316, %317 : vector<16x1xf32>
    %cst_94 = arith.constant 9.99999974E-6 : f32
    %319 = vector.broadcast %cst_94 : f32 to vector<16x1xf32>
    %320 = arith.addf %318, %319 : vector<16x1xf32>
    %321 = math.rsqrt %320 : vector<16x1xf32>
    %322 = vector.broadcast %321 : vector<16x1xf32> to vector<16x32xf32>
    %323 = arith.mulf %313, %322 : vector<16x32xf32>
    %324 = vector.broadcast %306 : vector<1x32xf32> to vector<16x32xf32>
    %325 = arith.mulf %323, %324 : vector<16x32xf32>
    %326 = vector.broadcast %307 : vector<1x32xf32> to vector<16x32xf32>
    %327 = arith.addf %325, %326 : vector<16x32xf32>
    %328 = arith.truncf %327 : vector<16x32xf32> to vector<16x32xbf16>
    %c0_95 = arith.constant 0 : index
    %c0_96 = arith.constant 0 : index
    %329 = vector.load %arg16[%c0_95, %c0_96] : memref<32x64xbf16, #tpu.memory_space<vmem>>, vector<32x64xbf16>
    %cst_97 = arith.constant dense<0.000000e+00> : vector<16x64xf32>
    %330 = tpu.matmul %328, %329, %cst_97 {dimension_numbers = #tpu.dot_dimension_numbers<[1], [0], [0], [1], [0, 0, 1, 1], [], []>} : vector<16x32xbf16>, vector<32x64xbf16>, vector<16x64xf32> -> vector<16x64xf32>
    %c0_98 = arith.constant 0 : index
    %c0_99 = arith.constant 0 : index
    %331 = vector.load %arg17[%c0_98, %c0_99] : memref<1x64xf32, #tpu.memory_space<vmem>>, vector<1x64xf32>
    %332 = vector.broadcast %331 : vector<1x64xf32> to vector<16x64xf32>
    %333 = arith.addf %330, %332 : vector<16x64xf32>
    %cst_100 = arith.constant 0.000000e+00 : f32
    %334 = vector.broadcast %cst_100 : f32 to vector<16x64xf32>
    %335 = arith.maximumf %333, %334 : vector<16x64xf32>
    %336 = arith.truncf %335 : vector<16x64xf32> to vector<16x64xbf16>
    %c0_101 = arith.constant 0 : index
    %c0_102 = arith.constant 0 : index
    %337 = vector.load %arg18[%c0_101, %c0_102] : memref<64x32xbf16, #tpu.memory_space<vmem>>, vector<64x32xbf16>
    %cst_103 = arith.constant dense<0.000000e+00> : vector<16x32xf32>
    %338 = tpu.matmul %336, %337, %cst_103 {dimension_numbers = #tpu.dot_dimension_numbers<[1], [0], [0], [1], [0, 0, 1, 1], [], []>} : vector<16x64xbf16>, vector<64x32xbf16>, vector<16x32xf32> -> vector<16x32xf32>
    %c0_104 = arith.constant 0 : index
    %c0_105 = arith.constant 0 : index
    %339 = vector.load %arg19[%c0_104, %c0_105] : memref<1x32xf32, #tpu.memory_space<vmem>>, vector<1x32xf32>
    %340 = vector.broadcast %339 : vector<1x32xf32> to vector<16x32xf32>
    %341 = arith.addf %338, %340 : vector<16x32xf32>
    %342 = arith.addf %327, %341 : vector<16x32xf32>
    %c0_106 = arith.constant 0 : index
    %c0_107 = arith.constant 0 : index
    %343 = vector.load %arg20[%c0_106, %c0_107] : memref<1x32xf32, #tpu.memory_space<vmem>>, vector<1x32xf32>
    %c0_108 = arith.constant 0 : index
    %c0_109 = arith.constant 0 : index
    %344 = vector.load %arg21[%c0_108, %c0_109] : memref<1x32xf32, #tpu.memory_space<vmem>>, vector<1x32xf32>
    %cst_110 = arith.constant dense<0.000000e+00> : vector<16xf32>
    %345 = vector.multi_reduction <add>, %342, %cst_110 [1] : vector<16x32xf32> to vector<16xf32>
    %346 = vector.shape_cast %345 : vector<16xf32> to vector<16x1xf32>
    %cst_111 = arith.constant 3.200000e+01 : f32
    %347 = vector.broadcast %cst_111 : f32 to vector<16x1xf32>
    %348 = arith.divf %346, %347 : vector<16x1xf32>
    %349 = vector.broadcast %348 : vector<16x1xf32> to vector<16x32xf32>
    %350 = arith.subf %342, %349 : vector<16x32xf32>
    %351 = arith.mulf %350, %350 : vector<16x32xf32>
    %cst_112 = arith.constant dense<0.000000e+00> : vector<16xf32>
    %352 = vector.multi_reduction <add>, %351, %cst_112 [1] : vector<16x32xf32> to vector<16xf32>
    %353 = vector.shape_cast %352 : vector<16xf32> to vector<16x1xf32>
    %cst_113 = arith.constant 3.200000e+01 : f32
    %354 = vector.broadcast %cst_113 : f32 to vector<16x1xf32>
    %355 = arith.divf %353, %354 : vector<16x1xf32>
    %cst_114 = arith.constant 9.99999974E-6 : f32
    %356 = vector.broadcast %cst_114 : f32 to vector<16x1xf32>
    %357 = arith.addf %355, %356 : vector<16x1xf32>
    %358 = math.rsqrt %357 : vector<16x1xf32>
    %359 = vector.broadcast %358 : vector<16x1xf32> to vector<16x32xf32>
    %360 = arith.mulf %350, %359 : vector<16x32xf32>
    %361 = vector.broadcast %343 : vector<1x32xf32> to vector<16x32xf32>
    %362 = arith.mulf %360, %361 : vector<16x32xf32>
    %363 = vector.broadcast %344 : vector<1x32xf32> to vector<16x32xf32>
    %364 = arith.addf %362, %363 : vector<16x32xf32>
    %c0_115 = arith.constant 0 : index
    %c0_116 = arith.constant 0 : index
    %365 = vector.load %arg22[%c0_115, %c0_116] : memref<16x32xf32, #tpu.memory_space<vmem>>, vector<16x32xf32>
    tpu.vector_store %arg22[%c0_115, %c0_116], %364 {strides = array<i32>} : memref<16x32xf32, #tpu.memory_space<vmem>>, vector<16x32xf32>,
    return
  }
}

module attributes {stable_mosaic.version = 11 : i64} {
  func.func @_final_norm_logits_kernel(%arg0: memref<16x32xf32, #tpu.memory_space<vmem>>, %arg1: memref<1x32xf32, #tpu.memory_space<vmem>>, %arg2: memref<1x32xf32, #tpu.memory_space<vmem>>, %arg3: memref<32x64xbf16, #tpu.memory_space<vmem>>, %arg4: memref<1x64xf32, #tpu.memory_space<vmem>>, %arg5: memref<16x64xf32, #tpu.memory_space<vmem>>) attributes {dimension_semantics = [], scalar_prefetch = 0 : i64, scratch_operands = 0 : i64, tpu.core_type = #tpu.core_type<tc>} {
    %c0 = arith.constant 0 : index
    %c0_0 = arith.constant 0 : index
    %0 = vector.load %arg0[%c0, %c0_0] : memref<16x32xf32, #tpu.memory_space<vmem>>, vector<16x32xf32>
    %c0_1 = arith.constant 0 : index
    %c0_2 = arith.constant 0 : index
    %1 = vector.load %arg1[%c0_1, %c0_2] : memref<1x32xf32, #tpu.memory_space<vmem>>, vector<1x32xf32>
    %c0_3 = arith.constant 0 : index
    %c0_4 = arith.constant 0 : index
    %2 = vector.load %arg2[%c0_3, %c0_4] : memref<1x32xf32, #tpu.memory_space<vmem>>, vector<1x32xf32>
    %cst = arith.constant dense<0.000000e+00> : vector<16xf32>
    %3 = vector.multi_reduction <add>, %0, %cst [1] : vector<16x32xf32> to vector<16xf32>
    %4 = vector.shape_cast %3 : vector<16xf32> to vector<16x1xf32>
    %cst_5 = arith.constant 3.200000e+01 : f32
    %5 = vector.broadcast %cst_5 : f32 to vector<16x1xf32>
    %6 = arith.divf %4, %5 : vector<16x1xf32>
    %7 = vector.broadcast %6 : vector<16x1xf32> to vector<16x32xf32>
    %8 = arith.subf %0, %7 : vector<16x32xf32>
    %9 = arith.mulf %8, %8 : vector<16x32xf32>
    %cst_6 = arith.constant dense<0.000000e+00> : vector<16xf32>
    %10 = vector.multi_reduction <add>, %9, %cst_6 [1] : vector<16x32xf32> to vector<16xf32>
    %11 = vector.shape_cast %10 : vector<16xf32> to vector<16x1xf32>
    %cst_7 = arith.constant 3.200000e+01 : f32
    %12 = vector.broadcast %cst_7 : f32 to vector<16x1xf32>
    %13 = arith.divf %11, %12 : vector<16x1xf32>
    %cst_8 = arith.constant 9.99999974E-6 : f32
    %14 = vector.broadcast %cst_8 : f32 to vector<16x1xf32>
    %15 = arith.addf %13, %14 : vector<16x1xf32>
    %16 = math.rsqrt %15 : vector<16x1xf32>
    %17 = vector.broadcast %16 : vector<16x1xf32> to vector<16x32xf32>
    %18 = arith.mulf %8, %17 : vector<16x32xf32>
    %19 = vector.broadcast %1 : vector<1x32xf32> to vector<16x32xf32>
    %20 = arith.mulf %18, %19 : vector<16x32xf32>
    %21 = vector.broadcast %2 : vector<1x32xf32> to vector<16x32xf32>
    %22 = arith.addf %20, %21 : vector<16x32xf32>
    %23 = arith.truncf %22 : vector<16x32xf32> to vector<16x32xbf16>
    %c0_9 = arith.constant 0 : index
    %c0_10 = arith.constant 0 : index
    %24 = vector.load %arg3[%c0_9, %c0_10] : memref<32x64xbf16, #tpu.memory_space<vmem>>, vector<32x64xbf16>
    %cst_11 = arith.constant dense<0.000000e+00> : vector<16x64xf32>
    %25 = tpu.matmul %23, %24, %cst_11 {dimension_numbers = #tpu.dot_dimension_numbers<[1], [0], [0], [1], [0, 0, 1, 1], [], []>} : vector<16x32xbf16>, vector<32x64xbf16>, vector<16x64xf32> -> vector<16x64xf32>
    %c0_12 = arith.constant 0 : index
    %c0_13 = arith.constant 0 : index
    %26 = vector.load %arg4[%c0_12, %c0_13] : memref<1x64xf32, #tpu.memory_space<vmem>>, vector<1x64xf32>
    %27 = vector.broadcast %26 : vector<1x64xf32> to vector<16x64xf32>
    %28 = arith.addf %25, %27 : vector<16x64xf32>
    %c0_14 = arith.constant 0 : index
    %c0_15 = arith.constant 0 : index
    %29 = vector.load %arg5[%c0_14, %c0_15] : memref<16x64xf32, #tpu.memory_space<vmem>>, vector<16x64xf32>
    tpu.vector_store %arg5[%c0_14, %c0_15], %28 {strides = array<i32>} : memref<16x64xf32, #tpu.memory_space<vmem>>, vector<16x64xf32>,
    return
  }
}

</mosaic_0001>

<llo_original>
// kernel: forward.8
$region0: #{forward.8}
  #allocation0 [shape = 'u32[]', space=smem, size = 0x4, offset = 0x4, fixed_abs, tag = 'smem constant byte address 0x4 - core index']
  #allocation1 [shape = 'u32[72,128]{1,0:T(1,128)}', space=vmem, size = 0x9000, scoped, tag = 'internal scratch']
  %s0 = inlined_call_operand.vmem [shape: f32[16,32], index: 0, kind: input, shape index: {}]
  %s1 = inlined_call_operand.vmem [shape: f32[1,32], index: 1, kind: input, shape index: {}]
  %s2 = inlined_call_operand.vmem [shape: f32[1,32], index: 2, kind: input, shape index: {}]
  %s3 = inlined_call_operand.vmem [shape: f32[16,32], index: 3, kind: output, shape index: {}]
  %s4 = sld [smem:[#allocation0]]
  $region22: #{forward.8} parent=0
    _
  %s6 = ssub.s32 1, %s4
  %s7 = scalar_select 0, %s6, %s4
  // Predicated region
  $region2: #{forward.8} parent=0 // pred_check
    _
  $region3: #{forward.8} parent=0 // pred_check_branch
    %9 = sbr.rel (0) target = $region5
  $region4: #{forward.8} parent=0 // pred_region
    _
  $region5: #{forward.8} parent=0 // pred_fallthru
    _
  // Predicated region
  $region6: #{forward.8} parent=0 // pred_check
    _
  $region7: #{forward.8} parent=0 // pred_check_branch
    %11 = sbr.rel (0) target = $region9
  $region8: #{forward.8} parent=0 // pred_region
    _
  $region9: #{forward.8} parent=0 // pred_fallthru
    _
  // Predicated region
  $region10: #{forward.8} parent=0 // pred_check
    _
  $region11: #{forward.8} parent=0 // pred_check_branch
    %13 = sbr.rel (0) target = $region13
  $region12: #{forward.8} parent=0 // pred_region
    _
  $region13: #{forward.8} parent=0 // pred_fallthru
    _
  %v14 = vld [vmem:[%s0] sm:$0xff]
  %v15 = vld [vmem:[%s0 + $0x8] sm:$0xff]
  %v16 = vld [vmem:[%s1] sm:$0x1]
  %v17 = vld [vmem:[%s2] sm:$0x1]
  %vm18 = vcmask 261120
  %v19 = vsel %vm18, %v14, 0.0
  %20 = vadd.xlane.f32.xlu0 %v19
  %v21 = vpop.xlane.xlu0 %20
  %v22 = vsel %vm18, %v15, 0.0
  %23 = vadd.xlane.f32.xlu0 %v22
  %v24 = vpop.xlane.xlu0 %23
  %v25 = vrcp.pop 32.0
  %v26 = vmul.f32 32.0, %v25
  %v27 = vsub.f32 1.0, %v26
  %v28 = vmul.f32 %v25, %v27
  %v29 = vadd.f32 %v25, %v28
  %vm30 = vweird.f32 %v25
  %v31 = vsel %vm30, %v25, %v29
  %v32 = vmul.f32 %v21, %v31
  %v33 = vmul.f32 %v24, %v31
  %v34 = vsub.f32 %v14, %v32
  %v35 = vsub.f32 %v15, %v33
  %v36 = vmul.f32 %v34, %v34
  %v37 = vmul.f32 %v35, %v35
  %v38 = vsel %vm18, %v36, 0.0
  %39 = vadd.xlane.f32.xlu0 %v38
  %v40 = vpop.xlane.xlu0 %39
  %v41 = vsel %vm18, %v37, 0.0
  %42 = vadd.xlane.f32.xlu0 %v41
  %v43 = vpop.xlane.xlu0 %42
  %v44 = vmul.f32 %v40, %v31
  %v45 = vmul.f32 %v43, %v31
  %v46 = vadd.f32 %v44, 1e-05
  %v47 = vadd.f32 %v45, 1e-05
  %v48 = vrsqrt.pop %v46
  %v49 = vmul.f32 %v48, %v46
  %v50 = vmul.f32 %v49, %v48
  %v51 = vmul.f32 0.5, %v50
  %v52 = vsub.f32 1.5, %v51
  %v53 = vmul.f32 %v48, %v52
  %vm54 = vweird.f32 %v46
  %vm55 = vweird.f32 %v48
  %vm56 = vmor %vm54, %vm55
  %v57 = vsel %vm56, %v48, %v53
  %v58 = vrsqrt.pop %v47
  %v59 = vmul.f32 %v58, %v47
  %v60 = vmul.f32 %v59, %v58
  %v61 = vmul.f32 0.5, %v60
  %v62 = vsub.f32 1.5, %v61
  %v63 = vmul.f32 %v58, %v62
  %vm64 = vweird.f32 %v47
  %vm65 = vweird.f32 %v58
  %vm66 = vmor %vm64, %vm65
  %v67 = vsel %vm66, %v58, %v63
  %v68 = vmul.f32 %v34, %v57
  %v69 = vmul.f32 %v35, %v67
  %v71 = vperm.slane %v16, 0
  %v73 = vmul.f32 %v68, %v71
  %v74 = vmul.f32 %v69, %v71
  %v76 = vperm.slane %v17, 0
  %v78 = vadd.f32 %v73, %v76
  %v79 = vadd.f32 %v74, %v76
  %80 = vst.msk [vmem:[%s3] sm:$0xff] %vm18, %v78
  %81 = vst.msk [vmem:[%s3 + $0x8] sm:$0xff] %vm18, %v79
  // Predicated region
  $region14: #{forward.8} parent=0 // pred_check
    _
  $region15: #{forward.8} parent=0 // pred_check_branch
    %83 = sbr.rel (0) target = $region17
  $region16: #{forward.8} parent=0 // pred_region
    _
  $region17: #{forward.8} parent=0 // pred_fallthru
    _
  // Predicated region
  $region18: #{forward.8} parent=0 // pred_check
    _
  $region19: #{forward.8} parent=0 // pred_check_branch
    %85 = sbr.rel (0) target = $region21
  $region20: #{forward.8} parent=0 // pred_region
    _
  $region21: #{forward.8} parent=0 // pred_fallthru
    _

// kernel: forward.6
$region0: #{forward.6}
  #allocation0 [shape = 'u32[]', space=smem, size = 0x4, offset = 0x4, fixed_abs, tag = 'smem constant byte address 0x4 - core index']
  #allocation1 [shape = 'u32[72,128]{1,0:T(1,128)}', space=vmem, size = 0x9000, scoped, tag = 'internal scratch']
  %s0 = inlined_call_operand.vmem [shape: f32[16,32], index: 0, kind: input, shape index: {}]
  %s1 = inlined_call_operand.vmem [shape: bf16[32,96], index: 1, kind: input, shape index: {}]
  %s2 = inlined_call_operand.vmem [shape: f32[1,96], index: 2, kind: input, shape index: {}]
  %s3 = inlined_call_operand.vmem [shape: f32[32,32], index: 3, kind: input, shape index: {}]
  %s4 = inlined_call_operand.vmem [shape: f32[1,32], index: 4, kind: input, shape index: {}]
  %s5 = inlined_call_operand.vmem [shape: f32[1,32], index: 5, kind: input, shape index: {}]
  %s6 = inlined_call_operand.vmem [shape: f32[1,32], index: 6, kind: input, shape index: {}]
  %s7 = inlined_call_operand.vmem [shape: bf16[32,64], index: 7, kind: input, shape index: {}]
  %s8 = inlined_call_operand.vmem [shape: f32[1,64], index: 8, kind: input, shape index: {}]
  %s9 = inlined_call_operand.vmem [shape: bf16[64,32], index: 9, kind: input, shape index: {}]
  %s10 = inlined_call_operand.vmem [shape: f32[1,32], index: 10, kind: input, shape index: {}]
  %s11 = inlined_call_operand.vmem [shape: f32[1,32], index: 11, kind: input, shape index: {}]
  %s12 = inlined_call_operand.vmem [shape: f32[1,32], index: 12, kind: input, shape index: {}]
  %s13 = inlined_call_operand.vmem [shape: f32[16,32], index: 13, kind: output, shape index: {}]
  %s14 = sld [smem:[#allocation0]]
  $region62: #{forward.6} parent=0
    _
  %s16 = ssub.s32 1, %s14
  %s17 = scalar_select 0, %s16, %s14
  // Predicated region
  $region2: #{forward.6} parent=0 // pred_check
    _
  $region3: #{forward.6} parent=0 // pred_check_branch
    %19 = sbr.rel (0) target = $region5
  $region4: #{forward.6} parent=0 // pred_region
    _
  $region5: #{forward.6} parent=0 // pred_fallthru
    _
  // Predicated region
  $region6: #{forward.6} parent=0 // pred_check
    _
  $region7: #{forward.6} parent=0 // pred_check_branch
    %21 = sbr.rel (0) target = $region9
  $region8: #{forward.6} parent=0 // pred_region
    _
  $region9: #{forward.6} parent=0 // pred_fallthru
    _
  // Predicated region
  $region10: #{forward.6} parent=0 // pred_check
    _
  $region11: #{forward.6} parent=0 // pred_check_branch
    %23 = sbr.rel (0) target = $region13
  $region12: #{forward.6} parent=0 // pred_region
    _
  $region13: #{forward.6} parent=0 // pred_fallthru
    _
  // Predicated region
  $region14: #{forward.6} parent=0 // pred_check
    _
  $region15: #{forward.6} parent=0 // pred_check_branch
    %25 = sbr.rel (0) target = $region17
  $region16: #{forward.6} parent=0 // pred_region
    _
  $region17: #{forward.6} parent=0 // pred_fallthru
    _
  // Predicated region
  $region18: #{forward.6} parent=0 // pred_check
    _
  $region19: #{forward.6} parent=0 // pred_check_branch
    %27 = sbr.rel (0) target = $region21
  $region20: #{forward.6} parent=0 // pred_region
    _
  $region21: #{forward.6} parent=0 // pred_fallthru
    _
  // Predicated region
  $region22: #{forward.6} parent=0 // pred_check
    _
  $region23: #{forward.6} parent=0 // pred_check_branch
    %29 = sbr.rel (0) target = $region25
  $region24: #{forward.6} parent=0 // pred_region
    _
  $region25: #{forward.6} parent=0 // pred_fallthru
    _
  // Predicated region
  $region26: #{forward.6} parent=0 // pred_check
    _
  $region27: #{forward.6} parent=0 // pred_check_branch
    %31 = sbr.rel (0) target = $region29
  $region28: #{forward.6} parent=0 // pred_region
    _
  $region29: #{forward.6} parent=0 // pred_fallthru
    _
  // Predicated region
  $region30: #{forward.6} parent=0 // pred_check
    _
  $region31: #{forward.6} parent=0 // pred_check_branch
    %33 = sbr.rel (0) target = $region33
  $region32: #{forward.6} parent=0 // pred_region
    _
  $region33: #{forward.6} parent=0 // pred_fallthru
    _
  // Predicated region
  $region34: #{forward.6} parent=0 // pred_check
    _
  $region35: #{forward.6} parent=0 // pred_check_branch
    %35 = sbr.rel (0) target = $region37
  $region36: #{forward.6} parent=0 // pred_region
    _
  $region37: #{forward.6} parent=0 // pred_fallthru
    _
  // Predicated region
  $region38: #{forward.6} parent=0 // pred_check
    _
  $region39: #{forward.6} parent=0 // pred_check_branch
    %37 = sbr.rel (0) target = $region41
  $region40: #{forward.6} parent=0 // pred_region
    _
  $region41: #{forward.6} parent=0 // pred_fallthru
    _
  // Predicated region
  $region42: #{forward.6} parent=0 // pred_check
    _
  $region43: #{forward.6} parent=0 // pred_check_branch
    %39 = sbr.rel (0) target = $region45
  $region44: #{forward.6} parent=0 // pred_region
    _
  $region45: #{forward.6} parent=0 // pred_fallthru
    _
  // Predicated region
  $region46: #{forward.6} parent=0 // pred_check
    _
  $region47: #{forward.6} parent=0 // pred_check_branch
    %41 = sbr.rel (0) target = $region49
  $region48: #{forward.6} parent=0 // pred_region
    _
  $region49: #{forward.6} parent=0 // pred_fallthru
    _
  // Predicated region
  $region50: #{forward.6} parent=0 // pred_check
    _
  $region51: #{forward.6} parent=0 // pred_check_branch
    %43 = sbr.rel (0) target = $region53
  $region52: #{forward.6} parent=0 // pred_region
    _
  $region53: #{forward.6} parent=0 // pred_fallthru
    _
  %v45 = vld [vmem:[%s0] sm:$0xff]
  %v46 = vld [vmem:[%s0 + $0x8] sm:$0xff]
  %v47 = vpack.c.bf16 %v46, %v45
  %v48 = vld [vmem:[%s1] sm:$0xf]
  %v49 = vld [vmem:[%s1 + $0x4] sm:$0xf]
  %v50 = vld [vmem:[%s1 + $0x8] sm:$0xf]
  %v51 = vld [vmem:[%s1 + $0xc] sm:$0xf]
  %v52 = vld [vmem:[%s2] sm:$0x1]
  %v54 = vperm.slane %v52, 0
  %v60 = vunpack.c.l.b16 %v48
  %v61 = vunpack.c.l.b16 %v49
  %v62 = vunpack.c.l.b16 %v50
  %v63 = vunpack.c.l.b16 %v51
  %v64 = vpack.c.b16 %v61, %v60
  %v65 = vpack.c.b16 %v63, %v62
  %vm68 = vcmask 261120
  %v70 = vsel %vm68, %v47, 0
  %72 = vmatpush.bf16.msra.mxu0 0
  %73 = vmatpush.bf16.msra.mxu0 0
  %74 = vmatpush.bf16.msra.mxu0 0
  %75 = vmatpush.bf16.msra.mxu0 0
  %76 = vmatpush.bf16.msra.mxu0 0
  %77 = vmatpush.bf16.msra.mxu0 0
  %78 = vmatpush.bf16.msra.mxu0 %v65
  %79 = vmatpush.bf16.msra.mxu0 %v64
  %80 = vmatmul.bf16.gmra.mxu0 %v70
  %v81 = vpop.f32.mrf.mxu0
  %v82 = vadd.f32 %v54, %v81
  %v83 = vpop.f32.mrf.mxu0
  %v84 = vadd.f32 %v54, %v83
  %85 = vdwg.mxu0
  %v86 = vld [vmem:[%s3] sm:$0xff]
  %v87 = vld [vmem:[%s3 + $0x8] sm:$0xff]
  %v88 = vld [vmem:[%s3 + $0x10] sm:$0xff]
  %v89 = vld [vmem:[%s3 + $0x18] sm:$0xff]
  %v90 = vld [vmem:[%s4] sm:$0x1]
  %v91 = vlaneseq
  %v92 = vshrl.u32 %v91, 7
  %v93 = vlaneseq
  %v94 = vand.u32 %v93, 127
  %vm95 = vcmp.gt.s32.totalorder %v94, %v92
  %v96 = vsel %vm95, -1e+30, 0.0
  %v97 = vpack.c.bf16 %v82, %v82
  %v98 = vpack.c.bf16 %v84, %v84
  %v100 = vunpack.c.l.b16 %v97
  %v101 = vpack.c.b16 %v100, %v100
  %102 = vrot.lane.b32.xlu0 %v101, 96
  %v103 = vpop.permute.xlu0 %102
  %vm104 = vcmask 64512
  %v106 = vsel %vm104, %v97, 0
  %v109 = vsel %vm104, %v103, 0
  %111 = vmatpush.bf16.xpose.msra.mxu0 0
  %112 = vmatpush.bf16.xpose.msra.mxu0 0
  %113 = vmatpush.bf16.xpose.msra.mxu0 0
  %114 = vmatpush.bf16.xpose.msra.mxu0 0
  %115 = vmatpush.bf16.xpose.msra.mxu0 0
  %116 = vmatpush.bf16.xpose.msra.mxu0 0
  %117 = vmatpush.bf16.xpose.msra.mxu0 0
  %118 = vmatpush.bf16.xpose.msra.mxu0 %v109
  %119 = vmatmul.bf16.gmra.mxu0 %v106
  %v120 = vpop.f32.mrf.mxu0
  %v121 = vadd.f32 0.0, %v120
  %v122 = vpop.f32.mrf.mxu0
  %123 = vdwg.mxu0
  %v125 = vunpack.c.l.b16 %v98
  %v126 = vpack.c.b16 %v125, %v125
  %127 = vrot.lane.b32.xlu0 %v126, 96
  %v128 = vpop.permute.xlu0 %127
  %v130 = vsel %vm104, %v98, 0
  %v133 = vsel %vm104, %v128, 0
  %135 = vmatpush.bf16.xpose.msra.mxu0 0
  %136 = vmatpush.bf16.xpose.msra.mxu0 0
  %137 = vmatpush.bf16.xpose.msra.mxu0 0
  %138 = vmatpush.bf16.xpose.msra.mxu0 0
  %139 = vmatpush.bf16.xpose.msra.mxu0 0
  %140 = vmatpush.bf16.xpose.msra.mxu0 0
  %141 = vmatpush.bf16.xpose.msra.mxu0 0
  %142 = vmatpush.bf16.xpose.msra.mxu0 %v133
  %143 = vmatmul.bf16.gmra.mxu0 %v130
  %v144 = vpop.f32.mrf.mxu0
  %v145 = vadd.f32 0.0, %v144
  %v146 = vpop.f32.mrf.mxu0
  %147 = vdwg.mxu0
  %v148 = vmul.f32 %v121, 0.35355338
  %v149 = vmul.f32 %v145, 0.35355338
  %v150 = vadd.f32 %v148, %v96
  %v151 = vadd.f32 %v149, %v96
  %v152 = vsel %vm104, %v150, -inf
  %153 = vmax.xlane.f32.xlu0 %v152
  %v154 = vpop.xlane.xlu0 %153
  %v155 = vsel %vm104, %v151, -inf
  %156 = vmax.xlane.f32.xlu0 %v155
  %v157 = vpop.xlane.xlu0 %156
  %v158 = vsub.f32 %v150, %v154
  %v159 = vsub.f32 %v151, %v157
  %v160 = vmul.f32 %v158, 1.442695
  %v161 = vpow.pop %v160
  %v162 = vmul.f32 %v159, 1.442695
  %v163 = vpow.pop %v162
  %v164 = vsel %vm104, %v161, 0.0
  %165 = vadd.xlane.f32.xlu0 %v164
  %v166 = vpop.xlane.xlu0 %165
  %v167 = vsel %vm104, %v163, 0.0
  %168 = vadd.xlane.f32.xlu0 %v167
  %v169 = vpop.xlane.xlu0 %168
  %v170 = vrcp.pop %v166
  %v171 = vmul.f32 %v166, %v170
  %v172 = vsub.f32 1.0, %v171
  %v173 = vmul.f32 %v170, %v172
  %v174 = vadd.f32 %v170, %v173
  %vm175 = vweird.f32 %v166
  %vm176 = vweird.f32 %v170
  %vm177 = vmor %vm175, %vm176
  %v178 = vsel %vm177, %v170, %v174
  %v179 = vand.u32 2147483647, %v166
  %vm180 = vcmp.eq.f32.partialorder %v179, 8.507059e+37
  %v181 = vand.u32 %v166, 2147483648
  %v182 = vor.u32 1.1754944e-38, %v181
  %v183 = vsel %vm180, %v182, %v178
  %v184 = vmul.f32 %v161, %v183
  %v185 = vrcp.pop %v169
  %v186 = vmul.f32 %v169, %v185
  %v187 = vsub.f32 1.0, %v186
  %v188 = vmul.f32 %v185, %v187
  %v189 = vadd.f32 %v185, %v188
  %vm190 = vweird.f32 %v169
  %vm191 = vweird.f32 %v185
  %vm192 = vmor %vm190, %vm191
  %v193 = vsel %vm192, %v185, %v189
  %v194 = vand.u32 2147483647, %v169
  %vm195 = vcmp.eq.f32.partialorder %v194, 8.507059e+37
  %v196 = vand.u32 %v169, 2147483648
  %v197 = vor.u32 1.1754944e-38, %v196
  %v198 = vsel %vm195, %v197, %v193
  %v199 = vmul.f32 %v163, %v198
  %v200 = vpack.c.bf16 %v184, %v184
  %v201 = vpack.c.bf16 %v199, %v199
  %202 = vrot.lane.b32.xlu0 %v101, 64
  %v203 = vpop.permute.xlu0 %202
  %v205 = vsel %vm104, %v200, 0
  %vm207 = vcmask 1043456
  %v209 = vsel %vm207, %v203, 0
  %211 = vmatpush.bf16.msra.mxu0 0
  %212 = vmatpush.bf16.msra.mxu0 0
  %213 = vmatpush.bf16.msra.mxu0 0
  %214 = vmatpush.bf16.msra.mxu0 0
  %215 = vmatpush.bf16.msra.mxu0 0
  %216 = vmatpush.bf16.msra.mxu0 0
  %217 = vmatpush.bf16.msra.mxu0 0
  %218 = vmatpush.bf16.msra.mxu0 %v209
  %219 = vmatmul.bf16.gmra.mxu0 %v205
  %v220 = vpop.f32.mrf.mxu0
  %v221 = vadd.f32 0.0, %v220
  %v222 = vpop.f32.mrf.mxu0
  %223 = vdwg.mxu0
  %224 = vrot.lane.b32.xlu0 %v126, 64
  %v225 = vpop.permute.xlu0 %224
  %v227 = vsel %vm104, %v201, 0
  %v230 = vsel %vm207, %v225, 0
  %232 = vmatpush.bf16.msra.mxu0 0
  %233 = vmatpush.bf16.msra.mxu0 0
  %234 = vmatpush.bf16.msra.mxu0 0
  %235 = vmatpush.bf16.msra.mxu0 0
  %236 = vmatpush.bf16.msra.mxu0 0
  %237 = vmatpush.bf16.msra.mxu0 0
  %238 = vmatpush.bf16.msra.mxu0 0
  %239 = vmatpush.bf16.msra.mxu0 %v230
  %240 = vmatmul.bf16.gmra.mxu0 %v227
  %v241 = vpop.f32.mrf.mxu0
  %v242 = vadd.f32 0.0, %v241
  %v243 = vpop.f32.mrf.mxu0
  %244 = vdwg.mxu0
  %v245 = vpack.c.bf16 %v86, %v86
  %v246 = vpack.c.bf16 %v242, %v221
  %247 = vrot.lane.b32.xlu0 %v101, 120
  %v248 = vpop.permute.xlu0 %247
  %249 = vrot.lane.b32.xlu0 %v101, 88
  %v250 = vpop.permute.xlu0 %249
  %v252 = vsel %vm104, %v248, 0
  %v255 = vsel %vm104, %v250, 0
  %257 = vmatpush.bf16.xpose.msra.mxu0 0
  %258 = vmatpush.bf16.xpose.msra.mxu0 0
  %259 = vmatpush.bf16.xpose.msra.mxu0 0
  %260 = vmatpush.bf16.xpose.msra.mxu0 0
  %261 = vmatpush.bf16.xpose.msra.mxu0 0
  %262 = vmatpush.bf16.xpose.msra.mxu0 0
  %263 = vmatpush.bf16.xpose.msra.mxu0 0
  %264 = vmatpush.bf16.xpose.msra.mxu0 %v255
  %265 = vmatmul.bf16.gmra.mxu0 %v252
  %v266 = vpop.f32.mrf.mxu0
  %v267 = vadd.f32 0.0, %v266
  %v268 = vpop.f32.mrf.mxu0
  %269 = vdwg.mxu0
  %270 = vrot.lane.b32.xlu0 %v126, 120
  %v271 = vpop.permute.xlu0 %270
  %272 = vrot.lane.b32.xlu0 %v126, 88
  %v273 = vpop.permute.xlu0 %272
  %v275 = vsel %vm104, %v271, 0
  %v278 = vsel %vm104, %v273, 0
  %280 = vmatpush.bf16.xpose.msra.mxu0 0
  %281 = vmatpush.bf16.xpose.msra.mxu0 0
  %282 = vmatpush.bf16.xpose.msra.mxu0 0
  %283 = vmatpush.bf16.xpose.msra.mxu0 0
  %284 = vmatpush.bf16.xpose.msra.mxu0 0
  %285 = vmatpush.bf16.xpose.msra.mxu0 0
  %286 = vmatpush.bf16.xpose.msra.mxu0 0
  %287 = vmatpush.bf16.xpose.msra.mxu0 %v278
  %288 = vmatmul.bf16.gmra.mxu0 %v275
  %v289 = vpop.f32.mrf.mxu0
  %v290 = vadd.f32 0.0, %v289
  %v291 = vpop.f32.mrf.mxu0
  %292 = vdwg.mxu0
  %v293 = vmul.f32 %v267, 0.35355338
  %v294 = vmul.f32 %v290, 0.35355338
  %v295 = vadd.f32 %v293, %v96
  %v296 = vadd.f32 %v294, %v96
  %v297 = vsel %vm104, %v295, -inf
  %298 = vmax.xlane.f32.xlu0 %v297
  %v299 = vpop.xlane.xlu0 %298
  %v300 = vsel %vm104, %v296, -inf
  %301 = vmax.xlane.f32.xlu0 %v300
  %v302 = vpop.xlane.xlu0 %301
  %v303 = vsub.f32 %v295, %v299
  %v304 = vsub.f32 %v296, %v302
  %v305 = vmul.f32 %v303, 1.442695
  %v306 = vpow.pop %v305
  %v307 = vmul.f32 %v304, 1.442695
  %v308 = vpow.pop %v307
  %v309 = vsel %vm104, %v306, 0.0
  %310 = vadd.xlane.f32.xlu0 %v309
  %v311 = vpop.xlane.xlu0 %310
  %v312 = vsel %vm104, %v308, 0.0
  %313 = vadd.xlane.f32.xlu0 %v312
  %v314 = vpop.xlane.xlu0 %313
  %v315 = vrcp.pop %v311
  %v316 = vmul.f32 %v311, %v315
  %v317 = vsub.f32 1.0, %v316
  %v318 = vmul.f32 %v315, %v317
  %v319 = vadd.f32 %v315, %v318
  %vm320 = vweird.f32 %v311
  %vm321 = vweird.f32 %v315
  %vm322 = vmor %vm320, %vm321
  %v323 = vsel %vm322, %v315, %v319
  %v324 = vand.u32 2147483647, %v311
  %vm325 = vcmp.eq.f32.partialorder %v324, 8.507059e+37
  %v326 = vand.u32 %v311, 2147483648
  %v327 = vor.u32 1.1754944e-38, %v326
  %v328 = vsel %vm325, %v327, %v323
  %v329 = vmul.f32 %v306, %v328
  %v330 = vrcp.pop %v314
  %v331 = vmul.f32 %v314, %v330
  %v332 = vsub.f32 1.0, %v331
  %v333 = vmul.f32 %v330, %v332
  %v334 = vadd.f32 %v330, %v333
  %vm335 = vweird.f32 %v314
  %vm336 = vweird.f32 %v330
  %vm337 = vmor %vm335, %vm336
  %v338 = vsel %vm337, %v330, %v334
  %v339 = vand.u32 2147483647, %v314
  %vm340 = vcmp.eq.f32.partialorder %v339, 8.507059e+37
  %v341 = vand.u32 %v314, 2147483648
  %v342 = vor.u32 1.1754944e-38, %v341
  %v343 = vsel %vm340, %v342, %v338
  %v344 = vmul.f32 %v308, %v343
  %v345 = vpack.c.bf16 %v329, %v329
  %v346 = vpack.c.bf16 %v344, %v344
  %347 = vrot.lane.b32.xlu0 %v101, 56
  %v348 = vpop.permute.xlu0 %347
  %v350 = vsel %vm104, %v345, 0
  %v353 = vsel %vm207, %v348, 0
  %355 = vmatpush.bf16.msra.mxu0 0
  %356 = vmatpush.bf16.msra.mxu0 0
  %357 = vmatpush.bf16.msra.mxu0 0
  %358 = vmatpush.bf16.msra.mxu0 0
  %359 = vmatpush.bf16.msra.mxu0 0
  %360 = vmatpush.bf16.msra.mxu0 0
  %361 = vmatpush.bf16.msra.mxu0 0
  %362 = vmatpush.bf16.msra.mxu0 %v353
  %363 = vmatmul.bf16.gmra.mxu0 %v350
  %v364 = vpop.f32.mrf.mxu0
  %v365 = vadd.f32 0.0, %v364
  %v366 = vpop.f32.mrf.mxu0
  %367 = vdwg.mxu0
  %368 = vrot.lane.b32.xlu0 %v126, 56
  %v369 = vpop.permute.xlu0 %368
  %v371 = vsel %vm104, %v346, 0
  %v374 = vsel %vm207, %v369, 0
  %376 = vmatpush.bf16.msra.mxu0 0
  %377 = vmatpush.bf16.msra.mxu0 0
  %378 = vmatpush.bf16.msra.mxu0 0
  %379 = vmatpush.bf16.msra.mxu0 0
  %380 = vmatpush.bf16.msra.mxu0 0
  %381 = vmatpush.bf16.msra.mxu0 0
  %382 = vmatpush.bf16.msra.mxu0 0
  %383 = vmatpush.bf16.msra.mxu0 %v374
  %384 = vmatmul.bf16.gmra.mxu0 %v371
  %v385 = vpop.f32.mrf.mxu0
  %v386 = vadd.f32 0.0, %v385
  %v387 = vpop.f32.mrf.mxu0
  %388 = vdwg.mxu0
  %v389 = vpack.c.bf16 %v87, %v87
  %v390 = vpack.c.bf16 %v386, %v365
  %v392 = vsel %vm104, %v390, 0
  %v395 = vsel %vm207, %v389, 0
  %397 = vmatpush.bf16.msra.mxu0 0
  %398 = vmatpush.bf16.msra.mxu0 0
  %399 = vmatpush.bf16.msra.mxu0 0
  %400 = vmatpush.bf16.msra.mxu0 0
  %401 = vmatpush.bf16.msra.mxu0 0
  %402 = vmatpush.bf16.msra.mxu0 0
  %403 = vmatpush.bf16.msra.mxu0 0
  %404 = vmatpush.bf16.msra.mxu0 %v395
  %405 = vmatmul.bf16.gmra.mxu0 %v392
  %v406 = vpop.f32.mrf.mxu0
  %v407 = vadd.f32 0.0, %v406
  %v408 = vpop.f32.mrf.mxu0
  %v409 = vadd.f32 0.0, %v408
  %410 = vdwg.mxu0
  %v412 = vsel %vm104, %v246, 0
  %v415 = vsel %vm207, %v245, 0
  %417 = vmatpush.bf16.msra.mxu0 0
  %418 = vmatpush.bf16.msra.mxu0 0
  %419 = vmatpush.bf16.msra.mxu0 0
  %420 = vmatpush.bf16.msra.mxu0 0
  %421 = vmatpush.bf16.msra.mxu0 0
  %422 = vmatpush.bf16.msra.mxu0 0
  %423 = vmatpush.bf16.msra.mxu0 0
  %424 = vmatpush.bf16.msra.mxu0 %v415
  %425 = vmatmul.bf16.gmra.mxu0 %v412
  %v426 = vpop.f32.mrf.mxu0
  %v427 = vadd.f32 %v407, %v426
  %v428 = vpop.f32.mrf.mxu0
  %v429 = vadd.f32 %v409, %v428
  %430 = vdwg.mxu0
  %431 = vrot.lane.b32.xlu0 %v101, 112
  %v432 = vpop.permute.xlu0 %431
  %433 = vrot.lane.b32.xlu0 %v101, 80
  %v434 = vpop.permute.xlu0 %433
  %v436 = vsel %vm104, %v432, 0
  %v439 = vsel %vm104, %v434, 0
  %441 = vmatpush.bf16.xpose.msra.mxu0 0
  %442 = vmatpush.bf16.xpose.msra.mxu0 0
  %443 = vmatpush.bf16.xpose.msra.mxu0 0
  %444 = vmatpush.bf16.xpose.msra.mxu0 0
  %445 = vmatpush.bf16.xpose.msra.mxu0 0
  %446 = vmatpush.bf16.xpose.msra.mxu0 0
  %447 = vmatpush.bf16.xpose.msra.mxu0 0
  %448 = vmatpush.bf16.xpose.msra.mxu0 %v439
  %449 = vmatmul.bf16.gmra.mxu0 %v436
  %v450 = vpop.f32.mrf.mxu0
  %v451 = vadd.f32 0.0, %v450
  %v452 = vpop.f32.mrf.mxu0
  %453 = vdwg.mxu0
  %454 = vrot.lane.b32.xlu0 %v126, 112
  %v455 = vpop.permute.xlu0 %454
  %456 = vrot.lane.b32.xlu0 %v126, 80
  %v457 = vpop.permute.xlu0 %456
  %v459 = vsel %vm104, %v455, 0
  %v462 = vsel %vm104, %v457, 0
  %464 = vmatpush.bf16.xpose.msra.mxu0 0
  %465 = vmatpush.bf16.xpose.msra.mxu0 0
  %466 = vmatpush.bf16.xpose.msra.mxu0 0
  %467 = vmatpush.bf16.xpose.msra.mxu0 0
  %468 = vmatpush.bf16.xpose.msra.mxu0 0
  %469 = vmatpush.bf16.xpose.msra.mxu0 0
  %470 = vmatpush.bf16.xpose.msra.mxu0 0
  %471 = vmatpush.bf16.xpose.msra.mxu0 %v462
  %472 = vmatmul.bf16.gmra.mxu0 %v459
  %v473 = vpop.f32.mrf.mxu0
  %v474 = vadd.f32 0.0, %v473
  %v475 = vpop.f32.mrf.mxu0
  %476 = vdwg.mxu0
  %v477 = vmul.f32 %v451, 0.35355338
  %v478 = vmul.f32 %v474, 0.35355338
  %v479 = vadd.f32 %v477, %v96
  %v480 = vadd.f32 %v478, %v96
  %v481 = vsel %vm104, %v479, -inf
  %482 = vmax.xlane.f32.xlu0 %v481
  %v483 = vpop.xlane.xlu0 %482
  %v484 = vsel %vm104, %v480, -inf
  %485 = vmax.xlane.f32.xlu0 %v484
  %v486 = vpop.xlane.xlu0 %485
  %v487 = vsub.f32 %v479, %v483
  %v488 = vsub.f32 %v480, %v486
  %v489 = vmul.f32 %v487, 1.442695
  %v490 = vpow.pop %v489
  %v491 = vmul.f32 %v488, 1.442695
  %v492 = vpow.pop %v491
  %v493 = vsel %vm104, %v490, 0.0
  %494 = vadd.xlane.f32.xlu0 %v493
  %v495 = vpop.xlane.xlu0 %494
  %v496 = vsel %vm104, %v492, 0.0
  %497 = vadd.xlane.f32.xlu0 %v496
  %v498 = vpop.xlane.xlu0 %497
  %v499 = vrcp.pop %v495
  %v500 = vmul.f32 %v495, %v499
  %v501 = vsub.f32 1.0, %v500
  %v502 = vmul.f32 %v499, %v501
  %v503 = vadd.f32 %v499, %v502
  %vm504 = vweird.f32 %v495
  %vm505 = vweird.f32 %v499
  %vm506 = vmor %vm504, %vm505
  %v507 = vsel %vm506, %v499, %v503
  %v508 = vand.u32 2147483647, %v495
  %vm509 = vcmp.eq.f32.partialorder %v508, 8.507059e+37
  %v510 = vand.u32 %v495, 2147483648
  %v511 = vor.u32 1.1754944e-38, %v510
  %v512 = vsel %vm509, %v511, %v507
  %v513 = vmul.f32 %v490, %v512
  %v514 = vrcp.pop %v498
  %v515 = vmul.f32 %v498, %v514
  %v516 = vsub.f32 1.0, %v515
  %v517 = vmul.f32 %v514, %v516
  %v518 = vadd.f32 %v514, %v517
  %vm519 = vweird.f32 %v498
  %vm520 = vweird.f32 %v514
  %vm521 = vmor %vm519, %vm520
  %v522 = vsel %vm521, %v514, %v518
  %v523 = vand.u32 2147483647, %v498
  %vm524 = vcmp.eq.f32.partialorder %v523, 8.507059e+37
  %v525 = vand.u32 %v498, 2147483648
  %v526 = vor.u32 1.1754944e-38, %v525
  %v527 = vsel %vm524, %v526, %v522
  %v528 = vmul.f32 %v492, %v527
  %v529 = vpack.c.bf16 %v513, %v513
  %v530 = vpack.c.bf16 %v528, %v528
  %531 = vrot.lane.b32.xlu0 %v101, 48
  %v532 = vpop.permute.xlu0 %531
  %v534 = vsel %vm104, %v529, 0
  %v537 = vsel %vm207, %v532, 0
  %539 = vmatpush.bf16.msra.mxu0 0
  %540 = vmatpush.bf16.msra.mxu0 0
  %541 = vmatpush.bf16.msra.mxu0 0
  %542 = vmatpush.bf16.msra.mxu0 0
  %543 = vmatpush.bf16.msra.mxu0 0
  %544 = vmatpush.bf16.msra.mxu0 0
  %545 = vmatpush.bf16.msra.mxu0 0
  %546 = vmatpush.bf16.msra.mxu0 %v537
  %547 = vmatmul.bf16.gmra.mxu0 %v534
  %v548 = vpop.f32.mrf.mxu0
  %v549 = vadd.f32 0.0, %v548
  %v550 = vpop.f32.mrf.mxu0
  %551 = vdwg.mxu0
  %552 = vrot.lane.b32.xlu0 %v126, 48
  %v553 = vpop.permute.xlu0 %552
  %v555 = vsel %vm104, %v530, 0
  %v558 = vsel %vm207, %v553, 0
  %560 = vmatpush.bf16.msra.mxu0 0
  %561 = vmatpush.bf16.msra.mxu0 0
  %562 = vmatpush.bf16.msra.mxu0 0
  %563 = vmatpush.bf16.msra.mxu0 0
  %564 = vmatpush.bf16.msra.mxu0 0
  %565 = vmatpush.bf16.msra.mxu0 0
  %566 = vmatpush.bf16.msra.mxu0 0
  %567 = vmatpush.bf16.msra.mxu0 %v558
  %568 = vmatmul.bf16.gmra.mxu0 %v555
  %v569 = vpop.f32.mrf.mxu0
  %v570 = vadd.f32 0.0, %v569
  %v571 = vpop.f32.mrf.mxu0
  %572 = vdwg.mxu0
  %v573 = vpack.c.bf16 %v88, %v88
  %v574 = vpack.c.bf16 %v570, %v549
  %v576 = vsel %vm104, %v574, 0
  %v579 = vsel %vm207, %v573, 0
  %581 = vmatpush.bf16.msra.mxu0 0
  %582 = vmatpush.bf16.msra.mxu0 0
  %583 = vmatpush.bf16.msra.mxu0 0
  %584 = vmatpush.bf16.msra.mxu0 0
  %585 = vmatpush.bf16.msra.mxu0 0
  %586 = vmatpush.bf16.msra.mxu0 0
  %587 = vmatpush.bf16.msra.mxu0 0
  %588 = vmatpush.bf16.msra.mxu0 %v579
  %589 = vmatmul.bf16.gmra.mxu0 %v576
  %v590 = vpop.f32.mrf.mxu0
  %v591 = vadd.f32 0.0, %v590
  %v592 = vpop.f32.mrf.mxu0
  %v593 = vadd.f32 0.0, %v592
  %594 = vdwg.mxu0
  %v595 = vadd.f32 %v427, %v591
  %v596 = vadd.f32 %v429, %v593
  %597 = vrot.lane.b32.xlu0 %v101, 104
  %v598 = vpop.permute.xlu0 %597
  %599 = vrot.lane.b32.xlu0 %v101, 72
  %v600 = vpop.permute.xlu0 %599
  %v602 = vsel %vm104, %v598, 0
  %v605 = vsel %vm104, %v600, 0
  %607 = vmatpush.bf16.xpose.msra.mxu0 0
  %608 = vmatpush.bf16.xpose.msra.mxu0 0
  %609 = vmatpush.bf16.xpose.msra.mxu0 0
  %610 = vmatpush.bf16.xpose.msra.mxu0 0
  %611 = vmatpush.bf16.xpose.msra.mxu0 0
  %612 = vmatpush.bf16.xpose.msra.mxu0 0
  %613 = vmatpush.bf16.xpose.msra.mxu0 0
  %614 = vmatpush.bf16.xpose.msra.mxu0 %v605
  %615 = vmatmul.bf16.gmra.mxu0 %v602
  %v616 = vpop.f32.mrf.mxu0
  %v617 = vadd.f32 0.0, %v616
  %v618 = vpop.f32.mrf.mxu0
  %619 = vdwg.mxu0
  %620 = vrot.lane.b32.xlu0 %v126, 104
  %v621 = vpop.permute.xlu0 %620
  %622 = vrot.lane.b32.xlu0 %v126, 72
  %v623 = vpop.permute.xlu0 %622
  %v625 = vsel %vm104, %v621, 0
  %v628 = vsel %vm104, %v623, 0
  %630 = vmatpush.bf16.xpose.msra.mxu0 0
  %631 = vmatpush.bf16.xpose.msra.mxu0 0
  %632 = vmatpush.bf16.xpose.msra.mxu0 0
  %633 = vmatpush.bf16.xpose.msra.mxu0 0
  %634 = vmatpush.bf16.xpose.msra.mxu0 0
  %635 = vmatpush.bf16.xpose.msra.mxu0 0
  %636 = vmatpush.bf16.xpose.msra.mxu0 0
  %637 = vmatpush.bf16.xpose.msra.mxu0 %v628
  %638 = vmatmul.bf16.gmra.mxu0 %v625
  %v639 = vpop.f32.mrf.mxu0
  %v640 = vadd.f32 0.0, %v639
  %v641 = vpop.f32.mrf.mxu0
  %642 = vdwg.mxu0
  %v643 = vmul.f32 %v617, 0.35355338
  %v644 = vmul.f32 %v640, 0.35355338
  %v645 = vadd.f32 %v643, %v96
  %v646 = vadd.f32 %v644, %v96
  %v647 = vsel %vm104, %v645, -inf
  %648 = vmax.xlane.f32.xlu0 %v647
  %v649 = vpop.xlane.xlu0 %648
  %v650 = vsel %vm104, %v646, -inf
  %651 = vmax.xlane.f32.xlu0 %v650
  %v652 = vpop.xlane.xlu0 %651
  %v653 = vsub.f32 %v645, %v649
  %v654 = vsub.f32 %v646, %v652
  %v655 = vmul.f32 %v653, 1.442695
  %v656 = vpow.pop %v655
  %v657 = vmul.f32 %v654, 1.442695
  %v658 = vpow.pop %v657
  %v659 = vsel %vm104, %v656, 0.0
  %660 = vadd.xlane.f32.xlu0 %v659
  %v661 = vpop.xlane.xlu0 %660
  %v662 = vsel %vm104, %v658, 0.0
  %663 = vadd.xlane.f32.xlu0 %v662
  %v664 = vpop.xlane.xlu0 %663
  %v665 = vrcp.pop %v661
  %v666 = vmul.f32 %v661, %v665
  %v667 = vsub.f32 1.0, %v666
  %v668 = vmul.f32 %v665, %v667
  %v669 = vadd.f32 %v665, %v668
  %vm670 = vweird.f32 %v661
  %vm671 = vweird.f32 %v665
  %vm672 = vmor %vm670, %vm671
  %v673 = vsel %vm672, %v665, %v669
  %v674 = vand.u32 2147483647, %v661
  %vm675 = vcmp.eq.f32.partialorder %v674, 8.507059e+37
  %v676 = vand.u32 %v661, 2147483648
  %v677 = vor.u32 1.1754944e-38, %v676
  %v678 = vsel %vm675, %v677, %v673
  %v679 = vmul.f32 %v656, %v678
  %v680 = vrcp.pop %v664
  %v681 = vmul.f32 %v664, %v680
  %v682 = vsub.f32 1.0, %v681
  %v683 = vmul.f32 %v680, %v682
  %v684 = vadd.f32 %v680, %v683
  %vm685 = vweird.f32 %v664
  %vm686 = vweird.f32 %v680
  %vm687 = vmor %vm685, %vm686
  %v688 = vsel %vm687, %v680, %v684
  %v689 = vand.u32 2147483647, %v664
  %vm690 = vcmp.eq.f32.partialorder %v689, 8.507059e+37
  %v691 = vand.u32 %v664, 2147483648
  %v692 = vor.u32 1.1754944e-38, %v691
  %v693 = vsel %vm690, %v692, %v688
  %v694 = vmul.f32 %v658, %v693
  %v695 = vpack.c.bf16 %v679, %v679
  %v696 = vpack.c.bf16 %v694, %v694
  %697 = vrot.lane.b32.xlu0 %v101, 40
  %v698 = vpop.permute.xlu0 %697
  %v700 = vsel %vm104, %v695, 0
  %v703 = vsel %vm207, %v698, 0
  %705 = vmatpush.bf16.msra.mxu0 0
  %706 = vmatpush.bf16.msra.mxu0 0
  %707 = vmatpush.bf16.msra.mxu0 0
  %708 = vmatpush.bf16.msra.mxu0 0
  %709 = vmatpush.bf16.msra.mxu0 0
  %710 = vmatpush.bf16.msra.mxu0 0
  %711 = vmatpush.bf16.msra.mxu0 0
  %712 = vmatpush.bf16.msra.mxu0 %v703
  %713 = vmatmul.bf16.gmra.mxu0 %v700
  %v714 = vpop.f32.mrf.mxu0
  %v715 = vadd.f32 0.0, %v714
  %v716 = vpop.f32.mrf.mxu0
  %717 = vdwg.mxu0
  %718 = vrot.lane.b32.xlu0 %v126, 40
  %v719 = vpop.permute.xlu0 %718
  %v721 = vsel %vm104, %v696, 0
  %v724 = vsel %vm207, %v719, 0
  %726 = vmatpush.bf16.msra.mxu0 0
  %727 = vmatpush.bf16.msra.mxu0 0
  %728 = vmatpush.bf16.msra.mxu0 0
  %729 = vmatpush.bf16.msra.mxu0 0
  %730 = vmatpush.bf16.msra.mxu0 0
  %731 = vmatpush.bf16.msra.mxu0 0
  %732 = vmatpush.bf16.msra.mxu0 0
  %733 = vmatpush.bf16.msra.mxu0 %v724
  %734 = vmatmul.bf16.gmra.mxu0 %v721
  %v735 = vpop.f32.mrf.mxu0
  %v736 = vadd.f32 0.0, %v735
  %v737 = vpop.f32.mrf.mxu0
  %738 = vdwg.mxu0
  %v739 = vpack.c.bf16 %v89, %v89
  %v740 = vpack.c.bf16 %v736, %v715
  %v742 = vsel %vm104, %v740, 0
  %v745 = vsel %vm207, %v739, 0
  %747 = vmatpush.bf16.msra.mxu0 0
  %748 = vmatpush.bf16.msra.mxu0 0
  %749 = vmatpush.bf16.msra.mxu0 0
  %750 = vmatpush.bf16.msra.mxu0 0
  %751 = vmatpush.bf16.msra.mxu0 0
  %752 = vmatpush.bf16.msra.mxu0 0
  %753 = vmatpush.bf16.msra.mxu0 0
  %754 = vmatpush.bf16.msra.mxu0 %v745
  %755 = vmatmul.bf16.gmra.mxu0 %v742
  %v756 = vpop.f32.mrf.mxu0
  %v757 = vadd.f32 0.0, %v756
  %v758 = vpop.f32.mrf.mxu0
  %v759 = vadd.f32 0.0, %v758
  %760 = vdwg.mxu0
  %v761 = vadd.f32 %v595, %v757
  %v762 = vadd.f32 %v596, %v759
  %v764 = vperm.slane %v90, 0
  %v766 = vadd.f32 %v761, %v764
  %v767 = vadd.f32 %v762, %v764
  %v768 = vadd.f32 %v45, %v766
  %v769 = vadd.f32 %v46, %v767
  %v770 = vld [vmem:[%s5] sm:$0x1]
  %v771 = vld [vmem:[%s6] sm:$0x1]
  %v772 = vsel %vm68, %v768, 0.0
  %773 = vadd.xlane.f32.xlu0 %v772
  %v774 = vpop.xlane.xlu0 %773
  %v775 = vsel %vm68, %v769, 0.0
  %776 = vadd.xlane.f32.xlu0 %v775
  %v777 = vpop.xlane.xlu0 %776
  %v778 = vrcp.pop 32.0
  %v779 = vmul.f32 32.0, %v778
  %v780 = vsub.f32 1.0, %v779
  %v781 = vmul.f32 %v778, %v780
  %v782 = vadd.f32 %v778, %v781
  %vm783 = vweird.f32 %v778
  %v784 = vsel %vm783, %v778, %v782
  %v785 = vmul.f32 %v774, %v784
  %v786 = vmul.f32 %v777, %v784
  %v787 = vsub.f32 %v768, %v785
  %v788 = vsub.f32 %v769, %v786
  %v789 = vmul.f32 %v787, %v787
  %v790 = vmul.f32 %v788, %v788
  %v791 = vsel %vm68, %v789, 0.0
  %792 = vadd.xlane.f32.xlu0 %v791
  %v793 = vpop.xlane.xlu0 %792
  %v794 = vsel %vm68, %v790, 0.0
  %795 = vadd.xlane.f32.xlu0 %v794
  %v796 = vpop.xlane.xlu0 %795
  %v797 = vmul.f32 %v793, %v784
  %v798 = vmul.f32 %v796, %v784
  %v799 = vadd.f32 %v797, 1e-05
  %v800 = vadd.f32 %v798, 1e-05
  %v801 = vrsqrt.pop %v799
  %v802 = vmul.f32 %v801, %v799
  %v803 = vmul.f32 %v802, %v801
  %v804 = vmul.f32 0.5, %v803
  %v805 = vsub.f32 1.5, %v804
  %v806 = vmul.f32 %v801, %v805
  %vm807 = vweird.f32 %v799
  %vm808 = vweird.f32 %v801
  %vm809 = vmor %vm807, %vm808
  %v810 = vsel %vm809, %v801, %v806
  %v811 = vrsqrt.pop %v800
  %v812 = vmul.f32 %v811, %v800
  %v813 = vmul.f32 %v812, %v811
  %v814 = vmul.f32 0.5, %v813
  %v815 = vsub.f32 1.5, %v814
  %v816 = vmul.f32 %v811, %v815
  %vm817 = vweird.f32 %v800
  %vm818 = vweird.f32 %v811
  %vm819 = vmor %vm817, %vm818
  %v820 = vsel %vm819, %v811, %v816
  %v821 = vmul.f32 %v787, %v810
  %v822 = vmul.f32 %v788, %v820
  %v824 = vperm.slane %v770, 0
  %v826 = vmul.f32 %v821, %v824
  %v827 = vmul.f32 %v822, %v824
  %v829 = vperm.slane %v771, 0
  %v831 = vadd.f32 %v826, %v829
  %v832 = vadd.f32 %v827, %v829
  %v833 = vpack.c.bf16 %v832, %v831
  %v834 = vld [vmem:[%s7] sm:$0xf]
  %v835 = vld [vmem:[%s7 + $0x4] sm:$0xf]
  %v836 = vld [vmem:[%s7 + $0x8] sm:$0xf]
  %v837 = vld [vmem:[%s7 + $0xc] sm:$0xf]
  %v838 = vld [vmem:[%s8] sm:$0x1]
  %v840 = vperm.slane %v838, 0
  %v846 = vunpack.c.l.b16 %v834
  %v847 = vunpack.c.l.b16 %v835
  %v848 = vunpack.c.l.b16 %v836
  %v849 = vunpack.c.l.b16 %v837
  %v850 = vpack.c.b16 %v847, %v846
  %v851 = vpack.c.b16 %v849, %v848
  %v855 = vsel %vm68, %v833, 0
  %857 = vmatpush.bf16.msra.mxu0 0
  %858 = vmatpush.bf16.msra.mxu0 0
  %859 = vmatpush.bf16.msra.mxu0 0
  %860 = vmatpush.bf16.msra.mxu0 0
  %861 = vmatpush.bf16.msra.mxu0 0
  %862 = vmatpush.bf16.msra.mxu0 0
  %863 = vmatpush.bf16.msra.mxu0 %v851
  %864 = vmatpush.bf16.msra.mxu0 %v850
  %865 = vmatmul.bf16.gmra.mxu0 %v855
  %v866 = vpop.f32.mrf.mxu0
  %v867 = vadd.f32 %v840, %v866
  %v868 = vpop.f32.mrf.mxu0
  %v869 = vadd.f32 %v840, %v868
  %870 = vdwg.mxu0
  %v871 = vmax.f32 %v867, 0.0
  %v872 = vmax.f32 %v869, 0.0
  %v873 = vpack.c.bf16 %v872, %v871
  %v874 = vld [vmem:[%s9] sm:$0xf]
  %v875 = vld [vmem:[%s9 + $0x4] sm:$0xf]
  %v876 = vld [vmem:[%s9 + $0x8] sm:$0xf]
  %v877 = vld [vmem:[%s9 + $0xc] sm:$0xf]
  %v878 = vld [vmem:[%s9 + $0x10] sm:$0xf]
  %v879 = vld [vmem:[%s9 + $0x14] sm:$0xf]
  %v880 = vld [vmem:[%s9 + $0x18] sm:$0xf]
  %v881 = vld [vmem:[%s9 + $0x1c] sm:$0xf]
  %v882 = vld [vmem:[%s10] sm:$0x1]
  %v884 = vperm.slane %v882, 0
  %v894 = vunpack.c.l.b16 %v874
  %v895 = vunpack.c.l.b16 %v875
  %v896 = vunpack.c.l.b16 %v876
  %v897 = vunpack.c.l.b16 %v877
  %v898 = vunpack.c.l.b16 %v878
  %v899 = vunpack.c.l.b16 %v879
  %v900 = vunpack.c.l.b16 %v880
  %v901 = vunpack.c.l.b16 %v881
  %v902 = vpack.c.b16 %v895, %v894
  %v903 = vpack.c.b16 %v897, %v896
  %v904 = vpack.c.b16 %v899, %v898
  %v905 = vpack.c.b16 %v901, %v900
  %vm910 = vcmask 523264
  %v912 = vsel %vm910, %v873, 0
  %914 = vmatpush.bf16.msra.mxu0 0
  %915 = vmatpush.bf16.msra.mxu0 0
  %916 = vmatpush.bf16.msra.mxu0 0
  %917 = vmatpush.bf16.msra.mxu0 0
  %918 = vmatpush.bf16.msra.mxu0 %v905
  %919 = vmatpush.bf16.msra.mxu0 %v904
  %920 = vmatpush.bf16.msra.mxu0 %v903
  %921 = vmatpush.bf16.msra.mxu0 %v902
  %922 = vmatmul.bf16.gmra.mxu0 %v912
  %v923 = vpop.f32.mrf.mxu0
  %v924 = vadd.f32 %v884, %v923
  %v925 = vpop.f32.mrf.mxu0
  %v926 = vadd.f32 %v884, %v925
  %927 = vdwg.mxu0
  %v928 = vadd.f32 %v831, %v924
  %v929 = vadd.f32 %v832, %v926
  %v930 = vld [vmem:[%s11] sm:$0x1]
  %v931 = vld [vmem:[%s12] sm:$0x1]
  %v932 = vsel %vm68, %v928, 0.0
  %933 = vadd.xlane.f32.xlu0 %v932
  %v934 = vpop.xlane.xlu0 %933
  %v935 = vsel %vm68, %v929, 0.0
  %936 = vadd.xlane.f32.xlu0 %v935
  %v937 = vpop.xlane.xlu0 %936
  %v938 = vmul.f32 %v934, %v784
  %v939 = vmul.f32 %v937, %v784
  %v940 = vsub.f32 %v928, %v938
  %v941 = vsub.f32 %v929, %v939
  %v942 = vmul.f32 %v940, %v940
  %v943 = vmul.f32 %v941, %v941
  %v944 = vsel %vm68, %v942, 0.0
  %945 = vadd.xlane.f32.xlu0 %v944
  %v946 = vpop.xlane.xlu0 %945
  %v947 = vsel %vm68, %v943, 0.0
  %948 = vadd.xlane.f32.xlu0 %v947
  %v949 = vpop.xlane.xlu0 %948
  %v950 = vmul.f32 %v946, %v784
  %v951 = vmul.f32 %v949, %v784
  %v952 = vadd.f32 %v950, 1e-05
  %v953 = vadd.f32 %v951, 1e-05
  %v954 = vrsqrt.pop %v952
  %v955 = vmul.f32 %v954, %v952
  %v956 = vmul.f32 %v955, %v954
  %v957 = vmul.f32 0.5, %v956
  %v958 = vsub.f32 1.5, %v957
  %v959 = vmul.f32 %v954, %v958
  %vm960 = vweird.f32 %v952
  %vm961 = vweird.f32 %v954
  %vm962 = vmor %vm960, %vm961
  %v963 = vsel %vm962, %v954, %v959
  %v964 = vrsqrt.pop %v953
  %v965 = vmul.f32 %v964, %v953
  %v966 = vmul.f32 %v965, %v964
  %v967 = vmul.f32 0.5, %v966
  %v968 = vsub.f32 1.5, %v967
  %v969 = vmul.f32 %v964, %v968
  %vm970 = vweird.f32 %v953
  %vm971 = vweird.f32 %v964
  %vm972 = vmor %vm970, %vm971
  %v973 = vsel %vm972, %v964, %v969
  %v974 = vmul.f32 %v940, %v963
  %v975 = vmul.f32 %v941, %v973
  %v977 = vperm.slane %v930, 0
  %v979 = vmul.f32 %v974, %v977
  %v980 = vmul.f32 %v975, %v977
  %v982 = vperm.slane %v931, 0
  %v984 = vadd.f32 %v979, %v982
  %v985 = vadd.f32 %v980, %v982
  %986 = vst.msk [vmem:[%s13] sm:$0xff] %vm68, %v984
  %987 = vst.msk [vmem:[%s13 + $0x8] sm:$0xff] %vm68, %v985
  // Predicated region
  $region54: #{forward.6} parent=0 // pred_check
    _
  $region55: #{forward.6} parent=0 // pred_check_branch
    %989 = sbr.rel (0) target = $region57
  $region56: #{forward.6} parent=0 // pred_region
    _
  $region57: #{forward.6} parent=0 // pred_fallthru
    _
  // Predicated region
  $region58: #{forward.6} parent=0 // pred_check
    _
  $region59: #{forward.6} parent=0 // pred_check_branch
    %991 = sbr.rel (0) target = $region61
  $region60: #{forward.6} parent=0 // pred_region
    _
  $region61: #{forward.6} parent=0 // pred_fallthru
    _

// kernel: forward.11
$region0: #{forward.11}
  #allocation0 [shape = 'u32[]', space=smem, size = 0x4, offset = 0x4, fixed_abs, tag = 'smem constant byte address 0x4 - core index']
  #allocation1 [shape = 'u32[72,128]{1,0:T(1,128)}', space=vmem, size = 0x9000, scoped, tag = 'internal scratch']
  %s0 = inlined_call_operand.vmem [shape: f32[16,32], index: 0, kind: input, shape index: {}]
  %s1 = inlined_call_operand.vmem [shape: f32[1,32], index: 1, kind: input, shape index: {}]
  %s2 = inlined_call_operand.hbm [shape: f32[1,32], index: 2, kind: input, shape index: {}]
  %s3 = inlined_call_operand.vmem [shape: bf16[32,64], index: 3, kind: input, shape index: {}]
  %s4 = inlined_call_operand.hbm [shape: f32[1,64], index: 4, kind: input, shape index: {}]
  %s5 = inlined_call_operand.hbm [shape: f32[16,64], index: 5, kind: output, shape index: {}]
  %s6 = sld [smem:[#allocation0]]
  $region38: #{forward.11} parent=0
    _
  %s8 = ssub.s32 1, %s6
  %s9 = scalar_select 0, %s8, %s6
  $region1: #{forward.11} parent=0
    #allocation2 [shape = 'u8[512]{0}', space=vmem, size = 0x400, scoped, tag = 'input window, operand 2, single buffered']
    #allocation3 [shape = 's32[1]{0}', space=sflag, size = 0x4, scoped, tag = 'scoped memory for forward.11']
    #allocation4 [shape = 's32[1]{0}', space=sflag, size = 0x4, scoped, tag = 'scoped memory for forward.11']
    #allocation5 [shape = 'u8[512]{0}', space=vmem, size = 0x400, scoped, tag = 'input window, operand 4, single buffered']
    #allocation6 [shape = 's32[1]{0}', space=sflag, size = 0x4, scoped, tag = 'scoped memory for forward.11']
    #allocation7 [shape = 'u8[8192]{0}', space=vmem, size = 0x2000, scoped, tag = 'output window, operand 0, single buffered']
    %10 = vsyncpa [#allocation3], 0
    %11 = vsyncpa [#allocation6], 0
    %12 = vsyncpa [#allocation4], 0
    // Predicated region
    $region2: #{forward.11} parent=1 // pred_check
      _
    $region3: #{forward.11} parent=1 // pred_check_branch
      %14 = sbr.rel (0) target = $region5
    $region4: #{forward.11} parent=1 // pred_region
      _
    $region5: #{forward.11} parent=1 // pred_fallthru
      _
    // Predicated region
    $region6: #{forward.11} parent=1 // pred_check
      _
    $region7: #{forward.11} parent=1 // pred_check_branch
      %16 = sbr.rel (0) target = $region9
    $region8: #{forward.11} parent=1 // pred_region
      _
    $region9: #{forward.11} parent=1 // pred_fallthru
      _
    // Predicated region
    $region10: #{forward.11} parent=1 // pred_check
      _
    $region11: #{forward.11} parent=1 // pred_check_branch
      %18 = sbr.rel (0) target = $region13
    $region12: #{forward.11} parent=1 // pred_region
      %20 = vsyncadd [#allocation3], 0
      %s22 = sshll.u32 %s2, 4
      %s23 = int_to_ptr.hbm [resolvable:$true] %s22
      %s24 = sshll.u32 [#allocation2], 4
      %s25 = int_to_ptr.vmem [resolvable:$true] %s24
      %27 = dma.hbm_to_vmem [thread:$0]  %s23, 16, %s25, [#allocation3]
    $region13: #{forward.11} parent=1 // pred_fallthru
      _
    // Predicated region
    $region14: #{forward.11} parent=1 // pred_check
      _
    $region15: #{forward.11} parent=1 // pred_check_branch
      %29 = sbr.rel (0) target = $region17
    $region16: #{forward.11} parent=1 // pred_region
      _
    $region17: #{forward.11} parent=1 // pred_fallthru
      _
    // Predicated region
    $region18: #{forward.11} parent=1 // pred_check
      _
    $region19: #{forward.11} parent=1 // pred_check_branch
      %31 = sbr.rel (0) target = $region21
    $region20: #{forward.11} parent=1 // pred_region
      %33 = vsyncadd [#allocation6], 0
      %s35 = sshll.u32 %s4, 4
      %s36 = int_to_ptr.hbm [resolvable:$true] %s35
      %s37 = sshll.u32 [#allocation5], 4
      %s38 = int_to_ptr.vmem [resolvable:$true] %s37
      %40 = dma.hbm_to_vmem [thread:$0]  %s36, 16, %s38, [#allocation6]
    $region21: #{forward.11} parent=1 // pred_fallthru
      _
    // Predicated region
    $region22: #{forward.11} parent=1 // pred_check
      _
    $region23: #{forward.11} parent=1 // pred_check_branch
      %42 = sbr.rel (0) target = $region25
    $region24: #{forward.11} parent=1 // pred_region
      %44 = dma.done [#allocation3], 16
    $region25: #{forward.11} parent=1 // pred_fallthru
      _
    // Predicated region
    $region26: #{forward.11} parent=1 // pred_check
      _
    $region27: #{forward.11} parent=1 // pred_check_branch
      %46 = sbr.rel (0) target = $region29
    $region28: #{forward.11} parent=1 // pred_region
      %48 = dma.done [#allocation6], 16
    $region29: #{forward.11} parent=1 // pred_fallthru
      _
    %v50 = vld [vmem:[%s0] sm:$0xff]
    %v51 = vld [vmem:[%s0 + $0x8] sm:$0xff]
    %v52 = vld [vmem:[%s1] sm:$0x1]
    %v53 = vld [vmem:[#allocation2] sm:$0x1]
    %vm54 = vcmask 261120
    %v55 = vsel %vm54, %v50, 0.0
    %56 = vadd.xlane.f32.xlu0 %v55
    %v57 = vpop.xlane.xlu0 %56
    %v58 = vsel %vm54, %v51, 0.0
    %59 = vadd.xlane.f32.xlu0 %v58
    %v60 = vpop.xlane.xlu0 %59
    %v61 = vrcp.pop 32.0
    %v62 = vmul.f32 32.0, %v61
    %v63 = vsub.f32 1.0, %v62
    %v64 = vmul.f32 %v61, %v63
    %v65 = vadd.f32 %v61, %v64
    %vm66 = vweird.f32 %v61
    %v67 = vsel %vm66, %v61, %v65
    %v68 = vmul.f32 %v57, %v67
    %v69 = vmul.f32 %v60, %v67
    %v70 = vsub.f32 %v50, %v68
    %v71 = vsub.f32 %v51, %v69
    %v72 = vmul.f32 %v70, %v70
    %v73 = vmul.f32 %v71, %v71
    %v74 = vsel %vm54, %v72, 0.0
    %75 = vadd.xlane.f32.xlu0 %v74
    %v76 = vpop.xlane.xlu0 %75
    %v77 = vsel %vm54, %v73, 0.0
    %78 = vadd.xlane.f32.xlu0 %v77
    %v79 = vpop.xlane.xlu0 %78
    %v80 = vmul.f32 %v76, %v67
    %v81 = vmul.f32 %v79, %v67
    %v82 = vadd.f32 %v80, 1e-05
    %v83 = vadd.f32 %v81, 1e-05
    %v84 = vrsqrt.pop %v82
    %v85 = vmul.f32 %v84, %v82
    %v86 = vmul.f32 %v85, %v84
    %v87 = vmul.f32 0.5, %v86
    %v88 = vsub.f32 1.5, %v87
    %v89 = vmul.f32 %v84, %v88
    %vm90 = vweird.f32 %v82
    %vm91 = vweird.f32 %v84
    %vm92 = vmor %vm90, %vm91
    %v93 = vsel %vm92, %v84, %v89
    %v94 = vrsqrt.pop %v83
    %v95 = vmul.f32 %v94, %v83
    %v96 = vmul.f32 %v95, %v94
    %v97 = vmul.f32 0.5, %v96
    %v98 = vsub.f32 1.5, %v97
    %v99 = vmul.f32 %v94, %v98
    %vm100 = vweird.f32 %v83
    %vm101 = vweird.f32 %v94
    %vm102 = vmor %vm100, %vm101
    %v103 = vsel %vm102, %v94, %v99
    %v104 = vmul.f32 %v70, %v93
    %v105 = vmul.f32 %v71, %v103
    %v107 = vperm.slane %v52, 0
    %v109 = vmul.f32 %v104, %v107
    %v110 = vmul.f32 %v105, %v107
    %v112 = vperm.slane %v53, 0
    %v114 = vadd.f32 %v109, %v112
    %v115 = vadd.f32 %v110, %v112
    %v116 = vpack.c.bf16 %v115, %v114
    %v117 = vld [vmem:[%s3] sm:$0xf]
    %v118 = vld [vmem:[%s3 + $0x4] sm:$0xf]
    %v119 = vld [vmem:[%s3 + $0x8] sm:$0xf]
    %v120 = vld [vmem:[%s3 + $0xc] sm:$0xf]
    %v121 = vld [vmem:[#allocation5] sm:$0x1]
    %v123 = vperm.slane %v121, 0
    %v129 = vunpack.c.l.b16 %v117
    %v130 = vunpack.c.l.b16 %v118
    %v131 = vunpack.c.l.b16 %v119
    %v132 = vunpack.c.l.b16 %v120
    %v133 = vpack.c.b16 %v130, %v129
    %v134 = vpack.c.b16 %v132, %v131
    %v138 = vsel %vm54, %v116, 0
    %140 = vmatpush.bf16.msra.mxu0 0
    %141 = vmatpush.bf16.msra.mxu0 0
    %142 = vmatpush.bf16.msra.mxu0 0
    %143 = vmatpush.bf16.msra.mxu0 0
    %144 = vmatpush.bf16.msra.mxu0 0
    %145 = vmatpush.bf16.msra.mxu0 0
    %146 = vmatpush.bf16.msra.mxu0 %v134
    %147 = vmatpush.bf16.msra.mxu0 %v133
    %148 = vmatmul.bf16.gmra.mxu0 %v138
    %v149 = vpop.f32.mrf.mxu0
    %v150 = vadd.f32 %v123, %v149
    %v151 = vpop.f32.mrf.mxu0
    %v152 = vadd.f32 %v123, %v151
    %153 = vdwg.mxu0
    %vm154 = vcmask 523264
    %155 = vst.msk [vmem:[#allocation7] sm:$0xff] %vm154, %v150
    %156 = vst.msk [vmem:[#allocation7 + $0x8] sm:$0xff] %vm154, %v152
    // Predicated region
    $region30: #{forward.11} parent=1 // pred_check
      _
    $region31: #{forward.11} parent=1 // pred_check_branch
      %158 = sbr.rel (0) target = $region33
    $region32: #{forward.11} parent=1 // pred_region
      %160 = vsyncadd [#allocation4], 0
      %s161 = sshll.u32 [#allocation7], 4
      %s162 = int_to_ptr.vmem [resolvable:$true] %s161
      %s163 = sshll.u32 %s5, 4
      %s164 = int_to_ptr.hbm [resolvable:$true] %s163
      %169 = dma.vmem_to_hbm [thread:$0]  %s162, 256, %s164, [#allocation4], 128, 128, 8
    $region33: #{forward.11} parent=1 // pred_fallthru
      _
    // Predicated region
    $region34: #{forward.11} parent=1 // pred_check
      _
    $region35: #{forward.11} parent=1 // pred_check_branch
      %171 = sbr.rel (0) target = $region37
    $region36: #{forward.11} parent=1 // pred_region
      %173 = dma.done [#allocation4], 256
    $region37: #{forward.11} parent=1 // pred_fallthru
      _
    %174 = vsyncpa [#allocation3], 1
    %175 = vsyncpa [#allocation6], 1
    %176 = vsyncpa [#allocation4], 1

// kernel: forward.9
$region0: #{forward.9}
  #allocation0 [shape = 'u32[]', space=smem, size = 0x4, offset = 0x4, fixed_abs, tag = 'smem constant byte address 0x4 - core index']
  #allocation1 [shape = 'u32[72,128]{1,0:T(1,128)}', space=vmem, size = 0x9000, scoped, tag = 'internal scratch']
  %s0 = inlined_call_operand.vmem [shape: f32[16,32], index: 0, kind: input, shape index: {}]
  %s1 = inlined_call_operand.vmem [shape: f32[16,32], index: 1, kind: input, shape index: {}]
  %s2 = inlined_call_operand.vmem [shape: bf16[32,96], index: 2, kind: input, shape index: {}]
  %s3 = inlined_call_operand.vmem [shape: f32[1,96], index: 3, kind: input, shape index: {}]
  %s4 = inlined_call_operand.vmem [shape: f32[32,32], index: 4, kind: input, shape index: {}]
  %s5 = inlined_call_operand.hbm [shape: f32[1,32], index: 5, kind: input, shape index: {}]
  %s6 = inlined_call_operand.hbm [shape: f32[1,32], index: 6, kind: input, shape index: {}]
  %s7 = inlined_call_operand.hbm [shape: f32[1,32], index: 7, kind: input, shape index: {}]
  %s8 = inlined_call_operand.vmem [shape: bf16[32,32], index: 8, kind: input, shape index: {}]
  %s9 = inlined_call_operand.hbm [shape: f32[1,32], index: 9, kind: input, shape index: {}]
  %s10 = inlined_call_operand.vmem [shape: bf16[32,64], index: 10, kind: input, shape index: {}]
  %s11 = inlined_call_operand.hbm [shape: f32[1,64], index: 11, kind: input, shape index: {}]
  %s12 = inlined_call_operand.vmem [shape: f32[32,32], index: 12, kind: input, shape index: {}]
  %s13 = inlined_call_operand.hbm [shape: f32[1,32], index: 13, kind: input, shape index: {}]
  %s14 = inlined_call_operand.hbm [shape: f32[1,32], index: 14, kind: input, shape index: {}]
  %s15 = inlined_call_operand.hbm [shape: f32[1,32], index: 15, kind: input, shape index: {}]
  %s16 = inlined_call_operand.vmem [shape: bf16[32,64], index: 16, kind: input, shape index: {}]
  %s17 = inlined_call_operand.hbm [shape: f32[1,64], index: 17, kind: input, shape index: {}]
  %s18 = inlined_call_operand.vmem [shape: bf16[64,32], index: 18, kind: input, shape index: {}]
  %s19 = inlined_call_operand.hbm [shape: f32[1,32], index: 19, kind: input, shape index: {}]
  %s20 = inlined_call_operand.hbm [shape: f32[1,32], index: 20, kind: input, shape index: {}]
  %s21 = inlined_call_operand.hbm [shape: f32[1,32], index: 21, kind: input, shape index: {}]
  %s22 = inlined_call_operand.vmem [shape: f32[16,32], index: 22, kind: output, shape index: {}]
  %s23 = sld [smem:[#allocation0]]
  $region146: #{forward.9} parent=0
    _
  %s25 = ssub.s32 1, %s23
  %s26 = scalar_select 0, %s25, %s23
  $region1: #{forward.9} parent=0
    #allocation2 [shape = 'u8[512]{0}', space=vmem, size = 0x400, scoped, tag = 'input window, operand 5, single buffered']
    #allocation3 [shape = 's32[1]{0}', space=sflag, size = 0x4, scoped, tag = 'scoped memory for forward.9']
    #allocation4 [shape = 'u8[512]{0}', space=vmem, size = 0x400, scoped, tag = 'input window, operand 6, single buffered']
    #allocation5 [shape = 's32[1]{0}', space=sflag, size = 0x4, scoped, tag = 'scoped memory for forward.9']
    #allocation6 [shape = 'u8[512]{0}', space=vmem, size = 0x400, scoped, tag = 'input window, operand 7, single buffered']
    #allocation7 [shape = 'u8[512]{0}', space=vmem, size = 0x400, scoped, tag = 'input window, operand 9, single buffered']
    #allocation8 [shape = 's32[1]{0}', space=sflag, size = 0x4, scoped, tag = 'scoped memory for forward.9']
    #allocation9 [shape = 'u8[512]{0}', space=vmem, size = 0x400, scoped, tag = 'input window, operand 11, single buffered']
    #allocation10 [shape = 'u8[512]{0}', space=vmem, size = 0x400, scoped, tag = 'input window, operand 13, single buffered']
    #allocation11 [shape = 's32[1]{0}', space=sflag, size = 0x4, scoped, tag = 'scoped memory for forward.9']
    #allocation12 [shape = 'u8[512]{0}', space=vmem, size = 0x400, scoped, tag = 'input window, operand 14, single buffered']
    #allocation13 [shape = 'u8[512]{0}', space=vmem, size = 0x400, scoped, tag = 'input window, operand 15, single buffered']
    #allocation14 [shape = 's32[1]{0}', space=sflag, size = 0x4, scoped, tag = 'scoped memory for forward.9']
    #allocation15 [shape = 'u8[512]{0}', space=vmem, size = 0x400, scoped, tag = 'input window, operand 17, single buffered']
    #allocation16 [shape = 'u8[512]{0}', space=vmem, size = 0x400, scoped, tag = 'input window, operand 19, single buffered']
    #allocation17 [shape = 's32[1]{0}', space=sflag, size = 0x4, scoped, tag = 'scoped memory for forward.9']
    #allocation18 [shape = 'u8[512]{0}', space=vmem, size = 0x400, scoped, tag = 'input window, operand 20, single buffered']
    #allocation19 [shape = 'u8[512]{0}', space=vmem, size = 0x400, scoped, tag = 'input window, operand 21, single buffered']
    #allocation20 [shape = 's32[1]{0}', space=sflag, size = 0x4, scoped, tag = 'scoped memory for forward.9']
    %27 = vsyncpa [#allocation3], 0
    %28 = vsyncpa [#allocation5], 0
    %29 = vsyncpa [#allocation8], 0
    %30 = vsyncpa [#allocation11], 0
    %31 = vsyncpa [#allocation14], 0
    %32 = vsyncpa [#allocation17], 0
    %33 = vsyncpa [#allocation20], 0
    // Predicated region
    $region2: #{forward.9} parent=1 // pred_check
      _
    $region3: #{forward.9} parent=1 // pred_check_branch
      %35 = sbr.rel (0) target = $region5
    $region4: #{forward.9} parent=1 // pred_region
      _
    $region5: #{forward.9} parent=1 // pred_fallthru
      _
    // Predicated region
    $region6: #{forward.9} parent=1 // pred_check
      _
    $region7: #{forward.9} parent=1 // pred_check_branch
      %37 = sbr.rel (0) target = $region9
    $region8: #{forward.9} parent=1 // pred_region
      _
    $region9: #{forward.9} parent=1 // pred_fallthru
      _
    // Predicated region
    $region10: #{forward.9} parent=1 // pred_check
      _
    $region11: #{forward.9} parent=1 // pred_check_branch
      %39 = sbr.rel (0) target = $region13
    $region12: #{forward.9} parent=1 // pred_region
      _
    $region13: #{forward.9} parent=1 // pred_fallthru
      _
    // Predicated region
    $region14: #{forward.9} parent=1 // pred_check
      _
    $region15: #{forward.9} parent=1 // pred_check_branch
      %41 = sbr.rel (0) target = $region17
    $region16: #{forward.9} parent=1 // pred_region
      _
    $region17: #{forward.9} parent=1 // pred_fallthru
      _
    // Predicated region
    $region18: #{forward.9} parent=1 // pred_check
      _
    $region19: #{forward.9} parent=1 // pred_check_branch
      %43 = sbr.rel (0) target = $region21
    $region20: #{forward.9} parent=1 // pred_region
      _
    $region21: #{forward.9} parent=1 // pred_fallthru
      _
    // Predicated region
    $region22: #{forward.9} parent=1 // pred_check
      _
    $region23: #{forward.9} parent=1 // pred_check_branch
      %45 = sbr.rel (0) target = $region25
    $region24: #{forward.9} parent=1 // pred_region
      %47 = vsyncadd [#allocation3], 0
      %s49 = sshll.u32 %s5, 4
      %s50 = int_to_ptr.hbm [resolvable:$true] %s49
      %s51 = sshll.u32 [#allocation2], 4
      %s52 = int_to_ptr.vmem [resolvable:$true] %s51
      %54 = dma.hbm_to_vmem [thread:$0]  %s50, 16, %s52, [#allocation3]
    $region25: #{forward.9} parent=1 // pred_fallthru
      _
    // Predicated region
    $region26: #{forward.9} parent=1 // pred_check
      _
    $region27: #{forward.9} parent=1 // pred_check_branch
      %56 = sbr.rel (0) target = $region29
    $region28: #{forward.9} parent=1 // pred_region
      %58 = vsyncadd [#allocation5], 0
      %s60 = sshll.u32 %s6, 4
      %s61 = int_to_ptr.hbm [resolvable:$true] %s60
      %s62 = sshll.u32 [#allocation4], 4
      %s63 = int_to_ptr.vmem [resolvable:$true] %s62
      %65 = dma.hbm_to_vmem [thread:$0]  %s61, 16, %s63, [#allocation5]
    $region29: #{forward.9} parent=1 // pred_fallthru
      _
    // Predicated region
    $region30: #{forward.9} parent=1 // pred_check
      _
    $region31: #{forward.9} parent=1 // pred_check_branch
      %67 = sbr.rel (0) target = $region33
    $region32: #{forward.9} parent=1 // pred_region
      %69 = vsyncadd [#allocation5], 0
      %s71 = sshll.u32 %s7, 4
      %s72 = int_to_ptr.hbm [resolvable:$true] %s71
      %s73 = sshll.u32 [#allocation6], 4
      %s74 = int_to_ptr.vmem [resolvable:$true] %s73
      %76 = dma.hbm_to_vmem [thread:$0]  %s72, 16, %s74, [#allocation5]
    $region33: #{forward.9} parent=1 // pred_fallthru
      _
    // Predicated region
    $region34: #{forward.9} parent=1 // pred_check
      _
    $region35: #{forward.9} parent=1 // pred_check_branch
      %78 = sbr.rel (0) target = $region37
    $region36: #{forward.9} parent=1 // pred_region
      _
    $region37: #{forward.9} parent=1 // pred_fallthru
      _
    // Predicated region
    $region38: #{forward.9} parent=1 // pred_check
      _
    $region39: #{forward.9} parent=1 // pred_check_branch
      %80 = sbr.rel (0) target = $region41
    $region40: #{forward.9} parent=1 // pred_region
      %82 = vsyncadd [#allocation8], 0
      %s84 = sshll.u32 %s9, 4
      %s85 = int_to_ptr.hbm [resolvable:$true] %s84
      %s86 = sshll.u32 [#allocation7], 4
      %s87 = int_to_ptr.vmem [resolvable:$true] %s86
      %89 = dma.hbm_to_vmem [thread:$0]  %s85, 16, %s87, [#allocation8]
    $region41: #{forward.9} parent=1 // pred_fallthru
      _
    // Predicated region
    $region42: #{forward.9} parent=1 // pred_check
      _
    $region43: #{forward.9} parent=1 // pred_check_branch
      %91 = sbr.rel (0) target = $region45
    $region44: #{forward.9} parent=1 // pred_region
      _
    $region45: #{forward.9} parent=1 // pred_fallthru
      _
    // Predicated region
    $region46: #{forward.9} parent=1 // pred_check
      _
    $region47: #{forward.9} parent=1 // pred_check_branch
      %93 = sbr.rel (0) target = $region49
    $region48: #{forward.9} parent=1 // pred_region
      %95 = vsyncadd [#allocation8], 0
      %s97 = sshll.u32 %s11, 4
      %s98 = int_to_ptr.hbm [resolvable:$true] %s97
      %s99 = sshll.u32 [#allocation9], 4
      %s100 = int_to_ptr.vmem [resolvable:$true] %s99
      %102 = dma.hbm_to_vmem [thread:$0]  %s98, 16, %s100, [#allocation8]
    $region49: #{forward.9} parent=1 // pred_fallthru
      _
    // Predicated region
    $region50: #{forward.9} parent=1 // pred_check
      _
    $region51: #{forward.9} parent=1 // pred_check_branch
      %104 = sbr.rel (0) target = $region53
    $region52: #{forward.9} parent=1 // pred_region
      _
    $region53: #{forward.9} parent=1 // pred_fallthru
      _
    // Predicated region
    $region54: #{forward.9} parent=1 // pred_check
      _
    $region55: #{forward.9} parent=1 // pred_check_branch
      %106 = sbr.rel (0) target = $region57
    $region56: #{forward.9} parent=1 // pred_region
      %108 = vsyncadd [#allocation11], 0
      %s110 = sshll.u32 %s13, 4
      %s111 = int_to_ptr.hbm [resolvable:$true] %s110
      %s112 = sshll.u32 [#allocation10], 4
      %s113 = int_to_ptr.vmem [resolvable:$true] %s112
      %115 = dma.hbm_to_vmem [thread:$0]  %s111, 16, %s113, [#allocation11]
    $region57: #{forward.9} parent=1 // pred_fallthru
      _
    // Predicated region
    $region58: #{forward.9} parent=1 // pred_check
      _
    $region59: #{forward.9} parent=1 // pred_check_branch
      %117 = sbr.rel (0) target = $region61
    $region60: #{forward.9} parent=1 // pred_region
      %119 = vsyncadd [#allocation11], 0
      %s121 = sshll.u32 %s14, 4
      %s122 = int_to_ptr.hbm [resolvable:$true] %s121
      %s123 = sshll.u32 [#allocation12], 4
      %s124 = int_to_ptr.vmem [resolvable:$true] %s123
      %126 = dma.hbm_to_vmem [thread:$0]  %s122, 16, %s124, [#allocation11]
    $region61: #{forward.9} parent=1 // pred_fallthru
      _
    // Predicated region
    $region62: #{forward.9} parent=1 // pred_check
      _
    $region63: #{forward.9} parent=1 // pred_check_branch
      %128 = sbr.rel (0) target = $region65
    $region64: #{forward.9} parent=1 // pred_region
      %130 = vsyncadd [#allocation14], 0
      %s132 = sshll.u32 %s15, 4
      %s133 = int_to_ptr.hbm [resolvable:$true] %s132
      %s134 = sshll.u32 [#allocation13], 4
      %s135 = int_to_ptr.vmem [resolvable:$true] %s134
      %137 = dma.hbm_to_vmem [thread:$0]  %s133, 16, %s135, [#allocation14]
    $region65: #{forward.9} parent=1 // pred_fallthru
      _
    // Predicated region
    $region66: #{forward.9} parent=1 // pred_check
      _
    $region67: #{forward.9} parent=1 // pred_check_branch
      %139 = sbr.rel (0) target = $region69
    $region68: #{forward.9} parent=1 // pred_region
      _
    $region69: #{forward.9} parent=1 // pred_fallthru
      _
    // Predicated region
    $region70: #{forward.9} parent=1 // pred_check
      _
    $region71: #{forward.9} parent=1 // pred_check_branch
      %141 = sbr.rel (0) target = $region73
    $region72: #{forward.9} parent=1 // pred_region
      %143 = vsyncadd [#allocation14], 0
      %s145 = sshll.u32 %s17, 4
      %s146 = int_to_ptr.hbm [resolvable:$true] %s145
      %s147 = sshll.u32 [#allocation15], 4
      %s148 = int_to_ptr.vmem [resolvable:$true] %s147
      %150 = dma.hbm_to_vmem [thread:$0]  %s146, 16, %s148, [#allocation14]
    $region73: #{forward.9} parent=1 // pred_fallthru
      _
    // Predicated region
    $region74: #{forward.9} parent=1 // pred_check
      _
    $region75: #{forward.9} parent=1 // pred_check_branch
      %152 = sbr.rel (0) target = $region77
    $region76: #{forward.9} parent=1 // pred_region
      _
    $region77: #{forward.9} parent=1 // pred_fallthru
      _
    // Predicated region
    $region78: #{forward.9} parent=1 // pred_check
      _
    $region79: #{forward.9} parent=1 // pred_check_branch
      %154 = sbr.rel (0) target = $region81
    $region80: #{forward.9} parent=1 // pred_region
      %156 = vsyncadd [#allocation17], 0
      %s158 = sshll.u32 %s19, 4
      %s159 = int_to_ptr.hbm [resolvable:$true] %s158
      %s160 = sshll.u32 [#allocation16], 4
      %s161 = int_to_ptr.vmem [resolvable:$true] %s160
      %163 = dma.hbm_to_vmem [thread:$0]  %s159, 16, %s161, [#allocation17]
    $region81: #{forward.9} parent=1 // pred_fallthru
      _
    // Predicated region
    $region82: #{forward.9} parent=1 // pred_check
      _
    $region83: #{forward.9} parent=1 // pred_check_branch
      %165 = sbr.rel (0) target = $region85
    $region84: #{forward.9} parent=1 // pred_region
      %167 = vsyncadd [#allocation17], 0
      %s169 = sshll.u32 %s20, 4
      %s170 = int_to_ptr.hbm [resolvable:$true] %s169
      %s171 = sshll.u32 [#allocation18], 4
      %s172 = int_to_ptr.vmem [resolvable:$true] %s171
      %174 = dma.hbm_to_vmem [thread:$0]  %s170, 16, %s172, [#allocation17]
    $region85: #{forward.9} parent=1 // pred_fallthru
      _
    // Predicated region
    $region86: #{forward.9} parent=1 // pred_check
      _
    $region87: #{forward.9} parent=1 // pred_check_branch
      %176 = sbr.rel (0) target = $region89
    $region88: #{forward.9} parent=1 // pred_region
      %178 = vsyncadd [#allocation20], 0
      %s180 = sshll.u32 %s21, 4
      %s181 = int_to_ptr.hbm [resolvable:$true] %s180
      %s182 = sshll.u32 [#allocation19], 4
      %s183 = int_to_ptr.vmem [resolvable:$true] %s182
      %185 = dma.hbm_to_vmem [thread:$0]  %s181, 16, %s183, [#allocation20]
    $region89: #{forward.9} parent=1 // pred_fallthru
      _
    // Predicated region
    $region90: #{forward.9} parent=1 // pred_check
      _
    $region91: #{forward.9} parent=1 // pred_check_branch
      %187 = sbr.rel (0) target = $region93
    $region92: #{forward.9} parent=1 // pred_region
      %189 = dma.done [#allocation3], 16
    $region93: #{forward.9} parent=1 // pred_fallthru
      _
    // Predicated region
    $region94: #{forward.9} parent=1 // pred_check
      _
    $region95: #{forward.9} parent=1 // pred_check_branch
      %191 = sbr.rel (0) target = $region97
    $region96: #{forward.9} parent=1 // pred_region
      %193 = dma.done [#allocation5], 16
    $region97: #{forward.9} parent=1 // pred_fallthru
      _
    // Predicated region
    $region98: #{forward.9} parent=1 // pred_check
      _
    $region99: #{forward.9} parent=1 // pred_check_branch
      %195 = sbr.rel (0) target = $region101
    $region100: #{forward.9} parent=1 // pred_region
      %197 = dma.done [#allocation5], 16
    $region101: #{forward.9} parent=1 // pred_fallthru
      _
    // Predicated region
    $region102: #{forward.9} parent=1 // pred_check
      _
    $region103: #{forward.9} parent=1 // pred_check_branch
      %199 = sbr.rel (0) target = $region105
    $region104: #{forward.9} parent=1 // pred_region
      %201 = dma.done [#allocation8], 16
    $region105: #{forward.9} parent=1 // pred_fallthru
      _
    // Predicated region
    $region106: #{forward.9} parent=1 // pred_check
      _
    $region107: #{forward.9} parent=1 // pred_check_branch
      %203 = sbr.rel (0) target = $region109
    $region108: #{forward.9} parent=1 // pred_region
      %205 = dma.done [#allocation8], 16
    $region109: #{forward.9} parent=1 // pred_fallthru
      _
    // Predicated region
    $region110: #{forward.9} parent=1 // pred_check
      _
    $region111: #{forward.9} parent=1 // pred_check_branch
      %207 = sbr.rel (0) target = $region113
    $region112: #{forward.9} parent=1 // pred_region
      %209 = dma.done [#allocation11], 16
    $region113: #{forward.9} parent=1 // pred_fallthru
      _
    // Predicated region
    $region114: #{forward.9} parent=1 // pred_check
      _
    $region115: #{forward.9} parent=1 // pred_check_branch
      %211 = sbr.rel (0) target = $region117
    $region116: #{forward.9} parent=1 // pred_region
      %213 = dma.done [#allocation11], 16
    $region117: #{forward.9} parent=1 // pred_fallthru
      _
    // Predicated region
    $region118: #{forward.9} parent=1 // pred_check
      _
    $region119: #{forward.9} parent=1 // pred_check_branch
      %215 = sbr.rel (0) target = $region121
    $region120: #{forward.9} parent=1 // pred_region
      %217 = dma.done [#allocation14], 16
    $region121: #{forward.9} parent=1 // pred_fallthru
      _
    // Predicated region
    $region122: #{forward.9} parent=1 // pred_check
      _
    $region123: #{forward.9} parent=1 // pred_check_branch
      %219 = sbr.rel (0) target = $region125
    $region124: #{forward.9} parent=1 // pred_region
      %221 = dma.done [#allocation14], 16
    $region125: #{forward.9} parent=1 // pred_fallthru
      _
    // Predicated region
    $region126: #{forward.9} parent=1 // pred_check
      _
    $region127: #{forward.9} parent=1 // pred_check_branch
      %223 = sbr.rel (0) target = $region129
    $region128: #{forward.9} parent=1 // pred_region
      %225 = dma.done [#allocation17], 16
    $region129: #{forward.9} parent=1 // pred_fallthru
      _
    // Predicated region
    $region130: #{forward.9} parent=1 // pred_check
      _
    $region131: #{forward.9} parent=1 // pred_check_branch
      %227 = sbr.rel (0) target = $region133
    $region132: #{forward.9} parent=1 // pred_region
      %229 = dma.done [#allocation17], 16
    $region133: #{forward.9} parent=1 // pred_fallthru
      _
    // Predicated region
    $region134: #{forward.9} parent=1 // pred_check
      _
    $region135: #{forward.9} parent=1 // pred_check_branch
      %231 = sbr.rel (0) target = $region137
    $region136: #{forward.9} parent=1 // pred_region
      %233 = dma.done [#allocation20], 16
    $region137: #{forward.9} parent=1 // pred_fallthru
      _
    %v235 = vld [vmem:[%s0] sm:$0xff]
    %v236 = vld [vmem:[%s0 + $0x8] sm:$0xff]
    %v237 = vld [vmem:[%s1] sm:$0xff]
    %v238 = vld [vmem:[%s1 + $0x8] sm:$0xff]
    %v239 = vpack.c.bf16 %v236, %v235
    %v240 = vld [vmem:[%s2] sm:$0xf]
    %v241 = vld [vmem:[%s2 + $0x4] sm:$0xf]
    %v242 = vld [vmem:[%s2 + $0x8] sm:$0xf]
    %v243 = vld [vmem:[%s2 + $0xc] sm:$0xf]
    %v244 = vld [vmem:[%s3] sm:$0x1]
    %v246 = vperm.slane %v244, 0
    %v252 = vunpack.c.l.b16 %v240
    %v253 = vunpack.c.l.b16 %v241
    %v254 = vunpack.c.l.b16 %v242
    %v255 = vunpack.c.l.b16 %v243
    %v256 = vpack.c.b16 %v253, %v252
    %v257 = vpack.c.b16 %v255, %v254
    %vm260 = vcmask 261120
    %v262 = vsel %vm260, %v239, 0
    %264 = vmatpush.bf16.msra.mxu0 0
    %265 = vmatpush.bf16.msra.mxu0 0
    %266 = vmatpush.bf16.msra.mxu0 0
    %267 = vmatpush.bf16.msra.mxu0 0
    %268 = vmatpush.bf16.msra.mxu0 0
    %269 = vmatpush.bf16.msra.mxu0 0
    %270 = vmatpush.bf16.msra.mxu0 %v257
    %271 = vmatpush.bf16.msra.mxu0 %v256
    %272 = vmatmul.bf16.gmra.mxu0 %v262
    %v273 = vpop.f32.mrf.mxu0
    %v274 = vadd.f32 %v246, %v273
    %v275 = vpop.f32.mrf.mxu0
    %v276 = vadd.f32 %v246, %v275
    %277 = vdwg.mxu0
    %v278 = vld [vmem:[%s4] sm:$0xff]
    %v279 = vld [vmem:[%s4 + $0x8] sm:$0xff]
    %v280 = vld [vmem:[%s4 + $0x10] sm:$0xff]
    %v281 = vld [vmem:[%s4 + $0x18] sm:$0xff]
    %v282 = vld [vmem:[#allocation2] sm:$0x1]
    %v283 = vlaneseq
    %v284 = vshrl.u32 %v283, 7
    %v285 = vlaneseq
    %v286 = vand.u32 %v285, 127
    %vm287 = vcmp.gt.s32.totalorder %v286, %v284
    %v288 = vsel %vm287, -1e+30, 0.0
    %v289 = vpack.c.bf16 %v274, %v274
    %v290 = vpack.c.bf16 %v276, %v276
    %v292 = vunpack.c.l.b16 %v289
    %v293 = vpack.c.b16 %v292, %v292
    %294 = vrot.lane.b32.xlu0 %v293, 96
    %v295 = vpop.permute.xlu0 %294
    %vm296 = vcmask 64512
    %v298 = vsel %vm296, %v289, 0
    %v301 = vsel %vm296, %v295, 0
    %303 = vmatpush.bf16.xpose.msra.mxu0 0
    %304 = vmatpush.bf16.xpose.msra.mxu0 0
    %305 = vmatpush.bf16.xpose.msra.mxu0 0
    %306 = vmatpush.bf16.xpose.msra.mxu0 0
    %307 = vmatpush.bf16.xpose.msra.mxu0 0
    %308 = vmatpush.bf16.xpose.msra.mxu0 0
    %309 = vmatpush.bf16.xpose.msra.mxu0 0
    %310 = vmatpush.bf16.xpose.msra.mxu0 %v301
    %311 = vmatmul.bf16.gmra.mxu0 %v298
    %v312 = vpop.f32.mrf.mxu0
    %v313 = vadd.f32 0.0, %v312
    %v314 = vpop.f32.mrf.mxu0
    %315 = vdwg.mxu0
    %v317 = vunpack.c.l.b16 %v290
    %v318 = vpack.c.b16 %v317, %v317
    %319 = vrot.lane.b32.xlu0 %v318, 96
    %v320 = vpop.permute.xlu0 %319
    %v322 = vsel %vm296, %v290, 0
    %v325 = vsel %vm296, %v320, 0
    %327 = vmatpush.bf16.xpose.msra.mxu0 0
    %328 = vmatpush.bf16.xpose.msra.mxu0 0
    %329 = vmatpush.bf16.xpose.msra.mxu0 0
    %330 = vmatpush.bf16.xpose.msra.mxu0 0
    %331 = vmatpush.bf16.xpose.msra.mxu0 0
    %332 = vmatpush.bf16.xpose.msra.mxu0 0
    %333 = vmatpush.bf16.xpose.msra.mxu0 0
    %334 = vmatpush.bf16.xpose.msra.mxu0 %v325
    %335 = vmatmul.bf16.gmra.mxu0 %v322
    %v336 = vpop.f32.mrf.mxu0
    %v337 = vadd.f32 0.0, %v336
    %v338 = vpop.f32.mrf.mxu0
    %339 = vdwg.mxu0
    %v340 = vmul.f32 %v313, 0.35355338
    %v341 = vmul.f32 %v337, 0.35355338
    %v342 = vadd.f32 %v340, %v288
    %v343 = vadd.f32 %v341, %v288
    %v344 = vsel %vm296, %v342, -inf
    %345 = vmax.xlane.f32.xlu0 %v344
    %v346 = vpop.xlane.xlu0 %345
    %v347 = vsel %vm296, %v343, -inf
    %348 = vmax.xlane.f32.xlu0 %v347
    %v349 = vpop.xlane.xlu0 %348
    %v350 = vsub.f32 %v342, %v346
    %v351 = vsub.f32 %v343, %v349
    %v352 = vmul.f32 %v350, 1.442695
    %v353 = vpow.pop %v352
    %v354 = vmul.f32 %v351, 1.442695
    %v355 = vpow.pop %v354
    %v356 = vsel %vm296, %v353, 0.0
    %357 = vadd.xlane.f32.xlu0 %v356
    %v358 = vpop.xlane.xlu0 %357
    %v359 = vsel %vm296, %v355, 0.0
    %360 = vadd.xlane.f32.xlu0 %v359
    %v361 = vpop.xlane.xlu0 %360
    %v362 = vrcp.pop %v358
    %v363 = vmul.f32 %v358, %v362
    %v364 = vsub.f32 1.0, %v363
    %v365 = vmul.f32 %v362, %v364
    %v366 = vadd.f32 %v362, %v365
    %vm367 = vweird.f32 %v358
    %vm368 = vweird.f32 %v362
    %vm369 = vmor %vm367, %vm368
    %v370 = vsel %vm369, %v362, %v366
    %v371 = vand.u32 2147483647, %v358
    %vm372 = vcmp.eq.f32.partialorder %v371, 8.507059e+37
    %v373 = vand.u32 %v358, 2147483648
    %v374 = vor.u32 1.1754944e-38, %v373
    %v375 = vsel %vm372, %v374, %v370
    %v376 = vmul.f32 %v353, %v375
    %v377 = vrcp.pop %v361
    %v378 = vmul.f32 %v361, %v377
    %v379 = vsub.f32 1.0, %v378
    %v380 = vmul.f32 %v377, %v379
    %v381 = vadd.f32 %v377, %v380
    %vm382 = vweird.f32 %v361
    %vm383 = vweird.f32 %v377
    %vm384 = vmor %vm382, %vm383
    %v385 = vsel %vm384, %v377, %v381
    %v386 = vand.u32 2147483647, %v361
    %vm387 = vcmp.eq.f32.partialorder %v386, 8.507059e+37
    %v388 = vand.u32 %v361, 2147483648
    %v389 = vor.u32 1.1754944e-38, %v388
    %v390 = vsel %vm387, %v389, %v385
    %v391 = vmul.f32 %v355, %v390
    %v392 = vpack.c.bf16 %v376, %v376
    %v393 = vpack.c.bf16 %v391, %v391
    %394 = vrot.lane.b32.xlu0 %v293, 64
    %v395 = vpop.permute.xlu0 %394
    %v397 = vsel %vm296, %v392, 0
    %vm399 = vcmask 1043456
    %v401 = vsel %vm399, %v395, 0
    %403 = vmatpush.bf16.msra.mxu0 0
    %404 = vmatpush.bf16.msra.mxu0 0
    %405 = vmatpush.bf16.msra.mxu0 0
    %406 = vmatpush.bf16.msra.mxu0 0
    %407 = vmatpush.bf16.msra.mxu0 0
    %408 = vmatpush.bf16.msra.mxu0 0
    %409 = vmatpush.bf16.msra.mxu0 0
    %410 = vmatpush.bf16.msra.mxu0 %v401
    %411 = vmatmul.bf16.gmra.mxu0 %v397
    %v412 = vpop.f32.mrf.mxu0
    %v413 = vadd.f32 0.0, %v412
    %v414 = vpop.f32.mrf.mxu0
    %415 = vdwg.mxu0
    %416 = vrot.lane.b32.xlu0 %v318, 64
    %v417 = vpop.permute.xlu0 %416
    %v419 = vsel %vm296, %v393, 0
    %v422 = vsel %vm399, %v417, 0
    %424 = vmatpush.bf16.msra.mxu0 0
    %425 = vmatpush.bf16.msra.mxu0 0
    %426 = vmatpush.bf16.msra.mxu0 0
    %427 = vmatpush.bf16.msra.mxu0 0
    %428 = vmatpush.bf16.msra.mxu0 0
    %429 = vmatpush.bf16.msra.mxu0 0
    %430 = vmatpush.bf16.msra.mxu0 0
    %431 = vmatpush.bf16.msra.mxu0 %v422
    %432 = vmatmul.bf16.gmra.mxu0 %v419
    %v433 = vpop.f32.mrf.mxu0
    %v434 = vadd.f32 0.0, %v433
    %v435 = vpop.f32.mrf.mxu0
    %436 = vdwg.mxu0
    %v437 = vpack.c.bf16 %v278, %v278
    %v438 = vpack.c.bf16 %v434, %v413
    %439 = vrot.lane.b32.xlu0 %v293, 120
    %v440 = vpop.permute.xlu0 %439
    %441 = vrot.lane.b32.xlu0 %v293, 88
    %v442 = vpop.permute.xlu0 %441
    %v444 = vsel %vm296, %v440, 0
    %v447 = vsel %vm296, %v442, 0
    %449 = vmatpush.bf16.xpose.msra.mxu0 0
    %450 = vmatpush.bf16.xpose.msra.mxu0 0
    %451 = vmatpush.bf16.xpose.msra.mxu0 0
    %452 = vmatpush.bf16.xpose.msra.mxu0 0
    %453 = vmatpush.bf16.xpose.msra.mxu0 0
    %454 = vmatpush.bf16.xpose.msra.mxu0 0
    %455 = vmatpush.bf16.xpose.msra.mxu0 0
    %456 = vmatpush.bf16.xpose.msra.mxu0 %v447
    %457 = vmatmul.bf16.gmra.mxu0 %v444
    %v458 = vpop.f32.mrf.mxu0
    %v459 = vadd.f32 0.0, %v458
    %v460 = vpop.f32.mrf.mxu0
    %461 = vdwg.mxu0
    %462 = vrot.lane.b32.xlu0 %v318, 120
    %v463 = vpop.permute.xlu0 %462
    %464 = vrot.lane.b32.xlu0 %v318, 88
    %v465 = vpop.permute.xlu0 %464
    %v467 = vsel %vm296, %v463, 0
    %v470 = vsel %vm296, %v465, 0
    %472 = vmatpush.bf16.xpose.msra.mxu0 0
    %473 = vmatpush.bf16.xpose.msra.mxu0 0
    %474 = vmatpush.bf16.xpose.msra.mxu0 0
    %475 = vmatpush.bf16.xpose.msra.mxu0 0
    %476 = vmatpush.bf16.xpose.msra.mxu0 0
    %477 = vmatpush.bf16.xpose.msra.mxu0 0
    %478 = vmatpush.bf16.xpose.msra.mxu0 0
    %479 = vmatpush.bf16.xpose.msra.mxu0 %v470
    %480 = vmatmul.bf16.gmra.mxu0 %v467
    %v481 = vpop.f32.mrf.mxu0
    %v482 = vadd.f32 0.0, %v481
    %v483 = vpop.f32.mrf.mxu0
    %484 = vdwg.mxu0
    %v485 = vmul.f32 %v459, 0.35355338
    %v486 = vmul.f32 %v482, 0.35355338
    %v487 = vadd.f32 %v485, %v288
    %v488 = vadd.f32 %v486, %v288
    %v489 = vsel %vm296, %v487, -inf
    %490 = vmax.xlane.f32.xlu0 %v489
    %v491 = vpop.xlane.xlu0 %490
    %v492 = vsel %vm296, %v488, -inf
    %493 = vmax.xlane.f32.xlu0 %v492
    %v494 = vpop.xlane.xlu0 %493
    %v495 = vsub.f32 %v487, %v491
    %v496 = vsub.f32 %v488, %v494
    %v497 = vmul.f32 %v495, 1.442695
    %v498 = vpow.pop %v497
    %v499 = vmul.f32 %v496, 1.442695
    %v500 = vpow.pop %v499
    %v501 = vsel %vm296, %v498, 0.0
    %502 = vadd.xlane.f32.xlu0 %v501
    %v503 = vpop.xlane.xlu0 %502
    %v504 = vsel %vm296, %v500, 0.0
    %505 = vadd.xlane.f32.xlu0 %v504
    %v506 = vpop.xlane.xlu0 %505
    %v507 = vrcp.pop %v503
    %v508 = vmul.f32 %v503, %v507
    %v509 = vsub.f32 1.0, %v508
    %v510 = vmul.f32 %v507, %v509
    %v511 = vadd.f32 %v507, %v510
    %vm512 = vweird.f32 %v503
    %vm513 = vweird.f32 %v507
    %vm514 = vmor %vm512, %vm513
    %v515 = vsel %vm514, %v507, %v511
    %v516 = vand.u32 2147483647, %v503
    %vm517 = vcmp.eq.f32.partialorder %v516, 8.507059e+37
    %v518 = vand.u32 %v503, 2147483648
    %v519 = vor.u32 1.1754944e-38, %v518
    %v520 = vsel %vm517, %v519, %v515
    %v521 = vmul.f32 %v498, %v520
    %v522 = vrcp.pop %v506
    %v523 = vmul.f32 %v506, %v522
    %v524 = vsub.f32 1.0, %v523
    %v525 = vmul.f32 %v522, %v524
    %v526 = vadd.f32 %v522, %v525
    %vm527 = vweird.f32 %v506
    %vm528 = vweird.f32 %v522
    %vm529 = vmor %vm527, %vm528
    %v530 = vsel %vm529, %v522, %v526
    %v531 = vand.u32 2147483647, %v506
    %vm532 = vcmp.eq.f32.partialorder %v531, 8.507059e+37
    %v533 = vand.u32 %v506, 2147483648
    %v534 = vor.u32 1.1754944e-38, %v533
    %v535 = vsel %vm532, %v534, %v530
    %v536 = vmul.f32 %v500, %v535
    %v537 = vpack.c.bf16 %v521, %v521
    %v538 = vpack.c.bf16 %v536, %v536
    %539 = vrot.lane.b32.xlu0 %v293, 56
    %v540 = vpop.permute.xlu0 %539
    %v542 = vsel %vm296, %v537, 0
    %v545 = vsel %vm399, %v540, 0
    %547 = vmatpush.bf16.msra.mxu0 0
    %548 = vmatpush.bf16.msra.mxu0 0
    %549 = vmatpush.bf16.msra.mxu0 0
    %550 = vmatpush.bf16.msra.mxu0 0
    %551 = vmatpush.bf16.msra.mxu0 0
    %552 = vmatpush.bf16.msra.mxu0 0
    %553 = vmatpush.bf16.msra.mxu0 0
    %554 = vmatpush.bf16.msra.mxu0 %v545
    %555 = vmatmul.bf16.gmra.mxu0 %v542
    %v556 = vpop.f32.mrf.mxu0
    %v557 = vadd.f32 0.0, %v556
    %v558 = vpop.f32.mrf.mxu0
    %559 = vdwg.mxu0
    %560 = vrot.lane.b32.xlu0 %v318, 56
    %v561 = vpop.permute.xlu0 %560
    %v563 = vsel %vm296, %v538, 0
    %v566 = vsel %vm399, %v561, 0
    %568 = vmatpush.bf16.msra.mxu0 0
    %569 = vmatpush.bf16.msra.mxu0 0
    %570 = vmatpush.bf16.msra.mxu0 0
    %571 = vmatpush.bf16.msra.mxu0 0
    %572 = vmatpush.bf16.msra.mxu0 0
    %573 = vmatpush.bf16.msra.mxu0 0
    %574 = vmatpush.bf16.msra.mxu0 0
    %575 = vmatpush.bf16.msra.mxu0 %v566
    %576 = vmatmul.bf16.gmra.mxu0 %v563
    %v577 = vpop.f32.mrf.mxu0
    %v578 = vadd.f32 0.0, %v577
    %v579 = vpop.f32.mrf.mxu0
    %580 = vdwg.mxu0
    %v581 = vpack.c.bf16 %v279, %v279
    %v582 = vpack.c.bf16 %v578, %v557
    %v584 = vsel %vm296, %v582, 0
    %v587 = vsel %vm399, %v581, 0
    %589 = vmatpush.bf16.msra.mxu0 0
    %590 = vmatpush.bf16.msra.mxu0 0
    %591 = vmatpush.bf16.msra.mxu0 0
    %592 = vmatpush.bf16.msra.mxu0 0
    %593 = vmatpush.bf16.msra.mxu0 0
    %594 = vmatpush.bf16.msra.mxu0 0
    %595 = vmatpush.bf16.msra.mxu0 0
    %596 = vmatpush.bf16.msra.mxu0 %v587
    %597 = vmatmul.bf16.gmra.mxu0 %v584
    %v598 = vpop.f32.mrf.mxu0
    %v599 = vadd.f32 0.0, %v598
    %v600 = vpop.f32.mrf.mxu0
    %v601 = vadd.f32 0.0, %v600
    %602 = vdwg.mxu0
    %v604 = vsel %vm296, %v438, 0
    %v607 = vsel %vm399, %v437, 0
    %609 = vmatpush.bf16.msra.mxu0 0
    %610 = vmatpush.bf16.msra.mxu0 0
    %611 = vmatpush.bf16.msra.mxu0 0
    %612 = vmatpush.bf16.msra.mxu0 0
    %613 = vmatpush.bf16.msra.mxu0 0
    %614 = vmatpush.bf16.msra.mxu0 0
    %615 = vmatpush.bf16.msra.mxu0 0
    %616 = vmatpush.bf16.msra.mxu0 %v607
    %617 = vmatmul.bf16.gmra.mxu0 %v604
    %v618 = vpop.f32.mrf.mxu0
    %v619 = vadd.f32 %v599, %v618
    %v620 = vpop.f32.mrf.mxu0
    %v621 = vadd.f32 %v601, %v620
    %622 = vdwg.mxu0
    %623 = vrot.lane.b32.xlu0 %v293, 112
    %v624 = vpop.permute.xlu0 %623
    %625 = vrot.lane.b32.xlu0 %v293, 80
    %v626 = vpop.permute.xlu0 %625
    %v628 = vsel %vm296, %v624, 0
    %v631 = vsel %vm296, %v626, 0
    %633 = vmatpush.bf16.xpose.msra.mxu0 0
    %634 = vmatpush.bf16.xpose.msra.mxu0 0
    %635 = vmatpush.bf16.xpose.msra.mxu0 0
    %636 = vmatpush.bf16.xpose.msra.mxu0 0
    %637 = vmatpush.bf16.xpose.msra.mxu0 0
    %638 = vmatpush.bf16.xpose.msra.mxu0 0
    %639 = vmatpush.bf16.xpose.msra.mxu0 0
    %640 = vmatpush.bf16.xpose.msra.mxu0 %v631
    %641 = vmatmul.bf16.gmra.mxu0 %v628
    %v642 = vpop.f32.mrf.mxu0
    %v643 = vadd.f32 0.0, %v642
    %v644 = vpop.f32.mrf.mxu0
    %645 = vdwg.mxu0
    %646 = vrot.lane.b32.xlu0 %v318, 112
    %v647 = vpop.permute.xlu0 %646
    %648 = vrot.lane.b32.xlu0 %v318, 80
    %v649 = vpop.permute.xlu0 %648
    %v651 = vsel %vm296, %v647, 0
    %v654 = vsel %vm296, %v649, 0
    %656 = vmatpush.bf16.xpose.msra.mxu0 0
    %657 = vmatpush.bf16.xpose.msra.mxu0 0
    %658 = vmatpush.bf16.xpose.msra.mxu0 0
    %659 = vmatpush.bf16.xpose.msra.mxu0 0
    %660 = vmatpush.bf16.xpose.msra.mxu0 0
    %661 = vmatpush.bf16.xpose.msra.mxu0 0
    %662 = vmatpush.bf16.xpose.msra.mxu0 0
    %663 = vmatpush.bf16.xpose.msra.mxu0 %v654
    %664 = vmatmul.bf16.gmra.mxu0 %v651
    %v665 = vpop.f32.mrf.mxu0
    %v666 = vadd.f32 0.0, %v665
    %v667 = vpop.f32.mrf.mxu0
    %668 = vdwg.mxu0
    %v669 = vmul.f32 %v643, 0.35355338
    %v670 = vmul.f32 %v666, 0.35355338
    %v671 = vadd.f32 %v669, %v288
    %v672 = vadd.f32 %v670, %v288
    %v673 = vsel %vm296, %v671, -inf
    %674 = vmax.xlane.f32.xlu0 %v673
    %v675 = vpop.xlane.xlu0 %674
    %v676 = vsel %vm296, %v672, -inf
    %677 = vmax.xlane.f32.xlu0 %v676
    %v678 = vpop.xlane.xlu0 %677
    %v679 = vsub.f32 %v671, %v675
    %v680 = vsub.f32 %v672, %v678
    %v681 = vmul.f32 %v679, 1.442695
    %v682 = vpow.pop %v681
    %v683 = vmul.f32 %v680, 1.442695
    %v684 = vpow.pop %v683
    %v685 = vsel %vm296, %v682, 0.0
    %686 = vadd.xlane.f32.xlu0 %v685
    %v687 = vpop.xlane.xlu0 %686
    %v688 = vsel %vm296, %v684, 0.0
    %689 = vadd.xlane.f32.xlu0 %v688
    %v690 = vpop.xlane.xlu0 %689
    %v691 = vrcp.pop %v687
    %v692 = vmul.f32 %v687, %v691
    %v693 = vsub.f32 1.0, %v692
    %v694 = vmul.f32 %v691, %v693
    %v695 = vadd.f32 %v691, %v694
    %vm696 = vweird.f32 %v687
    %vm697 = vweird.f32 %v691
    %vm698 = vmor %vm696, %vm697
    %v699 = vsel %vm698, %v691, %v695
    %v700 = vand.u32 2147483647, %v687
    %vm701 = vcmp.eq.f32.partialorder %v700, 8.507059e+37
    %v702 = vand.u32 %v687, 2147483648
    %v703 = vor.u32 1.1754944e-38, %v702
    %v704 = vsel %vm701, %v703, %v699
    %v705 = vmul.f32 %v682, %v704
    %v706 = vrcp.pop %v690
    %v707 = vmul.f32 %v690, %v706
    %v708 = vsub.f32 1.0, %v707
    %v709 = vmul.f32 %v706, %v708
    %v710 = vadd.f32 %v706, %v709
    %vm711 = vweird.f32 %v690
    %vm712 = vweird.f32 %v706
    %vm713 = vmor %vm711, %vm712
    %v714 = vsel %vm713, %v706, %v710
    %v715 = vand.u32 2147483647, %v690
    %vm716 = vcmp.eq.f32.partialorder %v715, 8.507059e+37
    %v717 = vand.u32 %v690, 2147483648
    %v718 = vor.u32 1.1754944e-38, %v717
    %v719 = vsel %vm716, %v718, %v714
    %v720 = vmul.f32 %v684, %v719
    %v721 = vpack.c.bf16 %v705, %v705
    %v722 = vpack.c.bf16 %v720, %v720
    %723 = vrot.lane.b32.xlu0 %v293, 48
    %v724 = vpop.permute.xlu0 %723
    %v726 = vsel %vm296, %v721, 0
    %v729 = vsel %vm399, %v724, 0
    %731 = vmatpush.bf16.msra.mxu0 0
    %732 = vmatpush.bf16.msra.mxu0 0
    %733 = vmatpush.bf16.msra.mxu0 0
    %734 = vmatpush.bf16.msra.mxu0 0
    %735 = vmatpush.bf16.msra.mxu0 0
    %736 = vmatpush.bf16.msra.mxu0 0
    %737 = vmatpush.bf16.msra.mxu0 0
    %738 = vmatpush.bf16.msra.mxu0 %v729
    %739 = vmatmul.bf16.gmra.mxu0 %v726
    %v740 = vpop.f32.mrf.mxu0
    %v741 = vadd.f32 0.0, %v740
    %v742 = vpop.f32.mrf.mxu0
    %743 = vdwg.mxu0
    %744 = vrot.lane.b32.xlu0 %v318, 48
    %v745 = vpop.permute.xlu0 %744
    %v747 = vsel %vm296, %v722, 0
    %v750 = vsel %vm399, %v745, 0
    %752 = vmatpush.bf16.msra.mxu0 0
    %753 = vmatpush.bf16.msra.mxu0 0
    %754 = vmatpush.bf16.msra.mxu0 0
    %755 = vmatpush.bf16.msra.mxu0 0
    %756 = vmatpush.bf16.msra.mxu0 0
    %757 = vmatpush.bf16.msra.mxu0 0
    %758 = vmatpush.bf16.msra.mxu0 0
    %759 = vmatpush.bf16.msra.mxu0 %v750
    %760 = vmatmul.bf16.gmra.mxu0 %v747
    %v761 = vpop.f32.mrf.mxu0
    %v762 = vadd.f32 0.0, %v761
    %v763 = vpop.f32.mrf.mxu0
    %764 = vdwg.mxu0
    %v765 = vpack.c.bf16 %v280, %v280
    %v766 = vpack.c.bf16 %v762, %v741
    %v768 = vsel %vm296, %v766, 0
    %v771 = vsel %vm399, %v765, 0
    %773 = vmatpush.bf16.msra.mxu0 0
    %774 = vmatpush.bf16.msra.mxu0 0
    %775 = vmatpush.bf16.msra.mxu0 0
    %776 = vmatpush.bf16.msra.mxu0 0
    %777 = vmatpush.bf16.msra.mxu0 0
    %778 = vmatpush.bf16.msra.mxu0 0
    %779 = vmatpush.bf16.msra.mxu0 0
    %780 = vmatpush.bf16.msra.mxu0 %v771
    %781 = vmatmul.bf16.gmra.mxu0 %v768
    %v782 = vpop.f32.mrf.mxu0
    %v783 = vadd.f32 0.0, %v782
    %v784 = vpop.f32.mrf.mxu0
    %v785 = vadd.f32 0.0, %v784
    %786 = vdwg.mxu0
    %v787 = vadd.f32 %v619, %v783
    %v788 = vadd.f32 %v621, %v785
    %789 = vrot.lane.b32.xlu0 %v293, 104
    %v790 = vpop.permute.xlu0 %789
    %791 = vrot.lane.b32.xlu0 %v293, 72
    %v792 = vpop.permute.xlu0 %791
    %v794 = vsel %vm296, %v790, 0
    %v797 = vsel %vm296, %v792, 0
    %799 = vmatpush.bf16.xpose.msra.mxu0 0
    %800 = vmatpush.bf16.xpose.msra.mxu0 0
    %801 = vmatpush.bf16.xpose.msra.mxu0 0
    %802 = vmatpush.bf16.xpose.msra.mxu0 0
    %803 = vmatpush.bf16.xpose.msra.mxu0 0
    %804 = vmatpush.bf16.xpose.msra.mxu0 0
    %805 = vmatpush.bf16.xpose.msra.mxu0 0
    %806 = vmatpush.bf16.xpose.msra.mxu0 %v797
    %807 = vmatmul.bf16.gmra.mxu0 %v794
    %v808 = vpop.f32.mrf.mxu0
    %v809 = vadd.f32 0.0, %v808
    %v810 = vpop.f32.mrf.mxu0
    %811 = vdwg.mxu0
    %812 = vrot.lane.b32.xlu0 %v318, 104
    %v813 = vpop.permute.xlu0 %812
    %814 = vrot.lane.b32.xlu0 %v318, 72
    %v815 = vpop.permute.xlu0 %814
    %v817 = vsel %vm296, %v813, 0
    %v820 = vsel %vm296, %v815, 0
    %822 = vmatpush.bf16.xpose.msra.mxu0 0
    %823 = vmatpush.bf16.xpose.msra.mxu0 0
    %824 = vmatpush.bf16.xpose.msra.mxu0 0
    %825 = vmatpush.bf16.xpose.msra.mxu0 0
    %826 = vmatpush.bf16.xpose.msra.mxu0 0
    %827 = vmatpush.bf16.xpose.msra.mxu0 0
    %828 = vmatpush.bf16.xpose.msra.mxu0 0
    %829 = vmatpush.bf16.xpose.msra.mxu0 %v820
    %830 = vmatmul.bf16.gmra.mxu0 %v817
    %v831 = vpop.f32.mrf.mxu0
    %v832 = vadd.f32 0.0, %v831
    %v833 = vpop.f32.mrf.mxu0
    %834 = vdwg.mxu0
    %v835 = vmul.f32 %v809, 0.35355338
    %v836 = vmul.f32 %v832, 0.35355338
    %v837 = vadd.f32 %v835, %v288
    %v838 = vadd.f32 %v836, %v288
    %v839 = vsel %vm296, %v837, -inf
    %840 = vmax.xlane.f32.xlu0 %v839
    %v841 = vpop.xlane.xlu0 %840
    %v842 = vsel %vm296, %v838, -inf
    %843 = vmax.xlane.f32.xlu0 %v842
    %v844 = vpop.xlane.xlu0 %843
    %v845 = vsub.f32 %v837, %v841
    %v846 = vsub.f32 %v838, %v844
    %v847 = vmul.f32 %v845, 1.442695
    %v848 = vpow.pop %v847
    %v849 = vmul.f32 %v846, 1.442695
    %v850 = vpow.pop %v849
    %v851 = vsel %vm296, %v848, 0.0
    %852 = vadd.xlane.f32.xlu0 %v851
    %v853 = vpop.xlane.xlu0 %852
    %v854 = vsel %vm296, %v850, 0.0
    %855 = vadd.xlane.f32.xlu0 %v854
    %v856 = vpop.xlane.xlu0 %855
    %v857 = vrcp.pop %v853
    %v858 = vmul.f32 %v853, %v857
    %v859 = vsub.f32 1.0, %v858
    %v860 = vmul.f32 %v857, %v859
    %v861 = vadd.f32 %v857, %v860
    %vm862 = vweird.f32 %v853
    %vm863 = vweird.f32 %v857
    %vm864 = vmor %vm862, %vm863
    %v865 = vsel %vm864, %v857, %v861
    %v866 = vand.u32 2147483647, %v853
    %vm867 = vcmp.eq.f32.partialorder %v866, 8.507059e+37
    %v868 = vand.u32 %v853, 2147483648
    %v869 = vor.u32 1.1754944e-38, %v868
    %v870 = vsel %vm867, %v869, %v865
    %v871 = vmul.f32 %v848, %v870
    %v872 = vrcp.pop %v856
    %v873 = vmul.f32 %v856, %v872
    %v874 = vsub.f32 1.0, %v873
    %v875 = vmul.f32 %v872, %v874
    %v876 = vadd.f32 %v872, %v875
    %vm877 = vweird.f32 %v856
    %vm878 = vweird.f32 %v872
    %vm879 = vmor %vm877, %vm878
    %v880 = vsel %vm879, %v872, %v876
    %v881 = vand.u32 2147483647, %v856
    %vm882 = vcmp.eq.f32.partialorder %v881, 8.507059e+37
    %v883 = vand.u32 %v856, 2147483648
    %v884 = vor.u32 1.1754944e-38, %v883
    %v885 = vsel %vm882, %v884, %v880
    %v886 = vmul.f32 %v850, %v885
    %v887 = vpack.c.bf16 %v871, %v871
    %v888 = vpack.c.bf16 %v886, %v886
    %889 = vrot.lane.b32.xlu0 %v293, 40
    %v890 = vpop.permute.xlu0 %889
    %v892 = vsel %vm296, %v887, 0
    %v895 = vsel %vm399, %v890, 0
    %897 = vmatpush.bf16.msra.mxu0 0
    %898 = vmatpush.bf16.msra.mxu0 0
    %899 = vmatpush.bf16.msra.mxu0 0
    %900 = vmatpush.bf16.msra.mxu0 0
    %901 = vmatpush.bf16.msra.mxu0 0
    %902 = vmatpush.bf16.msra.mxu0 0
    %903 = vmatpush.bf16.msra.mxu0 0
    %904 = vmatpush.bf16.msra.mxu0 %v895
    %905 = vmatmul.bf16.gmra.mxu0 %v892
    %v906 = vpop.f32.mrf.mxu0
    %v907 = vadd.f32 0.0, %v906
    %v908 = vpop.f32.mrf.mxu0
    %909 = vdwg.mxu0
    %910 = vrot.lane.b32.xlu0 %v318, 40
    %v911 = vpop.permute.xlu0 %910
    %v913 = vsel %vm296, %v888, 0
    %v916 = vsel %vm399, %v911, 0
    %918 = vmatpush.bf16.msra.mxu0 0
    %919 = vmatpush.bf16.msra.mxu0 0
    %920 = vmatpush.bf16.msra.mxu0 0
    %921 = vmatpush.bf16.msra.mxu0 0
    %922 = vmatpush.bf16.msra.mxu0 0
    %923 = vmatpush.bf16.msra.mxu0 0
    %924 = vmatpush.bf16.msra.mxu0 0
    %925 = vmatpush.bf16.msra.mxu0 %v916
    %926 = vmatmul.bf16.gmra.mxu0 %v913
    %v927 = vpop.f32.mrf.mxu0
    %v928 = vadd.f32 0.0, %v927
    %v929 = vpop.f32.mrf.mxu0
    %930 = vdwg.mxu0
    %v931 = vpack.c.bf16 %v281, %v281
    %v932 = vpack.c.bf16 %v928, %v907
    %v934 = vsel %vm296, %v932, 0
    %v937 = vsel %vm399, %v931, 0
    %939 = vmatpush.bf16.msra.mxu0 0
    %940 = vmatpush.bf16.msra.mxu0 0
    %941 = vmatpush.bf16.msra.mxu0 0
    %942 = vmatpush.bf16.msra.mxu0 0
    %943 = vmatpush.bf16.msra.mxu0 0
    %944 = vmatpush.bf16.msra.mxu0 0
    %945 = vmatpush.bf16.msra.mxu0 0
    %946 = vmatpush.bf16.msra.mxu0 %v937
    %947 = vmatmul.bf16.gmra.mxu0 %v934
    %v948 = vpop.f32.mrf.mxu0
    %v949 = vadd.f32 0.0, %v948
    %v950 = vpop.f32.mrf.mxu0
    %v951 = vadd.f32 0.0, %v950
    %952 = vdwg.mxu0
    %v953 = vadd.f32 %v787, %v949
    %v954 = vadd.f32 %v788, %v951
    %v956 = vperm.slane %v282, 0
    %v958 = vadd.f32 %v953, %v956
    %v959 = vadd.f32 %v954, %v956
    %v960 = vadd.f32 %v235, %v958
    %v961 = vadd.f32 %v236, %v959
    %v962 = vld [vmem:[#allocation4] sm:$0x1]
    %v963 = vld [vmem:[#allocation6] sm:$0x1]
    %v964 = vsel %vm260, %v960, 0.0
    %965 = vadd.xlane.f32.xlu0 %v964
    %v966 = vpop.xlane.xlu0 %965
    %v967 = vsel %vm260, %v961, 0.0
    %968 = vadd.xlane.f32.xlu0 %v967
    %v969 = vpop.xlane.xlu0 %968
    %v970 = vrcp.pop 32.0
    %v971 = vmul.f32 32.0, %v970
    %v972 = vsub.f32 1.0, %v971
    %v973 = vmul.f32 %v970, %v972
    %v974 = vadd.f32 %v970, %v973
    %vm975 = vweird.f32 %v970
    %v976 = vsel %vm975, %v970, %v974
    %v977 = vmul.f32 %v966, %v976
    %v978 = vmul.f32 %v969, %v976
    %v979 = vsub.f32 %v960, %v977
    %v980 = vsub.f32 %v961, %v978
    %v981 = vmul.f32 %v979, %v979
    %v982 = vmul.f32 %v980, %v980
    %v983 = vsel %vm260, %v981, 0.0
    %984 = vadd.xlane.f32.xlu0 %v983
    %v985 = vpop.xlane.xlu0 %984
    %v986 = vsel %vm260, %v982, 0.0
    %987 = vadd.xlane.f32.xlu0 %v986
    %v988 = vpop.xlane.xlu0 %987
    %v989 = vmul.f32 %v985, %v976
    %v990 = vmul.f32 %v988, %v976
    %v991 = vadd.f32 %v989, 1e-05
    %v992 = vadd.f32 %v990, 1e-05
    %v993 = vrsqrt.pop %v991
    %v994 = vmul.f32 %v993, %v991
    %v995 = vmul.f32 %v994, %v993
    %v996 = vmul.f32 0.5, %v995
    %v997 = vsub.f32 1.5, %v996
    %v998 = vmul.f32 %v993, %v997
    %vm999 = vweird.f32 %v991
    %vm1000 = vweird.f32 %v993
    %vm1001 = vmor %vm999, %vm1000
    %v1002 = vsel %vm1001, %v993, %v998
    %v1003 = vrsqrt.pop %v992
    %v1004 = vmul.f32 %v1003, %v992
    %v1005 = vmul.f32 %v1004, %v1003
    %v1006 = vmul.f32 0.5, %v1005
    %v1007 = vsub.f32 1.5, %v1006
    %v1008 = vmul.f32 %v1003, %v1007
    %vm1009 = vweird.f32 %v992
    %vm1010 = vweird.f32 %v1003
    %vm1011 = vmor %vm1009, %vm1010
    %v1012 = vsel %vm1011, %v1003, %v1008
    %v1013 = vmul.f32 %v979, %v1002
    %v1014 = vmul.f32 %v980, %v1012
    %v1016 = vperm.slane %v962, 0
    %v1018 = vmul.f32 %v1013, %v1016
    %v1019 = vmul.f32 %v1014, %v1016
    %v1021 = vperm.slane %v963, 0
    %v1023 = vadd.f32 %v1018, %v1021
    %v1024 = vadd.f32 %v1019, %v1021
    %v1025 = vpack.c.bf16 %v1024, %v1023
    %v1026 = vld [vmem:[%s8] sm:$0xf]
    %v1027 = vld [vmem:[%s8 + $0x4] sm:$0xf]
    %v1028 = vld [vmem:[%s8 + $0x8] sm:$0xf]
    %v1029 = vld [vmem:[%s8 + $0xc] sm:$0xf]
    %v1030 = vld [vmem:[#allocation7] sm:$0x1]
    %v1032 = vperm.slane %v1030, 0
    %v1038 = vunpack.c.l.b16 %v1026
    %v1039 = vunpack.c.l.b16 %v1027
    %v1040 = vunpack.c.l.b16 %v1028
    %v1041 = vunpack.c.l.b16 %v1029
    %v1042 = vpack.c.b16 %v1039, %v1038
    %v1043 = vpack.c.b16 %v1041, %v1040
    %v1047 = vsel %vm260, %v1025, 0
    %1049 = vmatpush.bf16.msra.mxu0 0
    %1050 = vmatpush.bf16.msra.mxu0 0
    %1051 = vmatpush.bf16.msra.mxu0 0
    %1052 = vmatpush.bf16.msra.mxu0 0
    %1053 = vmatpush.bf16.msra.mxu0 0
    %1054 = vmatpush.bf16.msra.mxu0 0
    %1055 = vmatpush.bf16.msra.mxu0 %v1043
    %1056 = vmatpush.bf16.msra.mxu0 %v1042
    %1057 = vmatmul.bf16.gmra.mxu0 %v1047
    %v1058 = vpop.f32.mrf.mxu0
    %v1059 = vadd.f32 %v1032, %v1058
    %v1060 = vpop.f32.mrf.mxu0
    %v1061 = vadd.f32 %v1032, %v1060
    %1062 = vdwg.mxu0
    %v1063 = vpack.c.bf16 %v238, %v237
    %v1064 = vld [vmem:[%s10] sm:$0xf]
    %v1065 = vld [vmem:[%s10 + $0x4] sm:$0xf]
    %v1066 = vld [vmem:[%s10 + $0x8] sm:$0xf]
    %v1067 = vld [vmem:[%s10 + $0xc] sm:$0xf]
    %v1068 = vld [vmem:[#allocation9] sm:$0x1]
    %v1070 = vperm.slane %v1068, 0
    %v1076 = vunpack.c.l.b16 %v1064
    %v1077 = vunpack.c.l.b16 %v1065
    %v1078 = vunpack.c.l.b16 %v1066
    %v1079 = vunpack.c.l.b16 %v1067
    %v1080 = vpack.c.b16 %v1077, %v1076
    %v1081 = vpack.c.b16 %v1079, %v1078
    %v1085 = vsel %vm260, %v1063, 0
    %1087 = vmatpush.bf16.msra.mxu0 0
    %1088 = vmatpush.bf16.msra.mxu0 0
    %1089 = vmatpush.bf16.msra.mxu0 0
    %1090 = vmatpush.bf16.msra.mxu0 0
    %1091 = vmatpush.bf16.msra.mxu0 0
    %1092 = vmatpush.bf16.msra.mxu0 0
    %1093 = vmatpush.bf16.msra.mxu0 %v1081
    %1094 = vmatpush.bf16.msra.mxu0 %v1080
    %1095 = vmatmul.bf16.gmra.mxu0 %v1085
    %v1096 = vpop.f32.mrf.mxu0
    %v1097 = vadd.f32 %v1070, %v1096
    %v1098 = vpop.f32.mrf.mxu0
    %v1099 = vadd.f32 %v1070, %v1098
    %1100 = vdwg.mxu0
    %v1101 = vld [vmem:[%s12] sm:$0xff]
    %v1102 = vld [vmem:[%s12 + $0x8] sm:$0xff]
    %v1103 = vld [vmem:[%s12 + $0x10] sm:$0xff]
    %v1104 = vld [vmem:[%s12 + $0x18] sm:$0xff]
    %v1105 = vld [vmem:[#allocation10] sm:$0x1]
    %v1106 = vpack.c.bf16 %v1059, %v1059
    %v1107 = vpack.c.bf16 %v1061, %v1061
    %v1108 = vpack.c.bf16 %v1097, %v1097
    %v1109 = vpack.c.bf16 %v1099, %v1099
    %v1111 = vsel %vm296, %v1106, 0
    %v1114 = vsel %vm296, %v1108, 0
    %1116 = vmatpush.bf16.xpose.msra.mxu0 0
    %1117 = vmatpush.bf16.xpose.msra.mxu0 0
    %1118 = vmatpush.bf16.xpose.msra.mxu0 0
    %1119 = vmatpush.bf16.xpose.msra.mxu0 0
    %1120 = vmatpush.bf16.xpose.msra.mxu0 0
    %1121 = vmatpush.bf16.xpose.msra.mxu0 0
    %1122 = vmatpush.bf16.xpose.msra.mxu0 0
    %1123 = vmatpush.bf16.xpose.msra.mxu0 %v1114
    %1124 = vmatmul.bf16.gmra.mxu0 %v1111
    %v1125 = vpop.f32.mrf.mxu0
    %v1126 = vadd.f32 0.0, %v1125
    %v1127 = vpop.f32.mrf.mxu0
    %1128 = vdwg.mxu0
    %v1130 = vsel %vm296, %v1107, 0
    %v1133 = vsel %vm296, %v1109, 0
    %1135 = vmatpush.bf16.xpose.msra.mxu0 0
    %1136 = vmatpush.bf16.xpose.msra.mxu0 0
    %1137 = vmatpush.bf16.xpose.msra.mxu0 0
    %1138 = vmatpush.bf16.xpose.msra.mxu0 0
    %1139 = vmatpush.bf16.xpose.msra.mxu0 0
    %1140 = vmatpush.bf16.xpose.msra.mxu0 0
    %1141 = vmatpush.bf16.xpose.msra.mxu0 0
    %1142 = vmatpush.bf16.xpose.msra.mxu0 %v1133
    %1143 = vmatmul.bf16.gmra.mxu0 %v1130
    %v1144 = vpop.f32.mrf.mxu0
    %v1145 = vadd.f32 0.0, %v1144
    %v1146 = vpop.f32.mrf.mxu0
    %1147 = vdwg.mxu0
    %v1148 = vmul.f32 %v1126, 0.35355338
    %v1149 = vmul.f32 %v1145, 0.35355338
    %v1150 = vsel %vm296, %v1148, -inf
    %1151 = vmax.xlane.f32.xlu0 %v1150
    %v1152 = vpop.xlane.xlu0 %1151
    %v1153 = vsel %vm296, %v1149, -inf
    %1154 = vmax.xlane.f32.xlu0 %v1153
    %v1155 = vpop.xlane.xlu0 %1154
    %v1156 = vsub.f32 %v1148, %v1152
    %v1157 = vsub.f32 %v1149, %v1155
    %v1158 = vmul.f32 %v1156, 1.442695
    %v1159 = vpow.pop %v1158
    %v1160 = vmul.f32 %v1157, 1.442695
    %v1161 = vpow.pop %v1160
    %v1162 = vsel %vm296, %v1159, 0.0
    %1163 = vadd.xlane.f32.xlu0 %v1162
    %v1164 = vpop.xlane.xlu0 %1163
    %v1165 = vsel %vm296, %v1161, 0.0
    %1166 = vadd.xlane.f32.xlu0 %v1165
    %v1167 = vpop.xlane.xlu0 %1166
    %v1168 = vrcp.pop %v1164
    %v1169 = vmul.f32 %v1164, %v1168
    %v1170 = vsub.f32 1.0, %v1169
    %v1171 = vmul.f32 %v1168, %v1170
    %v1172 = vadd.f32 %v1168, %v1171
    %vm1173 = vweird.f32 %v1164
    %vm1174 = vweird.f32 %v1168
    %vm1175 = vmor %vm1173, %vm1174
    %v1176 = vsel %vm1175, %v1168, %v1172
    %v1177 = vand.u32 2147483647, %v1164
    %vm1178 = vcmp.eq.f32.partialorder %v1177, 8.507059e+37
    %v1179 = vand.u32 %v1164, 2147483648
    %v1180 = vor.u32 1.1754944e-38, %v1179
    %v1181 = vsel %vm1178, %v1180, %v1176
    %v1182 = vmul.f32 %v1159, %v1181
    %v1183 = vrcp.pop %v1167
    %v1184 = vmul.f32 %v1167, %v1183
    %v1185 = vsub.f32 1.0, %v1184
    %v1186 = vmul.f32 %v1183, %v1185
    %v1187 = vadd.f32 %v1183, %v1186
    %vm1188 = vweird.f32 %v1167
    %vm1189 = vweird.f32 %v1183
    %vm1190 = vmor %vm1188, %vm1189
    %v1191 = vsel %vm1190, %v1183, %v1187
    %v1192 = vand.u32 2147483647, %v1167
    %vm1193 = vcmp.eq.f32.partialorder %v1192, 8.507059e+37
    %v1194 = vand.u32 %v1167, 2147483648
    %v1195 = vor.u32 1.1754944e-38, %v1194
    %v1196 = vsel %vm1193, %v1195, %v1191
    %v1197 = vmul.f32 %v1161, %v1196
    %v1198 = vpack.c.bf16 %v1182, %v1182
    %v1199 = vpack.c.bf16 %v1197, %v1197
    %v1201 = vunpack.c.l.b16 %v1108
    %v1202 = vpack.c.b16 %v1201, %v1201
    %1203 = vrot.lane.b32.xlu0 %v1202, 96
    %v1204 = vpop.permute.xlu0 %1203
    %v1206 = vsel %vm296, %v1198, 0
    %v1209 = vsel %vm399, %v1204, 0
    %1211 = vmatpush.bf16.msra.mxu0 0
    %1212 = vmatpush.bf16.msra.mxu0 0
    %1213 = vmatpush.bf16.msra.mxu0 0
    %1214 = vmatpush.bf16.msra.mxu0 0
    %1215 = vmatpush.bf16.msra.mxu0 0
    %1216 = vmatpush.bf16.msra.mxu0 0
    %1217 = vmatpush.bf16.msra.mxu0 0
    %1218 = vmatpush.bf16.msra.mxu0 %v1209
    %1219 = vmatmul.bf16.gmra.mxu0 %v1206
    %v1220 = vpop.f32.mrf.mxu0
    %v1221 = vadd.f32 0.0, %v1220
    %v1222 = vpop.f32.mrf.mxu0
    %1223 = vdwg.mxu0
    %v1225 = vunpack.c.l.b16 %v1109
    %v1226 = vpack.c.b16 %v1225, %v1225
    %1227 = vrot.lane.b32.xlu0 %v1226, 96
    %v1228 = vpop.permute.xlu0 %1227
    %v1230 = vsel %vm296, %v1199, 0
    %v1233 = vsel %vm399, %v1228, 0
    %1235 = vmatpush.bf16.msra.mxu0 0
    %1236 = vmatpush.bf16.msra.mxu0 0
    %1237 = vmatpush.bf16.msra.mxu0 0
    %1238 = vmatpush.bf16.msra.mxu0 0
    %1239 = vmatpush.bf16.msra.mxu0 0
    %1240 = vmatpush.bf16.msra.mxu0 0
    %1241 = vmatpush.bf16.msra.mxu0 0
    %1242 = vmatpush.bf16.msra.mxu0 %v1233
    %1243 = vmatmul.bf16.gmra.mxu0 %v1230
    %v1244 = vpop.f32.mrf.mxu0
    %v1245 = vadd.f32 0.0, %v1244
    %v1246 = vpop.f32.mrf.mxu0
    %1247 = vdwg.mxu0
    %v1248 = vpack.c.bf16 %v1101, %v1101
    %v1249 = vpack.c.bf16 %v1245, %v1221
    %v1251 = vunpack.c.l.b16 %v1106
    %v1252 = vpack.c.b16 %v1251, %v1251
    %1253 = vrot.lane.b32.xlu0 %v1252, 120
    %v1254 = vpop.permute.xlu0 %1253
    %1255 = vrot.lane.b32.xlu0 %v1202, 120
    %v1256 = vpop.permute.xlu0 %1255
    %v1258 = vsel %vm296, %v1254, 0
    %v1261 = vsel %vm296, %v1256, 0
    %1263 = vmatpush.bf16.xpose.msra.mxu0 0
    %1264 = vmatpush.bf16.xpose.msra.mxu0 0
    %1265 = vmatpush.bf16.xpose.msra.mxu0 0
    %1266 = vmatpush.bf16.xpose.msra.mxu0 0
    %1267 = vmatpush.bf16.xpose.msra.mxu0 0
    %1268 = vmatpush.bf16.xpose.msra.mxu0 0
    %1269 = vmatpush.bf16.xpose.msra.mxu0 0
    %1270 = vmatpush.bf16.xpose.msra.mxu0 %v1261
    %1271 = vmatmul.bf16.gmra.mxu0 %v1258
    %v1272 = vpop.f32.mrf.mxu0
    %v1273 = vadd.f32 0.0, %v1272
    %v1274 = vpop.f32.mrf.mxu0
    %1275 = vdwg.mxu0
    %v1277 = vunpack.c.l.b16 %v1107
    %v1278 = vpack.c.b16 %v1277, %v1277
    %1279 = vrot.lane.b32.xlu0 %v1278, 120
    %v1280 = vpop.permute.xlu0 %1279
    %1281 = vrot.lane.b32.xlu0 %v1226, 120
    %v1282 = vpop.permute.xlu0 %1281
    %v1284 = vsel %vm296, %v1280, 0
    %v1287 = vsel %vm296, %v1282, 0
    %1289 = vmatpush.bf16.xpose.msra.mxu0 0
    %1290 = vmatpush.bf16.xpose.msra.mxu0 0
    %1291 = vmatpush.bf16.xpose.msra.mxu0 0
    %1292 = vmatpush.bf16.xpose.msra.mxu0 0
    %1293 = vmatpush.bf16.xpose.msra.mxu0 0
    %1294 = vmatpush.bf16.xpose.msra.mxu0 0
    %1295 = vmatpush.bf16.xpose.msra.mxu0 0
    %1296 = vmatpush.bf16.xpose.msra.mxu0 %v1287
    %1297 = vmatmul.bf16.gmra.mxu0 %v1284
    %v1298 = vpop.f32.mrf.mxu0
    %v1299 = vadd.f32 0.0, %v1298
    %v1300 = vpop.f32.mrf.mxu0
    %1301 = vdwg.mxu0
    %v1302 = vmul.f32 %v1273, 0.35355338
    %v1303 = vmul.f32 %v1299, 0.35355338
    %v1304 = vsel %vm296, %v1302, -inf
    %1305 = vmax.xlane.f32.xlu0 %v1304
    %v1306 = vpop.xlane.xlu0 %1305
    %v1307 = vsel %vm296, %v1303, -inf
    %1308 = vmax.xlane.f32.xlu0 %v1307
    %v1309 = vpop.xlane.xlu0 %1308
    %v1310 = vsub.f32 %v1302, %v1306
    %v1311 = vsub.f32 %v1303, %v1309
    %v1312 = vmul.f32 %v1310, 1.442695
    %v1313 = vpow.pop %v1312
    %v1314 = vmul.f32 %v1311, 1.442695
    %v1315 = vpow.pop %v1314
    %v1316 = vsel %vm296, %v1313, 0.0
    %1317 = vadd.xlane.f32.xlu0 %v1316
    %v1318 = vpop.xlane.xlu0 %1317
    %v1319 = vsel %vm296, %v1315, 0.0
    %1320 = vadd.xlane.f32.xlu0 %v1319
    %v1321 = vpop.xlane.xlu0 %1320
    %v1322 = vrcp.pop %v1318
    %v1323 = vmul.f32 %v1318, %v1322
    %v1324 = vsub.f32 1.0, %v1323
    %v1325 = vmul.f32 %v1322, %v1324
    %v1326 = vadd.f32 %v1322, %v1325
    %vm1327 = vweird.f32 %v1318
    %vm1328 = vweird.f32 %v1322
    %vm1329 = vmor %vm1327, %vm1328
    %v1330 = vsel %vm1329, %v1322, %v1326
    %v1331 = vand.u32 2147483647, %v1318
    %vm1332 = vcmp.eq.f32.partialorder %v1331, 8.507059e+37
    %v1333 = vand.u32 %v1318, 2147483648
    %v1334 = vor.u32 1.1754944e-38, %v1333
    %v1335 = vsel %vm1332, %v1334, %v1330
    %v1336 = vmul.f32 %v1313, %v1335
    %v1337 = vrcp.pop %v1321
    %v1338 = vmul.f32 %v1321, %v1337
    %v1339 = vsub.f32 1.0, %v1338
    %v1340 = vmul.f32 %v1337, %v1339
    %v1341 = vadd.f32 %v1337, %v1340
    %vm1342 = vweird.f32 %v1321
    %vm1343 = vweird.f32 %v1337
    %vm1344 = vmor %vm1342, %vm1343
    %v1345 = vsel %vm1344, %v1337, %v1341
    %v1346 = vand.u32 2147483647, %v1321
    %vm1347 = vcmp.eq.f32.partialorder %v1346, 8.507059e+37
    %v1348 = vand.u32 %v1321, 2147483648
    %v1349 = vor.u32 1.1754944e-38, %v1348
    %v1350 = vsel %vm1347, %v1349, %v1345
    %v1351 = vmul.f32 %v1315, %v1350
    %v1352 = vpack.c.bf16 %v1336, %v1336
    %v1353 = vpack.c.bf16 %v1351, %v1351
    %1354 = vrot.lane.b32.xlu0 %v1202, 88
    %v1355 = vpop.permute.xlu0 %1354
    %v1357 = vsel %vm296, %v1352, 0
    %v1360 = vsel %vm399, %v1355, 0
    %1362 = vmatpush.bf16.msra.mxu0 0
    %1363 = vmatpush.bf16.msra.mxu0 0
    %1364 = vmatpush.bf16.msra.mxu0 0
    %1365 = vmatpush.bf16.msra.mxu0 0
    %1366 = vmatpush.bf16.msra.mxu0 0
    %1367 = vmatpush.bf16.msra.mxu0 0
    %1368 = vmatpush.bf16.msra.mxu0 0
    %1369 = vmatpush.bf16.msra.mxu0 %v1360
    %1370 = vmatmul.bf16.gmra.mxu0 %v1357
    %v1371 = vpop.f32.mrf.mxu0
    %v1372 = vadd.f32 0.0, %v1371
    %v1373 = vpop.f32.mrf.mxu0
    %1374 = vdwg.mxu0
    %1375 = vrot.lane.b32.xlu0 %v1226, 88
    %v1376 = vpop.permute.xlu0 %1375
    %v1378 = vsel %vm296, %v1353, 0
    %v1381 = vsel %vm399, %v1376, 0
    %1383 = vmatpush.bf16.msra.mxu0 0
    %1384 = vmatpush.bf16.msra.mxu0 0
    %1385 = vmatpush.bf16.msra.mxu0 0
    %1386 = vmatpush.bf16.msra.mxu0 0
    %1387 = vmatpush.bf16.msra.mxu0 0
    %1388 = vmatpush.bf16.msra.mxu0 0
    %1389 = vmatpush.bf16.msra.mxu0 0
    %1390 = vmatpush.bf16.msra.mxu0 %v1381
    %1391 = vmatmul.bf16.gmra.mxu0 %v1378
    %v1392 = vpop.f32.mrf.mxu0
    %v1393 = vadd.f32 0.0, %v1392
    %v1394 = vpop.f32.mrf.mxu0
    %1395 = vdwg.mxu0
    %v1396 = vpack.c.bf16 %v1102, %v1102
    %v1397 = vpack.c.bf16 %v1393, %v1372
    %v1399 = vsel %vm296, %v1397, 0
    %v1402 = vsel %vm399, %v1396, 0
    %1404 = vmatpush.bf16.msra.mxu0 0
    %1405 = vmatpush.bf16.msra.mxu0 0
    %1406 = vmatpush.bf16.msra.mxu0 0
    %1407 = vmatpush.bf16.msra.mxu0 0
    %1408 = vmatpush.bf16.msra.mxu0 0
    %1409 = vmatpush.bf16.msra.mxu0 0
    %1410 = vmatpush.bf16.msra.mxu0 0
    %1411 = vmatpush.bf16.msra.mxu0 %v1402
    %1412 = vmatmul.bf16.gmra.mxu0 %v1399
    %v1413 = vpop.f32.mrf.mxu0
    %v1414 = vadd.f32 0.0, %v1413
    %v1415 = vpop.f32.mrf.mxu0
    %v1416 = vadd.f32 0.0, %v1415
    %1417 = vdwg.mxu0
    %v1419 = vsel %vm296, %v1249, 0
    %v1422 = vsel %vm399, %v1248, 0
    %1424 = vmatpush.bf16.msra.mxu0 0
    %1425 = vmatpush.bf16.msra.mxu0 0
    %1426 = vmatpush.bf16.msra.mxu0 0
    %1427 = vmatpush.bf16.msra.mxu0 0
    %1428 = vmatpush.bf16.msra.mxu0 0
    %1429 = vmatpush.bf16.msra.mxu0 0
    %1430 = vmatpush.bf16.msra.mxu0 0
    %1431 = vmatpush.bf16.msra.mxu0 %v1422
    %1432 = vmatmul.bf16.gmra.mxu0 %v1419
    %v1433 = vpop.f32.mrf.mxu0
    %v1434 = vadd.f32 %v1414, %v1433
    %v1435 = vpop.f32.mrf.mxu0
    %v1436 = vadd.f32 %v1416, %v1435
    %1437 = vdwg.mxu0
    %1438 = vrot.lane.b32.xlu0 %v1252, 112
    %v1439 = vpop.permute.xlu0 %1438
    %1440 = vrot.lane.b32.xlu0 %v1202, 112
    %v1441 = vpop.permute.xlu0 %1440
    %v1443 = vsel %vm296, %v1439, 0
    %v1446 = vsel %vm296, %v1441, 0
    %1448 = vmatpush.bf16.xpose.msra.mxu0 0
    %1449 = vmatpush.bf16.xpose.msra.mxu0 0
    %1450 = vmatpush.bf16.xpose.msra.mxu0 0
    %1451 = vmatpush.bf16.xpose.msra.mxu0 0
    %1452 = vmatpush.bf16.xpose.msra.mxu0 0
    %1453 = vmatpush.bf16.xpose.msra.mxu0 0
    %1454 = vmatpush.bf16.xpose.msra.mxu0 0
    %1455 = vmatpush.bf16.xpose.msra.mxu0 %v1446
    %1456 = vmatmul.bf16.gmra.mxu0 %v1443
    %v1457 = vpop.f32.mrf.mxu0
    %v1458 = vadd.f32 0.0, %v1457
    %v1459 = vpop.f32.mrf.mxu0
    %1460 = vdwg.mxu0
    %1461 = vrot.lane.b32.xlu0 %v1278, 112
    %v1462 = vpop.permute.xlu0 %1461
    %1463 = vrot.lane.b32.xlu0 %v1226, 112
    %v1464 = vpop.permute.xlu0 %1463
    %v1466 = vsel %vm296, %v1462, 0
    %v1469 = vsel %vm296, %v1464, 0
    %1471 = vmatpush.bf16.xpose.msra.mxu0 0
    %1472 = vmatpush.bf16.xpose.msra.mxu0 0
    %1473 = vmatpush.bf16.xpose.msra.mxu0 0
    %1474 = vmatpush.bf16.xpose.msra.mxu0 0
    %1475 = vmatpush.bf16.xpose.msra.mxu0 0
    %1476 = vmatpush.bf16.xpose.msra.mxu0 0
    %1477 = vmatpush.bf16.xpose.msra.mxu0 0
    %1478 = vmatpush.bf16.xpose.msra.mxu0 %v1469
    %1479 = vmatmul.bf16.gmra.mxu0 %v1466
    %v1480 = vpop.f32.mrf.mxu0
    %v1481 = vadd.f32 0.0, %v1480
    %v1482 = vpop.f32.mrf.mxu0
    %1483 = vdwg.mxu0
    %v1484 = vmul.f32 %v1458, 0.35355338
    %v1485 = vmul.f32 %v1481, 0.35355338
    %v1486 = vsel %vm296, %v1484, -inf
    %1487 = vmax.xlane.f32.xlu0 %v1486
    %v1488 = vpop.xlane.xlu0 %1487
    %v1489 = vsel %vm296, %v1485, -inf
    %1490 = vmax.xlane.f32.xlu0 %v1489
    %v1491 = vpop.xlane.xlu0 %1490
    %v1492 = vsub.f32 %v1484, %v1488
    %v1493 = vsub.f32 %v1485, %v1491
    %v1494 = vmul.f32 %v1492, 1.442695
    %v1495 = vpow.pop %v1494
    %v1496 = vmul.f32 %v1493, 1.442695
    %v1497 = vpow.pop %v1496
    %v1498 = vsel %vm296, %v1495, 0.0
    %1499 = vadd.xlane.f32.xlu0 %v1498
    %v1500 = vpop.xlane.xlu0 %1499
    %v1501 = vsel %vm296, %v1497, 0.0
    %1502 = vadd.xlane.f32.xlu0 %v1501
    %v1503 = vpop.xlane.xlu0 %1502
    %v1504 = vrcp.pop %v1500
    %v1505 = vmul.f32 %v1500, %v1504
    %v1506 = vsub.f32 1.0, %v1505
    %v1507 = vmul.f32 %v1504, %v1506
    %v1508 = vadd.f32 %v1504, %v1507
    %vm1509 = vweird.f32 %v1500
    %vm1510 = vweird.f32 %v1504
    %vm1511 = vmor %vm1509, %vm1510
    %v1512 = vsel %vm1511, %v1504, %v1508
    %v1513 = vand.u32 2147483647, %v1500
    %vm1514 = vcmp.eq.f32.partialorder %v1513, 8.507059e+37
    %v1515 = vand.u32 %v1500, 2147483648
    %v1516 = vor.u32 1.1754944e-38, %v1515
    %v1517 = vsel %vm1514, %v1516, %v1512
    %v1518 = vmul.f32 %v1495, %v1517
    %v1519 = vrcp.pop %v1503
    %v1520 = vmul.f32 %v1503, %v1519
    %v1521 = vsub.f32 1.0, %v1520
    %v1522 = vmul.f32 %v1519, %v1521
    %v1523 = vadd.f32 %v1519, %v1522
    %vm1524 = vweird.f32 %v1503
    %vm1525 = vweird.f32 %v1519
    %vm1526 = vmor %vm1524, %vm1525
    %v1527 = vsel %vm1526, %v1519, %v1523
    %v1528 = vand.u32 2147483647, %v1503
    %vm1529 = vcmp.eq.f32.partialorder %v1528, 8.507059e+37
    %v1530 = vand.u32 %v1503, 2147483648
    %v1531 = vor.u32 1.1754944e-38, %v1530
    %v1532 = vsel %vm1529, %v1531, %v1527
    %v1533 = vmul.f32 %v1497, %v1532
    %v1534 = vpack.c.bf16 %v1518, %v1518
    %v1535 = vpack.c.bf16 %v1533, %v1533
    %1536 = vrot.lane.b32.xlu0 %v1202, 80
    %v1537 = vpop.permute.xlu0 %1536
    %v1539 = vsel %vm296, %v1534, 0
    %v1542 = vsel %vm399, %v1537, 0
    %1544 = vmatpush.bf16.msra.mxu0 0
    %1545 = vmatpush.bf16.msra.mxu0 0
    %1546 = vmatpush.bf16.msra.mxu0 0
    %1547 = vmatpush.bf16.msra.mxu0 0
    %1548 = vmatpush.bf16.msra.mxu0 0
    %1549 = vmatpush.bf16.msra.mxu0 0
    %1550 = vmatpush.bf16.msra.mxu0 0
    %1551 = vmatpush.bf16.msra.mxu0 %v1542
    %1552 = vmatmul.bf16.gmra.mxu0 %v1539
    %v1553 = vpop.f32.mrf.mxu0
    %v1554 = vadd.f32 0.0, %v1553
    %v1555 = vpop.f32.mrf.mxu0
    %1556 = vdwg.mxu0
    %1557 = vrot.lane.b32.xlu0 %v1226, 80
    %v1558 = vpop.permute.xlu0 %1557
    %v1560 = vsel %vm296, %v1535, 0
    %v1563 = vsel %vm399, %v1558, 0
    %1565 = vmatpush.bf16.msra.mxu0 0
    %1566 = vmatpush.bf16.msra.mxu0 0
    %1567 = vmatpush.bf16.msra.mxu0 0
    %1568 = vmatpush.bf16.msra.mxu0 0
    %1569 = vmatpush.bf16.msra.mxu0 0
    %1570 = vmatpush.bf16.msra.mxu0 0
    %1571 = vmatpush.bf16.msra.mxu0 0
    %1572 = vmatpush.bf16.msra.mxu0 %v1563
    %1573 = vmatmul.bf16.gmra.mxu0 %v1560
    %v1574 = vpop.f32.mrf.mxu0
    %v1575 = vadd.f32 0.0, %v1574
    %v1576 = vpop.f32.mrf.mxu0
    %1577 = vdwg.mxu0
    %v1578 = vpack.c.bf16 %v1103, %v1103
    %v1579 = vpack.c.bf16 %v1575, %v1554
    %v1581 = vsel %vm296, %v1579, 0
    %v1584 = vsel %vm399, %v1578, 0
    %1586 = vmatpush.bf16.msra.mxu0 0
    %1587 = vmatpush.bf16.msra.mxu0 0
    %1588 = vmatpush.bf16.msra.mxu0 0
    %1589 = vmatpush.bf16.msra.mxu0 0
    %1590 = vmatpush.bf16.msra.mxu0 0
    %1591 = vmatpush.bf16.msra.mxu0 0
    %1592 = vmatpush.bf16.msra.mxu0 0
    %1593 = vmatpush.bf16.msra.mxu0 %v1584
    %1594 = vmatmul.bf16.gmra.mxu0 %v1581
    %v1595 = vpop.f32.mrf.mxu0
    %v1596 = vadd.f32 0.0, %v1595
    %v1597 = vpop.f32.mrf.mxu0
    %v1598 = vadd.f32 0.0, %v1597
    %1599 = vdwg.mxu0
    %v1600 = vadd.f32 %v1434, %v1596
    %v1601 = vadd.f32 %v1436, %v1598
    %1602 = vrot.lane.b32.xlu0 %v1252, 104
    %v1603 = vpop.permute.xlu0 %1602
    %1604 = vrot.lane.b32.xlu0 %v1202, 104
    %v1605 = vpop.permute.xlu0 %1604
    %v1607 = vsel %vm296, %v1603, 0
    %v1610 = vsel %vm296, %v1605, 0
    %1612 = vmatpush.bf16.xpose.msra.mxu0 0
    %1613 = vmatpush.bf16.xpose.msra.mxu0 0
    %1614 = vmatpush.bf16.xpose.msra.mxu0 0
    %1615 = vmatpush.bf16.xpose.msra.mxu0 0
    %1616 = vmatpush.bf16.xpose.msra.mxu0 0
    %1617 = vmatpush.bf16.xpose.msra.mxu0 0
    %1618 = vmatpush.bf16.xpose.msra.mxu0 0
    %1619 = vmatpush.bf16.xpose.msra.mxu0 %v1610
    %1620 = vmatmul.bf16.gmra.mxu0 %v1607
    %v1621 = vpop.f32.mrf.mxu0
    %v1622 = vadd.f32 0.0, %v1621
    %v1623 = vpop.f32.mrf.mxu0
    %1624 = vdwg.mxu0
    %1625 = vrot.lane.b32.xlu0 %v1278, 104
    %v1626 = vpop.permute.xlu0 %1625
    %1627 = vrot.lane.b32.xlu0 %v1226, 104
    %v1628 = vpop.permute.xlu0 %1627
    %v1630 = vsel %vm296, %v1626, 0
    %v1633 = vsel %vm296, %v1628, 0
    %1635 = vmatpush.bf16.xpose.msra.mxu0 0
    %1636 = vmatpush.bf16.xpose.msra.mxu0 0
    %1637 = vmatpush.bf16.xpose.msra.mxu0 0
    %1638 = vmatpush.bf16.xpose.msra.mxu0 0
    %1639 = vmatpush.bf16.xpose.msra.mxu0 0
    %1640 = vmatpush.bf16.xpose.msra.mxu0 0
    %1641 = vmatpush.bf16.xpose.msra.mxu0 0
    %1642 = vmatpush.bf16.xpose.msra.mxu0 %v1633
    %1643 = vmatmul.bf16.gmra.mxu0 %v1630
    %v1644 = vpop.f32.mrf.mxu0
    %v1645 = vadd.f32 0.0, %v1644
    %v1646 = vpop.f32.mrf.mxu0
    %1647 = vdwg.mxu0
    %v1648 = vmul.f32 %v1622, 0.35355338
    %v1649 = vmul.f32 %v1645, 0.35355338
    %v1650 = vsel %vm296, %v1648, -inf
    %1651 = vmax.xlane.f32.xlu0 %v1650
    %v1652 = vpop.xlane.xlu0 %1651
    %v1653 = vsel %vm296, %v1649, -inf
    %1654 = vmax.xlane.f32.xlu0 %v1653
    %v1655 = vpop.xlane.xlu0 %1654
    %v1656 = vsub.f32 %v1648, %v1652
    %v1657 = vsub.f32 %v1649, %v1655
    %v1658 = vmul.f32 %v1656, 1.442695
    %v1659 = vpow.pop %v1658
    %v1660 = vmul.f32 %v1657, 1.442695
    %v1661 = vpow.pop %v1660
    %v1662 = vsel %vm296, %v1659, 0.0
    %1663 = vadd.xlane.f32.xlu0 %v1662
    %v1664 = vpop.xlane.xlu0 %1663
    %v1665 = vsel %vm296, %v1661, 0.0
    %1666 = vadd.xlane.f32.xlu0 %v1665
    %v1667 = vpop.xlane.xlu0 %1666
    %v1668 = vrcp.pop %v1664
    %v1669 = vmul.f32 %v1664, %v1668
    %v1670 = vsub.f32 1.0, %v1669
    %v1671 = vmul.f32 %v1668, %v1670
    %v1672 = vadd.f32 %v1668, %v1671
    %vm1673 = vweird.f32 %v1664
    %vm1674 = vweird.f32 %v1668
    %vm1675 = vmor %vm1673, %vm1674
    %v1676 = vsel %vm1675, %v1668, %v1672
    %v1677 = vand.u32 2147483647, %v1664
    %vm1678 = vcmp.eq.f32.partialorder %v1677, 8.507059e+37
    %v1679 = vand.u32 %v1664, 2147483648
    %v1680 = vor.u32 1.1754944e-38, %v1679
    %v1681 = vsel %vm1678, %v1680, %v1676
    %v1682 = vmul.f32 %v1659, %v1681
    %v1683 = vrcp.pop %v1667
    %v1684 = vmul.f32 %v1667, %v1683
    %v1685 = vsub.f32 1.0, %v1684
    %v1686 = vmul.f32 %v1683, %v1685
    %v1687 = vadd.f32 %v1683, %v1686
    %vm1688 = vweird.f32 %v1667
    %vm1689 = vweird.f32 %v1683
    %vm1690 = vmor %vm1688, %vm1689
    %v1691 = vsel %vm1690, %v1683, %v1687
    %v1692 = vand.u32 2147483647, %v1667
    %vm1693 = vcmp.eq.f32.partialorder %v1692, 8.507059e+37
    %v1694 = vand.u32 %v1667, 2147483648
    %v1695 = vor.u32 1.1754944e-38, %v1694
    %v1696 = vsel %vm1693, %v1695, %v1691
    %v1697 = vmul.f32 %v1661, %v1696
    %v1698 = vpack.c.bf16 %v1682, %v1682
    %v1699 = vpack.c.bf16 %v1697, %v1697
    %1700 = vrot.lane.b32.xlu0 %v1202, 72
    %v1701 = vpop.permute.xlu0 %1700
    %v1703 = vsel %vm296, %v1698, 0
    %v1706 = vsel %vm399, %v1701, 0
    %1708 = vmatpush.bf16.msra.mxu0 0
    %1709 = vmatpush.bf16.msra.mxu0 0
    %1710 = vmatpush.bf16.msra.mxu0 0
    %1711 = vmatpush.bf16.msra.mxu0 0
    %1712 = vmatpush.bf16.msra.mxu0 0
    %1713 = vmatpush.bf16.msra.mxu0 0
    %1714 = vmatpush.bf16.msra.mxu0 0
    %1715 = vmatpush.bf16.msra.mxu0 %v1706
    %1716 = vmatmul.bf16.gmra.mxu0 %v1703
    %v1717 = vpop.f32.mrf.mxu0
    %v1718 = vadd.f32 0.0, %v1717
    %v1719 = vpop.f32.mrf.mxu0
    %1720 = vdwg.mxu0
    %1721 = vrot.lane.b32.xlu0 %v1226, 72
    %v1722 = vpop.permute.xlu0 %1721
    %v1724 = vsel %vm296, %v1699, 0
    %v1727 = vsel %vm399, %v1722, 0
    %1729 = vmatpush.bf16.msra.mxu0 0
    %1730 = vmatpush.bf16.msra.mxu0 0
    %1731 = vmatpush.bf16.msra.mxu0 0
    %1732 = vmatpush.bf16.msra.mxu0 0
    %1733 = vmatpush.bf16.msra.mxu0 0
    %1734 = vmatpush.bf16.msra.mxu0 0
    %1735 = vmatpush.bf16.msra.mxu0 0
    %1736 = vmatpush.bf16.msra.mxu0 %v1727
    %1737 = vmatmul.bf16.gmra.mxu0 %v1724
    %v1738 = vpop.f32.mrf.mxu0
    %v1739 = vadd.f32 0.0, %v1738
    %v1740 = vpop.f32.mrf.mxu0
    %1741 = vdwg.mxu0
    %v1742 = vpack.c.bf16 %v1104, %v1104
    %v1743 = vpack.c.bf16 %v1739, %v1718
    %v1745 = vsel %vm296, %v1743, 0
    %v1748 = vsel %vm399, %v1742, 0
    %1750 = vmatpush.bf16.msra.mxu0 0
    %1751 = vmatpush.bf16.msra.mxu0 0
    %1752 = vmatpush.bf16.msra.mxu0 0
    %1753 = vmatpush.bf16.msra.mxu0 0
    %1754 = vmatpush.bf16.msra.mxu0 0
    %1755 = vmatpush.bf16.msra.mxu0 0
    %1756 = vmatpush.bf16.msra.mxu0 0
    %1757 = vmatpush.bf16.msra.mxu0 %v1748
    %1758 = vmatmul.bf16.gmra.mxu0 %v1745
    %v1759 = vpop.f32.mrf.mxu0
    %v1760 = vadd.f32 0.0, %v1759
    %v1761 = vpop.f32.mrf.mxu0
    %v1762 = vadd.f32 0.0, %v1761
    %1763 = vdwg.mxu0
    %v1764 = vadd.f32 %v1600, %v1760
    %v1765 = vadd.f32 %v1601, %v1762
    %v1767 = vperm.slane %v1105, 0
    %v1769 = vadd.f32 %v1764, %v1767
    %v1770 = vadd.f32 %v1765, %v1767
    %v1771 = vadd.f32 %v1023, %v1769
    %v1772 = vadd.f32 %v1024, %v1770
    %v1773 = vld [vmem:[#allocation12] sm:$0x1]
    %v1774 = vld [vmem:[#allocation13] sm:$0x1]
    %v1775 = vsel %vm260, %v1771, 0.0
    %1776 = vadd.xlane.f32.xlu0 %v1775
    %v1777 = vpop.xlane.xlu0 %1776
    %v1778 = vsel %vm260, %v1772, 0.0
    %1779 = vadd.xlane.f32.xlu0 %v1778
    %v1780 = vpop.xlane.xlu0 %1779
    %v1781 = vmul.f32 %v1777, %v976
    %v1782 = vmul.f32 %v1780, %v976
    %v1783 = vsub.f32 %v1771, %v1781
    %v1784 = vsub.f32 %v1772, %v1782
    %v1785 = vmul.f32 %v1783, %v1783
    %v1786 = vmul.f32 %v1784, %v1784
    %v1787 = vsel %vm260, %v1785, 0.0
    %1788 = vadd.xlane.f32.xlu0 %v1787
    %v1789 = vpop.xlane.xlu0 %1788
    %v1790 = vsel %vm260, %v1786, 0.0
    %1791 = vadd.xlane.f32.xlu0 %v1790
    %v1792 = vpop.xlane.xlu0 %1791
    %v1793 = vmul.f32 %v1789, %v976
    %v1794 = vmul.f32 %v1792, %v976
    %v1795 = vadd.f32 %v1793, 1e-05
    %v1796 = vadd.f32 %v1794, 1e-05
    %v1797 = vrsqrt.pop %v1795
    %v1798 = vmul.f32 %v1797, %v1795
    %v1799 = vmul.f32 %v1798, %v1797
    %v1800 = vmul.f32 0.5, %v1799
    %v1801 = vsub.f32 1.5, %v1800
    %v1802 = vmul.f32 %v1797, %v1801
    %vm1803 = vweird.f32 %v1795
    %vm1804 = vweird.f32 %v1797
    %vm1805 = vmor %vm1803, %vm1804
    %v1806 = vsel %vm1805, %v1797, %v1802
    %v1807 = vrsqrt.pop %v1796
    %v1808 = vmul.f32 %v1807, %v1796
    %v1809 = vmul.f32 %v1808, %v1807
    %v1810 = vmul.f32 0.5, %v1809
    %v1811 = vsub.f32 1.5, %v1810
    %v1812 = vmul.f32 %v1807, %v1811
    %vm1813 = vweird.f32 %v1796
    %vm1814 = vweird.f32 %v1807
    %vm1815 = vmor %vm1813, %vm1814
    %v1816 = vsel %vm1815, %v1807, %v1812
    %v1817 = vmul.f32 %v1783, %v1806
    %v1818 = vmul.f32 %v1784, %v1816
    %v1820 = vperm.slane %v1773, 0
    %v1822 = vmul.f32 %v1817, %v1820
    %v1823 = vmul.f32 %v1818, %v1820
    %v1825 = vperm.slane %v1774, 0
    %v1827 = vadd.f32 %v1822, %v1825
    %v1828 = vadd.f32 %v1823, %v1825
    %v1829 = vpack.c.bf16 %v1828, %v1827
    %v1830 = vld [vmem:[%s16] sm:$0xf]
    %v1831 = vld [vmem:[%s16 + $0x4] sm:$0xf]
    %v1832 = vld [vmem:[%s16 + $0x8] sm:$0xf]
    %v1833 = vld [vmem:[%s16 + $0xc] sm:$0xf]
    %v1834 = vld [vmem:[#allocation15] sm:$0x1]
    %v1836 = vperm.slane %v1834, 0
    %v1842 = vunpack.c.l.b16 %v1830
    %v1843 = vunpack.c.l.b16 %v1831
    %v1844 = vunpack.c.l.b16 %v1832
    %v1845 = vunpack.c.l.b16 %v1833
    %v1846 = vpack.c.b16 %v1843, %v1842
    %v1847 = vpack.c.b16 %v1845, %v1844
    %v1851 = vsel %vm260, %v1829, 0
    %1853 = vmatpush.bf16.msra.mxu0 0
    %1854 = vmatpush.bf16.msra.mxu0 0
    %1855 = vmatpush.bf16.msra.mxu0 0
    %1856 = vmatpush.bf16.msra.mxu0 0
    %1857 = vmatpush.bf16.msra.mxu0 0
    %1858 = vmatpush.bf16.msra.mxu0 0
    %1859 = vmatpush.bf16.msra.mxu0 %v1847
    %1860 = vmatpush.bf16.msra.mxu0 %v1846
    %1861 = vmatmul.bf16.gmra.mxu0 %v1851
    %v1862 = vpop.f32.mrf.mxu0
    %v1863 = vadd.f32 %v1836, %v1862
    %v1864 = vpop.f32.mrf.mxu0
    %v1865 = vadd.f32 %v1836, %v1864
    %1866 = vdwg.mxu0
    %v1867 = vmax.f32 %v1863, 0.0
    %v1868 = vmax.f32 %v1865, 0.0
    %v1869 = vpack.c.bf16 %v1868, %v1867
    %v1870 = vld [vmem:[%s18] sm:$0xf]
    %v1871 = vld [vmem:[%s18 + $0x4] sm:$0xf]
    %v1872 = vld [vmem:[%s18 + $0x8] sm:$0xf]
    %v1873 = vld [vmem:[%s18 + $0xc] sm:$0xf]
    %v1874 = vld [vmem:[%s18 + $0x10] sm:$0xf]
    %v1875 = vld [vmem:[%s18 + $0x14] sm:$0xf]
    %v1876 = vld [vmem:[%s18 + $0x18] sm:$0xf]
    %v1877 = vld [vmem:[%s18 + $0x1c] sm:$0xf]
    %v1878 = vld [vmem:[#allocation16] sm:$0x1]
    %v1880 = vperm.slane %v1878, 0
    %v1890 = vunpack.c.l.b16 %v1870
    %v1891 = vunpack.c.l.b16 %v1871
    %v1892 = vunpack.c.l.b16 %v1872
    %v1893 = vunpack.c.l.b16 %v1873
    %v1894 = vunpack.c.l.b16 %v1874
    %v1895 = vunpack.c.l.b16 %v1875
    %v1896 = vunpack.c.l.b16 %v1876
    %v1897 = vunpack.c.l.b16 %v1877
    %v1898 = vpack.c.b16 %v1891, %v1890
    %v1899 = vpack.c.b16 %v1893, %v1892
    %v1900 = vpack.c.b16 %v1895, %v1894
    %v1901 = vpack.c.b16 %v1897, %v1896
    %vm1906 = vcmask 523264
    %v1908 = vsel %vm1906, %v1869, 0
    %1910 = vmatpush.bf16.msra.mxu0 0
    %1911 = vmatpush.bf16.msra.mxu0 0
    %1912 = vmatpush.bf16.msra.mxu0 0
    %1913 = vmatpush.bf16.msra.mxu0 0
    %1914 = vmatpush.bf16.msra.mxu0 %v1901
    %1915 = vmatpush.bf16.msra.mxu0 %v1900
    %1916 = vmatpush.bf16.msra.mxu0 %v1899
    %1917 = vmatpush.bf16.msra.mxu0 %v1898
    %1918 = vmatmul.bf16.gmra.mxu0 %v1908
    %v1919 = vpop.f32.mrf.mxu0
    %v1920 = vadd.f32 %v1880, %v1919
    %v1921 = vpop.f32.mrf.mxu0
    %v1922 = vadd.f32 %v1880, %v1921
    %1923 = vdwg.mxu0
    %v1924 = vadd.f32 %v1827, %v1920
    %v1925 = vadd.f32 %v1828, %v1922
    %v1926 = vld [vmem:[#allocation18] sm:$0x1]
    %v1927 = vld [vmem:[#allocation19] sm:$0x1]
    %v1928 = vsel %vm260, %v1924, 0.0
    %1929 = vadd.xlane.f32.xlu0 %v1928
    %v1930 = vpop.xlane.xlu0 %1929
    %v1931 = vsel %vm260, %v1925, 0.0
    %1932 = vadd.xlane.f32.xlu0 %v1931
    %v1933 = vpop.xlane.xlu0 %1932
    %v1934 = vmul.f32 %v1930, %v976
    %v1935 = vmul.f32 %v1933, %v976
    %v1936 = vsub.f32 %v1924, %v1934
    %v1937 = vsub.f32 %v1925, %v1935
    %v1938 = vmul.f32 %v1936, %v1936
    %v1939 = vmul.f32 %v1937, %v1937
    %v1940 = vsel %vm260, %v1938, 0.0
    %1941 = vadd.xlane.f32.xlu0 %v1940
    %v1942 = vpop.xlane.xlu0 %1941
    %v1943 = vsel %vm260, %v1939, 0.0
    %1944 = vadd.xlane.f32.xlu0 %v1943
    %v1945 = vpop.xlane.xlu0 %1944
    %v1946 = vmul.f32 %v1942, %v976
    %v1947 = vmul.f32 %v1945, %v976
    %v1948 = vadd.f32 %v1946, 1e-05
    %v1949 = vadd.f32 %v1947, 1e-05
    %v1950 = vrsqrt.pop %v1948
    %v1951 = vmul.f32 %v1950, %v1948
    %v1952 = vmul.f32 %v1951, %v1950
    %v1953 = vmul.f32 0.5, %v1952
    %v1954 = vsub.f32 1.5, %v1953
    %v1955 = vmul.f32 %v1950, %v1954
    %vm1956 = vweird.f32 %v1948
    %vm1957 = vweird.f32 %v1950
    %vm1958 = vmor %vm1956, %vm1957
    %v1959 = vsel %vm1958, %v1950, %v1955
    %v1960 = vrsqrt.pop %v1949
    %v1961 = vmul.f32 %v1960, %v1949
    %v1962 = vmul.f32 %v1961, %v1960
    %v1963 = vmul.f32 0.5, %v1962
    %v1964 = vsub.f32 1.5, %v1963
    %v1965 = vmul.f32 %v1960, %v1964
    %vm1966 = vweird.f32 %v1949
    %vm1967 = vweird.f32 %v1960
    %vm1968 = vmor %vm1966, %vm1967
    %v1969 = vsel %vm1968, %v1960, %v1965
    %v1970 = vmul.f32 %v1936, %v1959
    %v1971 = vmul.f32 %v1937, %v1969
    %v1973 = vperm.slane %v1926, 0
    %v1975 = vmul.f32 %v1970, %v1973
    %v1976 = vmul.f32 %v1971, %v1973
    %v1978 = vperm.slane %v1927, 0
    %v1980 = vadd.f32 %v1975, %v1978
    %v1981 = vadd.f32 %v1976, %v1978
    %1982 = vst.msk [vmem:[%s22] sm:$0xff] %vm260, %v1980
    %1983 = vst.msk [vmem:[%s22 + $0x8] sm:$0xff] %vm260, %v1981
    // Predicated region
    $region138: #{forward.9} parent=1 // pred_check
      _
    $region139: #{forward.9} parent=1 // pred_check_branch
      %1985 = sbr.rel (0) target = $region141
    $region140: #{forward.9} parent=1 // pred_region
      _
    $region141: #{forward.9} parent=1 // pred_fallthru
      _
    // Predicated region
    $region142: #{forward.9} parent=1 // pred_check
      _
    $region143: #{forward.9} parent=1 // pred_check_branch
      %1987 = sbr.rel (0) target = $region145
    $region144: #{forward.9} parent=1 // pred_region
      _
    $region145: #{forward.9} parent=1 // pred_fallthru
      _
    %1988 = vsyncpa [#allocation3], 1
    %1989 = vsyncpa [#allocation5], 1
    %1990 = vsyncpa [#allocation8], 1
    %1991 = vsyncpa [#allocation11], 1
    %1992 = vsyncpa [#allocation14], 1
    %1993 = vsyncpa [#allocation17], 1
    %1994 = vsyncpa [#allocation20], 1

// kernel: forward.10
$region0: #{forward.10}
  #allocation0 [shape = 'u32[]', space=smem, size = 0x4, offset = 0x4, fixed_abs, tag = 'smem constant byte address 0x4 - core index']
  #allocation1 [shape = 'u32[72,128]{1,0:T(1,128)}', space=vmem, size = 0x9000, scoped, tag = 'internal scratch']
  %s0 = inlined_call_operand.vmem [shape: f32[16,32], index: 0, kind: input, shape index: {}]
  %s1 = inlined_call_operand.vmem [shape: f32[16,32], index: 1, kind: input, shape index: {}]
  %s2 = inlined_call_operand.vmem [shape: bf16[32,96], index: 2, kind: input, shape index: {}]
  %s3 = inlined_call_operand.hbm [shape: f32[1,96], index: 3, kind: input, shape index: {}]
  %s4 = inlined_call_operand.vmem [shape: f32[32,32], index: 4, kind: input, shape index: {}]
  %s5 = inlined_call_operand.hbm [shape: f32[1,32], index: 5, kind: input, shape index: {}]
  %s6 = inlined_call_operand.hbm [shape: f32[1,32], index: 6, kind: input, shape index: {}]
  %s7 = inlined_call_operand.hbm [shape: f32[1,32], index: 7, kind: input, shape index: {}]
  %s8 = inlined_call_operand.vmem [shape: bf16[32,32], index: 8, kind: input, shape index: {}]
  %s9 = inlined_call_operand.hbm [shape: f32[1,32], index: 9, kind: input, shape index: {}]
  %s10 = inlined_call_operand.vmem [shape: bf16[32,64], index: 10, kind: input, shape index: {}]
  %s11 = inlined_call_operand.hbm [shape: f32[1,64], index: 11, kind: input, shape index: {}]
  %s12 = inlined_call_operand.vmem [shape: f32[32,32], index: 12, kind: input, shape index: {}]
  %s13 = inlined_call_operand.hbm [shape: f32[1,32], index: 13, kind: input, shape index: {}]
  %s14 = inlined_call_operand.hbm [shape: f32[1,32], index: 14, kind: input, shape index: {}]
  %s15 = inlined_call_operand.hbm [shape: f32[1,32], index: 15, kind: input, shape index: {}]
  %s16 = inlined_call_operand.vmem [shape: bf16[32,64], index: 16, kind: input, shape index: {}]
  %s17 = inlined_call_operand.hbm [shape: f32[1,64], index: 17, kind: input, shape index: {}]
  %s18 = inlined_call_operand.vmem [shape: bf16[64,32], index: 18, kind: input, shape index: {}]
  %s19 = inlined_call_operand.hbm [shape: f32[1,32], index: 19, kind: input, shape index: {}]
  %s20 = inlined_call_operand.hbm [shape: f32[1,32], index: 20, kind: input, shape index: {}]
  %s21 = inlined_call_operand.hbm [shape: f32[1,32], index: 21, kind: input, shape index: {}]
  %s22 = inlined_call_operand.vmem [shape: f32[16,32], index: 22, kind: output, shape index: {}]
  %s23 = sld [smem:[#allocation0]]
  $region150: #{forward.10} parent=0
    _
  %s25 = ssub.s32 1, %s23
  %s26 = scalar_select 0, %s25, %s23
  $region1: #{forward.10} parent=0
    #allocation2 [shape = 'u8[512]{0}', space=vmem, size = 0x400, scoped, tag = 'input window, operand 3, single buffered']
    #allocation3 [shape = 's32[1]{0}', space=sflag, size = 0x4, scoped, tag = 'scoped memory for forward.10']
    #allocation4 [shape = 'u8[512]{0}', space=vmem, size = 0x400, scoped, tag = 'input window, operand 5, single buffered']
    #allocation5 [shape = 's32[1]{0}', space=sflag, size = 0x4, scoped, tag = 'scoped memory for forward.10']
    #allocation6 [shape = 'u8[512]{0}', space=vmem, size = 0x400, scoped, tag = 'input window, operand 6, single buffered']
    #allocation7 [shape = 'u8[512]{0}', space=vmem, size = 0x400, scoped, tag = 'input window, operand 7, single buffered']
    #allocation8 [shape = 's32[1]{0}', space=sflag, size = 0x4, scoped, tag = 'scoped memory for forward.10']
    #allocation9 [shape = 'u8[512]{0}', space=vmem, size = 0x400, scoped, tag = 'input window, operand 9, single buffered']
    #allocation10 [shape = 'u8[512]{0}', space=vmem, size = 0x400, scoped, tag = 'input window, operand 11, single buffered']
    #allocation11 [shape = 's32[1]{0}', space=sflag, size = 0x4, scoped, tag = 'scoped memory for forward.10']
    #allocation12 [shape = 'u8[512]{0}', space=vmem, size = 0x400, scoped, tag = 'input window, operand 13, single buffered']
    #allocation13 [shape = 'u8[512]{0}', space=vmem, size = 0x400, scoped, tag = 'input window, operand 14, single buffered']
    #allocation14 [shape = 's32[1]{0}', space=sflag, size = 0x4, scoped, tag = 'scoped memory for forward.10']
    #allocation15 [shape = 'u8[512]{0}', space=vmem, size = 0x400, scoped, tag = 'input window, operand 15, single buffered']
    #allocation16 [shape = 'u8[512]{0}', space=vmem, size = 0x400, scoped, tag = 'input window, operand 17, single buffered']
    #allocation17 [shape = 's32[1]{0}', space=sflag, size = 0x4, scoped, tag = 'scoped memory for forward.10']
    #allocation18 [shape = 'u8[512]{0}', space=vmem, size = 0x400, scoped, tag = 'input window, operand 19, single buffered']
    #allocation19 [shape = 'u8[512]{0}', space=vmem, size = 0x400, scoped, tag = 'input window, operand 20, single buffered']
    #allocation20 [shape = 's32[1]{0}', space=sflag, size = 0x4, scoped, tag = 'scoped memory for forward.10']
    #allocation21 [shape = 'u8[512]{0}', space=vmem, size = 0x400, scoped, tag = 'input window, operand 21, single buffered']
    %27 = vsyncpa [#allocation3], 0
    %28 = vsyncpa [#allocation5], 0
    %29 = vsyncpa [#allocation8], 0
    %30 = vsyncpa [#allocation11], 0
    %31 = vsyncpa [#allocation14], 0
    %32 = vsyncpa [#allocation17], 0
    %33 = vsyncpa [#allocation20], 0
    // Predicated region
    $region2: #{forward.10} parent=1 // pred_check
      _
    $region3: #{forward.10} parent=1 // pred_check_branch
      %35 = sbr.rel (0) target = $region5
    $region4: #{forward.10} parent=1 // pred_region
      _
    $region5: #{forward.10} parent=1 // pred_fallthru
      _
    // Predicated region
    $region6: #{forward.10} parent=1 // pred_check
      _
    $region7: #{forward.10} parent=1 // pred_check_branch
      %37 = sbr.rel (0) target = $region9
    $region8: #{forward.10} parent=1 // pred_region
      _
    $region9: #{forward.10} parent=1 // pred_fallthru
      _
    // Predicated region
    $region10: #{forward.10} parent=1 // pred_check
      _
    $region11: #{forward.10} parent=1 // pred_check_branch
      %39 = sbr.rel (0) target = $region13
    $region12: #{forward.10} parent=1 // pred_region
      _
    $region13: #{forward.10} parent=1 // pred_fallthru
      _
    // Predicated region
    $region14: #{forward.10} parent=1 // pred_check
      _
    $region15: #{forward.10} parent=1 // pred_check_branch
      %41 = sbr.rel (0) target = $region17
    $region16: #{forward.10} parent=1 // pred_region
      %43 = vsyncadd [#allocation3], 0
      %s45 = sshll.u32 %s3, 4
      %s46 = int_to_ptr.hbm [resolvable:$true] %s45
      %s47 = sshll.u32 [#allocation2], 4
      %s48 = int_to_ptr.vmem [resolvable:$true] %s47
      %50 = dma.hbm_to_vmem [thread:$0]  %s46, 16, %s48, [#allocation3]
    $region17: #{forward.10} parent=1 // pred_fallthru
      _
    // Predicated region
    $region18: #{forward.10} parent=1 // pred_check
      _
    $region19: #{forward.10} parent=1 // pred_check_branch
      %52 = sbr.rel (0) target = $region21
    $region20: #{forward.10} parent=1 // pred_region
      _
    $region21: #{forward.10} parent=1 // pred_fallthru
      _
    // Predicated region
    $region22: #{forward.10} parent=1 // pred_check
      _
    $region23: #{forward.10} parent=1 // pred_check_branch
      %54 = sbr.rel (0) target = $region25
    $region24: #{forward.10} parent=1 // pred_region
      %56 = vsyncadd [#allocation5], 0
      %s58 = sshll.u32 %s5, 4
      %s59 = int_to_ptr.hbm [resolvable:$true] %s58
      %s60 = sshll.u32 [#allocation4], 4
      %s61 = int_to_ptr.vmem [resolvable:$true] %s60
      %63 = dma.hbm_to_vmem [thread:$0]  %s59, 16, %s61, [#allocation5]
    $region25: #{forward.10} parent=1 // pred_fallthru
      _
    // Predicated region
    $region26: #{forward.10} parent=1 // pred_check
      _
    $region27: #{forward.10} parent=1 // pred_check_branch
      %65 = sbr.rel (0) target = $region29
    $region28: #{forward.10} parent=1 // pred_region
      %67 = vsyncadd [#allocation5], 0
      %s69 = sshll.u32 %s6, 4
      %s70 = int_to_ptr.hbm [resolvable:$true] %s69
      %s71 = sshll.u32 [#allocation6], 4
      %s72 = int_to_ptr.vmem [resolvable:$true] %s71
      %74 = dma.hbm_to_vmem [thread:$0]  %s70, 16, %s72, [#allocation5]
    $region29: #{forward.10} parent=1 // pred_fallthru
      _
    // Predicated region
    $region30: #{forward.10} parent=1 // pred_check
      _
    $region31: #{forward.10} parent=1 // pred_check_branch
      %76 = sbr.rel (0) target = $region33
    $region32: #{forward.10} parent=1 // pred_region
      %78 = vsyncadd [#allocation8], 0
      %s80 = sshll.u32 %s7, 4
      %s81 = int_to_ptr.hbm [resolvable:$true] %s80
      %s82 = sshll.u32 [#allocation7], 4
      %s83 = int_to_ptr.vmem [resolvable:$true] %s82
      %85 = dma.hbm_to_vmem [thread:$0]  %s81, 16, %s83, [#allocation8]
    $region33: #{forward.10} parent=1 // pred_fallthru
      _
    // Predicated region
    $region34: #{forward.10} parent=1 // pred_check
      _
    $region35: #{forward.10} parent=1 // pred_check_branch
      %87 = sbr.rel (0) target = $region37
    $region36: #{forward.10} parent=1 // pred_region
      _
    $region37: #{forward.10} parent=1 // pred_fallthru
      _
    // Predicated region
    $region38: #{forward.10} parent=1 // pred_check
      _
    $region39: #{forward.10} parent=1 // pred_check_branch
      %89 = sbr.rel (0) target = $region41
    $region40: #{forward.10} parent=1 // pred_region
      %91 = vsyncadd [#allocation8], 0
      %s93 = sshll.u32 %s9, 4
      %s94 = int_to_ptr.hbm [resolvable:$true] %s93
      %s95 = sshll.u32 [#allocation9], 4
      %s96 = int_to_ptr.vmem [resolvable:$true] %s95
      %98 = dma.hbm_to_vmem [thread:$0]  %s94, 16, %s96, [#allocation8]
    $region41: #{forward.10} parent=1 // pred_fallthru
      _
    // Predicated region
    $region42: #{forward.10} parent=1 // pred_check
      _
    $region43: #{forward.10} parent=1 // pred_check_branch
      %100 = sbr.rel (0) target = $region45
    $region44: #{forward.10} parent=1 // pred_region
      _
    $region45: #{forward.10} parent=1 // pred_fallthru
      _
    // Predicated region
    $region46: #{forward.10} parent=1 // pred_check
      _
    $region47: #{forward.10} parent=1 // pred_check_branch
      %102 = sbr.rel (0) target = $region49
    $region48: #{forward.10} parent=1 // pred_region
      %104 = vsyncadd [#allocation11], 0
      %s106 = sshll.u32 %s11, 4
      %s107 = int_to_ptr.hbm [resolvable:$true] %s106
      %s108 = sshll.u32 [#allocation10], 4
      %s109 = int_to_ptr.vmem [resolvable:$true] %s108
      %111 = dma.hbm_to_vmem [thread:$0]  %s107, 16, %s109, [#allocation11]
    $region49: #{forward.10} parent=1 // pred_fallthru
      _
    // Predicated region
    $region50: #{forward.10} parent=1 // pred_check
      _
    $region51: #{forward.10} parent=1 // pred_check_branch
      %113 = sbr.rel (0) target = $region53
    $region52: #{forward.10} parent=1 // pred_region
      _
    $region53: #{forward.10} parent=1 // pred_fallthru
      _
    // Predicated region
    $region54: #{forward.10} parent=1 // pred_check
      _
    $region55: #{forward.10} parent=1 // pred_check_branch
      %115 = sbr.rel (0) target = $region57
    $region56: #{forward.10} parent=1 // pred_region
      %117 = vsyncadd [#allocation11], 0
      %s119 = sshll.u32 %s13, 4
      %s120 = int_to_ptr.hbm [resolvable:$true] %s119
      %s121 = sshll.u32 [#allocation12], 4
      %s122 = int_to_ptr.vmem [resolvable:$true] %s121
      %124 = dma.hbm_to_vmem [thread:$0]  %s120, 16, %s122, [#allocation11]
    $region57: #{forward.10} parent=1 // pred_fallthru
      _
    // Predicated region
    $region58: #{forward.10} parent=1 // pred_check
      _
    $region59: #{forward.10} parent=1 // pred_check_branch
      %126 = sbr.rel (0) target = $region61
    $region60: #{forward.10} parent=1 // pred_region
      %128 = vsyncadd [#allocation14], 0
      %s130 = sshll.u32 %s14, 4
      %s131 = int_to_ptr.hbm [resolvable:$true] %s130
      %s132 = sshll.u32 [#allocation13], 4
      %s133 = int_to_ptr.vmem [resolvable:$true] %s132
      %135 = dma.hbm_to_vmem [thread:$0]  %s131, 16, %s133, [#allocation14]
    $region61: #{forward.10} parent=1 // pred_fallthru
      _
    // Predicated region
    $region62: #{forward.10} parent=1 // pred_check
      _
    $region63: #{forward.10} parent=1 // pred_check_branch
      %137 = sbr.rel (0) target = $region65
    $region64: #{forward.10} parent=1 // pred_region
      %139 = vsyncadd [#allocation14], 0
      %s141 = sshll.u32 %s15, 4
      %s142 = int_to_ptr.hbm [resolvable:$true] %s141
      %s143 = sshll.u32 [#allocation15], 4
      %s144 = int_to_ptr.vmem [resolvable:$true] %s143
      %146 = dma.hbm_to_vmem [thread:$0]  %s142, 16, %s144, [#allocation14]
    $region65: #{forward.10} parent=1 // pred_fallthru
      _
    // Predicated region
    $region66: #{forward.10} parent=1 // pred_check
      _
    $region67: #{forward.10} parent=1 // pred_check_branch
      %148 = sbr.rel (0) target = $region69
    $region68: #{forward.10} parent=1 // pred_region
      _
    $region69: #{forward.10} parent=1 // pred_fallthru
      _
    // Predicated region
    $region70: #{forward.10} parent=1 // pred_check
      _
    $region71: #{forward.10} parent=1 // pred_check_branch
      %150 = sbr.rel (0) target = $region73
    $region72: #{forward.10} parent=1 // pred_region
      %152 = vsyncadd [#allocation17], 0
      %s154 = sshll.u32 %s17, 4
      %s155 = int_to_ptr.hbm [resolvable:$true] %s154
      %s156 = sshll.u32 [#allocation16], 4
      %s157 = int_to_ptr.vmem [resolvable:$true] %s156
      %159 = dma.hbm_to_vmem [thread:$0]  %s155, 16, %s157, [#allocation17]
    $region73: #{forward.10} parent=1 // pred_fallthru
      _
    // Predicated region
    $region74: #{forward.10} parent=1 // pred_check
      _
    $region75: #{forward.10} parent=1 // pred_check_branch
      %161 = sbr.rel (0) target = $region77
    $region76: #{forward.10} parent=1 // pred_region
      _
    $region77: #{forward.10} parent=1 // pred_fallthru
      _
    // Predicated region
    $region78: #{forward.10} parent=1 // pred_check
      _
    $region79: #{forward.10} parent=1 // pred_check_branch
      %163 = sbr.rel (0) target = $region81
    $region80: #{forward.10} parent=1 // pred_region
      %165 = vsyncadd [#allocation17], 0
      %s167 = sshll.u32 %s19, 4
      %s168 = int_to_ptr.hbm [resolvable:$true] %s167
      %s169 = sshll.u32 [#allocation18], 4
      %s170 = int_to_ptr.vmem [resolvable:$true] %s169
      %172 = dma.hbm_to_vmem [thread:$0]  %s168, 16, %s170, [#allocation17]
    $region81: #{forward.10} parent=1 // pred_fallthru
      _
    // Predicated region
    $region82: #{forward.10} parent=1 // pred_check
      _
    $region83: #{forward.10} parent=1 // pred_check_branch
      %174 = sbr.rel (0) target = $region85
    $region84: #{forward.10} parent=1 // pred_region
      %176 = vsyncadd [#allocation20], 0
      %s178 = sshll.u32 %s20, 4
      %s179 = int_to_ptr.hbm [resolvable:$true] %s178
      %s180 = sshll.u32 [#allocation19], 4
      %s181 = int_to_ptr.vmem [resolvable:$true] %s180
      %183 = dma.hbm_to_vmem [thread:$0]  %s179, 16, %s181, [#allocation20]
    $region85: #{forward.10} parent=1 // pred_fallthru
      _
    // Predicated region
    $region86: #{forward.10} parent=1 // pred_check
      _
    $region87: #{forward.10} parent=1 // pred_check_branch
      %185 = sbr.rel (0) target = $region89
    $region88: #{forward.10} parent=1 // pred_region
      %187 = vsyncadd [#allocation20], 0
      %s189 = sshll.u32 %s21, 4
      %s190 = int_to_ptr.hbm [resolvable:$true] %s189
      %s191 = sshll.u32 [#allocation21], 4
      %s192 = int_to_ptr.vmem [resolvable:$true] %s191
      %194 = dma.hbm_to_vmem [thread:$0]  %s190, 16, %s192, [#allocation20]
    $region89: #{forward.10} parent=1 // pred_fallthru
      _
    // Predicated region
    $region90: #{forward.10} parent=1 // pred_check
      _
    $region91: #{forward.10} parent=1 // pred_check_branch
      %196 = sbr.rel (0) target = $region93
    $region92: #{forward.10} parent=1 // pred_region
      %198 = dma.done [#allocation3], 16
    $region93: #{forward.10} parent=1 // pred_fallthru
      _
    // Predicated region
    $region94: #{forward.10} parent=1 // pred_check
      _
    $region95: #{forward.10} parent=1 // pred_check_branch
      %200 = sbr.rel (0) target = $region97
    $region96: #{forward.10} parent=1 // pred_region
      %202 = dma.done [#allocation5], 16
    $region97: #{forward.10} parent=1 // pred_fallthru
      _
    // Predicated region
    $region98: #{forward.10} parent=1 // pred_check
      _
    $region99: #{forward.10} parent=1 // pred_check_branch
      %204 = sbr.rel (0) target = $region101
    $region100: #{forward.10} parent=1 // pred_region
      %206 = dma.done [#allocation5], 16
    $region101: #{forward.10} parent=1 // pred_fallthru
      _
    // Predicated region
    $region102: #{forward.10} parent=1 // pred_check
      _
    $region103: #{forward.10} parent=1 // pred_check_branch
      %208 = sbr.rel (0) target = $region105
    $region104: #{forward.10} parent=1 // pred_region
      %210 = dma.done [#allocation8], 16
    $region105: #{forward.10} parent=1 // pred_fallthru
      _
    // Predicated region
    $region106: #{forward.10} parent=1 // pred_check
      _
    $region107: #{forward.10} parent=1 // pred_check_branch
      %212 = sbr.rel (0) target = $region109
    $region108: #{forward.10} parent=1 // pred_region
      %214 = dma.done [#allocation8], 16
    $region109: #{forward.10} parent=1 // pred_fallthru
      _
    // Predicated region
    $region110: #{forward.10} parent=1 // pred_check
      _
    $region111: #{forward.10} parent=1 // pred_check_branch
      %216 = sbr.rel (0) target = $region113
    $region112: #{forward.10} parent=1 // pred_region
      %218 = dma.done [#allocation11], 16
    $region113: #{forward.10} parent=1 // pred_fallthru
      _
    // Predicated region
    $region114: #{forward.10} parent=1 // pred_check
      _
    $region115: #{forward.10} parent=1 // pred_check_branch
      %220 = sbr.rel (0) target = $region117
    $region116: #{forward.10} parent=1 // pred_region
      %222 = dma.done [#allocation11], 16
    $region117: #{forward.10} parent=1 // pred_fallthru
      _
    // Predicated region
    $region118: #{forward.10} parent=1 // pred_check
      _
    $region119: #{forward.10} parent=1 // pred_check_branch
      %224 = sbr.rel (0) target = $region121
    $region120: #{forward.10} parent=1 // pred_region
      %226 = dma.done [#allocation14], 16
    $region121: #{forward.10} parent=1 // pred_fallthru
      _
    // Predicated region
    $region122: #{forward.10} parent=1 // pred_check
      _
    $region123: #{forward.10} parent=1 // pred_check_branch
      %228 = sbr.rel (0) target = $region125
    $region124: #{forward.10} parent=1 // pred_region
      %230 = dma.done [#allocation14], 16
    $region125: #{forward.10} parent=1 // pred_fallthru
      _
    // Predicated region
    $region126: #{forward.10} parent=1 // pred_check
      _
    $region127: #{forward.10} parent=1 // pred_check_branch
      %232 = sbr.rel (0) target = $region129
    $region128: #{forward.10} parent=1 // pred_region
      %234 = dma.done [#allocation17], 16
    $region129: #{forward.10} parent=1 // pred_fallthru
      _
    // Predicated region
    $region130: #{forward.10} parent=1 // pred_check
      _
    $region131: #{forward.10} parent=1 // pred_check_branch
      %236 = sbr.rel (0) target = $region133
    $region132: #{forward.10} parent=1 // pred_region
      %238 = dma.done [#allocation17], 16
    $region133: #{forward.10} parent=1 // pred_fallthru
      _
    // Predicated region
    $region134: #{forward.10} parent=1 // pred_check
      _
    $region135: #{forward.10} parent=1 // pred_check_branch
      %240 = sbr.rel (0) target = $region137
    $region136: #{forward.10} parent=1 // pred_region
      %242 = dma.done [#allocation20], 16
    $region137: #{forward.10} parent=1 // pred_fallthru
      _
    // Predicated region
    $region138: #{forward.10} parent=1 // pred_check
      _
    $region139: #{forward.10} parent=1 // pred_check_branch
      %244 = sbr.rel (0) target = $region141
    $region140: #{forward.10} parent=1 // pred_region
      %246 = dma.done [#allocation20], 16
    $region141: #{forward.10} parent=1 // pred_fallthru
      _
    %v248 = vld [vmem:[%s0] sm:$0xff]
    %v249 = vld [vmem:[%s0 + $0x8] sm:$0xff]
    %v250 = vld [vmem:[%s1] sm:$0xff]
    %v251 = vld [vmem:[%s1 + $0x8] sm:$0xff]
    %v252 = vpack.c.bf16 %v249, %v248
    %v253 = vld [vmem:[%s2] sm:$0xf]
    %v254 = vld [vmem:[%s2 + $0x4] sm:$0xf]
    %v255 = vld [vmem:[%s2 + $0x8] sm:$0xf]
    %v256 = vld [vmem:[%s2 + $0xc] sm:$0xf]
    %v257 = vld [vmem:[#allocation2] sm:$0x1]
    %v259 = vperm.slane %v257, 0
    %v265 = vunpack.c.l.b16 %v253
    %v266 = vunpack.c.l.b16 %v254
    %v267 = vunpack.c.l.b16 %v255
    %v268 = vunpack.c.l.b16 %v256
    %v269 = vpack.c.b16 %v266, %v265
    %v270 = vpack.c.b16 %v268, %v267
    %vm273 = vcmask 261120
    %v275 = vsel %vm273, %v252, 0
    %277 = vmatpush.bf16.msra.mxu0 0
    %278 = vmatpush.bf16.msra.mxu0 0
    %279 = vmatpush.bf16.msra.mxu0 0
    %280 = vmatpush.bf16.msra.mxu0 0
    %281 = vmatpush.bf16.msra.mxu0 0
    %282 = vmatpush.bf16.msra.mxu0 0
    %283 = vmatpush.bf16.msra.mxu0 %v270
    %284 = vmatpush.bf16.msra.mxu0 %v269
    %285 = vmatmul.bf16.gmra.mxu0 %v275
    %v286 = vpop.f32.mrf.mxu0
    %v287 = vadd.f32 %v259, %v286
    %v288 = vpop.f32.mrf.mxu0
    %v289 = vadd.f32 %v259, %v288
    %290 = vdwg.mxu0
    %v291 = vld [vmem:[%s4] sm:$0xff]
    %v292 = vld [vmem:[%s4 + $0x8] sm:$0xff]
    %v293 = vld [vmem:[%s4 + $0x10] sm:$0xff]
    %v294 = vld [vmem:[%s4 + $0x18] sm:$0xff]
    %v295 = vld [vmem:[#allocation4] sm:$0x1]
    %v296 = vlaneseq
    %v297 = vshrl.u32 %v296, 7
    %v298 = vlaneseq
    %v299 = vand.u32 %v298, 127
    %vm300 = vcmp.gt.s32.totalorder %v299, %v297
    %v301 = vsel %vm300, -1e+30, 0.0
    %v302 = vpack.c.bf16 %v287, %v287
    %v303 = vpack.c.bf16 %v289, %v289
    %v305 = vunpack.c.l.b16 %v302
    %v306 = vpack.c.b16 %v305, %v305
    %307 = vrot.lane.b32.xlu0 %v306, 96
    %v308 = vpop.permute.xlu0 %307
    %vm309 = vcmask 64512
    %v311 = vsel %vm309, %v302, 0
    %v314 = vsel %vm309, %v308, 0
    %316 = vmatpush.bf16.xpose.msra.mxu0 0
    %317 = vmatpush.bf16.xpose.msra.mxu0 0
    %318 = vmatpush.bf16.xpose.msra.mxu0 0
    %319 = vmatpush.bf16.xpose.msra.mxu0 0
    %320 = vmatpush.bf16.xpose.msra.mxu0 0
    %321 = vmatpush.bf16.xpose.msra.mxu0 0
    %322 = vmatpush.bf16.xpose.msra.mxu0 0
    %323 = vmatpush.bf16.xpose.msra.mxu0 %v314
    %324 = vmatmul.bf16.gmra.mxu0 %v311
    %v325 = vpop.f32.mrf.mxu0
    %v326 = vadd.f32 0.0, %v325
    %v327 = vpop.f32.mrf.mxu0
    %328 = vdwg.mxu0
    %v330 = vunpack.c.l.b16 %v303
    %v331 = vpack.c.b16 %v330, %v330
    %332 = vrot.lane.b32.xlu0 %v331, 96
    %v333 = vpop.permute.xlu0 %332
    %v335 = vsel %vm309, %v303, 0
    %v338 = vsel %vm309, %v333, 0
    %340 = vmatpush.bf16.xpose.msra.mxu0 0
    %341 = vmatpush.bf16.xpose.msra.mxu0 0
    %342 = vmatpush.bf16.xpose.msra.mxu0 0
    %343 = vmatpush.bf16.xpose.msra.mxu0 0
    %344 = vmatpush.bf16.xpose.msra.mxu0 0
    %345 = vmatpush.bf16.xpose.msra.mxu0 0
    %346 = vmatpush.bf16.xpose.msra.mxu0 0
    %347 = vmatpush.bf16.xpose.msra.mxu0 %v338
    %348 = vmatmul.bf16.gmra.mxu0 %v335
    %v349 = vpop.f32.mrf.mxu0
    %v350 = vadd.f32 0.0, %v349
    %v351 = vpop.f32.mrf.mxu0
    %352 = vdwg.mxu0
    %v353 = vmul.f32 %v326, 0.35355338
    %v354 = vmul.f32 %v350, 0.35355338
    %v355 = vadd.f32 %v353, %v301
    %v356 = vadd.f32 %v354, %v301
    %v357 = vsel %vm309, %v355, -inf
    %358 = vmax.xlane.f32.xlu0 %v357
    %v359 = vpop.xlane.xlu0 %358
    %v360 = vsel %vm309, %v356, -inf
    %361 = vmax.xlane.f32.xlu0 %v360
    %v362 = vpop.xlane.xlu0 %361
    %v363 = vsub.f32 %v355, %v359
    %v364 = vsub.f32 %v356, %v362
    %v365 = vmul.f32 %v363, 1.442695
    %v366 = vpow.pop %v365
    %v367 = vmul.f32 %v364, 1.442695
    %v368 = vpow.pop %v367
    %v369 = vsel %vm309, %v366, 0.0
    %370 = vadd.xlane.f32.xlu0 %v369
    %v371 = vpop.xlane.xlu0 %370
    %v372 = vsel %vm309, %v368, 0.0
    %373 = vadd.xlane.f32.xlu0 %v372
    %v374 = vpop.xlane.xlu0 %373
    %v375 = vrcp.pop %v371
    %v376 = vmul.f32 %v371, %v375
    %v377 = vsub.f32 1.0, %v376
    %v378 = vmul.f32 %v375, %v377
    %v379 = vadd.f32 %v375, %v378
    %vm380 = vweird.f32 %v371
    %vm381 = vweird.f32 %v375
    %vm382 = vmor %vm380, %vm381
    %v383 = vsel %vm382, %v375, %v379
    %v384 = vand.u32 2147483647, %v371
    %vm385 = vcmp.eq.f32.partialorder %v384, 8.507059e+37
    %v386 = vand.u32 %v371, 2147483648
    %v387 = vor.u32 1.1754944e-38, %v386
    %v388 = vsel %vm385, %v387, %v383
    %v389 = vmul.f32 %v366, %v388
    %v390 = vrcp.pop %v374
    %v391 = vmul.f32 %v374, %v390
    %v392 = vsub.f32 1.0, %v391
    %v393 = vmul.f32 %v390, %v392
    %v394 = vadd.f32 %v390, %v393
    %vm395 = vweird.f32 %v374
    %vm396 = vweird.f32 %v390
    %vm397 = vmor %vm395, %vm396
    %v398 = vsel %vm397, %v390, %v394
    %v399 = vand.u32 2147483647, %v374
    %vm400 = vcmp.eq.f32.partialorder %v399, 8.507059e+37
    %v401 = vand.u32 %v374, 2147483648
    %v402 = vor.u32 1.1754944e-38, %v401
    %v403 = vsel %vm400, %v402, %v398
    %v404 = vmul.f32 %v368, %v403
    %v405 = vpack.c.bf16 %v389, %v389
    %v406 = vpack.c.bf16 %v404, %v404
    %407 = vrot.lane.b32.xlu0 %v306, 64
    %v408 = vpop.permute.xlu0 %407
    %v410 = vsel %vm309, %v405, 0
    %vm412 = vcmask 1043456
    %v414 = vsel %vm412, %v408, 0
    %416 = vmatpush.bf16.msra.mxu0 0
    %417 = vmatpush.bf16.msra.mxu0 0
    %418 = vmatpush.bf16.msra.mxu0 0
    %419 = vmatpush.bf16.msra.mxu0 0
    %420 = vmatpush.bf16.msra.mxu0 0
    %421 = vmatpush.bf16.msra.mxu0 0
    %422 = vmatpush.bf16.msra.mxu0 0
    %423 = vmatpush.bf16.msra.mxu0 %v414
    %424 = vmatmul.bf16.gmra.mxu0 %v410
    %v425 = vpop.f32.mrf.mxu0
    %v426 = vadd.f32 0.0, %v425
    %v427 = vpop.f32.mrf.mxu0
    %428 = vdwg.mxu0
    %429 = vrot.lane.b32.xlu0 %v331, 64
    %v430 = vpop.permute.xlu0 %429
    %v432 = vsel %vm309, %v406, 0
    %v435 = vsel %vm412, %v430, 0
    %437 = vmatpush.bf16.msra.mxu0 0
    %438 = vmatpush.bf16.msra.mxu0 0
    %439 = vmatpush.bf16.msra.mxu0 0
    %440 = vmatpush.bf16.msra.mxu0 0
    %441 = vmatpush.bf16.msra.mxu0 0
    %442 = vmatpush.bf16.msra.mxu0 0
    %443 = vmatpush.bf16.msra.mxu0 0
    %444 = vmatpush.bf16.msra.mxu0 %v435
    %445 = vmatmul.bf16.gmra.mxu0 %v432
    %v446 = vpop.f32.mrf.mxu0
    %v447 = vadd.f32 0.0, %v446
    %v448 = vpop.f32.mrf.mxu0
    %449 = vdwg.mxu0
    %v450 = vpack.c.bf16 %v291, %v291
    %v451 = vpack.c.bf16 %v447, %v426
    %452 = vrot.lane.b32.xlu0 %v306, 120
    %v453 = vpop.permute.xlu0 %452
    %454 = vrot.lane.b32.xlu0 %v306, 88
    %v455 = vpop.permute.xlu0 %454
    %v457 = vsel %vm309, %v453, 0
    %v460 = vsel %vm309, %v455, 0
    %462 = vmatpush.bf16.xpose.msra.mxu0 0
    %463 = vmatpush.bf16.xpose.msra.mxu0 0
    %464 = vmatpush.bf16.xpose.msra.mxu0 0
    %465 = vmatpush.bf16.xpose.msra.mxu0 0
    %466 = vmatpush.bf16.xpose.msra.mxu0 0
    %467 = vmatpush.bf16.xpose.msra.mxu0 0
    %468 = vmatpush.bf16.xpose.msra.mxu0 0
    %469 = vmatpush.bf16.xpose.msra.mxu0 %v460
    %470 = vmatmul.bf16.gmra.mxu0 %v457
    %v471 = vpop.f32.mrf.mxu0
    %v472 = vadd.f32 0.0, %v471
    %v473 = vpop.f32.mrf.mxu0
    %474 = vdwg.mxu0
    %475 = vrot.lane.b32.xlu0 %v331, 120
    %v476 = vpop.permute.xlu0 %475
    %477 = vrot.lane.b32.xlu0 %v331, 88
    %v478 = vpop.permute.xlu0 %477
    %v480 = vsel %vm309, %v476, 0
    %v483 = vsel %vm309, %v478, 0
    %485 = vmatpush.bf16.xpose.msra.mxu0 0
    %486 = vmatpush.bf16.xpose.msra.mxu0 0
    %487 = vmatpush.bf16.xpose.msra.mxu0 0
    %488 = vmatpush.bf16.xpose.msra.mxu0 0
    %489 = vmatpush.bf16.xpose.msra.mxu0 0
    %490 = vmatpush.bf16.xpose.msra.mxu0 0
    %491 = vmatpush.bf16.xpose.msra.mxu0 0
    %492 = vmatpush.bf16.xpose.msra.mxu0 %v483
    %493 = vmatmul.bf16.gmra.mxu0 %v480
    %v494 = vpop.f32.mrf.mxu0
    %v495 = vadd.f32 0.0, %v494
    %v496 = vpop.f32.mrf.mxu0
    %497 = vdwg.mxu0
    %v498 = vmul.f32 %v472, 0.35355338
    %v499 = vmul.f32 %v495, 0.35355338
    %v500 = vadd.f32 %v498, %v301
    %v501 = vadd.f32 %v499, %v301
    %v502 = vsel %vm309, %v500, -inf
    %503 = vmax.xlane.f32.xlu0 %v502
    %v504 = vpop.xlane.xlu0 %503
    %v505 = vsel %vm309, %v501, -inf
    %506 = vmax.xlane.f32.xlu0 %v505
    %v507 = vpop.xlane.xlu0 %506
    %v508 = vsub.f32 %v500, %v504
    %v509 = vsub.f32 %v501, %v507
    %v510 = vmul.f32 %v508, 1.442695
    %v511 = vpow.pop %v510
    %v512 = vmul.f32 %v509, 1.442695
    %v513 = vpow.pop %v512
    %v514 = vsel %vm309, %v511, 0.0
    %515 = vadd.xlane.f32.xlu0 %v514
    %v516 = vpop.xlane.xlu0 %515
    %v517 = vsel %vm309, %v513, 0.0
    %518 = vadd.xlane.f32.xlu0 %v517
    %v519 = vpop.xlane.xlu0 %518
    %v520 = vrcp.pop %v516
    %v521 = vmul.f32 %v516, %v520
    %v522 = vsub.f32 1.0, %v521
    %v523 = vmul.f32 %v520, %v522
    %v524 = vadd.f32 %v520, %v523
    %vm525 = vweird.f32 %v516
    %vm526 = vweird.f32 %v520
    %vm527 = vmor %vm525, %vm526
    %v528 = vsel %vm527, %v520, %v524
    %v529 = vand.u32 2147483647, %v516
    %vm530 = vcmp.eq.f32.partialorder %v529, 8.507059e+37
    %v531 = vand.u32 %v516, 2147483648
    %v532 = vor.u32 1.1754944e-38, %v531
    %v533 = vsel %vm530, %v532, %v528
    %v534 = vmul.f32 %v511, %v533
    %v535 = vrcp.pop %v519
    %v536 = vmul.f32 %v519, %v535
    %v537 = vsub.f32 1.0, %v536
    %v538 = vmul.f32 %v535, %v537
    %v539 = vadd.f32 %v535, %v538
    %vm540 = vweird.f32 %v519
    %vm541 = vweird.f32 %v535
    %vm542 = vmor %vm540, %vm541
    %v543 = vsel %vm542, %v535, %v539
    %v544 = vand.u32 2147483647, %v519
    %vm545 = vcmp.eq.f32.partialorder %v544, 8.507059e+37
    %v546 = vand.u32 %v519, 2147483648
    %v547 = vor.u32 1.1754944e-38, %v546
    %v548 = vsel %vm545, %v547, %v543
    %v549 = vmul.f32 %v513, %v548
    %v550 = vpack.c.bf16 %v534, %v534
    %v551 = vpack.c.bf16 %v549, %v549
    %552 = vrot.lane.b32.xlu0 %v306, 56
    %v553 = vpop.permute.xlu0 %552
    %v555 = vsel %vm309, %v550, 0
    %v558 = vsel %vm412, %v553, 0
    %560 = vmatpush.bf16.msra.mxu0 0
    %561 = vmatpush.bf16.msra.mxu0 0
    %562 = vmatpush.bf16.msra.mxu0 0
    %563 = vmatpush.bf16.msra.mxu0 0
    %564 = vmatpush.bf16.msra.mxu0 0
    %565 = vmatpush.bf16.msra.mxu0 0
    %566 = vmatpush.bf16.msra.mxu0 0
    %567 = vmatpush.bf16.msra.mxu0 %v558
    %568 = vmatmul.bf16.gmra.mxu0 %v555
    %v569 = vpop.f32.mrf.mxu0
    %v570 = vadd.f32 0.0, %v569
    %v571 = vpop.f32.mrf.mxu0
    %572 = vdwg.mxu0
    %573 = vrot.lane.b32.xlu0 %v331, 56
    %v574 = vpop.permute.xlu0 %573
    %v576 = vsel %vm309, %v551, 0
    %v579 = vsel %vm412, %v574, 0
    %581 = vmatpush.bf16.msra.mxu0 0
    %582 = vmatpush.bf16.msra.mxu0 0
    %583 = vmatpush.bf16.msra.mxu0 0
    %584 = vmatpush.bf16.msra.mxu0 0
    %585 = vmatpush.bf16.msra.mxu0 0
    %586 = vmatpush.bf16.msra.mxu0 0
    %587 = vmatpush.bf16.msra.mxu0 0
    %588 = vmatpush.bf16.msra.mxu0 %v579
    %589 = vmatmul.bf16.gmra.mxu0 %v576
    %v590 = vpop.f32.mrf.mxu0
    %v591 = vadd.f32 0.0, %v590
    %v592 = vpop.f32.mrf.mxu0
    %593 = vdwg.mxu0
    %v594 = vpack.c.bf16 %v292, %v292
    %v595 = vpack.c.bf16 %v591, %v570
    %v597 = vsel %vm309, %v595, 0
    %v600 = vsel %vm412, %v594, 0
    %602 = vmatpush.bf16.msra.mxu0 0
    %603 = vmatpush.bf16.msra.mxu0 0
    %604 = vmatpush.bf16.msra.mxu0 0
    %605 = vmatpush.bf16.msra.mxu0 0
    %606 = vmatpush.bf16.msra.mxu0 0
    %607 = vmatpush.bf16.msra.mxu0 0
    %608 = vmatpush.bf16.msra.mxu0 0
    %609 = vmatpush.bf16.msra.mxu0 %v600
    %610 = vmatmul.bf16.gmra.mxu0 %v597
    %v611 = vpop.f32.mrf.mxu0
    %v612 = vadd.f32 0.0, %v611
    %v613 = vpop.f32.mrf.mxu0
    %v614 = vadd.f32 0.0, %v613
    %615 = vdwg.mxu0
    %v617 = vsel %vm309, %v451, 0
    %v620 = vsel %vm412, %v450, 0
    %622 = vmatpush.bf16.msra.mxu0 0
    %623 = vmatpush.bf16.msra.mxu0 0
    %624 = vmatpush.bf16.msra.mxu0 0
    %625 = vmatpush.bf16.msra.mxu0 0
    %626 = vmatpush.bf16.msra.mxu0 0
    %627 = vmatpush.bf16.msra.mxu0 0
    %628 = vmatpush.bf16.msra.mxu0 0
    %629 = vmatpush.bf16.msra.mxu0 %v620
    %630 = vmatmul.bf16.gmra.mxu0 %v617
    %v631 = vpop.f32.mrf.mxu0
    %v632 = vadd.f32 %v612, %v631
    %v633 = vpop.f32.mrf.mxu0
    %v634 = vadd.f32 %v614, %v633
    %635 = vdwg.mxu0
    %636 = vrot.lane.b32.xlu0 %v306, 112
    %v637 = vpop.permute.xlu0 %636
    %638 = vrot.lane.b32.xlu0 %v306, 80
    %v639 = vpop.permute.xlu0 %638
    %v641 = vsel %vm309, %v637, 0
    %v644 = vsel %vm309, %v639, 0
    %646 = vmatpush.bf16.xpose.msra.mxu0 0
    %647 = vmatpush.bf16.xpose.msra.mxu0 0
    %648 = vmatpush.bf16.xpose.msra.mxu0 0
    %649 = vmatpush.bf16.xpose.msra.mxu0 0
    %650 = vmatpush.bf16.xpose.msra.mxu0 0
    %651 = vmatpush.bf16.xpose.msra.mxu0 0
    %652 = vmatpush.bf16.xpose.msra.mxu0 0
    %653 = vmatpush.bf16.xpose.msra.mxu0 %v644
    %654 = vmatmul.bf16.gmra.mxu0 %v641
    %v655 = vpop.f32.mrf.mxu0
    %v656 = vadd.f32 0.0, %v655
    %v657 = vpop.f32.mrf.mxu0
    %658 = vdwg.mxu0
    %659 = vrot.lane.b32.xlu0 %v331, 112
    %v660 = vpop.permute.xlu0 %659
    %661 = vrot.lane.b32.xlu0 %v331, 80
    %v662 = vpop.permute.xlu0 %661
    %v664 = vsel %vm309, %v660, 0
    %v667 = vsel %vm309, %v662, 0
    %669 = vmatpush.bf16.xpose.msra.mxu0 0
    %670 = vmatpush.bf16.xpose.msra.mxu0 0
    %671 = vmatpush.bf16.xpose.msra.mxu0 0
    %672 = vmatpush.bf16.xpose.msra.mxu0 0
    %673 = vmatpush.bf16.xpose.msra.mxu0 0
    %674 = vmatpush.bf16.xpose.msra.mxu0 0
    %675 = vmatpush.bf16.xpose.msra.mxu0 0
    %676 = vmatpush.bf16.xpose.msra.mxu0 %v667
    %677 = vmatmul.bf16.gmra.mxu0 %v664
    %v678 = vpop.f32.mrf.mxu0
    %v679 = vadd.f32 0.0, %v678
    %v680 = vpop.f32.mrf.mxu0
    %681 = vdwg.mxu0
    %v682 = vmul.f32 %v656, 0.35355338
    %v683 = vmul.f32 %v679, 0.35355338
    %v684 = vadd.f32 %v682, %v301
    %v685 = vadd.f32 %v683, %v301
    %v686 = vsel %vm309, %v684, -inf
    %687 = vmax.xlane.f32.xlu0 %v686
    %v688 = vpop.xlane.xlu0 %687
    %v689 = vsel %vm309, %v685, -inf
    %690 = vmax.xlane.f32.xlu0 %v689
    %v691 = vpop.xlane.xlu0 %690
    %v692 = vsub.f32 %v684, %v688
    %v693 = vsub.f32 %v685, %v691
    %v694 = vmul.f32 %v692, 1.442695
    %v695 = vpow.pop %v694
    %v696 = vmul.f32 %v693, 1.442695
    %v697 = vpow.pop %v696
    %v698 = vsel %vm309, %v695, 0.0
    %699 = vadd.xlane.f32.xlu0 %v698
    %v700 = vpop.xlane.xlu0 %699
    %v701 = vsel %vm309, %v697, 0.0
    %702 = vadd.xlane.f32.xlu0 %v701
    %v703 = vpop.xlane.xlu0 %702
    %v704 = vrcp.pop %v700
    %v705 = vmul.f32 %v700, %v704
    %v706 = vsub.f32 1.0, %v705
    %v707 = vmul.f32 %v704, %v706
    %v708 = vadd.f32 %v704, %v707
    %vm709 = vweird.f32 %v700
    %vm710 = vweird.f32 %v704
    %vm711 = vmor %vm709, %vm710
    %v712 = vsel %vm711, %v704, %v708
    %v713 = vand.u32 2147483647, %v700
    %vm714 = vcmp.eq.f32.partialorder %v713, 8.507059e+37
    %v715 = vand.u32 %v700, 2147483648
    %v716 = vor.u32 1.1754944e-38, %v715
    %v717 = vsel %vm714, %v716, %v712
    %v718 = vmul.f32 %v695, %v717
    %v719 = vrcp.pop %v703
    %v720 = vmul.f32 %v703, %v719
    %v721 = vsub.f32 1.0, %v720
    %v722 = vmul.f32 %v719, %v721
    %v723 = vadd.f32 %v719, %v722
    %vm724 = vweird.f32 %v703
    %vm725 = vweird.f32 %v719
    %vm726 = vmor %vm724, %vm725
    %v727 = vsel %vm726, %v719, %v723
    %v728 = vand.u32 2147483647, %v703
    %vm729 = vcmp.eq.f32.partialorder %v728, 8.507059e+37
    %v730 = vand.u32 %v703, 2147483648
    %v731 = vor.u32 1.1754944e-38, %v730
    %v732 = vsel %vm729, %v731, %v727
    %v733 = vmul.f32 %v697, %v732
    %v734 = vpack.c.bf16 %v718, %v718
    %v735 = vpack.c.bf16 %v733, %v733
    %736 = vrot.lane.b32.xlu0 %v306, 48
    %v737 = vpop.permute.xlu0 %736
    %v739 = vsel %vm309, %v734, 0
    %v742 = vsel %vm412, %v737, 0
    %744 = vmatpush.bf16.msra.mxu0 0
    %745 = vmatpush.bf16.msra.mxu0 0
    %746 = vmatpush.bf16.msra.mxu0 0
    %747 = vmatpush.bf16.msra.mxu0 0
    %748 = vmatpush.bf16.msra.mxu0 0
    %749 = vmatpush.bf16.msra.mxu0 0
    %750 = vmatpush.bf16.msra.mxu0 0
    %751 = vmatpush.bf16.msra.mxu0 %v742
    %752 = vmatmul.bf16.gmra.mxu0 %v739
    %v753 = vpop.f32.mrf.mxu0
    %v754 = vadd.f32 0.0, %v753
    %v755 = vpop.f32.mrf.mxu0
    %756 = vdwg.mxu0
    %757 = vrot.lane.b32.xlu0 %v331, 48
    %v758 = vpop.permute.xlu0 %757
    %v760 = vsel %vm309, %v735, 0
    %v763 = vsel %vm412, %v758, 0
    %765 = vmatpush.bf16.msra.mxu0 0
    %766 = vmatpush.bf16.msra.mxu0 0
    %767 = vmatpush.bf16.msra.mxu0 0
    %768 = vmatpush.bf16.msra.mxu0 0
    %769 = vmatpush.bf16.msra.mxu0 0
    %770 = vmatpush.bf16.msra.mxu0 0
    %771 = vmatpush.bf16.msra.mxu0 0
    %772 = vmatpush.bf16.msra.mxu0 %v763
    %773 = vmatmul.bf16.gmra.mxu0 %v760
    %v774 = vpop.f32.mrf.mxu0
    %v775 = vadd.f32 0.0, %v774
    %v776 = vpop.f32.mrf.mxu0
    %777 = vdwg.mxu0
    %v778 = vpack.c.bf16 %v293, %v293
    %v779 = vpack.c.bf16 %v775, %v754
    %v781 = vsel %vm309, %v779, 0
    %v784 = vsel %vm412, %v778, 0
    %786 = vmatpush.bf16.msra.mxu0 0
    %787 = vmatpush.bf16.msra.mxu0 0
    %788 = vmatpush.bf16.msra.mxu0 0
    %789 = vmatpush.bf16.msra.mxu0 0
    %790 = vmatpush.bf16.msra.mxu0 0
    %791 = vmatpush.bf16.msra.mxu0 0
    %792 = vmatpush.bf16.msra.mxu0 0
    %793 = vmatpush.bf16.msra.mxu0 %v784
    %794 = vmatmul.bf16.gmra.mxu0 %v781
    %v795 = vpop.f32.mrf.mxu0
    %v796 = vadd.f32 0.0, %v795
    %v797 = vpop.f32.mrf.mxu0
    %v798 = vadd.f32 0.0, %v797
    %799 = vdwg.mxu0
    %v800 = vadd.f32 %v632, %v796
    %v801 = vadd.f32 %v634, %v798
    %802 = vrot.lane.b32.xlu0 %v306, 104
    %v803 = vpop.permute.xlu0 %802
    %804 = vrot.lane.b32.xlu0 %v306, 72
    %v805 = vpop.permute.xlu0 %804
    %v807 = vsel %vm309, %v803, 0
    %v810 = vsel %vm309, %v805, 0
    %812 = vmatpush.bf16.xpose.msra.mxu0 0
    %813 = vmatpush.bf16.xpose.msra.mxu0 0
    %814 = vmatpush.bf16.xpose.msra.mxu0 0
    %815 = vmatpush.bf16.xpose.msra.mxu0 0
    %816 = vmatpush.bf16.xpose.msra.mxu0 0
    %817 = vmatpush.bf16.xpose.msra.mxu0 0
    %818 = vmatpush.bf16.xpose.msra.mxu0 0
    %819 = vmatpush.bf16.xpose.msra.mxu0 %v810
    %820 = vmatmul.bf16.gmra.mxu0 %v807
    %v821 = vpop.f32.mrf.mxu0
    %v822 = vadd.f32 0.0, %v821
    %v823 = vpop.f32.mrf.mxu0
    %824 = vdwg.mxu0
    %825 = vrot.lane.b32.xlu0 %v331, 104
    %v826 = vpop.permute.xlu0 %825
    %827 = vrot.lane.b32.xlu0 %v331, 72
    %v828 = vpop.permute.xlu0 %827
    %v830 = vsel %vm309, %v826, 0
    %v833 = vsel %vm309, %v828, 0
    %835 = vmatpush.bf16.xpose.msra.mxu0 0
    %836 = vmatpush.bf16.xpose.msra.mxu0 0
    %837 = vmatpush.bf16.xpose.msra.mxu0 0
    %838 = vmatpush.bf16.xpose.msra.mxu0 0
    %839 = vmatpush.bf16.xpose.msra.mxu0 0
    %840 = vmatpush.bf16.xpose.msra.mxu0 0
    %841 = vmatpush.bf16.xpose.msra.mxu0 0
    %842 = vmatpush.bf16.xpose.msra.mxu0 %v833
    %843 = vmatmul.bf16.gmra.mxu0 %v830
    %v844 = vpop.f32.mrf.mxu0
    %v845 = vadd.f32 0.0, %v844
    %v846 = vpop.f32.mrf.mxu0
    %847 = vdwg.mxu0
    %v848 = vmul.f32 %v822, 0.35355338
    %v849 = vmul.f32 %v845, 0.35355338
    %v850 = vadd.f32 %v848, %v301
    %v851 = vadd.f32 %v849, %v301
    %v852 = vsel %vm309, %v850, -inf
    %853 = vmax.xlane.f32.xlu0 %v852
    %v854 = vpop.xlane.xlu0 %853
    %v855 = vsel %vm309, %v851, -inf
    %856 = vmax.xlane.f32.xlu0 %v855
    %v857 = vpop.xlane.xlu0 %856
    %v858 = vsub.f32 %v850, %v854
    %v859 = vsub.f32 %v851, %v857
    %v860 = vmul.f32 %v858, 1.442695
    %v861 = vpow.pop %v860
    %v862 = vmul.f32 %v859, 1.442695
    %v863 = vpow.pop %v862
    %v864 = vsel %vm309, %v861, 0.0
    %865 = vadd.xlane.f32.xlu0 %v864
    %v866 = vpop.xlane.xlu0 %865
    %v867 = vsel %vm309, %v863, 0.0
    %868 = vadd.xlane.f32.xlu0 %v867
    %v869 = vpop.xlane.xlu0 %868
    %v870 = vrcp.pop %v866
    %v871 = vmul.f32 %v866, %v870
    %v872 = vsub.f32 1.0, %v871
    %v873 = vmul.f32 %v870, %v872
    %v874 = vadd.f32 %v870, %v873
    %vm875 = vweird.f32 %v866
    %vm876 = vweird.f32 %v870
    %vm877 = vmor %vm875, %vm876
    %v878 = vsel %vm877, %v870, %v874
    %v879 = vand.u32 2147483647, %v866
    %vm880 = vcmp.eq.f32.partialorder %v879, 8.507059e+37
    %v881 = vand.u32 %v866, 2147483648
    %v882 = vor.u32 1.1754944e-38, %v881
    %v883 = vsel %vm880, %v882, %v878
    %v884 = vmul.f32 %v861, %v883
    %v885 = vrcp.pop %v869
    %v886 = vmul.f32 %v869, %v885
    %v887 = vsub.f32 1.0, %v886
    %v888 = vmul.f32 %v885, %v887
    %v889 = vadd.f32 %v885, %v888
    %vm890 = vweird.f32 %v869
    %vm891 = vweird.f32 %v885
    %vm892 = vmor %vm890, %vm891
    %v893 = vsel %vm892, %v885, %v889
    %v894 = vand.u32 2147483647, %v869
    %vm895 = vcmp.eq.f32.partialorder %v894, 8.507059e+37
    %v896 = vand.u32 %v869, 2147483648
    %v897 = vor.u32 1.1754944e-38, %v896
    %v898 = vsel %vm895, %v897, %v893
    %v899 = vmul.f32 %v863, %v898
    %v900 = vpack.c.bf16 %v884, %v884
    %v901 = vpack.c.bf16 %v899, %v899
    %902 = vrot.lane.b32.xlu0 %v306, 40
    %v903 = vpop.permute.xlu0 %902
    %v905 = vsel %vm309, %v900, 0
    %v908 = vsel %vm412, %v903, 0
    %910 = vmatpush.bf16.msra.mxu0 0
    %911 = vmatpush.bf16.msra.mxu0 0
    %912 = vmatpush.bf16.msra.mxu0 0
    %913 = vmatpush.bf16.msra.mxu0 0
    %914 = vmatpush.bf16.msra.mxu0 0
    %915 = vmatpush.bf16.msra.mxu0 0
    %916 = vmatpush.bf16.msra.mxu0 0
    %917 = vmatpush.bf16.msra.mxu0 %v908
    %918 = vmatmul.bf16.gmra.mxu0 %v905
    %v919 = vpop.f32.mrf.mxu0
    %v920 = vadd.f32 0.0, %v919
    %v921 = vpop.f32.mrf.mxu0
    %922 = vdwg.mxu0
    %923 = vrot.lane.b32.xlu0 %v331, 40
    %v924 = vpop.permute.xlu0 %923
    %v926 = vsel %vm309, %v901, 0
    %v929 = vsel %vm412, %v924, 0
    %931 = vmatpush.bf16.msra.mxu0 0
    %932 = vmatpush.bf16.msra.mxu0 0
    %933 = vmatpush.bf16.msra.mxu0 0
    %934 = vmatpush.bf16.msra.mxu0 0
    %935 = vmatpush.bf16.msra.mxu0 0
    %936 = vmatpush.bf16.msra.mxu0 0
    %937 = vmatpush.bf16.msra.mxu0 0
    %938 = vmatpush.bf16.msra.mxu0 %v929
    %939 = vmatmul.bf16.gmra.mxu0 %v926
    %v940 = vpop.f32.mrf.mxu0
    %v941 = vadd.f32 0.0, %v940
    %v942 = vpop.f32.mrf.mxu0
    %943 = vdwg.mxu0
    %v944 = vpack.c.bf16 %v294, %v294
    %v945 = vpack.c.bf16 %v941, %v920
    %v947 = vsel %vm309, %v945, 0
    %v950 = vsel %vm412, %v944, 0
    %952 = vmatpush.bf16.msra.mxu0 0
    %953 = vmatpush.bf16.msra.mxu0 0
    %954 = vmatpush.bf16.msra.mxu0 0
    %955 = vmatpush.bf16.msra.mxu0 0
    %956 = vmatpush.bf16.msra.mxu0 0
    %957 = vmatpush.bf16.msra.mxu0 0
    %958 = vmatpush.bf16.msra.mxu0 0
    %959 = vmatpush.bf16.msra.mxu0 %v950
    %960 = vmatmul.bf16.gmra.mxu0 %v947
    %v961 = vpop.f32.mrf.mxu0
    %v962 = vadd.f32 0.0, %v961
    %v963 = vpop.f32.mrf.mxu0
    %v964 = vadd.f32 0.0, %v963
    %965 = vdwg.mxu0
    %v966 = vadd.f32 %v800, %v962
    %v967 = vadd.f32 %v801, %v964
    %v969 = vperm.slane %v295, 0
    %v971 = vadd.f32 %v966, %v969
    %v972 = vadd.f32 %v967, %v969
    %v973 = vadd.f32 %v248, %v971
    %v974 = vadd.f32 %v249, %v972
    %v975 = vld [vmem:[#allocation6] sm:$0x1]
    %v976 = vld [vmem:[#allocation7] sm:$0x1]
    %v977 = vsel %vm273, %v973, 0.0
    %978 = vadd.xlane.f32.xlu0 %v977
    %v979 = vpop.xlane.xlu0 %978
    %v980 = vsel %vm273, %v974, 0.0
    %981 = vadd.xlane.f32.xlu0 %v980
    %v982 = vpop.xlane.xlu0 %981
    %v983 = vrcp.pop 32.0
    %v984 = vmul.f32 32.0, %v983
    %v985 = vsub.f32 1.0, %v984
    %v986 = vmul.f32 %v983, %v985
    %v987 = vadd.f32 %v983, %v986
    %vm988 = vweird.f32 %v983
    %v989 = vsel %vm988, %v983, %v987
    %v990 = vmul.f32 %v979, %v989
    %v991 = vmul.f32 %v982, %v989
    %v992 = vsub.f32 %v973, %v990
    %v993 = vsub.f32 %v974, %v991
    %v994 = vmul.f32 %v992, %v992
    %v995 = vmul.f32 %v993, %v993
    %v996 = vsel %vm273, %v994, 0.0
    %997 = vadd.xlane.f32.xlu0 %v996
    %v998 = vpop.xlane.xlu0 %997
    %v999 = vsel %vm273, %v995, 0.0
    %1000 = vadd.xlane.f32.xlu0 %v999
    %v1001 = vpop.xlane.xlu0 %1000
    %v1002 = vmul.f32 %v998, %v989
    %v1003 = vmul.f32 %v1001, %v989
    %v1004 = vadd.f32 %v1002, 1e-05
    %v1005 = vadd.f32 %v1003, 1e-05
    %v1006 = vrsqrt.pop %v1004
    %v1007 = vmul.f32 %v1006, %v1004
    %v1008 = vmul.f32 %v1007, %v1006
    %v1009 = vmul.f32 0.5, %v1008
    %v1010 = vsub.f32 1.5, %v1009
    %v1011 = vmul.f32 %v1006, %v1010
    %vm1012 = vweird.f32 %v1004
    %vm1013 = vweird.f32 %v1006
    %vm1014 = vmor %vm1012, %vm1013
    %v1015 = vsel %vm1014, %v1006, %v1011
    %v1016 = vrsqrt.pop %v1005
    %v1017 = vmul.f32 %v1016, %v1005
    %v1018 = vmul.f32 %v1017, %v1016
    %v1019 = vmul.f32 0.5, %v1018
    %v1020 = vsub.f32 1.5, %v1019
    %v1021 = vmul.f32 %v1016, %v1020
    %vm1022 = vweird.f32 %v1005
    %vm1023 = vweird.f32 %v1016
    %vm1024 = vmor %vm1022, %vm1023
    %v1025 = vsel %vm1024, %v1016, %v1021
    %v1026 = vmul.f32 %v992, %v1015
    %v1027 = vmul.f32 %v993, %v1025
    %v1029 = vperm.slane %v975, 0
    %v1031 = vmul.f32 %v1026, %v1029
    %v1032 = vmul.f32 %v1027, %v1029
    %v1034 = vperm.slane %v976, 0
    %v1036 = vadd.f32 %v1031, %v1034
    %v1037 = vadd.f32 %v1032, %v1034
    %v1038 = vpack.c.bf16 %v1037, %v1036
    %v1039 = vld [vmem:[%s8] sm:$0xf]
    %v1040 = vld [vmem:[%s8 + $0x4] sm:$0xf]
    %v1041 = vld [vmem:[%s8 + $0x8] sm:$0xf]
    %v1042 = vld [vmem:[%s8 + $0xc] sm:$0xf]
    %v1043 = vld [vmem:[#allocation9] sm:$0x1]
    %v1045 = vperm.slane %v1043, 0
    %v1051 = vunpack.c.l.b16 %v1039
    %v1052 = vunpack.c.l.b16 %v1040
    %v1053 = vunpack.c.l.b16 %v1041
    %v1054 = vunpack.c.l.b16 %v1042
    %v1055 = vpack.c.b16 %v1052, %v1051
    %v1056 = vpack.c.b16 %v1054, %v1053
    %v1060 = vsel %vm273, %v1038, 0
    %1062 = vmatpush.bf16.msra.mxu0 0
    %1063 = vmatpush.bf16.msra.mxu0 0
    %1064 = vmatpush.bf16.msra.mxu0 0
    %1065 = vmatpush.bf16.msra.mxu0 0
    %1066 = vmatpush.bf16.msra.mxu0 0
    %1067 = vmatpush.bf16.msra.mxu0 0
    %1068 = vmatpush.bf16.msra.mxu0 %v1056
    %1069 = vmatpush.bf16.msra.mxu0 %v1055
    %1070 = vmatmul.bf16.gmra.mxu0 %v1060
    %v1071 = vpop.f32.mrf.mxu0
    %v1072 = vadd.f32 %v1045, %v1071
    %v1073 = vpop.f32.mrf.mxu0
    %v1074 = vadd.f32 %v1045, %v1073
    %1075 = vdwg.mxu0
    %v1076 = vpack.c.bf16 %v251, %v250
    %v1077 = vld [vmem:[%s10] sm:$0xf]
    %v1078 = vld [vmem:[%s10 + $0x4] sm:$0xf]
    %v1079 = vld [vmem:[%s10 + $0x8] sm:$0xf]
    %v1080 = vld [vmem:[%s10 + $0xc] sm:$0xf]
    %v1081 = vld [vmem:[#allocation10] sm:$0x1]
    %v1083 = vperm.slane %v1081, 0
    %v1089 = vunpack.c.l.b16 %v1077
    %v1090 = vunpack.c.l.b16 %v1078
    %v1091 = vunpack.c.l.b16 %v1079
    %v1092 = vunpack.c.l.b16 %v1080
    %v1093 = vpack.c.b16 %v1090, %v1089
    %v1094 = vpack.c.b16 %v1092, %v1091
    %v1098 = vsel %vm273, %v1076, 0
    %1100 = vmatpush.bf16.msra.mxu0 0
    %1101 = vmatpush.bf16.msra.mxu0 0
    %1102 = vmatpush.bf16.msra.mxu0 0
    %1103 = vmatpush.bf16.msra.mxu0 0
    %1104 = vmatpush.bf16.msra.mxu0 0
    %1105 = vmatpush.bf16.msra.mxu0 0
    %1106 = vmatpush.bf16.msra.mxu0 %v1094
    %1107 = vmatpush.bf16.msra.mxu0 %v1093
    %1108 = vmatmul.bf16.gmra.mxu0 %v1098
    %v1109 = vpop.f32.mrf.mxu0
    %v1110 = vadd.f32 %v1083, %v1109
    %v1111 = vpop.f32.mrf.mxu0
    %v1112 = vadd.f32 %v1083, %v1111
    %1113 = vdwg.mxu0
    %v1114 = vld [vmem:[%s12] sm:$0xff]
    %v1115 = vld [vmem:[%s12 + $0x8] sm:$0xff]
    %v1116 = vld [vmem:[%s12 + $0x10] sm:$0xff]
    %v1117 = vld [vmem:[%s12 + $0x18] sm:$0xff]
    %v1118 = vld [vmem:[#allocation12] sm:$0x1]
    %v1119 = vpack.c.bf16 %v1072, %v1072
    %v1120 = vpack.c.bf16 %v1074, %v1074
    %v1121 = vpack.c.bf16 %v1110, %v1110
    %v1122 = vpack.c.bf16 %v1112, %v1112
    %v1124 = vsel %vm309, %v1119, 0
    %v1127 = vsel %vm309, %v1121, 0
    %1129 = vmatpush.bf16.xpose.msra.mxu0 0
    %1130 = vmatpush.bf16.xpose.msra.mxu0 0
    %1131 = vmatpush.bf16.xpose.msra.mxu0 0
    %1132 = vmatpush.bf16.xpose.msra.mxu0 0
    %1133 = vmatpush.bf16.xpose.msra.mxu0 0
    %1134 = vmatpush.bf16.xpose.msra.mxu0 0
    %1135 = vmatpush.bf16.xpose.msra.mxu0 0
    %1136 = vmatpush.bf16.xpose.msra.mxu0 %v1127
    %1137 = vmatmul.bf16.gmra.mxu0 %v1124
    %v1138 = vpop.f32.mrf.mxu0
    %v1139 = vadd.f32 0.0, %v1138
    %v1140 = vpop.f32.mrf.mxu0
    %1141 = vdwg.mxu0
    %v1143 = vsel %vm309, %v1120, 0
    %v1146 = vsel %vm309, %v1122, 0
    %1148 = vmatpush.bf16.xpose.msra.mxu0 0
    %1149 = vmatpush.bf16.xpose.msra.mxu0 0
    %1150 = vmatpush.bf16.xpose.msra.mxu0 0
    %1151 = vmatpush.bf16.xpose.msra.mxu0 0
    %1152 = vmatpush.bf16.xpose.msra.mxu0 0
    %1153 = vmatpush.bf16.xpose.msra.mxu0 0
    %1154 = vmatpush.bf16.xpose.msra.mxu0 0
    %1155 = vmatpush.bf16.xpose.msra.mxu0 %v1146
    %1156 = vmatmul.bf16.gmra.mxu0 %v1143
    %v1157 = vpop.f32.mrf.mxu0
    %v1158 = vadd.f32 0.0, %v1157
    %v1159 = vpop.f32.mrf.mxu0
    %1160 = vdwg.mxu0
    %v1161 = vmul.f32 %v1139, 0.35355338
    %v1162 = vmul.f32 %v1158, 0.35355338
    %v1163 = vsel %vm309, %v1161, -inf
    %1164 = vmax.xlane.f32.xlu0 %v1163
    %v1165 = vpop.xlane.xlu0 %1164
    %v1166 = vsel %vm309, %v1162, -inf
    %1167 = vmax.xlane.f32.xlu0 %v1166
    %v1168 = vpop.xlane.xlu0 %1167
    %v1169 = vsub.f32 %v1161, %v1165
    %v1170 = vsub.f32 %v1162, %v1168
    %v1171 = vmul.f32 %v1169, 1.442695
    %v1172 = vpow.pop %v1171
    %v1173 = vmul.f32 %v1170, 1.442695
    %v1174 = vpow.pop %v1173
    %v1175 = vsel %vm309, %v1172, 0.0
    %1176 = vadd.xlane.f32.xlu0 %v1175
    %v1177 = vpop.xlane.xlu0 %1176
    %v1178 = vsel %vm309, %v1174, 0.0
    %1179 = vadd.xlane.f32.xlu0 %v1178
    %v1180 = vpop.xlane.xlu0 %1179
    %v1181 = vrcp.pop %v1177
    %v1182 = vmul.f32 %v1177, %v1181
    %v1183 = vsub.f32 1.0, %v1182
    %v1184 = vmul.f32 %v1181, %v1183
    %v1185 = vadd.f32 %v1181, %v1184
    %vm1186 = vweird.f32 %v1177
    %vm1187 = vweird.f32 %v1181
    %vm1188 = vmor %vm1186, %vm1187
    %v1189 = vsel %vm1188, %v1181, %v1185
    %v1190 = vand.u32 2147483647, %v1177
    %vm1191 = vcmp.eq.f32.partialorder %v1190, 8.507059e+37
    %v1192 = vand.u32 %v1177, 2147483648
    %v1193 = vor.u32 1.1754944e-38, %v1192
    %v1194 = vsel %vm1191, %v1193, %v1189
    %v1195 = vmul.f32 %v1172, %v1194
    %v1196 = vrcp.pop %v1180
    %v1197 = vmul.f32 %v1180, %v1196
    %v1198 = vsub.f32 1.0, %v1197
    %v1199 = vmul.f32 %v1196, %v1198
    %v1200 = vadd.f32 %v1196, %v1199
    %vm1201 = vweird.f32 %v1180
    %vm1202 = vweird.f32 %v1196
    %vm1203 = vmor %vm1201, %vm1202
    %v1204 = vsel %vm1203, %v1196, %v1200
    %v1205 = vand.u32 2147483647, %v1180
    %vm1206 = vcmp.eq.f32.partialorder %v1205, 8.507059e+37
    %v1207 = vand.u32 %v1180, 2147483648
    %v1208 = vor.u32 1.1754944e-38, %v1207
    %v1209 = vsel %vm1206, %v1208, %v1204
    %v1210 = vmul.f32 %v1174, %v1209
    %v1211 = vpack.c.bf16 %v1195, %v1195
    %v1212 = vpack.c.bf16 %v1210, %v1210
    %v1214 = vunpack.c.l.b16 %v1121
    %v1215 = vpack.c.b16 %v1214, %v1214
    %1216 = vrot.lane.b32.xlu0 %v1215, 96
    %v1217 = vpop.permute.xlu0 %1216
    %v1219 = vsel %vm309, %v1211, 0
    %v1222 = vsel %vm412, %v1217, 0
    %1224 = vmatpush.bf16.msra.mxu0 0
    %1225 = vmatpush.bf16.msra.mxu0 0
    %1226 = vmatpush.bf16.msra.mxu0 0
    %1227 = vmatpush.bf16.msra.mxu0 0
    %1228 = vmatpush.bf16.msra.mxu0 0
    %1229 = vmatpush.bf16.msra.mxu0 0
    %1230 = vmatpush.bf16.msra.mxu0 0
    %1231 = vmatpush.bf16.msra.mxu0 %v1222
    %1232 = vmatmul.bf16.gmra.mxu0 %v1219
    %v1233 = vpop.f32.mrf.mxu0
    %v1234 = vadd.f32 0.0, %v1233
    %v1235 = vpop.f32.mrf.mxu0
    %1236 = vdwg.mxu0
    %v1238 = vunpack.c.l.b16 %v1122
    %v1239 = vpack.c.b16 %v1238, %v1238
    %1240 = vrot.lane.b32.xlu0 %v1239, 96
    %v1241 = vpop.permute.xlu0 %1240
    %v1243 = vsel %vm309, %v1212, 0
    %v1246 = vsel %vm412, %v1241, 0
    %1248 = vmatpush.bf16.msra.mxu0 0
    %1249 = vmatpush.bf16.msra.mxu0 0
    %1250 = vmatpush.bf16.msra.mxu0 0
    %1251 = vmatpush.bf16.msra.mxu0 0
    %1252 = vmatpush.bf16.msra.mxu0 0
    %1253 = vmatpush.bf16.msra.mxu0 0
    %1254 = vmatpush.bf16.msra.mxu0 0
    %1255 = vmatpush.bf16.msra.mxu0 %v1246
    %1256 = vmatmul.bf16.gmra.mxu0 %v1243
    %v1257 = vpop.f32.mrf.mxu0
    %v1258 = vadd.f32 0.0, %v1257
    %v1259 = vpop.f32.mrf.mxu0
    %1260 = vdwg.mxu0
    %v1261 = vpack.c.bf16 %v1114, %v1114
    %v1262 = vpack.c.bf16 %v1258, %v1234
    %v1264 = vunpack.c.l.b16 %v1119
    %v1265 = vpack.c.b16 %v1264, %v1264
    %1266 = vrot.lane.b32.xlu0 %v1265, 120
    %v1267 = vpop.permute.xlu0 %1266
    %1268 = vrot.lane.b32.xlu0 %v1215, 120
    %v1269 = vpop.permute.xlu0 %1268
    %v1271 = vsel %vm309, %v1267, 0
    %v1274 = vsel %vm309, %v1269, 0
    %1276 = vmatpush.bf16.xpose.msra.mxu0 0
    %1277 = vmatpush.bf16.xpose.msra.mxu0 0
    %1278 = vmatpush.bf16.xpose.msra.mxu0 0
    %1279 = vmatpush.bf16.xpose.msra.mxu0 0
    %1280 = vmatpush.bf16.xpose.msra.mxu0 0
    %1281 = vmatpush.bf16.xpose.msra.mxu0 0
    %1282 = vmatpush.bf16.xpose.msra.mxu0 0
    %1283 = vmatpush.bf16.xpose.msra.mxu0 %v1274
    %1284 = vmatmul.bf16.gmra.mxu0 %v1271
    %v1285 = vpop.f32.mrf.mxu0
    %v1286 = vadd.f32 0.0, %v1285
    %v1287 = vpop.f32.mrf.mxu0
    %1288 = vdwg.mxu0
    %v1290 = vunpack.c.l.b16 %v1120
    %v1291 = vpack.c.b16 %v1290, %v1290
    %1292 = vrot.lane.b32.xlu0 %v1291, 120
    %v1293 = vpop.permute.xlu0 %1292
    %1294 = vrot.lane.b32.xlu0 %v1239, 120
    %v1295 = vpop.permute.xlu0 %1294
    %v1297 = vsel %vm309, %v1293, 0
    %v1300 = vsel %vm309, %v1295, 0
    %1302 = vmatpush.bf16.xpose.msra.mxu0 0
    %1303 = vmatpush.bf16.xpose.msra.mxu0 0
    %1304 = vmatpush.bf16.xpose.msra.mxu0 0
    %1305 = vmatpush.bf16.xpose.msra.mxu0 0
    %1306 = vmatpush.bf16.xpose.msra.mxu0 0
    %1307 = vmatpush.bf16.xpose.msra.mxu0 0
    %1308 = vmatpush.bf16.xpose.msra.mxu0 0
    %1309 = vmatpush.bf16.xpose.msra.mxu0 %v1300
    %1310 = vmatmul.bf16.gmra.mxu0 %v1297
    %v1311 = vpop.f32.mrf.mxu0
    %v1312 = vadd.f32 0.0, %v1311
    %v1313 = vpop.f32.mrf.mxu0
    %1314 = vdwg.mxu0
    %v1315 = vmul.f32 %v1286, 0.35355338
    %v1316 = vmul.f32 %v1312, 0.35355338
    %v1317 = vsel %vm309, %v1315, -inf
    %1318 = vmax.xlane.f32.xlu0 %v1317
    %v1319 = vpop.xlane.xlu0 %1318
    %v1320 = vsel %vm309, %v1316, -inf
    %1321 = vmax.xlane.f32.xlu0 %v1320
    %v1322 = vpop.xlane.xlu0 %1321
    %v1323 = vsub.f32 %v1315, %v1319
    %v1324 = vsub.f32 %v1316, %v1322
    %v1325 = vmul.f32 %v1323, 1.442695
    %v1326 = vpow.pop %v1325
    %v1327 = vmul.f32 %v1324, 1.442695
    %v1328 = vpow.pop %v1327
    %v1329 = vsel %vm309, %v1326, 0.0
    %1330 = vadd.xlane.f32.xlu0 %v1329
    %v1331 = vpop.xlane.xlu0 %1330
    %v1332 = vsel %vm309, %v1328, 0.0
    %1333 = vadd.xlane.f32.xlu0 %v1332
    %v1334 = vpop.xlane.xlu0 %1333
    %v1335 = vrcp.pop %v1331
    %v1336 = vmul.f32 %v1331, %v1335
    %v1337 = vsub.f32 1.0, %v1336
    %v1338 = vmul.f32 %v1335, %v1337
    %v1339 = vadd.f32 %v1335, %v1338
    %vm1340 = vweird.f32 %v1331
    %vm1341 = vweird.f32 %v1335
    %vm1342 = vmor %vm1340, %vm1341
    %v1343 = vsel %vm1342, %v1335, %v1339
    %v1344 = vand.u32 2147483647, %v1331
    %vm1345 = vcmp.eq.f32.partialorder %v1344, 8.507059e+37
    %v1346 = vand.u32 %v1331, 2147483648
    %v1347 = vor.u32 1.1754944e-38, %v1346
    %v1348 = vsel %vm1345, %v1347, %v1343
    %v1349 = vmul.f32 %v1326, %v1348
    %v1350 = vrcp.pop %v1334
    %v1351 = vmul.f32 %v1334, %v1350
    %v1352 = vsub.f32 1.0, %v1351
    %v1353 = vmul.f32 %v1350, %v1352
    %v1354 = vadd.f32 %v1350, %v1353
    %vm1355 = vweird.f32 %v1334
    %vm1356 = vweird.f32 %v1350
    %vm1357 = vmor %vm1355, %vm1356
    %v1358 = vsel %vm1357, %v1350, %v1354
    %v1359 = vand.u32 2147483647, %v1334
    %vm1360 = vcmp.eq.f32.partialorder %v1359, 8.507059e+37
    %v1361 = vand.u32 %v1334, 2147483648
    %v1362 = vor.u32 1.1754944e-38, %v1361
    %v1363 = vsel %vm1360, %v1362, %v1358
    %v1364 = vmul.f32 %v1328, %v1363
    %v1365 = vpack.c.bf16 %v1349, %v1349
    %v1366 = vpack.c.bf16 %v1364, %v1364
    %1367 = vrot.lane.b32.xlu0 %v1215, 88
    %v1368 = vpop.permute.xlu0 %1367
    %v1370 = vsel %vm309, %v1365, 0
    %v1373 = vsel %vm412, %v1368, 0
    %1375 = vmatpush.bf16.msra.mxu0 0
    %1376 = vmatpush.bf16.msra.mxu0 0
    %1377 = vmatpush.bf16.msra.mxu0 0
    %1378 = vmatpush.bf16.msra.mxu0 0
    %1379 = vmatpush.bf16.msra.mxu0 0
    %1380 = vmatpush.bf16.msra.mxu0 0
    %1381 = vmatpush.bf16.msra.mxu0 0
    %1382 = vmatpush.bf16.msra.mxu0 %v1373
    %1383 = vmatmul.bf16.gmra.mxu0 %v1370
    %v1384 = vpop.f32.mrf.mxu0
    %v1385 = vadd.f32 0.0, %v1384
    %v1386 = vpop.f32.mrf.mxu0
    %1387 = vdwg.mxu0
    %1388 = vrot.lane.b32.xlu0 %v1239, 88
    %v1389 = vpop.permute.xlu0 %1388
    %v1391 = vsel %vm309, %v1366, 0
    %v1394 = vsel %vm412, %v1389, 0
    %1396 = vmatpush.bf16.msra.mxu0 0
    %1397 = vmatpush.bf16.msra.mxu0 0
    %1398 = vmatpush.bf16.msra.mxu0 0
    %1399 = vmatpush.bf16.msra.mxu0 0
    %1400 = vmatpush.bf16.msra.mxu0 0
    %1401 = vmatpush.bf16.msra.mxu0 0
    %1402 = vmatpush.bf16.msra.mxu0 0
    %1403 = vmatpush.bf16.msra.mxu0 %v1394
    %1404 = vmatmul.bf16.gmra.mxu0 %v1391
    %v1405 = vpop.f32.mrf.mxu0
    %v1406 = vadd.f32 0.0, %v1405
    %v1407 = vpop.f32.mrf.mxu0
    %1408 = vdwg.mxu0
    %v1409 = vpack.c.bf16 %v1115, %v1115
    %v1410 = vpack.c.bf16 %v1406, %v1385
    %v1412 = vsel %vm309, %v1410, 0
    %v1415 = vsel %vm412, %v1409, 0
    %1417 = vmatpush.bf16.msra.mxu0 0
    %1418 = vmatpush.bf16.msra.mxu0 0
    %1419 = vmatpush.bf16.msra.mxu0 0
    %1420 = vmatpush.bf16.msra.mxu0 0
    %1421 = vmatpush.bf16.msra.mxu0 0
    %1422 = vmatpush.bf16.msra.mxu0 0
    %1423 = vmatpush.bf16.msra.mxu0 0
    %1424 = vmatpush.bf16.msra.mxu0 %v1415
    %1425 = vmatmul.bf16.gmra.mxu0 %v1412
    %v1426 = vpop.f32.mrf.mxu0
    %v1427 = vadd.f32 0.0, %v1426
    %v1428 = vpop.f32.mrf.mxu0
    %v1429 = vadd.f32 0.0, %v1428
    %1430 = vdwg.mxu0
    %v1432 = vsel %vm309, %v1262, 0
    %v1435 = vsel %vm412, %v1261, 0
    %1437 = vmatpush.bf16.msra.mxu0 0
    %1438 = vmatpush.bf16.msra.mxu0 0
    %1439 = vmatpush.bf16.msra.mxu0 0
    %1440 = vmatpush.bf16.msra.mxu0 0
    %1441 = vmatpush.bf16.msra.mxu0 0
    %1442 = vmatpush.bf16.msra.mxu0 0
    %1443 = vmatpush.bf16.msra.mxu0 0
    %1444 = vmatpush.bf16.msra.mxu0 %v1435
    %1445 = vmatmul.bf16.gmra.mxu0 %v1432
    %v1446 = vpop.f32.mrf.mxu0
    %v1447 = vadd.f32 %v1427, %v1446
    %v1448 = vpop.f32.mrf.mxu0
    %v1449 = vadd.f32 %v1429, %v1448
    %1450 = vdwg.mxu0
    %1451 = vrot.lane.b32.xlu0 %v1265, 112
    %v1452 = vpop.permute.xlu0 %1451
    %1453 = vrot.lane.b32.xlu0 %v1215, 112
    %v1454 = vpop.permute.xlu0 %1453
    %v1456 = vsel %vm309, %v1452, 0
    %v1459 = vsel %vm309, %v1454, 0
    %1461 = vmatpush.bf16.xpose.msra.mxu0 0
    %1462 = vmatpush.bf16.xpose.msra.mxu0 0
    %1463 = vmatpush.bf16.xpose.msra.mxu0 0
    %1464 = vmatpush.bf16.xpose.msra.mxu0 0
    %1465 = vmatpush.bf16.xpose.msra.mxu0 0
    %1466 = vmatpush.bf16.xpose.msra.mxu0 0
    %1467 = vmatpush.bf16.xpose.msra.mxu0 0
    %1468 = vmatpush.bf16.xpose.msra.mxu0 %v1459
    %1469 = vmatmul.bf16.gmra.mxu0 %v1456
    %v1470 = vpop.f32.mrf.mxu0
    %v1471 = vadd.f32 0.0, %v1470
    %v1472 = vpop.f32.mrf.mxu0
    %1473 = vdwg.mxu0
    %1474 = vrot.lane.b32.xlu0 %v1291, 112
    %v1475 = vpop.permute.xlu0 %1474
    %1476 = vrot.lane.b32.xlu0 %v1239, 112
    %v1477 = vpop.permute.xlu0 %1476
    %v1479 = vsel %vm309, %v1475, 0
    %v1482 = vsel %vm309, %v1477, 0
    %1484 = vmatpush.bf16.xpose.msra.mxu0 0
    %1485 = vmatpush.bf16.xpose.msra.mxu0 0
    %1486 = vmatpush.bf16.xpose.msra.mxu0 0
    %1487 = vmatpush.bf16.xpose.msra.mxu0 0
    %1488 = vmatpush.bf16.xpose.msra.mxu0 0
    %1489 = vmatpush.bf16.xpose.msra.mxu0 0
    %1490 = vmatpush.bf16.xpose.msra.mxu0 0
    %1491 = vmatpush.bf16.xpose.msra.mxu0 %v1482
    %1492 = vmatmul.bf16.gmra.mxu0 %v1479
    %v1493 = vpop.f32.mrf.mxu0
    %v1494 = vadd.f32 0.0, %v1493
    %v1495 = vpop.f32.mrf.mxu0
    %1496 = vdwg.mxu0
    %v1497 = vmul.f32 %v1471, 0.35355338
    %v1498 = vmul.f32 %v1494, 0.35355338
    %v1499 = vsel %vm309, %v1497, -inf
    %1500 = vmax.xlane.f32.xlu0 %v1499
    %v1501 = vpop.xlane.xlu0 %1500
    %v1502 = vsel %vm309, %v1498, -inf
    %1503 = vmax.xlane.f32.xlu0 %v1502
    %v1504 = vpop.xlane.xlu0 %1503
    %v1505 = vsub.f32 %v1497, %v1501
    %v1506 = vsub.f32 %v1498, %v1504
    %v1507 = vmul.f32 %v1505, 1.442695
    %v1508 = vpow.pop %v1507
    %v1509 = vmul.f32 %v1506, 1.442695
    %v1510 = vpow.pop %v1509
    %v1511 = vsel %vm309, %v1508, 0.0
    %1512 = vadd.xlane.f32.xlu0 %v1511
    %v1513 = vpop.xlane.xlu0 %1512
    %v1514 = vsel %vm309, %v1510, 0.0
    %1515 = vadd.xlane.f32.xlu0 %v1514
    %v1516 = vpop.xlane.xlu0 %1515
    %v1517 = vrcp.pop %v1513
    %v1518 = vmul.f32 %v1513, %v1517
    %v1519 = vsub.f32 1.0, %v1518
    %v1520 = vmul.f32 %v1517, %v1519
    %v1521 = vadd.f32 %v1517, %v1520
    %vm1522 = vweird.f32 %v1513
    %vm1523 = vweird.f32 %v1517
    %vm1524 = vmor %vm1522, %vm1523
    %v1525 = vsel %vm1524, %v1517, %v1521
    %v1526 = vand.u32 2147483647, %v1513
    %vm1527 = vcmp.eq.f32.partialorder %v1526, 8.507059e+37
    %v1528 = vand.u32 %v1513, 2147483648
    %v1529 = vor.u32 1.1754944e-38, %v1528
    %v1530 = vsel %vm1527, %v1529, %v1525
    %v1531 = vmul.f32 %v1508, %v1530
    %v1532 = vrcp.pop %v1516
    %v1533 = vmul.f32 %v1516, %v1532
    %v1534 = vsub.f32 1.0, %v1533
    %v1535 = vmul.f32 %v1532, %v1534
    %v1536 = vadd.f32 %v1532, %v1535
    %vm1537 = vweird.f32 %v1516
    %vm1538 = vweird.f32 %v1532
    %vm1539 = vmor %vm1537, %vm1538
    %v1540 = vsel %vm1539, %v1532, %v1536
    %v1541 = vand.u32 2147483647, %v1516
    %vm1542 = vcmp.eq.f32.partialorder %v1541, 8.507059e+37
    %v1543 = vand.u32 %v1516, 2147483648
    %v1544 = vor.u32 1.1754944e-38, %v1543
    %v1545 = vsel %vm1542, %v1544, %v1540
    %v1546 = vmul.f32 %v1510, %v1545
    %v1547 = vpack.c.bf16 %v1531, %v1531
    %v1548 = vpack.c.bf16 %v1546, %v1546
    %1549 = vrot.lane.b32.xlu0 %v1215, 80
    %v1550 = vpop.permute.xlu0 %1549
    %v1552 = vsel %vm309, %v1547, 0
    %v1555 = vsel %vm412, %v1550, 0
    %1557 = vmatpush.bf16.msra.mxu0 0
    %1558 = vmatpush.bf16.msra.mxu0 0
    %1559 = vmatpush.bf16.msra.mxu0 0
    %1560 = vmatpush.bf16.msra.mxu0 0
    %1561 = vmatpush.bf16.msra.mxu0 0
    %1562 = vmatpush.bf16.msra.mxu0 0
    %1563 = vmatpush.bf16.msra.mxu0 0
    %1564 = vmatpush.bf16.msra.mxu0 %v1555
    %1565 = vmatmul.bf16.gmra.mxu0 %v1552
    %v1566 = vpop.f32.mrf.mxu0
    %v1567 = vadd.f32 0.0, %v1566
    %v1568 = vpop.f32.mrf.mxu0
    %1569 = vdwg.mxu0
    %1570 = vrot.lane.b32.xlu0 %v1239, 80
    %v1571 = vpop.permute.xlu0 %1570
    %v1573 = vsel %vm309, %v1548, 0
    %v1576 = vsel %vm412, %v1571, 0
    %1578 = vmatpush.bf16.msra.mxu0 0
    %1579 = vmatpush.bf16.msra.mxu0 0
    %1580 = vmatpush.bf16.msra.mxu0 0
    %1581 = vmatpush.bf16.msra.mxu0 0
    %1582 = vmatpush.bf16.msra.mxu0 0
    %1583 = vmatpush.bf16.msra.mxu0 0
    %1584 = vmatpush.bf16.msra.mxu0 0
    %1585 = vmatpush.bf16.msra.mxu0 %v1576
    %1586 = vmatmul.bf16.gmra.mxu0 %v1573
    %v1587 = vpop.f32.mrf.mxu0
    %v1588 = vadd.f32 0.0, %v1587
    %v1589 = vpop.f32.mrf.mxu0
    %1590 = vdwg.mxu0
    %v1591 = vpack.c.bf16 %v1116, %v1116
    %v1592 = vpack.c.bf16 %v1588, %v1567
    %v1594 = vsel %vm309, %v1592, 0
    %v1597 = vsel %vm412, %v1591, 0
    %1599 = vmatpush.bf16.msra.mxu0 0
    %1600 = vmatpush.bf16.msra.mxu0 0
    %1601 = vmatpush.bf16.msra.mxu0 0
    %1602 = vmatpush.bf16.msra.mxu0 0
    %1603 = vmatpush.bf16.msra.mxu0 0
    %1604 = vmatpush.bf16.msra.mxu0 0
    %1605 = vmatpush.bf16.msra.mxu0 0
    %1606 = vmatpush.bf16.msra.mxu0 %v1597
    %1607 = vmatmul.bf16.gmra.mxu0 %v1594
    %v1608 = vpop.f32.mrf.mxu0
    %v1609 = vadd.f32 0.0, %v1608
    %v1610 = vpop.f32.mrf.mxu0
    %v1611 = vadd.f32 0.0, %v1610
    %1612 = vdwg.mxu0
    %v1613 = vadd.f32 %v1447, %v1609
    %v1614 = vadd.f32 %v1449, %v1611
    %1615 = vrot.lane.b32.xlu0 %v1265, 104
    %v1616 = vpop.permute.xlu0 %1615
    %1617 = vrot.lane.b32.xlu0 %v1215, 104
    %v1618 = vpop.permute.xlu0 %1617
    %v1620 = vsel %vm309, %v1616, 0
    %v1623 = vsel %vm309, %v1618, 0
    %1625 = vmatpush.bf16.xpose.msra.mxu0 0
    %1626 = vmatpush.bf16.xpose.msra.mxu0 0
    %1627 = vmatpush.bf16.xpose.msra.mxu0 0
    %1628 = vmatpush.bf16.xpose.msra.mxu0 0
    %1629 = vmatpush.bf16.xpose.msra.mxu0 0
    %1630 = vmatpush.bf16.xpose.msra.mxu0 0
    %1631 = vmatpush.bf16.xpose.msra.mxu0 0
    %1632 = vmatpush.bf16.xpose.msra.mxu0 %v1623
    %1633 = vmatmul.bf16.gmra.mxu0 %v1620
    %v1634 = vpop.f32.mrf.mxu0
    %v1635 = vadd.f32 0.0, %v1634
    %v1636 = vpop.f32.mrf.mxu0
    %1637 = vdwg.mxu0
    %1638 = vrot.lane.b32.xlu0 %v1291, 104
    %v1639 = vpop.permute.xlu0 %1638
    %1640 = vrot.lane.b32.xlu0 %v1239, 104
    %v1641 = vpop.permute.xlu0 %1640
    %v1643 = vsel %vm309, %v1639, 0
    %v1646 = vsel %vm309, %v1641, 0
    %1648 = vmatpush.bf16.xpose.msra.mxu0 0
    %1649 = vmatpush.bf16.xpose.msra.mxu0 0
    %1650 = vmatpush.bf16.xpose.msra.mxu0 0
    %1651 = vmatpush.bf16.xpose.msra.mxu0 0
    %1652 = vmatpush.bf16.xpose.msra.mxu0 0
    %1653 = vmatpush.bf16.xpose.msra.mxu0 0
    %1654 = vmatpush.bf16.xpose.msra.mxu0 0
    %1655 = vmatpush.bf16.xpose.msra.mxu0 %v1646
    %1656 = vmatmul.bf16.gmra.mxu0 %v1643
    %v1657 = vpop.f32.mrf.mxu0
    %v1658 = vadd.f32 0.0, %v1657
    %v1659 = vpop.f32.mrf.mxu0
    %1660 = vdwg.mxu0
    %v1661 = vmul.f32 %v1635, 0.35355338
    %v1662 = vmul.f32 %v1658, 0.35355338
    %v1663 = vsel %vm309, %v1661, -inf
    %1664 = vmax.xlane.f32.xlu0 %v1663
    %v1665 = vpop.xlane.xlu0 %1664
    %v1666 = vsel %vm309, %v1662, -inf
    %1667 = vmax.xlane.f32.xlu0 %v1666
    %v1668 = vpop.xlane.xlu0 %1667
    %v1669 = vsub.f32 %v1661, %v1665
    %v1670 = vsub.f32 %v1662, %v1668
    %v1671 = vmul.f32 %v1669, 1.442695
    %v1672 = vpow.pop %v1671
    %v1673 = vmul.f32 %v1670, 1.442695
    %v1674 = vpow.pop %v1673
    %v1675 = vsel %vm309, %v1672, 0.0
    %1676 = vadd.xlane.f32.xlu0 %v1675
    %v1677 = vpop.xlane.xlu0 %1676
    %v1678 = vsel %vm309, %v1674, 0.0
    %1679 = vadd.xlane.f32.xlu0 %v1678
    %v1680 = vpop.xlane.xlu0 %1679
    %v1681 = vrcp.pop %v1677
    %v1682 = vmul.f32 %v1677, %v1681
    %v1683 = vsub.f32 1.0, %v1682
    %v1684 = vmul.f32 %v1681, %v1683
    %v1685 = vadd.f32 %v1681, %v1684
    %vm1686 = vweird.f32 %v1677
    %vm1687 = vweird.f32 %v1681
    %vm1688 = vmor %vm1686, %vm1687
    %v1689 = vsel %vm1688, %v1681, %v1685
    %v1690 = vand.u32 2147483647, %v1677
    %vm1691 = vcmp.eq.f32.partialorder %v1690, 8.507059e+37
    %v1692 = vand.u32 %v1677, 2147483648
    %v1693 = vor.u32 1.1754944e-38, %v1692
    %v1694 = vsel %vm1691, %v1693, %v1689
    %v1695 = vmul.f32 %v1672, %v1694
    %v1696 = vrcp.pop %v1680
    %v1697 = vmul.f32 %v1680, %v1696
    %v1698 = vsub.f32 1.0, %v1697
    %v1699 = vmul.f32 %v1696, %v1698
    %v1700 = vadd.f32 %v1696, %v1699
    %vm1701 = vweird.f32 %v1680
    %vm1702 = vweird.f32 %v1696
    %vm1703 = vmor %vm1701, %vm1702
    %v1704 = vsel %vm1703, %v1696, %v1700
    %v1705 = vand.u32 2147483647, %v1680
    %vm1706 = vcmp.eq.f32.partialorder %v1705, 8.507059e+37
    %v1707 = vand.u32 %v1680, 2147483648
    %v1708 = vor.u32 1.1754944e-38, %v1707
    %v1709 = vsel %vm1706, %v1708, %v1704
    %v1710 = vmul.f32 %v1674, %v1709
    %v1711 = vpack.c.bf16 %v1695, %v1695
    %v1712 = vpack.c.bf16 %v1710, %v1710
    %1713 = vrot.lane.b32.xlu0 %v1215, 72
    %v1714 = vpop.permute.xlu0 %1713
    %v1716 = vsel %vm309, %v1711, 0
    %v1719 = vsel %vm412, %v1714, 0
    %1721 = vmatpush.bf16.msra.mxu0 0
    %1722 = vmatpush.bf16.msra.mxu0 0
    %1723 = vmatpush.bf16.msra.mxu0 0
    %1724 = vmatpush.bf16.msra.mxu0 0
    %1725 = vmatpush.bf16.msra.mxu0 0
    %1726 = vmatpush.bf16.msra.mxu0 0
    %1727 = vmatpush.bf16.msra.mxu0 0
    %1728 = vmatpush.bf16.msra.mxu0 %v1719
    %1729 = vmatmul.bf16.gmra.mxu0 %v1716
    %v1730 = vpop.f32.mrf.mxu0
    %v1731 = vadd.f32 0.0, %v1730
    %v1732 = vpop.f32.mrf.mxu0
    %1733 = vdwg.mxu0
    %1734 = vrot.lane.b32.xlu0 %v1239, 72
    %v1735 = vpop.permute.xlu0 %1734
    %v1737 = vsel %vm309, %v1712, 0
    %v1740 = vsel %vm412, %v1735, 0
    %1742 = vmatpush.bf16.msra.mxu0 0
    %1743 = vmatpush.bf16.msra.mxu0 0
    %1744 = vmatpush.bf16.msra.mxu0 0
    %1745 = vmatpush.bf16.msra.mxu0 0
    %1746 = vmatpush.bf16.msra.mxu0 0
    %1747 = vmatpush.bf16.msra.mxu0 0
    %1748 = vmatpush.bf16.msra.mxu0 0
    %1749 = vmatpush.bf16.msra.mxu0 %v1740
    %1750 = vmatmul.bf16.gmra.mxu0 %v1737
    %v1751 = vpop.f32.mrf.mxu0
    %v1752 = vadd.f32 0.0, %v1751
    %v1753 = vpop.f32.mrf.mxu0
    %1754 = vdwg.mxu0
    %v1755 = vpack.c.bf16 %v1117, %v1117
    %v1756 = vpack.c.bf16 %v1752, %v1731
    %v1758 = vsel %vm309, %v1756, 0
    %v1761 = vsel %vm412, %v1755, 0
    %1763 = vmatpush.bf16.msra.mxu0 0
    %1764 = vmatpush.bf16.msra.mxu0 0
    %1765 = vmatpush.bf16.msra.mxu0 0
    %1766 = vmatpush.bf16.msra.mxu0 0
    %1767 = vmatpush.bf16.msra.mxu0 0
    %1768 = vmatpush.bf16.msra.mxu0 0
    %1769 = vmatpush.bf16.msra.mxu0 0
    %1770 = vmatpush.bf16.msra.mxu0 %v1761
    %1771 = vmatmul.bf16.gmra.mxu0 %v1758
    %v1772 = vpop.f32.mrf.mxu0
    %v1773 = vadd.f32 0.0, %v1772
    %v1774 = vpop.f32.mrf.mxu0
    %v1775 = vadd.f32 0.0, %v1774
    %1776 = vdwg.mxu0
    %v1777 = vadd.f32 %v1613, %v1773
    %v1778 = vadd.f32 %v1614, %v1775
    %v1780 = vperm.slane %v1118, 0
    %v1782 = vadd.f32 %v1777, %v1780
    %v1783 = vadd.f32 %v1778, %v1780
    %v1784 = vadd.f32 %v1036, %v1782
    %v1785 = vadd.f32 %v1037, %v1783
    %v1786 = vld [vmem:[#allocation13] sm:$0x1]
    %v1787 = vld [vmem:[#allocation15] sm:$0x1]
    %v1788 = vsel %vm273, %v1784, 0.0
    %1789 = vadd.xlane.f32.xlu0 %v1788
    %v1790 = vpop.xlane.xlu0 %1789
    %v1791 = vsel %vm273, %v1785, 0.0
    %1792 = vadd.xlane.f32.xlu0 %v1791
    %v1793 = vpop.xlane.xlu0 %1792
    %v1794 = vmul.f32 %v1790, %v989
    %v1795 = vmul.f32 %v1793, %v989
    %v1796 = vsub.f32 %v1784, %v1794
    %v1797 = vsub.f32 %v1785, %v1795
    %v1798 = vmul.f32 %v1796, %v1796
    %v1799 = vmul.f32 %v1797, %v1797
    %v1800 = vsel %vm273, %v1798, 0.0
    %1801 = vadd.xlane.f32.xlu0 %v1800
    %v1802 = vpop.xlane.xlu0 %1801
    %v1803 = vsel %vm273, %v1799, 0.0
    %1804 = vadd.xlane.f32.xlu0 %v1803
    %v1805 = vpop.xlane.xlu0 %1804
    %v1806 = vmul.f32 %v1802, %v989
    %v1807 = vmul.f32 %v1805, %v989
    %v1808 = vadd.f32 %v1806, 1e-05
    %v1809 = vadd.f32 %v1807, 1e-05
    %v1810 = vrsqrt.pop %v1808
    %v1811 = vmul.f32 %v1810, %v1808
    %v1812 = vmul.f32 %v1811, %v1810
    %v1813 = vmul.f32 0.5, %v1812
    %v1814 = vsub.f32 1.5, %v1813
    %v1815 = vmul.f32 %v1810, %v1814
    %vm1816 = vweird.f32 %v1808
    %vm1817 = vweird.f32 %v1810
    %vm1818 = vmor %vm1816, %vm1817
    %v1819 = vsel %vm1818, %v1810, %v1815
    %v1820 = vrsqrt.pop %v1809
    %v1821 = vmul.f32 %v1820, %v1809
    %v1822 = vmul.f32 %v1821, %v1820
    %v1823 = vmul.f32 0.5, %v1822
    %v1824 = vsub.f32 1.5, %v1823
    %v1825 = vmul.f32 %v1820, %v1824
    %vm1826 = vweird.f32 %v1809
    %vm1827 = vweird.f32 %v1820
    %vm1828 = vmor %vm1826, %vm1827
    %v1829 = vsel %vm1828, %v1820, %v1825
    %v1830 = vmul.f32 %v1796, %v1819
    %v1831 = vmul.f32 %v1797, %v1829
    %v1833 = vperm.slane %v1786, 0
    %v1835 = vmul.f32 %v1830, %v1833
    %v1836 = vmul.f32 %v1831, %v1833
    %v1838 = vperm.slane %v1787, 0
    %v1840 = vadd.f32 %v1835, %v1838
    %v1841 = vadd.f32 %v1836, %v1838
    %v1842 = vpack.c.bf16 %v1841, %v1840
    %v1843 = vld [vmem:[%s16] sm:$0xf]
    %v1844 = vld [vmem:[%s16 + $0x4] sm:$0xf]
    %v1845 = vld [vmem:[%s16 + $0x8] sm:$0xf]
    %v1846 = vld [vmem:[%s16 + $0xc] sm:$0xf]
    %v1847 = vld [vmem:[#allocation16] sm:$0x1]
    %v1849 = vperm.slane %v1847, 0
    %v1855 = vunpack.c.l.b16 %v1843
    %v1856 = vunpack.c.l.b16 %v1844
    %v1857 = vunpack.c.l.b16 %v1845
    %v1858 = vunpack.c.l.b16 %v1846
    %v1859 = vpack.c.b16 %v1856, %v1855
    %v1860 = vpack.c.b16 %v1858, %v1857
    %v1864 = vsel %vm273, %v1842, 0
    %1866 = vmatpush.bf16.msra.mxu0 0
    %1867 = vmatpush.bf16.msra.mxu0 0
    %1868 = vmatpush.bf16.msra.mxu0 0
    %1869 = vmatpush.bf16.msra.mxu0 0
    %1870 = vmatpush.bf16.msra.mxu0 0
    %1871 = vmatpush.bf16.msra.mxu0 0
    %1872 = vmatpush.bf16.msra.mxu0 %v1860
    %1873 = vmatpush.bf16.msra.mxu0 %v1859
    %1874 = vmatmul.bf16.gmra.mxu0 %v1864
    %v1875 = vpop.f32.mrf.mxu0
    %v1876 = vadd.f32 %v1849, %v1875
    %v1877 = vpop.f32.mrf.mxu0
    %v1878 = vadd.f32 %v1849, %v1877
    %1879 = vdwg.mxu0
    %v1880 = vmax.f32 %v1876, 0.0
    %v1881 = vmax.f32 %v1878, 0.0
    %v1882 = vpack.c.bf16 %v1881, %v1880
    %v1883 = vld [vmem:[%s18] sm:$0xf]
    %v1884 = vld [vmem:[%s18 + $0x4] sm:$0xf]
    %v1885 = vld [vmem:[%s18 + $0x8] sm:$0xf]
    %v1886 = vld [vmem:[%s18 + $0xc] sm:$0xf]
    %v1887 = vld [vmem:[%s18 + $0x10] sm:$0xf]
    %v1888 = vld [vmem:[%s18 + $0x14] sm:$0xf]
    %v1889 = vld [vmem:[%s18 + $0x18] sm:$0xf]
    %v1890 = vld [vmem:[%s18 + $0x1c] sm:$0xf]
    %v1891 = vld [vmem:[#allocation18] sm:$0x1]
    %v1893 = vperm.slane %v1891, 0
    %v1903 = vunpack.c.l.b16 %v1883
    %v1904 = vunpack.c.l.b16 %v1884
    %v1905 = vunpack.c.l.b16 %v1885
    %v1906 = vunpack.c.l.b16 %v1886
    %v1907 = vunpack.c.l.b16 %v1887
    %v1908 = vunpack.c.l.b16 %v1888
    %v1909 = vunpack.c.l.b16 %v1889
    %v1910 = vunpack.c.l.b16 %v1890
    %v1911 = vpack.c.b16 %v1904, %v1903
    %v1912 = vpack.c.b16 %v1906, %v1905
    %v1913 = vpack.c.b16 %v1908, %v1907
    %v1914 = vpack.c.b16 %v1910, %v1909
    %vm1919 = vcmask 523264
    %v1921 = vsel %vm1919, %v1882, 0
    %1923 = vmatpush.bf16.msra.mxu0 0
    %1924 = vmatpush.bf16.msra.mxu0 0
    %1925 = vmatpush.bf16.msra.mxu0 0
    %1926 = vmatpush.bf16.msra.mxu0 0
    %1927 = vmatpush.bf16.msra.mxu0 %v1914
    %1928 = vmatpush.bf16.msra.mxu0 %v1913
    %1929 = vmatpush.bf16.msra.mxu0 %v1912
    %1930 = vmatpush.bf16.msra.mxu0 %v1911
    %1931 = vmatmul.bf16.gmra.mxu0 %v1921
    %v1932 = vpop.f32.mrf.mxu0
    %v1933 = vadd.f32 %v1893, %v1932
    %v1934 = vpop.f32.mrf.mxu0
    %v1935 = vadd.f32 %v1893, %v1934
    %1936 = vdwg.mxu0
    %v1937 = vadd.f32 %v1840, %v1933
    %v1938 = vadd.f32 %v1841, %v1935
    %v1939 = vld [vmem:[#allocation19] sm:$0x1]
    %v1940 = vld [vmem:[#allocation21] sm:$0x1]
    %v1941 = vsel %vm273, %v1937, 0.0
    %1942 = vadd.xlane.f32.xlu0 %v1941
    %v1943 = vpop.xlane.xlu0 %1942
    %v1944 = vsel %vm273, %v1938, 0.0
    %1945 = vadd.xlane.f32.xlu0 %v1944
    %v1946 = vpop.xlane.xlu0 %1945
    %v1947 = vmul.f32 %v1943, %v989
    %v1948 = vmul.f32 %v1946, %v989
    %v1949 = vsub.f32 %v1937, %v1947
    %v1950 = vsub.f32 %v1938, %v1948
    %v1951 = vmul.f32 %v1949, %v1949
    %v1952 = vmul.f32 %v1950, %v1950
    %v1953 = vsel %vm273, %v1951, 0.0
    %1954 = vadd.xlane.f32.xlu0 %v1953
    %v1955 = vpop.xlane.xlu0 %1954
    %v1956 = vsel %vm273, %v1952, 0.0
    %1957 = vadd.xlane.f32.xlu0 %v1956
    %v1958 = vpop.xlane.xlu0 %1957
    %v1959 = vmul.f32 %v1955, %v989
    %v1960 = vmul.f32 %v1958, %v989
    %v1961 = vadd.f32 %v1959, 1e-05
    %v1962 = vadd.f32 %v1960, 1e-05
    %v1963 = vrsqrt.pop %v1961
    %v1964 = vmul.f32 %v1963, %v1961
    %v1965 = vmul.f32 %v1964, %v1963
    %v1966 = vmul.f32 0.5, %v1965
    %v1967 = vsub.f32 1.5, %v1966
    %v1968 = vmul.f32 %v1963, %v1967
    %vm1969 = vweird.f32 %v1961
    %vm1970 = vweird.f32 %v1963
    %vm1971 = vmor %vm1969, %vm1970
    %v1972 = vsel %vm1971, %v1963, %v1968
    %v1973 = vrsqrt.pop %v1962
    %v1974 = vmul.f32 %v1973, %v1962
    %v1975 = vmul.f32 %v1974, %v1973
    %v1976 = vmul.f32 0.5, %v1975
    %v1977 = vsub.f32 1.5, %v1976
    %v1978 = vmul.f32 %v1973, %v1977
    %vm1979 = vweird.f32 %v1962
    %vm1980 = vweird.f32 %v1973
    %vm1981 = vmor %vm1979, %vm1980
    %v1982 = vsel %vm1981, %v1973, %v1978
    %v1983 = vmul.f32 %v1949, %v1972
    %v1984 = vmul.f32 %v1950, %v1982
    %v1986 = vperm.slane %v1939, 0
    %v1988 = vmul.f32 %v1983, %v1986
    %v1989 = vmul.f32 %v1984, %v1986
    %v1991 = vperm.slane %v1940, 0
    %v1993 = vadd.f32 %v1988, %v1991
    %v1994 = vadd.f32 %v1989, %v1991
    %1995 = vst.msk [vmem:[%s22] sm:$0xff] %vm273, %v1993
    %1996 = vst.msk [vmem:[%s22 + $0x8] sm:$0xff] %vm273, %v1994
    // Predicated region
    $region142: #{forward.10} parent=1 // pred_check
      _
    $region143: #{forward.10} parent=1 // pred_check_branch
      %1998 = sbr.rel (0) target = $region145
    $region144: #{forward.10} parent=1 // pred_region
      _
    $region145: #{forward.10} parent=1 // pred_fallthru
      _
    // Predicated region
    $region146: #{forward.10} parent=1 // pred_check
      _
    $region147: #{forward.10} parent=1 // pred_check_branch
      %2000 = sbr.rel (0) target = $region149
    $region148: #{forward.10} parent=1 // pred_region
      _
    $region149: #{forward.10} parent=1 // pred_fallthru
      _
    %2001 = vsyncpa [#allocation3], 1
    %2002 = vsyncpa [#allocation5], 1
    %2003 = vsyncpa [#allocation8], 1
    %2004 = vsyncpa [#allocation11], 1
    %2005 = vsyncpa [#allocation14], 1
    %2006 = vsyncpa [#allocation17], 1
    %2007 = vsyncpa [#allocation20], 1

</llo_original>
